<compile_context>
chip_gen: v6e
topology: v6e:2x2x1
jax: 0.10.0
libtpu: 0.0.40
codegen_flags: <defaults>
</compile_context>

<pallas_src>
import jax
import jax.numpy as jnp
import numpy as np
from jax.experimental import pallas as pl
from jax.experimental.pallas import tpu as pltpu

IN_FEATURES = 1024
HID = IN_FEATURES // 2          # 512
OUT_FEATURES = 1024


def _custom_clip_kernel(scale_ref,
                        img_ref, txt_ref,
                        wi1_ref, wi2_ref, wi3_ref,
                        wt1_ref, wt2_ref, wt3_ref,
                        lpi_ref):
    f32 = jnp.float32
    bf16 = jnp.bfloat16

    def mm(x_bf16, w_ref):
        # bf16 x bf16 MXU matmul with f32 accumulation.
        return jnp.dot(x_bf16, w_ref[...], preferred_element_type=f32)

    # --- image bottleneck: Linear -> ReLU -> Linear -> ReLU -> Linear (no bias)
    # Inputs arrive bf16; intermediates are stored bf16 (activation math in
    # f32, result cast once), matching the module's autocast(half) bottleneck.
    h = jnp.maximum(mm(img_ref[...], wi1_ref), 0.0).astype(bf16)
    h = jnp.maximum(mm(h, wi2_ref), 0.0).astype(bf16)
    img = mm(h, wi3_ref)                       # f32 for BatchNorm

    # --- text bottleneck: Linear -> Sigmoid -> Linear -> Sigmoid -> Linear
    g = jax.nn.sigmoid(mm(txt_ref[...], wt1_ref)).astype(bf16)
    g = jax.nn.sigmoid(mm(g, wt2_ref)).astype(bf16)
    txt = mm(g, wt3_ref)                       # f32 for BatchNorm

    # --- BatchNorm1d(track_running_stats=False, affine=False):
    # per-feature mean/std over the batch dim; std uses Bessel correction
    # (N-1), matching torch.std's default (unbiased=True) used by the custom
    # BN; no epsilon by design (same divide-by-zero behavior as the module).
    # Precondition: batch >= 2 and nonzero per-feature variance.
    # rsqrt lowers to the (otherwise idle) EUP slot.
    def batchnorm(x):
        n = x.shape[0]
        mean = jnp.mean(x, axis=0, keepdims=True)
        var = jnp.sum((x - mean) ** 2, axis=0, keepdims=True) * (1.0 / (n - 1))
        return (x - mean) * jax.lax.rsqrt(var)

    img = batchnorm(img)
    txt = batchnorm(txt)

    # --- row-wise L2 normalization; exp(logit_scale) is folded into the
    # image-side per-row factor so the [B, T] logits need no extra pass.
    scale = jnp.exp(scale_ref[0])
    img = img * (scale * jax.lax.rsqrt(jnp.sum(img * img, axis=-1, keepdims=True)))
    txt = txt * jax.lax.rsqrt(jnp.sum(txt * txt, axis=-1, keepdims=True))

    # --- logits_per_image = exp(logit_scale) * img_n @ txt_n.T (scale already
    # folded in).  bf16 MXU inputs, f32 accumulation.  logits_per_text is
    # exactly its transpose and is produced in the wrapper, not re-computed.
    lpi_ref[...] = jax.lax.dot_general(
        img.astype(jnp.bfloat16), txt.astype(jnp.bfloat16),
        (((1,), (1,)), ((), ())), preferred_element_type=f32)


def custom_clip_forward(img_feats, txt_feats, params, logit_scale):
    """img_feats: [B, 1024], txt_feats: [T, 1024] (CLIP encoder outputs).
    params: (wi1, wi2, wi3, wt1, wt2, wt3) with [in, out] layout (cast to bf16
    here).  logit_scale: shape-(1,) f32 holding log(1/0.07).
    Requires B >= 2 and T >= 2 (BatchNorm uses N-1).
    Returns (logits_per_image [B, T], logits_per_text [T, B])."""
    B = img_feats.shape[0]
    T = txt_feats.shape[0]
    params = tuple(w.astype(jnp.bfloat16) for w in params)
    # Activations are only ever used as bf16 MXU operands -> ship them bf16.
    img_bf16 = img_feats.astype(jnp.bfloat16)
    txt_bf16 = txt_feats.astype(jnp.bfloat16)

    vmem = pl.BlockSpec(memory_space=pltpu.MemorySpace.VMEM)
    smem = pl.BlockSpec(memory_space=pltpu.MemorySpace.SMEM)

    # Advisory cost hint: the call is small and DMA-bound; lets XLA overlap it
    # against the upstream encoder compute.
    bottleneck_flops = 2 * (IN_FEATURES * HID + HID * HID + HID * OUT_FEATURES)
    weight_bytes = 2 * 2 * (IN_FEATURES * HID + HID * HID + HID * OUT_FEATURES)
    cost = pl.CostEstimate(
        flops=(B + T) * bottleneck_flops + 2 * B * T * OUT_FEATURES,
        transcendentals=T * (HID + HID),                       # sigmoids
        bytes_accessed=weight_bytes + (B + T) * IN_FEATURES * 2 + B * T * 4,
    )

    lpi = pl.pallas_call(
        _custom_clip_kernel,
        out_shape=jax.ShapeDtypeStruct((B, T), jnp.float32),
        in_specs=[smem] + [vmem] * 8,
        out_specs=vmem,
        cost_estimate=cost,
        # Actual footprint: ~5.25 MiB bf16 weights + small activations/logits.
        # 16 MiB leaves scoped-VMEM headroom on every generation (v7x: 64 MiB
        # physical).
        compiler_params=pltpu.CompilerParams(vmem_limit_bytes=16 << 20),
    )(logit_scale, img_bf16, txt_bf16, *params)

    lpt = jnp.swapaxes(lpi, 0, 1)   # logits_per_text == logits_per_image.T
    return lpi, lpt


def _reference(img, txt, params, logit_scale):
    # Pure-JAX reference: f32 math with the same (bf16-quantized) weights and
    # bf16-quantized input activations.
    wi1, wi2, wi3, wt1, wt2, wt3 = [w.astype(jnp.float32) for w in params]
    img = img.astype(jnp.bfloat16).astype(jnp.float32)
    txt = txt.astype(jnp.bfloat16).astype(jnp.float32)
    h = jnp.maximum(img @ wi1, 0.0)
    h = jnp.maximum(h @ wi2, 0.0)
    i = h @ wi3
    g = jax.nn.sigmoid(txt @ wt1)
    g = jax.nn.sigmoid(g @ wt2)
    t = g @ wt3

    def bn(x):
        m = x.mean(axis=0, keepdims=True)
        v = ((x - m) ** 2).sum(axis=0, keepdims=True) / (x.shape[0] - 1)
        return (x - m) / jnp.sqrt(v)

    i = bn(i)
    t = bn(t)
    i = i / jnp.linalg.norm(i, axis=-1, keepdims=True)
    t = t / jnp.linalg.norm(t, axis=-1, keepdims=True)
    s = jnp.exp(logit_scale[0])
    lpi = s * (i @ t.T)
    return lpi, lpi.T


def _make_params(key):
    keys = jax.random.split(key, 6)
    shapes = [(IN_FEATURES, HID), (HID, HID), (HID, OUT_FEATURES),   # img bottleneck
              (IN_FEATURES, HID), (HID, HID), (HID, OUT_FEATURES)]   # txt bottleneck
    # Stored as bf16: halves the (dominant) weight DMA; MXU-native input dtype.
    return tuple(
        (jax.random.normal(k, s, dtype=jnp.float32) * (1.0 / np.sqrt(s[0])))
        .astype(jnp.bfloat16)
        for k, s in zip(keys, shapes))


if __name__ == "__main__":
    key = jax.random.PRNGKey(0)
    k_img, k_txt, k_w = jax.random.split(key, 3)

    B, T = 8, 128   # images x texts; T=128 keeps the [B, T] logits lane-dense
    img_feats = jax.random.normal(k_img, (B, IN_FEATURES), dtype=jnp.float32)
    txt_feats = jax.random.normal(k_txt, (T, IN_FEATURES), dtype=jnp.float32)
    params = _make_params(k_w)
    logit_scale = jnp.array([np.log(1.0 / 0.07)], dtype=jnp.float32)

    lpi, lpt = custom_clip_forward(img_feats, txt_feats, params, logit_scale)
    jax.block_until_ready((lpi, lpt))

    ref_lpi, ref_lpt = _reference(img_feats, txt_feats, params, logit_scale)
    # Kernel feeds bf16 activations to the MXU everywhere (mirroring the torch
    # module's autocast(half) bottlenecks); the f32 reference therefore drifts
    # by ~1e-2 on logits of O(1) magnitude.
    np.testing.assert_allclose(np.asarray(lpi), np.asarray(ref_lpi),
                               rtol=2e-2, atol=4e-2)
    np.testing.assert_allclose(np.asarray(lpt), np.asarray(ref_lpt),
                               rtol=2e-2, atol=4e-2)
    assert lpi.shape == (B, T) and lpt.shape == (T, B)

    print("KERNEL_OK")
</pallas_src>

<mosaic_0001>
module attributes {stable_mosaic.version = 11 : i64} {
  func.func @_custom_clip_kernel(%arg0: memref<1xf32, #tpu.memory_space<smem>>, %arg1: memref<8x1024xbf16, #tpu.memory_space<vmem>>, %arg2: memref<128x1024xbf16, #tpu.memory_space<vmem>>, %arg3: memref<1024x512xbf16, #tpu.memory_space<vmem>>, %arg4: memref<512x512xbf16, #tpu.memory_space<vmem>>, %arg5: memref<512x1024xbf16, #tpu.memory_space<vmem>>, %arg6: memref<1024x512xbf16, #tpu.memory_space<vmem>>, %arg7: memref<512x512xbf16, #tpu.memory_space<vmem>>, %arg8: memref<512x1024xbf16, #tpu.memory_space<vmem>>, %arg9: memref<8x128xf32, #tpu.memory_space<vmem>>) attributes {dimension_semantics = [], scalar_prefetch = 0 : i64, scratch_operands = 0 : i64, tpu.core_type = #tpu.core_type<tc>} {
    %c0 = arith.constant 0 : index
    %c0_0 = arith.constant 0 : index
    %0 = vector.load %arg1[%c0, %c0_0] : memref<8x1024xbf16, #tpu.memory_space<vmem>>, vector<8x1024xbf16>
    %c0_1 = arith.constant 0 : index
    %c0_2 = arith.constant 0 : index
    %1 = vector.load %arg3[%c0_1, %c0_2] : memref<1024x512xbf16, #tpu.memory_space<vmem>>, vector<1024x512xbf16>
    %cst = arith.constant dense<0.000000e+00> : vector<8x512xf32>
    %2 = tpu.matmul %0, %1, %cst {dimension_numbers = #tpu.dot_dimension_numbers<[1], [0], [0], [1], [0, 0, 1, 1], [], []>} : vector<8x1024xbf16>, vector<1024x512xbf16>, vector<8x512xf32> -> vector<8x512xf32>
    %cst_3 = arith.constant 0.000000e+00 : f32
    %3 = vector.broadcast %cst_3 : f32 to vector<8x512xf32>
    %4 = arith.maximumf %2, %3 : vector<8x512xf32>
    %5 = arith.truncf %4 : vector<8x512xf32> to vector<8x512xbf16>
    %c0_4 = arith.constant 0 : index
    %c0_5 = arith.constant 0 : index
    %6 = vector.load %arg4[%c0_4, %c0_5] : memref<512x512xbf16, #tpu.memory_space<vmem>>, vector<512x512xbf16>
    %cst_6 = arith.constant dense<0.000000e+00> : vector<8x512xf32>
    %7 = tpu.matmul %5, %6, %cst_6 {dimension_numbers = #tpu.dot_dimension_numbers<[1], [0], [0], [1], [0, 0, 1, 1], [], []>} : vector<8x512xbf16>, vector<512x512xbf16>, vector<8x512xf32> -> vector<8x512xf32>
    %cst_7 = arith.constant 0.000000e+00 : f32
    %8 = vector.broadcast %cst_7 : f32 to vector<8x512xf32>
    %9 = arith.maximumf %7, %8 : vector<8x512xf32>
    %10 = arith.truncf %9 : vector<8x512xf32> to vector<8x512xbf16>
    %c0_8 = arith.constant 0 : index
    %c0_9 = arith.constant 0 : index
    %11 = vector.load %arg5[%c0_8, %c0_9] : memref<512x1024xbf16, #tpu.memory_space<vmem>>, vector<512x1024xbf16>
    %cst_10 = arith.constant dense<0.000000e+00> : vector<8x1024xf32>
    %12 = tpu.matmul %10, %11, %cst_10 {dimension_numbers = #tpu.dot_dimension_numbers<[1], [0], [0], [1], [0, 0, 1, 1], [], []>} : vector<8x512xbf16>, vector<512x1024xbf16>, vector<8x1024xf32> -> vector<8x1024xf32>
    %c0_11 = arith.constant 0 : index
    %c0_12 = arith.constant 0 : index
    %13 = vector.load %arg2[%c0_11, %c0_12] : memref<128x1024xbf16, #tpu.memory_space<vmem>>, vector<128x1024xbf16>
    %c0_13 = arith.constant 0 : index
    %c0_14 = arith.constant 0 : index
    %14 = vector.load %arg6[%c0_13, %c0_14] : memref<1024x512xbf16, #tpu.memory_space<vmem>>, vector<1024x512xbf16>
    %cst_15 = arith.constant dense<0.000000e+00> : vector<128x512xf32>
    %15 = tpu.matmul %13, %14, %cst_15 {dimension_numbers = #tpu.dot_dimension_numbers<[1], [0], [0], [1], [0, 0, 1, 1], [], []>} : vector<128x1024xbf16>, vector<1024x512xbf16>, vector<128x512xf32> -> vector<128x512xf32>
    %16 = arith.negf %15 : vector<128x512xf32>
    %17 = math.exp %16 : vector<128x512xf32>
    %cst_16 = arith.constant 1.000000e+00 : f32
    %18 = vector.broadcast %cst_16 : f32 to vector<128x512xf32>
    %19 = arith.addf %18, %17 : vector<128x512xf32>
    %20 = arith.divf %18, %19 : vector<128x512xf32>
    %21 = arith.truncf %20 : vector<128x512xf32> to vector<128x512xbf16>
    %c0_17 = arith.constant 0 : index
    %c0_18 = arith.constant 0 : index
    %22 = vector.load %arg7[%c0_17, %c0_18] : memref<512x512xbf16, #tpu.memory_space<vmem>>, vector<512x512xbf16>
    %cst_19 = arith.constant dense<0.000000e+00> : vector<128x512xf32>
    %23 = tpu.matmul %21, %22, %cst_19 {dimension_numbers = #tpu.dot_dimension_numbers<[1], [0], [0], [1], [0, 0, 1, 1], [], []>} : vector<128x512xbf16>, vector<512x512xbf16>, vector<128x512xf32> -> vector<128x512xf32>
    %24 = arith.negf %23 : vector<128x512xf32>
    %25 = math.exp %24 : vector<128x512xf32>
    %cst_20 = arith.constant 1.000000e+00 : f32
    %26 = vector.broadcast %cst_20 : f32 to vector<128x512xf32>
    %27 = arith.addf %26, %25 : vector<128x512xf32>
    %28 = arith.divf %26, %27 : vector<128x512xf32>
    %29 = arith.truncf %28 : vector<128x512xf32> to vector<128x512xbf16>
    %c0_21 = arith.constant 0 : index
    %c0_22 = arith.constant 0 : index
    %30 = vector.load %arg8[%c0_21, %c0_22] : memref<512x1024xbf16, #tpu.memory_space<vmem>>, vector<512x1024xbf16>
    %cst_23 = arith.constant dense<0.000000e+00> : vector<128x1024xf32>
    %31 = tpu.matmul %29, %30, %cst_23 {dimension_numbers = #tpu.dot_dimension_numbers<[1], [0], [0], [1], [0, 0, 1, 1], [], []>} : vector<128x512xbf16>, vector<512x1024xbf16>, vector<128x1024xf32> -> vector<128x1024xf32>
    %cst_24 = arith.constant dense<0.000000e+00> : vector<1024xf32>
    %32 = vector.multi_reduction <add>, %12, %cst_24 [0] : vector<8x1024xf32> to vector<1024xf32>
    %33 = vector.shape_cast %32 : vector<1024xf32> to vector<1x1024xf32>
    %cst_25 = arith.constant 8.000000e+00 : f32
    %34 = vector.broadcast %cst_25 : f32 to vector<1x1024xf32>
    %35 = arith.divf %33, %34 : vector<1x1024xf32>
    %36 = vector.broadcast %35 : vector<1x1024xf32> to vector<8x1024xf32>
    %37 = arith.subf %12, %36 : vector<8x1024xf32>
    %38 = arith.mulf %37, %37 : vector<8x1024xf32>
    %cst_26 = arith.constant dense<0.000000e+00> : vector<1024xf32>
    %39 = vector.multi_reduction <add>, %38, %cst_26 [0] : vector<8x1024xf32> to vector<1024xf32>
    %40 = vector.shape_cast %39 : vector<1024xf32> to vector<1x1024xf32>
    %cst_27 = arith.constant 0.142857149 : f32
    %41 = vector.broadcast %cst_27 : f32 to vector<1x1024xf32>
    %42 = arith.mulf %40, %41 : vector<1x1024xf32>
    %43 = vector.broadcast %35 : vector<1x1024xf32> to vector<8x1024xf32>
    %44 = arith.subf %12, %43 : vector<8x1024xf32>
    %45 = math.rsqrt %42 : vector<1x1024xf32>
    %46 = vector.broadcast %45 : vector<1x1024xf32> to vector<8x1024xf32>
    %47 = arith.mulf %44, %46 : vector<8x1024xf32>
    %cst_28 = arith.constant dense<0.000000e+00> : vector<1024xf32>
    %48 = vector.multi_reduction <add>, %31, %cst_28 [0] : vector<128x1024xf32> to vector<1024xf32>
    %49 = vector.shape_cast %48 : vector<1024xf32> to vector<1x1024xf32>
    %cst_29 = arith.constant 1.280000e+02 : f32
    %50 = vector.broadcast %cst_29 : f32 to vector<1x1024xf32>
    %51 = arith.divf %49, %50 : vector<1x1024xf32>
    %52 = vector.broadcast %51 : vector<1x1024xf32> to vector<128x1024xf32>
    %53 = arith.subf %31, %52 : vector<128x1024xf32>
    %54 = arith.mulf %53, %53 : vector<128x1024xf32>
    %cst_30 = arith.constant dense<0.000000e+00> : vector<1024xf32>
    %55 = vector.multi_reduction <add>, %54, %cst_30 [0] : vector<128x1024xf32> to vector<1024xf32>
    %56 = vector.shape_cast %55 : vector<1024xf32> to vector<1x1024xf32>
    %cst_31 = arith.constant 0.00787401571 : f32
    %57 = vector.broadcast %cst_31 : f32 to vector<1x1024xf32>
    %58 = arith.mulf %56, %57 : vector<1x1024xf32>
    %59 = vector.broadcast %51 : vector<1x1024xf32> to vector<128x1024xf32>
    %60 = arith.subf %31, %59 : vector<128x1024xf32>
    %61 = math.rsqrt %58 : vector<1x1024xf32>
    %62 = vector.broadcast %61 : vector<1x1024xf32> to vector<128x1024xf32>
    %63 = arith.mulf %60, %62 : vector<128x1024xf32>
    %c0_32 = arith.constant 0 : index
    %64 = memref.load %arg0[%c0_32] : memref<1xf32, #tpu.memory_space<smem>>
    %65 = math.exp %64 : f32
    %66 = arith.mulf %47, %47 : vector<8x1024xf32>
    %cst_33 = arith.constant dense<0.000000e+00> : vector<8xf32>
    %67 = vector.multi_reduction <add>, %66, %cst_33 [1] : vector<8x1024xf32> to vector<8xf32>
    %68 = vector.shape_cast %67 : vector<8xf32> to vector<8x1xf32>
    %69 = math.rsqrt %68 : vector<8x1xf32>
    %70 = vector.broadcast %65 : f32 to vector<8x1xf32>
    %71 = arith.mulf %70, %69 : vector<8x1xf32>
    %72 = vector.broadcast %71 : vector<8x1xf32> to vector<8x1024xf32>
    %73 = arith.mulf %47, %72 : vector<8x1024xf32>
    %74 = arith.mulf %63, %63 : vector<128x1024xf32>
    %cst_34 = arith.constant dense<0.000000e+00> : vector<128xf32>
    %75 = vector.multi_reduction <add>, %74, %cst_34 [1] : vector<128x1024xf32> to vector<128xf32>
    %76 = vector.shape_cast %75 : vector<128xf32> to vector<128x1xf32>
    %77 = math.rsqrt %76 : vector<128x1xf32>
    %78 = vector.broadcast %77 : vector<128x1xf32> to vector<128x1024xf32>
    %79 = arith.mulf %63, %78 : vector<128x1024xf32>
    %80 = arith.truncf %73 : vector<8x1024xf32> to vector<8x1024xbf16>
    %81 = arith.truncf %79 : vector<128x1024xf32> to vector<128x1024xbf16>
    %cst_35 = arith.constant dense<0.000000e+00> : vector<8x128xf32>
    %82 = tpu.matmul %80, %81, %cst_35 {dimension_numbers = #tpu.dot_dimension_numbers<[1], [1], [0], [0], [0, 0, 1, 0], [], []>} : vector<8x1024xbf16>, vector<128x1024xbf16>, vector<8x128xf32> -> vector<8x128xf32>
    %c0_36 = arith.constant 0 : index
    %c0_37 = arith.constant 0 : index
    %83 = vector.load %arg9[%c0_36, %c0_37] : memref<8x128xf32, #tpu.memory_space<vmem>>, vector<8x128xf32>
    tpu.vector_store %arg9[%c0_36, %c0_37], %82 {strides = array<i32>} : memref<8x128xf32, #tpu.memory_space<vmem>>, vector<8x128xf32>,
    return
  }
}

</mosaic_0001>

<llo_original>
// kernel: tpu_custom_call.1
$region0: #{tpu_custom_call.1}
  #allocation0 [shape = 'u32[]', space=smem, size = 0x4, offset = 0x4, fixed_abs, tag = 'smem constant byte address 0x4 - core index']
  #allocation1 [shape = 'u32[144,128]{1,0:T(1,128)}', space=vmem, size = 0x12000, scoped, tag = 'internal scratch']
  #allocation2 [shape = 'f32[1]{0:T(128)S(6)}', space=smem, size = 0x200, scoped, tag = 'scoped memory for tpu_custom_call.1']
  %s0 = inlined_call_operand.<no memory space> [shape: f32[1], index: 0, kind: input, shape index: {}]
  %s1 = inlined_call_operand.hbm [shape: bf16[8,1024], index: 1, kind: input, shape index: {}]
  %s2 = inlined_call_operand.hbm [shape: bf16[128,1024], index: 2, kind: input, shape index: {}]
  %s3 = inlined_call_operand.hbm [shape: bf16[1024,512], index: 3, kind: input, shape index: {}]
  %s4 = inlined_call_operand.hbm [shape: bf16[512,512], index: 4, kind: input, shape index: {}]
  %s5 = inlined_call_operand.hbm [shape: bf16[512,1024], index: 5, kind: input, shape index: {}]
  %s6 = inlined_call_operand.hbm [shape: bf16[1024,512], index: 6, kind: input, shape index: {}]
  %s7 = inlined_call_operand.hbm [shape: bf16[512,512], index: 7, kind: input, shape index: {}]
  %s8 = inlined_call_operand.hbm [shape: bf16[512,1024], index: 8, kind: input, shape index: {}]
  %s9 = inlined_call_operand.hbm [shape: f32[8,128], index: 9, kind: output, shape index: {}]
  %s10 = sld [smem:[#allocation0]]
  $region78: #{tpu_custom_call.1} parent=0
    _
  %s12 = ssub.s32 1, %s10
  %s13 = scalar_select 0, %s12, %s10
  %14 = sst [smem:[#allocation2]] %s0
  $region1: #{tpu_custom_call.1} parent=0
    #allocation3 [shape = 'u8[16384]{0}', space=vmem, size = 0x4000, scoped, tag = 'input window, operand 1, single buffered']
    #allocation4 [shape = 's32[1]{0}', space=sflag, size = 0x4, scoped, tag = 'scoped memory for tpu_custom_call.1']
    #allocation5 [shape = 's32[1]{0}', space=sflag, size = 0x4, scoped, tag = 'scoped memory for tpu_custom_call.1']
    #allocation6 [shape = 'u8[262144]{0}', space=vmem, size = 0x40000, scoped, tag = 'input window, operand 2, single buffered']
    #allocation7 [shape = 's32[1]{0}', space=sflag, size = 0x4, scoped, tag = 'scoped memory for tpu_custom_call.1']
    #allocation8 [shape = 'u8[1048576]{0}', space=vmem, size = 0x100000, scoped, tag = 'input window, operand 3, single buffered']
    #allocation9 [shape = 'u8[524288]{0}', space=vmem, size = 0x80000, scoped, tag = 'input window, operand 4, single buffered']
    #allocation10 [shape = 's32[1]{0}', space=sflag, size = 0x4, scoped, tag = 'scoped memory for tpu_custom_call.1']
    #allocation11 [shape = 'u8[1048576]{0}', space=vmem, size = 0x100000, scoped, tag = 'input window, operand 5, single buffered']
    #allocation12 [shape = 'u8[1048576]{0}', space=vmem, size = 0x100000, scoped, tag = 'input window, operand 6, single buffered']
    #allocation13 [shape = 's32[1]{0}', space=sflag, size = 0x4, scoped, tag = 'scoped memory for tpu_custom_call.1']
    #allocation14 [shape = 'u8[524288]{0}', space=vmem, size = 0x80000, scoped, tag = 'input window, operand 7, single buffered']
    #allocation15 [shape = 'u8[1048576]{0}', space=vmem, size = 0x100000, scoped, tag = 'input window, operand 8, single buffered']
    #allocation16 [shape = 's32[1]{0}', space=sflag, size = 0x4, scoped, tag = 'scoped memory for tpu_custom_call.1']
    #allocation17 [shape = 'u8[4096]{0}', space=vmem, size = 0x1000, scoped, tag = 'output window, operand 0, single buffered']
    %15 = vsyncpa [#allocation4], 0
    %16 = vsyncpa [#allocation7], 0
    %17 = vsyncpa [#allocation10], 0
    %18 = vsyncpa [#allocation13], 0
    %19 = vsyncpa [#allocation16], 0
    %20 = vsyncpa [#allocation5], 0
    // Predicated region
    $region2: #{tpu_custom_call.1} parent=1 // pred_check
      _
    $region3: #{tpu_custom_call.1} parent=1 // pred_check_branch
      %22 = sbr.rel (0) target = $region5
    $region4: #{tpu_custom_call.1} parent=1 // pred_region
      _
    $region5: #{tpu_custom_call.1} parent=1 // pred_fallthru
      _
    // Predicated region
    $region6: #{tpu_custom_call.1} parent=1 // pred_check
      _
    $region7: #{tpu_custom_call.1} parent=1 // pred_check_branch
      %24 = sbr.rel (0) target = $region9
    $region8: #{tpu_custom_call.1} parent=1 // pred_region
      %s26 = ssub.s32 512, 512
      %27 = vsyncadd [#allocation4], %s26
      %s29 = sshll.u32 [#allocation3], 4
      %s30 = int_to_ptr.vmem [resolvable:$true] %s29
      %32 = dma.hbm_to_vmem [thread:$0]  %s1, 512, %s30, [#allocation4]
    $region9: #{tpu_custom_call.1} parent=1 // pred_fallthru
      _
    // Predicated region
    $region10: #{tpu_custom_call.1} parent=1 // pred_check
      _
    $region11: #{tpu_custom_call.1} parent=1 // pred_check_branch
      %34 = sbr.rel (0) target = $region13
    $region12: #{tpu_custom_call.1} parent=1 // pred_region
      %s36 = ssub.s32 8192, 8192
      %37 = vsyncadd [#allocation7], %s36
      %s38 = sshll.u32 [#allocation6], 4
      %s39 = int_to_ptr.vmem [resolvable:$true] %s38
      %44 = dma.hbm_to_vmem [thread:$0]  %s2, 8192, %s39, [#allocation7], 512, 512, 32
    $region13: #{tpu_custom_call.1} parent=1 // pred_fallthru
      _
    // Predicated region
    $region14: #{tpu_custom_call.1} parent=1 // pred_check
      _
    $region15: #{tpu_custom_call.1} parent=1 // pred_check_branch
      %46 = sbr.rel (0) target = $region17
    $region16: #{tpu_custom_call.1} parent=1 // pred_region
      %s48 = ssub.s32 32768, 32768
      %49 = vsyncadd [#allocation7], %s48
      %s50 = sshll.u32 [#allocation8], 4
      %s51 = int_to_ptr.vmem [resolvable:$true] %s50
      %56 = dma.hbm_to_vmem [thread:$0]  %s3, 32768, %s51, [#allocation7], 256, 256, 16
    $region17: #{tpu_custom_call.1} parent=1 // pred_fallthru
      _
    // Predicated region
    $region18: #{tpu_custom_call.1} parent=1 // pred_check
      _
    $region19: #{tpu_custom_call.1} parent=1 // pred_check_branch
      %58 = sbr.rel (0) target = $region21
    $region20: #{tpu_custom_call.1} parent=1 // pred_region
      %s60 = ssub.s32 16384, 16384
      %61 = vsyncadd [#allocation10], %s60
      %s62 = sshll.u32 [#allocation9], 4
      %s63 = int_to_ptr.vmem [resolvable:$true] %s62
      %68 = dma.hbm_to_vmem [thread:$0]  %s4, 16384, %s63, [#allocation10], 256, 256, 16
    $region21: #{tpu_custom_call.1} parent=1 // pred_fallthru
      _
    // Predicated region
    $region22: #{tpu_custom_call.1} parent=1 // pred_check
      _
    $region23: #{tpu_custom_call.1} parent=1 // pred_check_branch
      %70 = sbr.rel (0) target = $region25
    $region24: #{tpu_custom_call.1} parent=1 // pred_region
      %s72 = ssub.s32 32768, 32768
      %73 = vsyncadd [#allocation10], %s72
      %s74 = sshll.u32 [#allocation11], 4
      %s75 = int_to_ptr.vmem [resolvable:$true] %s74
      %80 = dma.hbm_to_vmem [thread:$0]  %s5, 32768, %s75, [#allocation10], 512, 512, 32
    $region25: #{tpu_custom_call.1} parent=1 // pred_fallthru
      _
    // Predicated region
    $region26: #{tpu_custom_call.1} parent=1 // pred_check
      _
    $region27: #{tpu_custom_call.1} parent=1 // pred_check_branch
      %82 = sbr.rel (0) target = $region29
    $region28: #{tpu_custom_call.1} parent=1 // pred_region
      %s84 = ssub.s32 32768, 32768
      %85 = vsyncadd [#allocation13], %s84
      %s86 = sshll.u32 [#allocation12], 4
      %s87 = int_to_ptr.vmem [resolvable:$true] %s86
      %92 = dma.hbm_to_vmem [thread:$0]  %s6, 32768, %s87, [#allocation13], 256, 256, 16
    $region29: #{tpu_custom_call.1} parent=1 // pred_fallthru
      _
    // Predicated region
    $region30: #{tpu_custom_call.1} parent=1 // pred_check
      _
    $region31: #{tpu_custom_call.1} parent=1 // pred_check_branch
      %94 = sbr.rel (0) target = $region33
    $region32: #{tpu_custom_call.1} parent=1 // pred_region
      %s96 = ssub.s32 16384, 16384
      %97 = vsyncadd [#allocation13], %s96
      %s98 = sshll.u32 [#allocation14], 4
      %s99 = int_to_ptr.vmem [resolvable:$true] %s98
      %104 = dma.hbm_to_vmem [thread:$0]  %s7, 16384, %s99, [#allocation13], 256, 256, 16
    $region33: #{tpu_custom_call.1} parent=1 // pred_fallthru
      _
    // Predicated region
    $region34: #{tpu_custom_call.1} parent=1 // pred_check
      _
    $region35: #{tpu_custom_call.1} parent=1 // pred_check_branch
      %106 = sbr.rel (0) target = $region37
    $region36: #{tpu_custom_call.1} parent=1 // pred_region
      %s108 = ssub.s32 32768, 32768
      %109 = vsyncadd [#allocation16], %s108
      %s110 = sshll.u32 [#allocation15], 4
      %s111 = int_to_ptr.vmem [resolvable:$true] %s110
      %116 = dma.hbm_to_vmem [thread:$0]  %s8, 32768, %s111, [#allocation16], 512, 512, 32
    $region37: #{tpu_custom_call.1} parent=1 // pred_fallthru
      _
    // Predicated region
    $region38: #{tpu_custom_call.1} parent=1 // pred_check
      _
    $region39: #{tpu_custom_call.1} parent=1 // pred_check_branch
      %118 = sbr.rel (0) target = $region41
    $region40: #{tpu_custom_call.1} parent=1 // pred_region
      %119 = dma.done [#allocation4], 512
    $region41: #{tpu_custom_call.1} parent=1 // pred_fallthru
      _
    // Predicated region
    $region42: #{tpu_custom_call.1} parent=1 // pred_check
      _
    $region43: #{tpu_custom_call.1} parent=1 // pred_check_branch
      %121 = sbr.rel (0) target = $region45
    $region44: #{tpu_custom_call.1} parent=1 // pred_region
      %122 = dma.done [#allocation7], 8192
    $region45: #{tpu_custom_call.1} parent=1 // pred_fallthru
      _
    // Predicated region
    $region46: #{tpu_custom_call.1} parent=1 // pred_check
      _
    $region47: #{tpu_custom_call.1} parent=1 // pred_check_branch
      %124 = sbr.rel (0) target = $region49
    $region48: #{tpu_custom_call.1} parent=1 // pred_region
      %125 = dma.done [#allocation7], 32768
    $region49: #{tpu_custom_call.1} parent=1 // pred_fallthru
      _
    // Predicated region
    $region50: #{tpu_custom_call.1} parent=1 // pred_check
      _
    $region51: #{tpu_custom_call.1} parent=1 // pred_check_branch
      %127 = sbr.rel (0) target = $region53
    $region52: #{tpu_custom_call.1} parent=1 // pred_region
      %128 = dma.done [#allocation10], 16384
    $region53: #{tpu_custom_call.1} parent=1 // pred_fallthru
      _
    // Predicated region
    $region54: #{tpu_custom_call.1} parent=1 // pred_check
      _
    $region55: #{tpu_custom_call.1} parent=1 // pred_check_branch
      %130 = sbr.rel (0) target = $region57
    $region56: #{tpu_custom_call.1} parent=1 // pred_region
      %131 = dma.done [#allocation10], 32768
    $region57: #{tpu_custom_call.1} parent=1 // pred_fallthru
      _
    // Predicated region
    $region58: #{tpu_custom_call.1} parent=1 // pred_check
      _
    $region59: #{tpu_custom_call.1} parent=1 // pred_check_branch
      %133 = sbr.rel (0) target = $region61
    $region60: #{tpu_custom_call.1} parent=1 // pred_region
      %134 = dma.done [#allocation13], 32768
    $region61: #{tpu_custom_call.1} parent=1 // pred_fallthru
      _
    // Predicated region
    $region62: #{tpu_custom_call.1} parent=1 // pred_check
      _
    $region63: #{tpu_custom_call.1} parent=1 // pred_check_branch
      %136 = sbr.rel (0) target = $region65
    $region64: #{tpu_custom_call.1} parent=1 // pred_region
      %137 = dma.done [#allocation13], 16384
    $region65: #{tpu_custom_call.1} parent=1 // pred_fallthru
      _
    // Predicated region
    $region66: #{tpu_custom_call.1} parent=1 // pred_check
      _
    $region67: #{tpu_custom_call.1} parent=1 // pred_check_branch
      %139 = sbr.rel (0) target = $region69
    $region68: #{tpu_custom_call.1} parent=1 // pred_region
      %140 = dma.done [#allocation16], 32768
    $region69: #{tpu_custom_call.1} parent=1 // pred_fallthru
      _
    %v142 = vld [vmem:[#allocation3] sm:$0xff]
    %v143 = vld [vmem:[#allocation3 + $0x8] sm:$0xff]
    %v144 = vld [vmem:[#allocation3 + $0x10] sm:$0xff]
    %v145 = vld [vmem:[#allocation3 + $0x18] sm:$0xff]
    %v146 = vld [vmem:[#allocation8] sm:$0xff]
    %v147 = vld [vmem:[#allocation8 + $0x8] sm:$0xff]
    %v148 = vld [vmem:[#allocation8 + $0x10] sm:$0xff]
    %v149 = vld [vmem:[#allocation8 + $0x18] sm:$0xff]
    %v150 = vld [vmem:[#allocation8 + $0x20] sm:$0xff]
    %v151 = vld [vmem:[#allocation8 + $0x28] sm:$0xff]
    %v152 = vld [vmem:[#allocation8 + $0x30] sm:$0xff]
    %v153 = vld [vmem:[#allocation8 + $0x38] sm:$0xff]
    %v154 = vld [vmem:[#allocation8 + $0x40] sm:$0xff]
    %v155 = vld [vmem:[#allocation8 + $0x48] sm:$0xff]
    %v156 = vld [vmem:[#allocation8 + $0x50] sm:$0xff]
    %v157 = vld [vmem:[#allocation8 + $0x58] sm:$0xff]
    %v158 = vld [vmem:[#allocation8 + $0x60] sm:$0xff]
    %v159 = vld [vmem:[#allocation8 + $0x68] sm:$0xff]
    %v160 = vld [vmem:[#allocation8 + $0x70] sm:$0xff]
    %v161 = vld [vmem:[#allocation8 + $0x78] sm:$0xff]
    %v162 = vld [vmem:[#allocation8 + $0x80] sm:$0xff]
    %v163 = vld [vmem:[#allocation8 + $0x88] sm:$0xff]
    %v164 = vld [vmem:[#allocation8 + $0x90] sm:$0xff]
    %v165 = vld [vmem:[#allocation8 + $0x98] sm:$0xff]
    %v166 = vld [vmem:[#allocation8 + $0xa0] sm:$0xff]
    %v167 = vld [vmem:[#allocation8 + $0xa8] sm:$0xff]
    %v168 = vld [vmem:[#allocation8 + $0xb0] sm:$0xff]
    %v169 = vld [vmem:[#allocation8 + $0xb8] sm:$0xff]
    %v170 = vld [vmem:[#allocation8 + $0xc0] sm:$0xff]
    %v171 = vld [vmem:[#allocation8 + $0xc8] sm:$0xff]
    %v172 = vld [vmem:[#allocation8 + $0xd0] sm:$0xff]
    %v173 = vld [vmem:[#allocation8 + $0xd8] sm:$0xff]
    %v174 = vld [vmem:[#allocation8 + $0xe0] sm:$0xff]
    %v175 = vld [vmem:[#allocation8 + $0xe8] sm:$0xff]
    %v176 = vld [vmem:[#allocation8 + $0xf0] sm:$0xff]
    %v177 = vld [vmem:[#allocation8 + $0xf8] sm:$0xff]
    %v178 = vld [vmem:[#allocation8 + $0x100] sm:$0xff]
    %v179 = vld [vmem:[#allocation8 + $0x108] sm:$0xff]
    %v180 = vld [vmem:[#allocation8 + $0x110] sm:$0xff]
    %v181 = vld [vmem:[#allocation8 + $0x118] sm:$0xff]
    %v182 = vld [vmem:[#allocation8 + $0x120] sm:$0xff]
    %v183 = vld [vmem:[#allocation8 + $0x128] sm:$0xff]
    %v184 = vld [vmem:[#allocation8 + $0x130] sm:$0xff]
    %v185 = vld [vmem:[#allocation8 + $0x138] sm:$0xff]
    %v186 = vld [vmem:[#allocation8 + $0x140] sm:$0xff]
    %v187 = vld [vmem:[#allocation8 + $0x148] sm:$0xff]
    %v188 = vld [vmem:[#allocation8 + $0x150] sm:$0xff]
    %v189 = vld [vmem:[#allocation8 + $0x158] sm:$0xff]
    %v190 = vld [vmem:[#allocation8 + $0x160] sm:$0xff]
    %v191 = vld [vmem:[#allocation8 + $0x168] sm:$0xff]
    %v192 = vld [vmem:[#allocation8 + $0x170] sm:$0xff]
    %v193 = vld [vmem:[#allocation8 + $0x178] sm:$0xff]
    %v194 = vld [vmem:[#allocation8 + $0x180] sm:$0xff]
    %v195 = vld [vmem:[#allocation8 + $0x188] sm:$0xff]
    %v196 = vld [vmem:[#allocation8 + $0x190] sm:$0xff]
    %v197 = vld [vmem:[#allocation8 + $0x198] sm:$0xff]
    %v198 = vld [vmem:[#allocation8 + $0x1a0] sm:$0xff]
    %v199 = vld [vmem:[#allocation8 + $0x1a8] sm:$0xff]
    %v200 = vld [vmem:[#allocation8 + $0x1b0] sm:$0xff]
    %v201 = vld [vmem:[#allocation8 + $0x1b8] sm:$0xff]
    %v202 = vld [vmem:[#allocation8 + $0x1c0] sm:$0xff]
    %v203 = vld [vmem:[#allocation8 + $0x1c8] sm:$0xff]
    %v204 = vld [vmem:[#allocation8 + $0x1d0] sm:$0xff]
    %v205 = vld [vmem:[#allocation8 + $0x1d8] sm:$0xff]
    %v206 = vld [vmem:[#allocation8 + $0x1e0] sm:$0xff]
    %v207 = vld [vmem:[#allocation8 + $0x1e8] sm:$0xff]
    %v208 = vld [vmem:[#allocation8 + $0x1f0] sm:$0xff]
    %v209 = vld [vmem:[#allocation8 + $0x1f8] sm:$0xff]
    %v210 = vld [vmem:[#allocation8 + $0x200] sm:$0xff]
    %v211 = vld [vmem:[#allocation8 + $0x208] sm:$0xff]
    %v212 = vld [vmem:[#allocation8 + $0x210] sm:$0xff]
    %v213 = vld [vmem:[#allocation8 + $0x218] sm:$0xff]
    %v214 = vld [vmem:[#allocation8 + $0x220] sm:$0xff]
    %v215 = vld [vmem:[#allocation8 + $0x228] sm:$0xff]
    %v216 = vld [vmem:[#allocation8 + $0x230] sm:$0xff]
    %v217 = vld [vmem:[#allocation8 + $0x238] sm:$0xff]
    %v218 = vld [vmem:[#allocation8 + $0x240] sm:$0xff]
    %v219 = vld [vmem:[#allocation8 + $0x248] sm:$0xff]
    %v220 = vld [vmem:[#allocation8 + $0x250] sm:$0xff]
    %v221 = vld [vmem:[#allocation8 + $0x258] sm:$0xff]
    %v222 = vld [vmem:[#allocation8 + $0x260] sm:$0xff]
    %v223 = vld [vmem:[#allocation8 + $0x268] sm:$0xff]
    %v224 = vld [vmem:[#allocation8 + $0x270] sm:$0xff]
    %v225 = vld [vmem:[#allocation8 + $0x278] sm:$0xff]
    %v226 = vld [vmem:[#allocation8 + $0x280] sm:$0xff]
    %v227 = vld [vmem:[#allocation8 + $0x288] sm:$0xff]
    %v228 = vld [vmem:[#allocation8 + $0x290] sm:$0xff]
    %v229 = vld [vmem:[#allocation8 + $0x298] sm:$0xff]
    %v230 = vld [vmem:[#allocation8 + $0x2a0] sm:$0xff]
    %v231 = vld [vmem:[#allocation8 + $0x2a8] sm:$0xff]
    %v232 = vld [vmem:[#allocation8 + $0x2b0] sm:$0xff]
    %v233 = vld [vmem:[#allocation8 + $0x2b8] sm:$0xff]
    %v234 = vld [vmem:[#allocation8 + $0x2c0] sm:$0xff]
    %v235 = vld [vmem:[#allocation8 + $0x2c8] sm:$0xff]
    %v236 = vld [vmem:[#allocation8 + $0x2d0] sm:$0xff]
    %v237 = vld [vmem:[#allocation8 + $0x2d8] sm:$0xff]
    %v238 = vld [vmem:[#allocation8 + $0x2e0] sm:$0xff]
    %v239 = vld [vmem:[#allocation8 + $0x2e8] sm:$0xff]
    %v240 = vld [vmem:[#allocation8 + $0x2f0] sm:$0xff]
    %v241 = vld [vmem:[#allocation8 + $0x2f8] sm:$0xff]
    %v242 = vld [vmem:[#allocation8 + $0x300] sm:$0xff]
    %v243 = vld [vmem:[#allocation8 + $0x308] sm:$0xff]
    %v244 = vld [vmem:[#allocation8 + $0x310] sm:$0xff]
    %v245 = vld [vmem:[#allocation8 + $0x318] sm:$0xff]
    %v246 = vld [vmem:[#allocation8 + $0x320] sm:$0xff]
    %v247 = vld [vmem:[#allocation8 + $0x328] sm:$0xff]
    %v248 = vld [vmem:[#allocation8 + $0x330] sm:$0xff]
    %v249 = vld [vmem:[#allocation8 + $0x338] sm:$0xff]
    %v250 = vld [vmem:[#allocation8 + $0x340] sm:$0xff]
    %v251 = vld [vmem:[#allocation8 + $0x348] sm:$0xff]
    %v252 = vld [vmem:[#allocation8 + $0x350] sm:$0xff]
    %v253 = vld [vmem:[#allocation8 + $0x358] sm:$0xff]
    %v254 = vld [vmem:[#allocation8 + $0x360] sm:$0xff]
    %v255 = vld [vmem:[#allocation8 + $0x368] sm:$0xff]
    %v256 = vld [vmem:[#allocation8 + $0x370] sm:$0xff]
    %v257 = vld [vmem:[#allocation8 + $0x378] sm:$0xff]
    %v258 = vld [vmem:[#allocation8 + $0x380] sm:$0xff]
    %v259 = vld [vmem:[#allocation8 + $0x388] sm:$0xff]
    %v260 = vld [vmem:[#allocation8 + $0x390] sm:$0xff]
    %v261 = vld [vmem:[#allocation8 + $0x398] sm:$0xff]
    %v262 = vld [vmem:[#allocation8 + $0x3a0] sm:$0xff]
    %v263 = vld [vmem:[#allocation8 + $0x3a8] sm:$0xff]
    %v264 = vld [vmem:[#allocation8 + $0x3b0] sm:$0xff]
    %v265 = vld [vmem:[#allocation8 + $0x3b8] sm:$0xff]
    %v266 = vld [vmem:[#allocation8 + $0x3c0] sm:$0xff]
    %v267 = vld [vmem:[#allocation8 + $0x3c8] sm:$0xff]
    %v268 = vld [vmem:[#allocation8 + $0x3d0] sm:$0xff]
    %v269 = vld [vmem:[#allocation8 + $0x3d8] sm:$0xff]
    %v270 = vld [vmem:[#allocation8 + $0x3e0] sm:$0xff]
    %v271 = vld [vmem:[#allocation8 + $0x3e8] sm:$0xff]
    %v272 = vld [vmem:[#allocation8 + $0x3f0] sm:$0xff]
    %v273 = vld [vmem:[#allocation8 + $0x3f8] sm:$0xff]
    %v274 = vld [vmem:[#allocation8 + $0x400] sm:$0xff]
    %v275 = vld [vmem:[#allocation8 + $0x408] sm:$0xff]
    %v276 = vld [vmem:[#allocation8 + $0x410] sm:$0xff]
    %v277 = vld [vmem:[#allocation8 + $0x418] sm:$0xff]
    %v278 = vld [vmem:[#allocation8 + $0x420] sm:$0xff]
    %v279 = vld [vmem:[#allocation8 + $0x428] sm:$0xff]
    %v280 = vld [vmem:[#allocation8 + $0x430] sm:$0xff]
    %v281 = vld [vmem:[#allocation8 + $0x438] sm:$0xff]
    %v282 = vld [vmem:[#allocation8 + $0x440] sm:$0xff]
    %v283 = vld [vmem:[#allocation8 + $0x448] sm:$0xff]
    %v284 = vld [vmem:[#allocation8 + $0x450] sm:$0xff]
    %v285 = vld [vmem:[#allocation8 + $0x458] sm:$0xff]
    %v286 = vld [vmem:[#allocation8 + $0x460] sm:$0xff]
    %v287 = vld [vmem:[#allocation8 + $0x468] sm:$0xff]
    %v288 = vld [vmem:[#allocation8 + $0x470] sm:$0xff]
    %v289 = vld [vmem:[#allocation8 + $0x478] sm:$0xff]
    %v290 = vld [vmem:[#allocation8 + $0x480] sm:$0xff]
    %v291 = vld [vmem:[#allocation8 + $0x488] sm:$0xff]
    %v292 = vld [vmem:[#allocation8 + $0x490] sm:$0xff]
    %v293 = vld [vmem:[#allocation8 + $0x498] sm:$0xff]
    %v294 = vld [vmem:[#allocation8 + $0x4a0] sm:$0xff]
    %v295 = vld [vmem:[#allocation8 + $0x4a8] sm:$0xff]
    %v296 = vld [vmem:[#allocation8 + $0x4b0] sm:$0xff]
    %v297 = vld [vmem:[#allocation8 + $0x4b8] sm:$0xff]
    %v298 = vld [vmem:[#allocation8 + $0x4c0] sm:$0xff]
    %v299 = vld [vmem:[#allocation8 + $0x4c8] sm:$0xff]
    %v300 = vld [vmem:[#allocation8 + $0x4d0] sm:$0xff]
    %v301 = vld [vmem:[#allocation8 + $0x4d8] sm:$0xff]
    %v302 = vld [vmem:[#allocation8 + $0x4e0] sm:$0xff]
    %v303 = vld [vmem:[#allocation8 + $0x4e8] sm:$0xff]
    %v304 = vld [vmem:[#allocation8 + $0x4f0] sm:$0xff]
    %v305 = vld [vmem:[#allocation8 + $0x4f8] sm:$0xff]
    %v306 = vld [vmem:[#allocation8 + $0x500] sm:$0xff]
    %v307 = vld [vmem:[#allocation8 + $0x508] sm:$0xff]
    %v308 = vld [vmem:[#allocation8 + $0x510] sm:$0xff]
    %v309 = vld [vmem:[#allocation8 + $0x518] sm:$0xff]
    %v310 = vld [vmem:[#allocation8 + $0x520] sm:$0xff]
    %v311 = vld [vmem:[#allocation8 + $0x528] sm:$0xff]
    %v312 = vld [vmem:[#allocation8 + $0x530] sm:$0xff]
    %v313 = vld [vmem:[#allocation8 + $0x538] sm:$0xff]
    %v314 = vld [vmem:[#allocation8 + $0x540] sm:$0xff]
    %v315 = vld [vmem:[#allocation8 + $0x548] sm:$0xff]
    %v316 = vld [vmem:[#allocation8 + $0x550] sm:$0xff]
    %v317 = vld [vmem:[#allocation8 + $0x558] sm:$0xff]
    %v318 = vld [vmem:[#allocation8 + $0x560] sm:$0xff]
    %v319 = vld [vmem:[#allocation8 + $0x568] sm:$0xff]
    %v320 = vld [vmem:[#allocation8 + $0x570] sm:$0xff]
    %v321 = vld [vmem:[#allocation8 + $0x578] sm:$0xff]
    %v322 = vld [vmem:[#allocation8 + $0x580] sm:$0xff]
    %v323 = vld [vmem:[#allocation8 + $0x588] sm:$0xff]
    %v324 = vld [vmem:[#allocation8 + $0x590] sm:$0xff]
    %v325 = vld [vmem:[#allocation8 + $0x598] sm:$0xff]
    %v326 = vld [vmem:[#allocation8 + $0x5a0] sm:$0xff]
    %v327 = vld [vmem:[#allocation8 + $0x5a8] sm:$0xff]
    %v328 = vld [vmem:[#allocation8 + $0x5b0] sm:$0xff]
    %v329 = vld [vmem:[#allocation8 + $0x5b8] sm:$0xff]
    %v330 = vld [vmem:[#allocation8 + $0x5c0] sm:$0xff]
    %v331 = vld [vmem:[#allocation8 + $0x5c8] sm:$0xff]
    %v332 = vld [vmem:[#allocation8 + $0x5d0] sm:$0xff]
    %v333 = vld [vmem:[#allocation8 + $0x5d8] sm:$0xff]
    %v334 = vld [vmem:[#allocation8 + $0x5e0] sm:$0xff]
    %v335 = vld [vmem:[#allocation8 + $0x5e8] sm:$0xff]
    %v336 = vld [vmem:[#allocation8 + $0x5f0] sm:$0xff]
    %v337 = vld [vmem:[#allocation8 + $0x5f8] sm:$0xff]
    %v338 = vld [vmem:[#allocation8 + $0x600] sm:$0xff]
    %v339 = vld [vmem:[#allocation8 + $0x608] sm:$0xff]
    %v340 = vld [vmem:[#allocation8 + $0x610] sm:$0xff]
    %v341 = vld [vmem:[#allocation8 + $0x618] sm:$0xff]
    %v342 = vld [vmem:[#allocation8 + $0x620] sm:$0xff]
    %v343 = vld [vmem:[#allocation8 + $0x628] sm:$0xff]
    %v344 = vld [vmem:[#allocation8 + $0x630] sm:$0xff]
    %v345 = vld [vmem:[#allocation8 + $0x638] sm:$0xff]
    %v346 = vld [vmem:[#allocation8 + $0x640] sm:$0xff]
    %v347 = vld [vmem:[#allocation8 + $0x648] sm:$0xff]
    %v348 = vld [vmem:[#allocation8 + $0x650] sm:$0xff]
    %v349 = vld [vmem:[#allocation8 + $0x658] sm:$0xff]
    %v350 = vld [vmem:[#allocation8 + $0x660] sm:$0xff]
    %v351 = vld [vmem:[#allocation8 + $0x668] sm:$0xff]
    %v352 = vld [vmem:[#allocation8 + $0x670] sm:$0xff]
    %v353 = vld [vmem:[#allocation8 + $0x678] sm:$0xff]
    %v354 = vld [vmem:[#allocation8 + $0x680] sm:$0xff]
    %v355 = vld [vmem:[#allocation8 + $0x688] sm:$0xff]
    %v356 = vld [vmem:[#allocation8 + $0x690] sm:$0xff]
    %v357 = vld [vmem:[#allocation8 + $0x698] sm:$0xff]
    %v358 = vld [vmem:[#allocation8 + $0x6a0] sm:$0xff]
    %v359 = vld [vmem:[#allocation8 + $0x6a8] sm:$0xff]
    %v360 = vld [vmem:[#allocation8 + $0x6b0] sm:$0xff]
    %v361 = vld [vmem:[#allocation8 + $0x6b8] sm:$0xff]
    %v362 = vld [vmem:[#allocation8 + $0x6c0] sm:$0xff]
    %v363 = vld [vmem:[#allocation8 + $0x6c8] sm:$0xff]
    %v364 = vld [vmem:[#allocation8 + $0x6d0] sm:$0xff]
    %v365 = vld [vmem:[#allocation8 + $0x6d8] sm:$0xff]
    %v366 = vld [vmem:[#allocation8 + $0x6e0] sm:$0xff]
    %v367 = vld [vmem:[#allocation8 + $0x6e8] sm:$0xff]
    %v368 = vld [vmem:[#allocation8 + $0x6f0] sm:$0xff]
    %v369 = vld [vmem:[#allocation8 + $0x6f8] sm:$0xff]
    %v370 = vld [vmem:[#allocation8 + $0x700] sm:$0xff]
    %v371 = vld [vmem:[#allocation8 + $0x708] sm:$0xff]
    %v372 = vld [vmem:[#allocation8 + $0x710] sm:$0xff]
    %v373 = vld [vmem:[#allocation8 + $0x718] sm:$0xff]
    %v374 = vld [vmem:[#allocation8 + $0x720] sm:$0xff]
    %v375 = vld [vmem:[#allocation8 + $0x728] sm:$0xff]
    %v376 = vld [vmem:[#allocation8 + $0x730] sm:$0xff]
    %v377 = vld [vmem:[#allocation8 + $0x738] sm:$0xff]
    %v378 = vld [vmem:[#allocation8 + $0x740] sm:$0xff]
    %v379 = vld [vmem:[#allocation8 + $0x748] sm:$0xff]
    %v380 = vld [vmem:[#allocation8 + $0x750] sm:$0xff]
    %v381 = vld [vmem:[#allocation8 + $0x758] sm:$0xff]
    %v382 = vld [vmem:[#allocation8 + $0x760] sm:$0xff]
    %v383 = vld [vmem:[#allocation8 + $0x768] sm:$0xff]
    %v384 = vld [vmem:[#allocation8 + $0x770] sm:$0xff]
    %v385 = vld [vmem:[#allocation8 + $0x778] sm:$0xff]
    %v386 = vld [vmem:[#allocation8 + $0x780] sm:$0xff]
    %v387 = vld [vmem:[#allocation8 + $0x788] sm:$0xff]
    %v388 = vld [vmem:[#allocation8 + $0x790] sm:$0xff]
    %v389 = vld [vmem:[#allocation8 + $0x798] sm:$0xff]
    %v390 = vld [vmem:[#allocation8 + $0x7a0] sm:$0xff]
    %v391 = vld [vmem:[#allocation8 + $0x7a8] sm:$0xff]
    %v392 = vld [vmem:[#allocation8 + $0x7b0] sm:$0xff]
    %v393 = vld [vmem:[#allocation8 + $0x7b8] sm:$0xff]
    %v394 = vld [vmem:[#allocation8 + $0x7c0] sm:$0xff]
    %v395 = vld [vmem:[#allocation8 + $0x7c8] sm:$0xff]
    %v396 = vld [vmem:[#allocation8 + $0x7d0] sm:$0xff]
    %v397 = vld [vmem:[#allocation8 + $0x7d8] sm:$0xff]
    %v398 = vld [vmem:[#allocation8 + $0x7e0] sm:$0xff]
    %v399 = vld [vmem:[#allocation8 + $0x7e8] sm:$0xff]
    %v400 = vld [vmem:[#allocation8 + $0x7f0] sm:$0xff]
    %v401 = vld [vmem:[#allocation8 + $0x7f8] sm:$0xff]
    %v406 = vunpack.c.l.b16 %v142
    %v407 = vunpack.c.h.b16 %v142
    %v408 = vunpack.c.l.b16 %v143
    %v409 = vunpack.c.h.b16 %v143
    %v410 = vunpack.c.l.b16 %v144
    %v411 = vunpack.c.h.b16 %v144
    %v412 = vunpack.c.l.b16 %v145
    %v413 = vunpack.c.h.b16 %v145
    %v414 = vpack.c.b16 %v406, %v406
    %v415 = vpack.c.b16 %v407, %v407
    %v416 = vpack.c.b16 %v408, %v408
    %v417 = vpack.c.b16 %v409, %v409
    %v418 = vpack.c.b16 %v410, %v410
    %v419 = vpack.c.b16 %v411, %v411
    %v420 = vpack.c.b16 %v412, %v412
    %v421 = vpack.c.b16 %v413, %v413
    %v686 = vunpack.c.l.b16 %v146
    %v687 = vunpack.c.h.b16 %v146
    %v688 = vunpack.c.l.b16 %v147
    %v689 = vunpack.c.h.b16 %v147
    %v690 = vunpack.c.l.b16 %v148
    %v691 = vunpack.c.h.b16 %v148
    %v692 = vunpack.c.l.b16 %v149
    %v693 = vunpack.c.h.b16 %v149
    %v694 = vunpack.c.l.b16 %v150
    %v695 = vunpack.c.h.b16 %v150
    %v696 = vunpack.c.l.b16 %v151
    %v697 = vunpack.c.h.b16 %v151
    %v698 = vunpack.c.l.b16 %v152
    %v699 = vunpack.c.h.b16 %v152
    %v700 = vunpack.c.l.b16 %v153
    %v701 = vunpack.c.h.b16 %v153
    %v702 = vunpack.c.l.b16 %v154
    %v703 = vunpack.c.h.b16 %v154
    %v704 = vunpack.c.l.b16 %v155
    %v705 = vunpack.c.h.b16 %v155
    %v706 = vunpack.c.l.b16 %v156
    %v707 = vunpack.c.h.b16 %v156
    %v708 = vunpack.c.l.b16 %v157
    %v709 = vunpack.c.h.b16 %v157
    %v710 = vunpack.c.l.b16 %v158
    %v711 = vunpack.c.h.b16 %v158
    %v712 = vunpack.c.l.b16 %v159
    %v713 = vunpack.c.h.b16 %v159
    %v714 = vunpack.c.l.b16 %v160
    %v715 = vunpack.c.h.b16 %v160
    %v716 = vunpack.c.l.b16 %v161
    %v717 = vunpack.c.h.b16 %v161
    %v718 = vunpack.c.l.b16 %v162
    %v719 = vunpack.c.h.b16 %v162
    %v720 = vunpack.c.l.b16 %v163
    %v721 = vunpack.c.h.b16 %v163
    %v722 = vunpack.c.l.b16 %v164
    %v723 = vunpack.c.h.b16 %v164
    %v724 = vunpack.c.l.b16 %v165
    %v725 = vunpack.c.h.b16 %v165
    %v726 = vunpack.c.l.b16 %v166
    %v727 = vunpack.c.h.b16 %v166
    %v728 = vunpack.c.l.b16 %v167
    %v729 = vunpack.c.h.b16 %v167
    %v730 = vunpack.c.l.b16 %v168
    %v731 = vunpack.c.h.b16 %v168
    %v732 = vunpack.c.l.b16 %v169
    %v733 = vunpack.c.h.b16 %v169
    %v734 = vunpack.c.l.b16 %v170
    %v735 = vunpack.c.h.b16 %v170
    %v736 = vunpack.c.l.b16 %v171
    %v737 = vunpack.c.h.b16 %v171
    %v738 = vunpack.c.l.b16 %v172
    %v739 = vunpack.c.h.b16 %v172
    %v740 = vunpack.c.l.b16 %v173
    %v741 = vunpack.c.h.b16 %v173
    %v742 = vunpack.c.l.b16 %v174
    %v743 = vunpack.c.h.b16 %v174
    %v744 = vunpack.c.l.b16 %v175
    %v745 = vunpack.c.h.b16 %v175
    %v746 = vunpack.c.l.b16 %v176
    %v747 = vunpack.c.h.b16 %v176
    %v748 = vunpack.c.l.b16 %v177
    %v749 = vunpack.c.h.b16 %v177
    %v750 = vunpack.c.l.b16 %v178
    %v751 = vunpack.c.h.b16 %v178
    %v752 = vunpack.c.l.b16 %v179
    %v753 = vunpack.c.h.b16 %v179
    %v754 = vunpack.c.l.b16 %v180
    %v755 = vunpack.c.h.b16 %v180
    %v756 = vunpack.c.l.b16 %v181
    %v757 = vunpack.c.h.b16 %v181
    %v758 = vunpack.c.l.b16 %v182
    %v759 = vunpack.c.h.b16 %v182
    %v760 = vunpack.c.l.b16 %v183
    %v761 = vunpack.c.h.b16 %v183
    %v762 = vunpack.c.l.b16 %v184
    %v763 = vunpack.c.h.b16 %v184
    %v764 = vunpack.c.l.b16 %v185
    %v765 = vunpack.c.h.b16 %v185
    %v766 = vunpack.c.l.b16 %v186
    %v767 = vunpack.c.h.b16 %v186
    %v768 = vunpack.c.l.b16 %v187
    %v769 = vunpack.c.h.b16 %v187
    %v770 = vunpack.c.l.b16 %v188
    %v771 = vunpack.c.h.b16 %v188
    %v772 = vunpack.c.l.b16 %v189
    %v773 = vunpack.c.h.b16 %v189
    %v774 = vunpack.c.l.b16 %v190
    %v775 = vunpack.c.h.b16 %v190
    %v776 = vunpack.c.l.b16 %v191
    %v777 = vunpack.c.h.b16 %v191
    %v778 = vunpack.c.l.b16 %v192
    %v779 = vunpack.c.h.b16 %v192
    %v780 = vunpack.c.l.b16 %v193
    %v781 = vunpack.c.h.b16 %v193
    %v782 = vunpack.c.l.b16 %v194
    %v783 = vunpack.c.h.b16 %v194
    %v784 = vunpack.c.l.b16 %v195
    %v785 = vunpack.c.h.b16 %v195
    %v786 = vunpack.c.l.b16 %v196
    %v787 = vunpack.c.h.b16 %v196
    %v788 = vunpack.c.l.b16 %v197
    %v789 = vunpack.c.h.b16 %v197
    %v790 = vunpack.c.l.b16 %v198
    %v791 = vunpack.c.h.b16 %v198
    %v792 = vunpack.c.l.b16 %v199
    %v793 = vunpack.c.h.b16 %v199
    %v794 = vunpack.c.l.b16 %v200
    %v795 = vunpack.c.h.b16 %v200
    %v796 = vunpack.c.l.b16 %v201
    %v797 = vunpack.c.h.b16 %v201
    %v798 = vunpack.c.l.b16 %v202
    %v799 = vunpack.c.h.b16 %v202
    %v800 = vunpack.c.l.b16 %v203
    %v801 = vunpack.c.h.b16 %v203
    %v802 = vunpack.c.l.b16 %v204
    %v803 = vunpack.c.h.b16 %v204
    %v804 = vunpack.c.l.b16 %v205
    %v805 = vunpack.c.h.b16 %v205
    %v806 = vunpack.c.l.b16 %v206
    %v807 = vunpack.c.h.b16 %v206
    %v808 = vunpack.c.l.b16 %v207
    %v809 = vunpack.c.h.b16 %v207
    %v810 = vunpack.c.l.b16 %v208
    %v811 = vunpack.c.h.b16 %v208
    %v812 = vunpack.c.l.b16 %v209
    %v813 = vunpack.c.h.b16 %v209
    %v814 = vunpack.c.l.b16 %v210
    %v815 = vunpack.c.h.b16 %v210
    %v816 = vunpack.c.l.b16 %v211
    %v817 = vunpack.c.h.b16 %v211
    %v818 = vunpack.c.l.b16 %v212
    %v819 = vunpack.c.h.b16 %v212
    %v820 = vunpack.c.l.b16 %v213
    %v821 = vunpack.c.h.b16 %v213
    %v822 = vunpack.c.l.b16 %v214
    %v823 = vunpack.c.h.b16 %v214
    %v824 = vunpack.c.l.b16 %v215
    %v825 = vunpack.c.h.b16 %v215
    %v826 = vunpack.c.l.b16 %v216
    %v827 = vunpack.c.h.b16 %v216
    %v828 = vunpack.c.l.b16 %v217
    %v829 = vunpack.c.h.b16 %v217
    %v830 = vunpack.c.l.b16 %v218
    %v831 = vunpack.c.h.b16 %v218
    %v832 = vunpack.c.l.b16 %v219
    %v833 = vunpack.c.h.b16 %v219
    %v834 = vunpack.c.l.b16 %v220
    %v835 = vunpack.c.h.b16 %v220
    %v836 = vunpack.c.l.b16 %v221
    %v837 = vunpack.c.h.b16 %v221
    %v838 = vunpack.c.l.b16 %v222
    %v839 = vunpack.c.h.b16 %v222
    %v840 = vunpack.c.l.b16 %v223
    %v841 = vunpack.c.h.b16 %v223
    %v842 = vunpack.c.l.b16 %v224
    %v843 = vunpack.c.h.b16 %v224
    %v844 = vunpack.c.l.b16 %v225
    %v845 = vunpack.c.h.b16 %v225
    %v846 = vunpack.c.l.b16 %v226
    %v847 = vunpack.c.h.b16 %v226
    %v848 = vunpack.c.l.b16 %v227
    %v849 = vunpack.c.h.b16 %v227
    %v850 = vunpack.c.l.b16 %v228
    %v851 = vunpack.c.h.b16 %v228
    %v852 = vunpack.c.l.b16 %v229
    %v853 = vunpack.c.h.b16 %v229
    %v854 = vunpack.c.l.b16 %v230
    %v855 = vunpack.c.h.b16 %v230
    %v856 = vunpack.c.l.b16 %v231
    %v857 = vunpack.c.h.b16 %v231
    %v858 = vunpack.c.l.b16 %v232
    %v859 = vunpack.c.h.b16 %v232
    %v860 = vunpack.c.l.b16 %v233
    %v861 = vunpack.c.h.b16 %v233
    %v862 = vunpack.c.l.b16 %v234
    %v863 = vunpack.c.h.b16 %v234
    %v864 = vunpack.c.l.b16 %v235
    %v865 = vunpack.c.h.b16 %v235
    %v866 = vunpack.c.l.b16 %v236
    %v867 = vunpack.c.h.b16 %v236
    %v868 = vunpack.c.l.b16 %v237
    %v869 = vunpack.c.h.b16 %v237
    %v870 = vunpack.c.l.b16 %v238
    %v871 = vunpack.c.h.b16 %v238
    %v872 = vunpack.c.l.b16 %v239
    %v873 = vunpack.c.h.b16 %v239
    %v874 = vunpack.c.l.b16 %v240
    %v875 = vunpack.c.h.b16 %v240
    %v876 = vunpack.c.l.b16 %v241
    %v877 = vunpack.c.h.b16 %v241
    %v878 = vunpack.c.l.b16 %v242
    %v879 = vunpack.c.h.b16 %v242
    %v880 = vunpack.c.l.b16 %v243
    %v881 = vunpack.c.h.b16 %v243
    %v882 = vunpack.c.l.b16 %v244
    %v883 = vunpack.c.h.b16 %v244
    %v884 = vunpack.c.l.b16 %v245
    %v885 = vunpack.c.h.b16 %v245
    %v886 = vunpack.c.l.b16 %v246
    %v887 = vunpack.c.h.b16 %v246
    %v888 = vunpack.c.l.b16 %v247
    %v889 = vunpack.c.h.b16 %v247
    %v890 = vunpack.c.l.b16 %v248
    %v891 = vunpack.c.h.b16 %v248
    %v892 = vunpack.c.l.b16 %v249
    %v893 = vunpack.c.h.b16 %v249
    %v894 = vunpack.c.l.b16 %v250
    %v895 = vunpack.c.h.b16 %v250
    %v896 = vunpack.c.l.b16 %v251
    %v897 = vunpack.c.h.b16 %v251
    %v898 = vunpack.c.l.b16 %v252
    %v899 = vunpack.c.h.b16 %v252
    %v900 = vunpack.c.l.b16 %v253
    %v901 = vunpack.c.h.b16 %v253
    %v902 = vunpack.c.l.b16 %v254
    %v903 = vunpack.c.h.b16 %v254
    %v904 = vunpack.c.l.b16 %v255
    %v905 = vunpack.c.h.b16 %v255
    %v906 = vunpack.c.l.b16 %v256
    %v907 = vunpack.c.h.b16 %v256
    %v908 = vunpack.c.l.b16 %v257
    %v909 = vunpack.c.h.b16 %v257
    %v910 = vunpack.c.l.b16 %v258
    %v911 = vunpack.c.h.b16 %v258
    %v912 = vunpack.c.l.b16 %v259
    %v913 = vunpack.c.h.b16 %v259
    %v914 = vunpack.c.l.b16 %v260
    %v915 = vunpack.c.h.b16 %v260
    %v916 = vunpack.c.l.b16 %v261
    %v917 = vunpack.c.h.b16 %v261
    %v918 = vunpack.c.l.b16 %v262
    %v919 = vunpack.c.h.b16 %v262
    %v920 = vunpack.c.l.b16 %v263
    %v921 = vunpack.c.h.b16 %v263
    %v922 = vunpack.c.l.b16 %v264
    %v923 = vunpack.c.h.b16 %v264
    %v924 = vunpack.c.l.b16 %v265
    %v925 = vunpack.c.h.b16 %v265
    %v926 = vunpack.c.l.b16 %v266
    %v927 = vunpack.c.h.b16 %v266
    %v928 = vunpack.c.l.b16 %v267
    %v929 = vunpack.c.h.b16 %v267
    %v930 = vunpack.c.l.b16 %v268
    %v931 = vunpack.c.h.b16 %v268
    %v932 = vunpack.c.l.b16 %v269
    %v933 = vunpack.c.h.b16 %v269
    %v934 = vunpack.c.l.b16 %v270
    %v935 = vunpack.c.h.b16 %v270
    %v936 = vunpack.c.l.b16 %v271
    %v937 = vunpack.c.h.b16 %v271
    %v938 = vunpack.c.l.b16 %v272
    %v939 = vunpack.c.h.b16 %v272
    %v940 = vunpack.c.l.b16 %v273
    %v941 = vunpack.c.h.b16 %v273
    %v942 = vunpack.c.l.b16 %v274
    %v943 = vunpack.c.h.b16 %v274
    %v944 = vunpack.c.l.b16 %v275
    %v945 = vunpack.c.h.b16 %v275
    %v946 = vunpack.c.l.b16 %v276
    %v947 = vunpack.c.h.b16 %v276
    %v948 = vunpack.c.l.b16 %v277
    %v949 = vunpack.c.h.b16 %v277
    %v950 = vunpack.c.l.b16 %v278
    %v951 = vunpack.c.h.b16 %v278
    %v952 = vunpack.c.l.b16 %v279
    %v953 = vunpack.c.h.b16 %v279
    %v954 = vunpack.c.l.b16 %v280
    %v955 = vunpack.c.h.b16 %v280
    %v956 = vunpack.c.l.b16 %v281
    %v957 = vunpack.c.h.b16 %v281
    %v958 = vunpack.c.l.b16 %v282
    %v959 = vunpack.c.h.b16 %v282
    %v960 = vunpack.c.l.b16 %v283
    %v961 = vunpack.c.h.b16 %v283
    %v962 = vunpack.c.l.b16 %v284
    %v963 = vunpack.c.h.b16 %v284
    %v964 = vunpack.c.l.b16 %v285
    %v965 = vunpack.c.h.b16 %v285
    %v966 = vunpack.c.l.b16 %v286
    %v967 = vunpack.c.h.b16 %v286
    %v968 = vunpack.c.l.b16 %v287
    %v969 = vunpack.c.h.b16 %v287
    %v970 = vunpack.c.l.b16 %v288
    %v971 = vunpack.c.h.b16 %v288
    %v972 = vunpack.c.l.b16 %v289
    %v973 = vunpack.c.h.b16 %v289
    %v974 = vunpack.c.l.b16 %v290
    %v975 = vunpack.c.h.b16 %v290
    %v976 = vunpack.c.l.b16 %v291
    %v977 = vunpack.c.h.b16 %v291
    %v978 = vunpack.c.l.b16 %v292
    %v979 = vunpack.c.h.b16 %v292
    %v980 = vunpack.c.l.b16 %v293
    %v981 = vunpack.c.h.b16 %v293
    %v982 = vunpack.c.l.b16 %v294
    %v983 = vunpack.c.h.b16 %v294
    %v984 = vunpack.c.l.b16 %v295
    %v985 = vunpack.c.h.b16 %v295
    %v986 = vunpack.c.l.b16 %v296
    %v987 = vunpack.c.h.b16 %v296
    %v988 = vunpack.c.l.b16 %v297
    %v989 = vunpack.c.h.b16 %v297
    %v990 = vunpack.c.l.b16 %v298
    %v991 = vunpack.c.h.b16 %v298
    %v992 = vunpack.c.l.b16 %v299
    %v993 = vunpack.c.h.b16 %v299
    %v994 = vunpack.c.l.b16 %v300
    %v995 = vunpack.c.h.b16 %v300
    %v996 = vunpack.c.l.b16 %v301
    %v997 = vunpack.c.h.b16 %v301
    %v998 = vunpack.c.l.b16 %v302
    %v999 = vunpack.c.h.b16 %v302
    %v1000 = vunpack.c.l.b16 %v303
    %v1001 = vunpack.c.h.b16 %v303
    %v1002 = vunpack.c.l.b16 %v304
    %v1003 = vunpack.c.h.b16 %v304
    %v1004 = vunpack.c.l.b16 %v305
    %v1005 = vunpack.c.h.b16 %v305
    %v1006 = vunpack.c.l.b16 %v306
    %v1007 = vunpack.c.h.b16 %v306
    %v1008 = vunpack.c.l.b16 %v307
    %v1009 = vunpack.c.h.b16 %v307
    %v1010 = vunpack.c.l.b16 %v308
    %v1011 = vunpack.c.h.b16 %v308
    %v1012 = vunpack.c.l.b16 %v309
    %v1013 = vunpack.c.h.b16 %v309
    %v1014 = vunpack.c.l.b16 %v310
    %v1015 = vunpack.c.h.b16 %v310
    %v1016 = vunpack.c.l.b16 %v311
    %v1017 = vunpack.c.h.b16 %v311
    %v1018 = vunpack.c.l.b16 %v312
    %v1019 = vunpack.c.h.b16 %v312
    %v1020 = vunpack.c.l.b16 %v313
    %v1021 = vunpack.c.h.b16 %v313
    %v1022 = vunpack.c.l.b16 %v314
    %v1023 = vunpack.c.h.b16 %v314
    %v1024 = vunpack.c.l.b16 %v315
    %v1025 = vunpack.c.h.b16 %v315
    %v1026 = vunpack.c.l.b16 %v316
    %v1027 = vunpack.c.h.b16 %v316
    %v1028 = vunpack.c.l.b16 %v317
    %v1029 = vunpack.c.h.b16 %v317
    %v1030 = vunpack.c.l.b16 %v318
    %v1031 = vunpack.c.h.b16 %v318
    %v1032 = vunpack.c.l.b16 %v319
    %v1033 = vunpack.c.h.b16 %v319
    %v1034 = vunpack.c.l.b16 %v320
    %v1035 = vunpack.c.h.b16 %v320
    %v1036 = vunpack.c.l.b16 %v321
    %v1037 = vunpack.c.h.b16 %v321
    %v1038 = vunpack.c.l.b16 %v322
    %v1039 = vunpack.c.h.b16 %v322
    %v1040 = vunpack.c.l.b16 %v323
    %v1041 = vunpack.c.h.b16 %v323
    %v1042 = vunpack.c.l.b16 %v324
    %v1043 = vunpack.c.h.b16 %v324
    %v1044 = vunpack.c.l.b16 %v325
    %v1045 = vunpack.c.h.b16 %v325
    %v1046 = vunpack.c.l.b16 %v326
    %v1047 = vunpack.c.h.b16 %v326
    %v1048 = vunpack.c.l.b16 %v327
    %v1049 = vunpack.c.h.b16 %v327
    %v1050 = vunpack.c.l.b16 %v328
    %v1051 = vunpack.c.h.b16 %v328
    %v1052 = vunpack.c.l.b16 %v329
    %v1053 = vunpack.c.h.b16 %v329
    %v1054 = vunpack.c.l.b16 %v330
    %v1055 = vunpack.c.h.b16 %v330
    %v1056 = vunpack.c.l.b16 %v331
    %v1057 = vunpack.c.h.b16 %v331
    %v1058 = vunpack.c.l.b16 %v332
    %v1059 = vunpack.c.h.b16 %v332
    %v1060 = vunpack.c.l.b16 %v333
    %v1061 = vunpack.c.h.b16 %v333
    %v1062 = vunpack.c.l.b16 %v334
    %v1063 = vunpack.c.h.b16 %v334
    %v1064 = vunpack.c.l.b16 %v335
    %v1065 = vunpack.c.h.b16 %v335
    %v1066 = vunpack.c.l.b16 %v336
    %v1067 = vunpack.c.h.b16 %v336
    %v1068 = vunpack.c.l.b16 %v337
    %v1069 = vunpack.c.h.b16 %v337
    %v1070 = vunpack.c.l.b16 %v338
    %v1071 = vunpack.c.h.b16 %v338
    %v1072 = vunpack.c.l.b16 %v339
    %v1073 = vunpack.c.h.b16 %v339
    %v1074 = vunpack.c.l.b16 %v340
    %v1075 = vunpack.c.h.b16 %v340
    %v1076 = vunpack.c.l.b16 %v341
    %v1077 = vunpack.c.h.b16 %v341
    %v1078 = vunpack.c.l.b16 %v342
    %v1079 = vunpack.c.h.b16 %v342
    %v1080 = vunpack.c.l.b16 %v343
    %v1081 = vunpack.c.h.b16 %v343
    %v1082 = vunpack.c.l.b16 %v344
    %v1083 = vunpack.c.h.b16 %v344
    %v1084 = vunpack.c.l.b16 %v345
    %v1085 = vunpack.c.h.b16 %v345
    %v1086 = vunpack.c.l.b16 %v346
    %v1087 = vunpack.c.h.b16 %v346
    %v1088 = vunpack.c.l.b16 %v347
    %v1089 = vunpack.c.h.b16 %v347
    %v1090 = vunpack.c.l.b16 %v348
    %v1091 = vunpack.c.h.b16 %v348
    %v1092 = vunpack.c.l.b16 %v349
    %v1093 = vunpack.c.h.b16 %v349
    %v1094 = vunpack.c.l.b16 %v350
    %v1095 = vunpack.c.h.b16 %v350
    %v1096 = vunpack.c.l.b16 %v351
    %v1097 = vunpack.c.h.b16 %v351
    %v1098 = vunpack.c.l.b16 %v352
    %v1099 = vunpack.c.h.b16 %v352
    %v1100 = vunpack.c.l.b16 %v353
    %v1101 = vunpack.c.h.b16 %v353
    %v1102 = vunpack.c.l.b16 %v354
    %v1103 = vunpack.c.h.b16 %v354
    %v1104 = vunpack.c.l.b16 %v355
    %v1105 = vunpack.c.h.b16 %v355
    %v1106 = vunpack.c.l.b16 %v356
    %v1107 = vunpack.c.h.b16 %v356
    %v1108 = vunpack.c.l.b16 %v357
    %v1109 = vunpack.c.h.b16 %v357
    %v1110 = vunpack.c.l.b16 %v358
    %v1111 = vunpack.c.h.b16 %v358
    %v1112 = vunpack.c.l.b16 %v359
    %v1113 = vunpack.c.h.b16 %v359
    %v1114 = vunpack.c.l.b16 %v360
    %v1115 = vunpack.c.h.b16 %v360
    %v1116 = vunpack.c.l.b16 %v361
    %v1117 = vunpack.c.h.b16 %v361
    %v1118 = vunpack.c.l.b16 %v362
    %v1119 = vunpack.c.h.b16 %v362
    %v1120 = vunpack.c.l.b16 %v363
    %v1121 = vunpack.c.h.b16 %v363
    %v1122 = vunpack.c.l.b16 %v364
    %v1123 = vunpack.c.h.b16 %v364
    %v1124 = vunpack.c.l.b16 %v365
    %v1125 = vunpack.c.h.b16 %v365
    %v1126 = vunpack.c.l.b16 %v366
    %v1127 = vunpack.c.h.b16 %v366
    %v1128 = vunpack.c.l.b16 %v367
    %v1129 = vunpack.c.h.b16 %v367
    %v1130 = vunpack.c.l.b16 %v368
    %v1131 = vunpack.c.h.b16 %v368
    %v1132 = vunpack.c.l.b16 %v369
    %v1133 = vunpack.c.h.b16 %v369
    %v1134 = vunpack.c.l.b16 %v370
    %v1135 = vunpack.c.h.b16 %v370
    %v1136 = vunpack.c.l.b16 %v371
    %v1137 = vunpack.c.h.b16 %v371
    %v1138 = vunpack.c.l.b16 %v372
    %v1139 = vunpack.c.h.b16 %v372
    %v1140 = vunpack.c.l.b16 %v373
    %v1141 = vunpack.c.h.b16 %v373
    %v1142 = vunpack.c.l.b16 %v374
    %v1143 = vunpack.c.h.b16 %v374
    %v1144 = vunpack.c.l.b16 %v375
    %v1145 = vunpack.c.h.b16 %v375
    %v1146 = vunpack.c.l.b16 %v376
    %v1147 = vunpack.c.h.b16 %v376
    %v1148 = vunpack.c.l.b16 %v377
    %v1149 = vunpack.c.h.b16 %v377
    %v1150 = vunpack.c.l.b16 %v378
    %v1151 = vunpack.c.h.b16 %v378
    %v1152 = vunpack.c.l.b16 %v379
    %v1153 = vunpack.c.h.b16 %v379
    %v1154 = vunpack.c.l.b16 %v380
    %v1155 = vunpack.c.h.b16 %v380
    %v1156 = vunpack.c.l.b16 %v381
    %v1157 = vunpack.c.h.b16 %v381
    %v1158 = vunpack.c.l.b16 %v382
    %v1159 = vunpack.c.h.b16 %v382
    %v1160 = vunpack.c.l.b16 %v383
    %v1161 = vunpack.c.h.b16 %v383
    %v1162 = vunpack.c.l.b16 %v384
    %v1163 = vunpack.c.h.b16 %v384
    %v1164 = vunpack.c.l.b16 %v385
    %v1165 = vunpack.c.h.b16 %v385
    %v1166 = vunpack.c.l.b16 %v386
    %v1167 = vunpack.c.h.b16 %v386
    %v1168 = vunpack.c.l.b16 %v387
    %v1169 = vunpack.c.h.b16 %v387
    %v1170 = vunpack.c.l.b16 %v388
    %v1171 = vunpack.c.h.b16 %v388
    %v1172 = vunpack.c.l.b16 %v389
    %v1173 = vunpack.c.h.b16 %v389
    %v1174 = vunpack.c.l.b16 %v390
    %v1175 = vunpack.c.h.b16 %v390
    %v1176 = vunpack.c.l.b16 %v391
    %v1177 = vunpack.c.h.b16 %v391
    %v1178 = vunpack.c.l.b16 %v392
    %v1179 = vunpack.c.h.b16 %v392
    %v1180 = vunpack.c.l.b16 %v393
    %v1181 = vunpack.c.h.b16 %v393
    %v1182 = vunpack.c.l.b16 %v394
    %v1183 = vunpack.c.h.b16 %v394
    %v1184 = vunpack.c.l.b16 %v395
    %v1185 = vunpack.c.h.b16 %v395
    %v1186 = vunpack.c.l.b16 %v396
    %v1187 = vunpack.c.h.b16 %v396
    %v1188 = vunpack.c.l.b16 %v397
    %v1189 = vunpack.c.h.b16 %v397
    %v1190 = vunpack.c.l.b16 %v398
    %v1191 = vunpack.c.h.b16 %v398
    %v1192 = vunpack.c.l.b16 %v399
    %v1193 = vunpack.c.h.b16 %v399
    %v1194 = vunpack.c.l.b16 %v400
    %v1195 = vunpack.c.h.b16 %v400
    %v1196 = vunpack.c.l.b16 %v401
    %v1197 = vunpack.c.h.b16 %v401
    %v1198 = vpack.c.b16 %v690, %v686
    %v1199 = vpack.c.b16 %v691, %v687
    %v1200 = vpack.c.b16 %v692, %v688
    %v1201 = vpack.c.b16 %v693, %v689
    %v1202 = vpack.c.b16 %v698, %v694
    %v1203 = vpack.c.b16 %v699, %v695
    %v1204 = vpack.c.b16 %v700, %v696
    %v1205 = vpack.c.b16 %v701, %v697
    %v1206 = vpack.c.b16 %v706, %v702
    %v1207 = vpack.c.b16 %v707, %v703
    %v1208 = vpack.c.b16 %v708, %v704
    %v1209 = vpack.c.b16 %v709, %v705
    %v1210 = vpack.c.b16 %v714, %v710
    %v1211 = vpack.c.b16 %v715, %v711
    %v1212 = vpack.c.b16 %v716, %v712
    %v1213 = vpack.c.b16 %v717, %v713
    %v1214 = vpack.c.b16 %v722, %v718
    %v1215 = vpack.c.b16 %v723, %v719
    %v1216 = vpack.c.b16 %v724, %v720
    %v1217 = vpack.c.b16 %v725, %v721
    %v1218 = vpack.c.b16 %v730, %v726
    %v1219 = vpack.c.b16 %v731, %v727
    %v1220 = vpack.c.b16 %v732, %v728
    %v1221 = vpack.c.b16 %v733, %v729
    %v1222 = vpack.c.b16 %v738, %v734
    %v1223 = vpack.c.b16 %v739, %v735
    %v1224 = vpack.c.b16 %v740, %v736
    %v1225 = vpack.c.b16 %v741, %v737
    %v1226 = vpack.c.b16 %v746, %v742
    %v1227 = vpack.c.b16 %v747, %v743
    %v1228 = vpack.c.b16 %v748, %v744
    %v1229 = vpack.c.b16 %v749, %v745
    %v1230 = vpack.c.b16 %v754, %v750
    %v1231 = vpack.c.b16 %v755, %v751
    %v1232 = vpack.c.b16 %v756, %v752
    %v1233 = vpack.c.b16 %v757, %v753
    %v1234 = vpack.c.b16 %v762, %v758
    %v1235 = vpack.c.b16 %v763, %v759
    %v1236 = vpack.c.b16 %v764, %v760
    %v1237 = vpack.c.b16 %v765, %v761
    %v1238 = vpack.c.b16 %v770, %v766
    %v1239 = vpack.c.b16 %v771, %v767
    %v1240 = vpack.c.b16 %v772, %v768
    %v1241 = vpack.c.b16 %v773, %v769
    %v1242 = vpack.c.b16 %v778, %v774
    %v1243 = vpack.c.b16 %v779, %v775
    %v1244 = vpack.c.b16 %v780, %v776
    %v1245 = vpack.c.b16 %v781, %v777
    %v1246 = vpack.c.b16 %v786, %v782
    %v1247 = vpack.c.b16 %v787, %v783
    %v1248 = vpack.c.b16 %v788, %v784
    %v1249 = vpack.c.b16 %v789, %v785
    %v1250 = vpack.c.b16 %v794, %v790
    %v1251 = vpack.c.b16 %v795, %v791
    %v1252 = vpack.c.b16 %v796, %v792
    %v1253 = vpack.c.b16 %v797, %v793
    %v1254 = vpack.c.b16 %v802, %v798
    %v1255 = vpack.c.b16 %v803, %v799
    %v1256 = vpack.c.b16 %v804, %v800
    %v1257 = vpack.c.b16 %v805, %v801
    %v1258 = vpack.c.b16 %v810, %v806
    %v1259 = vpack.c.b16 %v811, %v807
    %v1260 = vpack.c.b16 %v812, %v808
    %v1261 = vpack.c.b16 %v813, %v809
    %v1262 = vpack.c.b16 %v818, %v814
    %v1263 = vpack.c.b16 %v819, %v815
    %v1264 = vpack.c.b16 %v820, %v816
    %v1265 = vpack.c.b16 %v821, %v817
    %v1266 = vpack.c.b16 %v826, %v822
    %v1267 = vpack.c.b16 %v827, %v823
    %v1268 = vpack.c.b16 %v828, %v824
    %v1269 = vpack.c.b16 %v829, %v825
    %v1270 = vpack.c.b16 %v834, %v830
    %v1271 = vpack.c.b16 %v835, %v831
    %v1272 = vpack.c.b16 %v836, %v832
    %v1273 = vpack.c.b16 %v837, %v833
    %v1274 = vpack.c.b16 %v842, %v838
    %v1275 = vpack.c.b16 %v843, %v839
    %v1276 = vpack.c.b16 %v844, %v840
    %v1277 = vpack.c.b16 %v845, %v841
    %v1278 = vpack.c.b16 %v850, %v846
    %v1279 = vpack.c.b16 %v851, %v847
    %v1280 = vpack.c.b16 %v852, %v848
    %v1281 = vpack.c.b16 %v853, %v849
    %v1282 = vpack.c.b16 %v858, %v854
    %v1283 = vpack.c.b16 %v859, %v855
    %v1284 = vpack.c.b16 %v860, %v856
    %v1285 = vpack.c.b16 %v861, %v857
    %v1286 = vpack.c.b16 %v866, %v862
    %v1287 = vpack.c.b16 %v867, %v863
    %v1288 = vpack.c.b16 %v868, %v864
    %v1289 = vpack.c.b16 %v869, %v865
    %v1290 = vpack.c.b16 %v874, %v870
    %v1291 = vpack.c.b16 %v875, %v871
    %v1292 = vpack.c.b16 %v876, %v872
    %v1293 = vpack.c.b16 %v877, %v873
    %v1294 = vpack.c.b16 %v882, %v878
    %v1295 = vpack.c.b16 %v883, %v879
    %v1296 = vpack.c.b16 %v884, %v880
    %v1297 = vpack.c.b16 %v885, %v881
    %v1298 = vpack.c.b16 %v890, %v886
    %v1299 = vpack.c.b16 %v891, %v887
    %v1300 = vpack.c.b16 %v892, %v888
    %v1301 = vpack.c.b16 %v893, %v889
    %v1302 = vpack.c.b16 %v898, %v894
    %v1303 = vpack.c.b16 %v899, %v895
    %v1304 = vpack.c.b16 %v900, %v896
    %v1305 = vpack.c.b16 %v901, %v897
    %v1306 = vpack.c.b16 %v906, %v902
    %v1307 = vpack.c.b16 %v907, %v903
    %v1308 = vpack.c.b16 %v908, %v904
    %v1309 = vpack.c.b16 %v909, %v905
    %v1310 = vpack.c.b16 %v914, %v910
    %v1311 = vpack.c.b16 %v915, %v911
    %v1312 = vpack.c.b16 %v916, %v912
    %v1313 = vpack.c.b16 %v917, %v913
    %v1314 = vpack.c.b16 %v922, %v918
    %v1315 = vpack.c.b16 %v923, %v919
    %v1316 = vpack.c.b16 %v924, %v920
    %v1317 = vpack.c.b16 %v925, %v921
    %v1318 = vpack.c.b16 %v930, %v926
    %v1319 = vpack.c.b16 %v931, %v927
    %v1320 = vpack.c.b16 %v932, %v928
    %v1321 = vpack.c.b16 %v933, %v929
    %v1322 = vpack.c.b16 %v938, %v934
    %v1323 = vpack.c.b16 %v939, %v935
    %v1324 = vpack.c.b16 %v940, %v936
    %v1325 = vpack.c.b16 %v941, %v937
    %v1326 = vpack.c.b16 %v946, %v942
    %v1327 = vpack.c.b16 %v947, %v943
    %v1328 = vpack.c.b16 %v948, %v944
    %v1329 = vpack.c.b16 %v949, %v945
    %v1330 = vpack.c.b16 %v954, %v950
    %v1331 = vpack.c.b16 %v955, %v951
    %v1332 = vpack.c.b16 %v956, %v952
    %v1333 = vpack.c.b16 %v957, %v953
    %v1334 = vpack.c.b16 %v962, %v958
    %v1335 = vpack.c.b16 %v963, %v959
    %v1336 = vpack.c.b16 %v964, %v960
    %v1337 = vpack.c.b16 %v965, %v961
    %v1338 = vpack.c.b16 %v970, %v966
    %v1339 = vpack.c.b16 %v971, %v967
    %v1340 = vpack.c.b16 %v972, %v968
    %v1341 = vpack.c.b16 %v973, %v969
    %v1342 = vpack.c.b16 %v978, %v974
    %v1343 = vpack.c.b16 %v979, %v975
    %v1344 = vpack.c.b16 %v980, %v976
    %v1345 = vpack.c.b16 %v981, %v977
    %v1346 = vpack.c.b16 %v986, %v982
    %v1347 = vpack.c.b16 %v987, %v983
    %v1348 = vpack.c.b16 %v988, %v984
    %v1349 = vpack.c.b16 %v989, %v985
    %v1350 = vpack.c.b16 %v994, %v990
    %v1351 = vpack.c.b16 %v995, %v991
    %v1352 = vpack.c.b16 %v996, %v992
    %v1353 = vpack.c.b16 %v997, %v993
    %v1354 = vpack.c.b16 %v1002, %v998
    %v1355 = vpack.c.b16 %v1003, %v999
    %v1356 = vpack.c.b16 %v1004, %v1000
    %v1357 = vpack.c.b16 %v1005, %v1001
    %v1358 = vpack.c.b16 %v1010, %v1006
    %v1359 = vpack.c.b16 %v1011, %v1007
    %v1360 = vpack.c.b16 %v1012, %v1008
    %v1361 = vpack.c.b16 %v1013, %v1009
    %v1362 = vpack.c.b16 %v1018, %v1014
    %v1363 = vpack.c.b16 %v1019, %v1015
    %v1364 = vpack.c.b16 %v1020, %v1016
    %v1365 = vpack.c.b16 %v1021, %v1017
    %v1366 = vpack.c.b16 %v1026, %v1022
    %v1367 = vpack.c.b16 %v1027, %v1023
    %v1368 = vpack.c.b16 %v1028, %v1024
    %v1369 = vpack.c.b16 %v1029, %v1025
    %v1370 = vpack.c.b16 %v1034, %v1030
    %v1371 = vpack.c.b16 %v1035, %v1031
    %v1372 = vpack.c.b16 %v1036, %v1032
    %v1373 = vpack.c.b16 %v1037, %v1033
    %v1374 = vpack.c.b16 %v1042, %v1038
    %v1375 = vpack.c.b16 %v1043, %v1039
    %v1376 = vpack.c.b16 %v1044, %v1040
    %v1377 = vpack.c.b16 %v1045, %v1041
    %v1378 = vpack.c.b16 %v1050, %v1046
    %v1379 = vpack.c.b16 %v1051, %v1047
    %v1380 = vpack.c.b16 %v1052, %v1048
    %v1381 = vpack.c.b16 %v1053, %v1049
    %v1382 = vpack.c.b16 %v1058, %v1054
    %v1383 = vpack.c.b16 %v1059, %v1055
    %v1384 = vpack.c.b16 %v1060, %v1056
    %v1385 = vpack.c.b16 %v1061, %v1057
    %v1386 = vpack.c.b16 %v1066, %v1062
    %v1387 = vpack.c.b16 %v1067, %v1063
    %v1388 = vpack.c.b16 %v1068, %v1064
    %v1389 = vpack.c.b16 %v1069, %v1065
    %v1390 = vpack.c.b16 %v1074, %v1070
    %v1391 = vpack.c.b16 %v1075, %v1071
    %v1392 = vpack.c.b16 %v1076, %v1072
    %v1393 = vpack.c.b16 %v1077, %v1073
    %v1394 = vpack.c.b16 %v1082, %v1078
    %v1395 = vpack.c.b16 %v1083, %v1079
    %v1396 = vpack.c.b16 %v1084, %v1080
    %v1397 = vpack.c.b16 %v1085, %v1081
    %v1398 = vpack.c.b16 %v1090, %v1086
    %v1399 = vpack.c.b16 %v1091, %v1087
    %v1400 = vpack.c.b16 %v1092, %v1088
    %v1401 = vpack.c.b16 %v1093, %v1089
    %v1402 = vpack.c.b16 %v1098, %v1094
    %v1403 = vpack.c.b16 %v1099, %v1095
    %v1404 = vpack.c.b16 %v1100, %v1096
    %v1405 = vpack.c.b16 %v1101, %v1097
    %v1406 = vpack.c.b16 %v1106, %v1102
    %v1407 = vpack.c.b16 %v1107, %v1103
    %v1408 = vpack.c.b16 %v1108, %v1104
    %v1409 = vpack.c.b16 %v1109, %v1105
    %v1410 = vpack.c.b16 %v1114, %v1110
    %v1411 = vpack.c.b16 %v1115, %v1111
    %v1412 = vpack.c.b16 %v1116, %v1112
    %v1413 = vpack.c.b16 %v1117, %v1113
    %v1414 = vpack.c.b16 %v1122, %v1118
    %v1415 = vpack.c.b16 %v1123, %v1119
    %v1416 = vpack.c.b16 %v1124, %v1120
    %v1417 = vpack.c.b16 %v1125, %v1121
    %v1418 = vpack.c.b16 %v1130, %v1126
    %v1419 = vpack.c.b16 %v1131, %v1127
    %v1420 = vpack.c.b16 %v1132, %v1128
    %v1421 = vpack.c.b16 %v1133, %v1129
    %v1422 = vpack.c.b16 %v1138, %v1134
    %v1423 = vpack.c.b16 %v1139, %v1135
    %v1424 = vpack.c.b16 %v1140, %v1136
    %v1425 = vpack.c.b16 %v1141, %v1137
    %v1426 = vpack.c.b16 %v1146, %v1142
    %v1427 = vpack.c.b16 %v1147, %v1143
    %v1428 = vpack.c.b16 %v1148, %v1144
    %v1429 = vpack.c.b16 %v1149, %v1145
    %v1430 = vpack.c.b16 %v1154, %v1150
    %v1431 = vpack.c.b16 %v1155, %v1151
    %v1432 = vpack.c.b16 %v1156, %v1152
    %v1433 = vpack.c.b16 %v1157, %v1153
    %v1434 = vpack.c.b16 %v1162, %v1158
    %v1435 = vpack.c.b16 %v1163, %v1159
    %v1436 = vpack.c.b16 %v1164, %v1160
    %v1437 = vpack.c.b16 %v1165, %v1161
    %v1438 = vpack.c.b16 %v1170, %v1166
    %v1439 = vpack.c.b16 %v1171, %v1167
    %v1440 = vpack.c.b16 %v1172, %v1168
    %v1441 = vpack.c.b16 %v1173, %v1169
    %v1442 = vpack.c.b16 %v1178, %v1174
    %v1443 = vpack.c.b16 %v1179, %v1175
    %v1444 = vpack.c.b16 %v1180, %v1176
    %v1445 = vpack.c.b16 %v1181, %v1177
    %v1446 = vpack.c.b16 %v1186, %v1182
    %v1447 = vpack.c.b16 %v1187, %v1183
    %v1448 = vpack.c.b16 %v1188, %v1184
    %v1449 = vpack.c.b16 %v1189, %v1185
    %v1450 = vpack.c.b16 %v1194, %v1190
    %v1451 = vpack.c.b16 %v1195, %v1191
    %v1452 = vpack.c.b16 %v1196, %v1192
    %v1453 = vpack.c.b16 %v1197, %v1193
    %1710 = vmatprep.subr.bf16.mxu0 %v1227
    %1711 = vmatpush1.bf16.msra.mxu0 %v1226
    %1712 = vmatprep.subr.bf16.mxu0 %v1223
    %1713 = vmatpush1.bf16.msra.mxu0 %v1222
    %1714 = vmatprep.subr.bf16.mxu0 %v1219
    %1715 = vmatpush1.bf16.msra.mxu0 %v1218
    %1716 = vmatprep.subr.bf16.mxu0 %v1215
    %1717 = vmatpush1.bf16.msra.mxu0 %v1214
    %1718 = vmatprep.subr.bf16.mxu0 %v1211
    %1719 = vmatpush1.bf16.msra.mxu0 %v1210
    %1720 = vmatprep.subr.bf16.mxu0 %v1207
    %1721 = vmatpush1.bf16.msra.mxu0 %v1206
    %1722 = vmatprep.subr.bf16.mxu0 %v1203
    %1723 = vmatpush1.bf16.msra.mxu0 %v1202
    %1724 = vmatprep.subr.bf16.mxu0 %v1199
    %1725 = vmatpush1.bf16.msra.mxu0 %v1198
    %1726 = vmatprep.subr.bf16.mxu0 %v1259
    %1727 = vmatpush2.bf16.msra.mxu0 %v1258
    %1728 = vmatprep.subr.bf16.mxu0 %v1255
    %1729 = vmatpush2.bf16.msra.mxu0 %v1254
    %1730 = vmatprep.subr.bf16.mxu0 %v1251
    %1731 = vmatpush2.bf16.msra.mxu0 %v1250
    %1732 = vmatprep.subr.bf16.mxu0 %v1247
    %1733 = vmatpush2.bf16.msra.mxu0 %v1246
    %1734 = vmatprep.subr.bf16.mxu0 %v1243
    %1735 = vmatpush2.bf16.msra.mxu0 %v1242
    %1736 = vmatprep.subr.bf16.mxu0 %v1239
    %1737 = vmatpush2.bf16.msra.mxu0 %v1238
    %1738 = vmatprep.subr.bf16.mxu0 %v1235
    %1739 = vmatpush2.bf16.msra.mxu0 %v1234
    %1740 = vmatprep.subr.bf16.mxu0 %v1231
    %1741 = vmatpush2.bf16.msra.mxu0 %v1230
    %1742 = vmatprep.mubr.bf16.mxu0 %v415
    %1743 = vmatmul.mubr.bf16.gmra.mxu0 %v414
    %v1744 = vpop.f32.mrf.mxu0
    %v1745 = vadd.f32 0.0, %v1744
    %v1746 = vpop.f32.mrf.mxu0
    %v1747 = vadd.f32 0.0, %v1746
    %v1748 = vpop.f32.mrf.mxu0
    %v1749 = vpop.f32.mrf.mxu0
    %1750 = vdwg.mxu0
    %1751 = vmatprep.subr.bf16.mxu0 %v1291
    %1752 = vmatpush1.bf16.msra.mxu0 %v1290
    %1753 = vmatprep.subr.bf16.mxu0 %v1287
    %1754 = vmatpush1.bf16.msra.mxu0 %v1286
    %1755 = vmatprep.subr.bf16.mxu0 %v1283
    %1756 = vmatpush1.bf16.msra.mxu0 %v1282
    %1757 = vmatprep.subr.bf16.mxu0 %v1279
    %1758 = vmatpush1.bf16.msra.mxu0 %v1278
    %1759 = vmatprep.subr.bf16.mxu0 %v1275
    %1760 = vmatpush1.bf16.msra.mxu0 %v1274
    %1761 = vmatprep.subr.bf16.mxu0 %v1271
    %1762 = vmatpush1.bf16.msra.mxu0 %v1270
    %1763 = vmatprep.subr.bf16.mxu0 %v1267
    %1764 = vmatpush1.bf16.msra.mxu0 %v1266
    %1765 = vmatprep.subr.bf16.mxu0 %v1263
    %1766 = vmatpush1.bf16.msra.mxu0 %v1262
    %1767 = vmatprep.subr.bf16.mxu0 %v1323
    %1768 = vmatpush2.bf16.msra.mxu0 %v1322
    %1769 = vmatprep.subr.bf16.mxu0 %v1319
    %1770 = vmatpush2.bf16.msra.mxu0 %v1318
    %1771 = vmatprep.subr.bf16.mxu0 %v1315
    %1772 = vmatpush2.bf16.msra.mxu0 %v1314
    %1773 = vmatprep.subr.bf16.mxu0 %v1311
    %1774 = vmatpush2.bf16.msra.mxu0 %v1310
    %1775 = vmatprep.subr.bf16.mxu0 %v1307
    %1776 = vmatpush2.bf16.msra.mxu0 %v1306
    %1777 = vmatprep.subr.bf16.mxu0 %v1303
    %1778 = vmatpush2.bf16.msra.mxu0 %v1302
    %1779 = vmatprep.subr.bf16.mxu0 %v1299
    %1780 = vmatpush2.bf16.msra.mxu0 %v1298
    %1781 = vmatprep.subr.bf16.mxu0 %v1295
    %1782 = vmatpush2.bf16.msra.mxu0 %v1294
    %1783 = vmatprep.mubr.bf16.mxu0 %v417
    %1784 = vmatmul.mubr.bf16.gmra.mxu0 %v416
    %v1785 = vpop.f32.mrf.mxu0
    %v1786 = vadd.f32 %v1745, %v1785
    %v1787 = vpop.f32.mrf.mxu0
    %v1788 = vadd.f32 %v1747, %v1787
    %v1789 = vpop.f32.mrf.mxu0
    %v1790 = vpop.f32.mrf.mxu0
    %1791 = vdwg.mxu0
    %1792 = vmatprep.subr.bf16.mxu0 %v1355
    %1793 = vmatpush1.bf16.msra.mxu0 %v1354
    %1794 = vmatprep.subr.bf16.mxu0 %v1351
    %1795 = vmatpush1.bf16.msra.mxu0 %v1350
    %1796 = vmatprep.subr.bf16.mxu0 %v1347
    %1797 = vmatpush1.bf16.msra.mxu0 %v1346
    %1798 = vmatprep.subr.bf16.mxu0 %v1343
    %1799 = vmatpush1.bf16.msra.mxu0 %v1342
    %1800 = vmatprep.subr.bf16.mxu0 %v1339
    %1801 = vmatpush1.bf16.msra.mxu0 %v1338
    %1802 = vmatprep.subr.bf16.mxu0 %v1335
    %1803 = vmatpush1.bf16.msra.mxu0 %v1334
    %1804 = vmatprep.subr.bf16.mxu0 %v1331
    %1805 = vmatpush1.bf16.msra.mxu0 %v1330
    %1806 = vmatprep.subr.bf16.mxu0 %v1327
    %1807 = vmatpush1.bf16.msra.mxu0 %v1326
    %1808 = vmatprep.subr.bf16.mxu0 %v1387
    %1809 = vmatpush2.bf16.msra.mxu0 %v1386
    %1810 = vmatprep.subr.bf16.mxu0 %v1383
    %1811 = vmatpush2.bf16.msra.mxu0 %v1382
    %1812 = vmatprep.subr.bf16.mxu0 %v1379
    %1813 = vmatpush2.bf16.msra.mxu0 %v1378
    %1814 = vmatprep.subr.bf16.mxu0 %v1375
    %1815 = vmatpush2.bf16.msra.mxu0 %v1374
    %1816 = vmatprep.subr.bf16.mxu0 %v1371
    %1817 = vmatpush2.bf16.msra.mxu0 %v1370
    %1818 = vmatprep.subr.bf16.mxu0 %v1367
    %1819 = vmatpush2.bf16.msra.mxu0 %v1366
    %1820 = vmatprep.subr.bf16.mxu0 %v1363
    %1821 = vmatpush2.bf16.msra.mxu0 %v1362
    %1822 = vmatprep.subr.bf16.mxu0 %v1359
    %1823 = vmatpush2.bf16.msra.mxu0 %v1358
    %1824 = vmatprep.mubr.bf16.mxu0 %v419
    %1825 = vmatmul.mubr.bf16.gmra.mxu0 %v418
    %v1826 = vpop.f32.mrf.mxu0
    %v1827 = vadd.f32 %v1786, %v1826
    %v1828 = vpop.f32.mrf.mxu0
    %v1829 = vadd.f32 %v1788, %v1828
    %v1830 = vpop.f32.mrf.mxu0
    %v1831 = vpop.f32.mrf.mxu0
    %1832 = vdwg.mxu0
    %1833 = vmatprep.subr.bf16.mxu0 %v1419
    %1834 = vmatpush1.bf16.msra.mxu0 %v1418
    %1835 = vmatprep.subr.bf16.mxu0 %v1415
    %1836 = vmatpush1.bf16.msra.mxu0 %v1414
    %1837 = vmatprep.subr.bf16.mxu0 %v1411
    %1838 = vmatpush1.bf16.msra.mxu0 %v1410
    %1839 = vmatprep.subr.bf16.mxu0 %v1407
    %1840 = vmatpush1.bf16.msra.mxu0 %v1406
    %1841 = vmatprep.subr.bf16.mxu0 %v1403
    %1842 = vmatpush1.bf16.msra.mxu0 %v1402
    %1843 = vmatprep.subr.bf16.mxu0 %v1399
    %1844 = vmatpush1.bf16.msra.mxu0 %v1398
    %1845 = vmatprep.subr.bf16.mxu0 %v1395
    %1846 = vmatpush1.bf16.msra.mxu0 %v1394
    %1847 = vmatprep.subr.bf16.mxu0 %v1391
    %1848 = vmatpush1.bf16.msra.mxu0 %v1390
    %1849 = vmatprep.subr.bf16.mxu0 %v1451
    %1850 = vmatpush2.bf16.msra.mxu0 %v1450
    %1851 = vmatprep.subr.bf16.mxu0 %v1447
    %1852 = vmatpush2.bf16.msra.mxu0 %v1446
    %1853 = vmatprep.subr.bf16.mxu0 %v1443
    %1854 = vmatpush2.bf16.msra.mxu0 %v1442
    %1855 = vmatprep.subr.bf16.mxu0 %v1439
    %1856 = vmatpush2.bf16.msra.mxu0 %v1438
    %1857 = vmatprep.subr.bf16.mxu0 %v1435
    %1858 = vmatpush2.bf16.msra.mxu0 %v1434
    %1859 = vmatprep.subr.bf16.mxu0 %v1431
    %1860 = vmatpush2.bf16.msra.mxu0 %v1430
    %1861 = vmatprep.subr.bf16.mxu0 %v1427
    %1862 = vmatpush2.bf16.msra.mxu0 %v1426
    %1863 = vmatprep.subr.bf16.mxu0 %v1423
    %1864 = vmatpush2.bf16.msra.mxu0 %v1422
    %1865 = vmatprep.mubr.bf16.mxu0 %v421
    %1866 = vmatmul.mubr.bf16.gmra.mxu0 %v420
    %v1867 = vpop.f32.mrf.mxu0
    %v1868 = vadd.f32 %v1827, %v1867
    %v1869 = vpop.f32.mrf.mxu0
    %v1870 = vadd.f32 %v1829, %v1869
    %v1871 = vpop.f32.mrf.mxu0
    %v1872 = vpop.f32.mrf.mxu0
    %1873 = vdwg.mxu0
    %1874 = vmatprep.subr.bf16.mxu0 %v1229
    %1875 = vmatpush1.bf16.msra.mxu0 %v1228
    %1876 = vmatprep.subr.bf16.mxu0 %v1225
    %1877 = vmatpush1.bf16.msra.mxu0 %v1224
    %1878 = vmatprep.subr.bf16.mxu0 %v1221
    %1879 = vmatpush1.bf16.msra.mxu0 %v1220
    %1880 = vmatprep.subr.bf16.mxu0 %v1217
    %1881 = vmatpush1.bf16.msra.mxu0 %v1216
    %1882 = vmatprep.subr.bf16.mxu0 %v1213
    %1883 = vmatpush1.bf16.msra.mxu0 %v1212
    %1884 = vmatprep.subr.bf16.mxu0 %v1209
    %1885 = vmatpush1.bf16.msra.mxu0 %v1208
    %1886 = vmatprep.subr.bf16.mxu0 %v1205
    %1887 = vmatpush1.bf16.msra.mxu0 %v1204
    %1888 = vmatprep.subr.bf16.mxu0 %v1201
    %1889 = vmatpush1.bf16.msra.mxu0 %v1200
    %1890 = vmatprep.subr.bf16.mxu0 %v1261
    %1891 = vmatpush2.bf16.msra.mxu0 %v1260
    %1892 = vmatprep.subr.bf16.mxu0 %v1257
    %1893 = vmatpush2.bf16.msra.mxu0 %v1256
    %1894 = vmatprep.subr.bf16.mxu0 %v1253
    %1895 = vmatpush2.bf16.msra.mxu0 %v1252
    %1896 = vmatprep.subr.bf16.mxu0 %v1249
    %1897 = vmatpush2.bf16.msra.mxu0 %v1248
    %1898 = vmatprep.subr.bf16.mxu0 %v1245
    %1899 = vmatpush2.bf16.msra.mxu0 %v1244
    %1900 = vmatprep.subr.bf16.mxu0 %v1241
    %1901 = vmatpush2.bf16.msra.mxu0 %v1240
    %1902 = vmatprep.subr.bf16.mxu0 %v1237
    %1903 = vmatpush2.bf16.msra.mxu0 %v1236
    %1904 = vmatprep.subr.bf16.mxu0 %v1233
    %1905 = vmatpush2.bf16.msra.mxu0 %v1232
    %1906 = vmatprep.mubr.bf16.mxu0 %v415
    %1907 = vmatmul.mubr.bf16.gmra.mxu0 %v414
    %v1908 = vpop.f32.mrf.mxu0
    %v1909 = vadd.f32 0.0, %v1908
    %v1910 = vpop.f32.mrf.mxu0
    %v1911 = vadd.f32 0.0, %v1910
    %v1912 = vpop.f32.mrf.mxu0
    %v1913 = vpop.f32.mrf.mxu0
    %1914 = vdwg.mxu0
    %1915 = vmatprep.subr.bf16.mxu0 %v1293
    %1916 = vmatpush1.bf16.msra.mxu0 %v1292
    %1917 = vmatprep.subr.bf16.mxu0 %v1289
    %1918 = vmatpush1.bf16.msra.mxu0 %v1288
    %1919 = vmatprep.subr.bf16.mxu0 %v1285
    %1920 = vmatpush1.bf16.msra.mxu0 %v1284
    %1921 = vmatprep.subr.bf16.mxu0 %v1281
    %1922 = vmatpush1.bf16.msra.mxu0 %v1280
    %1923 = vmatprep.subr.bf16.mxu0 %v1277
    %1924 = vmatpush1.bf16.msra.mxu0 %v1276
    %1925 = vmatprep.subr.bf16.mxu0 %v1273
    %1926 = vmatpush1.bf16.msra.mxu0 %v1272
    %1927 = vmatprep.subr.bf16.mxu0 %v1269
    %1928 = vmatpush1.bf16.msra.mxu0 %v1268
    %1929 = vmatprep.subr.bf16.mxu0 %v1265
    %1930 = vmatpush1.bf16.msra.mxu0 %v1264
    %1931 = vmatprep.subr.bf16.mxu0 %v1325
    %1932 = vmatpush2.bf16.msra.mxu0 %v1324
    %1933 = vmatprep.subr.bf16.mxu0 %v1321
    %1934 = vmatpush2.bf16.msra.mxu0 %v1320
    %1935 = vmatprep.subr.bf16.mxu0 %v1317
    %1936 = vmatpush2.bf16.msra.mxu0 %v1316
    %1937 = vmatprep.subr.bf16.mxu0 %v1313
    %1938 = vmatpush2.bf16.msra.mxu0 %v1312
    %1939 = vmatprep.subr.bf16.mxu0 %v1309
    %1940 = vmatpush2.bf16.msra.mxu0 %v1308
    %1941 = vmatprep.subr.bf16.mxu0 %v1305
    %1942 = vmatpush2.bf16.msra.mxu0 %v1304
    %1943 = vmatprep.subr.bf16.mxu0 %v1301
    %1944 = vmatpush2.bf16.msra.mxu0 %v1300
    %1945 = vmatprep.subr.bf16.mxu0 %v1297
    %1946 = vmatpush2.bf16.msra.mxu0 %v1296
    %1947 = vmatprep.mubr.bf16.mxu0 %v417
    %1948 = vmatmul.mubr.bf16.gmra.mxu0 %v416
    %v1949 = vpop.f32.mrf.mxu0
    %v1950 = vadd.f32 %v1909, %v1949
    %v1951 = vpop.f32.mrf.mxu0
    %v1952 = vadd.f32 %v1911, %v1951
    %v1953 = vpop.f32.mrf.mxu0
    %v1954 = vpop.f32.mrf.mxu0
    %1955 = vdwg.mxu0
    %1956 = vmatprep.subr.bf16.mxu0 %v1357
    %1957 = vmatpush1.bf16.msra.mxu0 %v1356
    %1958 = vmatprep.subr.bf16.mxu0 %v1353
    %1959 = vmatpush1.bf16.msra.mxu0 %v1352
    %1960 = vmatprep.subr.bf16.mxu0 %v1349
    %1961 = vmatpush1.bf16.msra.mxu0 %v1348
    %1962 = vmatprep.subr.bf16.mxu0 %v1345
    %1963 = vmatpush1.bf16.msra.mxu0 %v1344
    %1964 = vmatprep.subr.bf16.mxu0 %v1341
    %1965 = vmatpush1.bf16.msra.mxu0 %v1340
    %1966 = vmatprep.subr.bf16.mxu0 %v1337
    %1967 = vmatpush1.bf16.msra.mxu0 %v1336
    %1968 = vmatprep.subr.bf16.mxu0 %v1333
    %1969 = vmatpush1.bf16.msra.mxu0 %v1332
    %1970 = vmatprep.subr.bf16.mxu0 %v1329
    %1971 = vmatpush1.bf16.msra.mxu0 %v1328
    %1972 = vmatprep.subr.bf16.mxu0 %v1389
    %1973 = vmatpush2.bf16.msra.mxu0 %v1388
    %1974 = vmatprep.subr.bf16.mxu0 %v1385
    %1975 = vmatpush2.bf16.msra.mxu0 %v1384
    %1976 = vmatprep.subr.bf16.mxu0 %v1381
    %1977 = vmatpush2.bf16.msra.mxu0 %v1380
    %1978 = vmatprep.subr.bf16.mxu0 %v1377
    %1979 = vmatpush2.bf16.msra.mxu0 %v1376
    %1980 = vmatprep.subr.bf16.mxu0 %v1373
    %1981 = vmatpush2.bf16.msra.mxu0 %v1372
    %1982 = vmatprep.subr.bf16.mxu0 %v1369
    %1983 = vmatpush2.bf16.msra.mxu0 %v1368
    %1984 = vmatprep.subr.bf16.mxu0 %v1365
    %1985 = vmatpush2.bf16.msra.mxu0 %v1364
    %1986 = vmatprep.subr.bf16.mxu0 %v1361
    %1987 = vmatpush2.bf16.msra.mxu0 %v1360
    %1988 = vmatprep.mubr.bf16.mxu0 %v419
    %1989 = vmatmul.mubr.bf16.gmra.mxu0 %v418
    %v1990 = vpop.f32.mrf.mxu0
    %v1991 = vadd.f32 %v1950, %v1990
    %v1992 = vpop.f32.mrf.mxu0
    %v1993 = vadd.f32 %v1952, %v1992
    %v1994 = vpop.f32.mrf.mxu0
    %v1995 = vpop.f32.mrf.mxu0
    %1996 = vdwg.mxu0
    %1997 = vmatprep.subr.bf16.mxu0 %v1421
    %1998 = vmatpush1.bf16.msra.mxu0 %v1420
    %1999 = vmatprep.subr.bf16.mxu0 %v1417
    %2000 = vmatpush1.bf16.msra.mxu0 %v1416
    %2001 = vmatprep.subr.bf16.mxu0 %v1413
    %2002 = vmatpush1.bf16.msra.mxu0 %v1412
    %2003 = vmatprep.subr.bf16.mxu0 %v1409
    %2004 = vmatpush1.bf16.msra.mxu0 %v1408
    %2005 = vmatprep.subr.bf16.mxu0 %v1405
    %2006 = vmatpush1.bf16.msra.mxu0 %v1404
    %2007 = vmatprep.subr.bf16.mxu0 %v1401
    %2008 = vmatpush1.bf16.msra.mxu0 %v1400
    %2009 = vmatprep.subr.bf16.mxu0 %v1397
    %2010 = vmatpush1.bf16.msra.mxu0 %v1396
    %2011 = vmatprep.subr.bf16.mxu0 %v1393
    %2012 = vmatpush1.bf16.msra.mxu0 %v1392
    %2013 = vmatprep.subr.bf16.mxu0 %v1453
    %2014 = vmatpush2.bf16.msra.mxu0 %v1452
    %2015 = vmatprep.subr.bf16.mxu0 %v1449
    %2016 = vmatpush2.bf16.msra.mxu0 %v1448
    %2017 = vmatprep.subr.bf16.mxu0 %v1445
    %2018 = vmatpush2.bf16.msra.mxu0 %v1444
    %2019 = vmatprep.subr.bf16.mxu0 %v1441
    %2020 = vmatpush2.bf16.msra.mxu0 %v1440
    %2021 = vmatprep.subr.bf16.mxu0 %v1437
    %2022 = vmatpush2.bf16.msra.mxu0 %v1436
    %2023 = vmatprep.subr.bf16.mxu0 %v1433
    %2024 = vmatpush2.bf16.msra.mxu0 %v1432
    %2025 = vmatprep.subr.bf16.mxu0 %v1429
    %2026 = vmatpush2.bf16.msra.mxu0 %v1428
    %2027 = vmatprep.subr.bf16.mxu0 %v1425
    %2028 = vmatpush2.bf16.msra.mxu0 %v1424
    %2029 = vmatprep.mubr.bf16.mxu0 %v421
    %2030 = vmatmul.mubr.bf16.gmra.mxu0 %v420
    %v2031 = vpop.f32.mrf.mxu0
    %v2032 = vadd.f32 %v1991, %v2031
    %v2033 = vpop.f32.mrf.mxu0
    %v2034 = vadd.f32 %v1993, %v2033
    %v2035 = vpop.f32.mrf.mxu0
    %v2036 = vpop.f32.mrf.mxu0
    %2037 = vdwg.mxu0
    %v2038 = vmax.f32 %v1868, 0.0
    %v2039 = vmax.f32 %v1870, 0.0
    %v2040 = vmax.f32 %v2032, 0.0
    %v2041 = vmax.f32 %v2034, 0.0
    %v2042 = vpack.c.bf16 %v2038, %v2038
    %v2043 = vpack.c.bf16 %v2039, %v2039
    %v2044 = vpack.c.bf16 %v2040, %v2040
    %v2045 = vpack.c.bf16 %v2041, %v2041
    %v2046 = vld [vmem:[#allocation9] sm:$0xff]
    %v2047 = vld [vmem:[#allocation9 + $0x8] sm:$0xff]
    %v2048 = vld [vmem:[#allocation9 + $0x10] sm:$0xff]
    %v2049 = vld [vmem:[#allocation9 + $0x18] sm:$0xff]
    %v2050 = vld [vmem:[#allocation9 + $0x20] sm:$0xff]
    %v2051 = vld [vmem:[#allocation9 + $0x28] sm:$0xff]
    %v2052 = vld [vmem:[#allocation9 + $0x30] sm:$0xff]
    %v2053 = vld [vmem:[#allocation9 + $0x38] sm:$0xff]
    %v2054 = vld [vmem:[#allocation9 + $0x40] sm:$0xff]
    %v2055 = vld [vmem:[#allocation9 + $0x48] sm:$0xff]
    %v2056 = vld [vmem:[#allocation9 + $0x50] sm:$0xff]
    %v2057 = vld [vmem:[#allocation9 + $0x58] sm:$0xff]
    %v2058 = vld [vmem:[#allocation9 + $0x60] sm:$0xff]
    %v2059 = vld [vmem:[#allocation9 + $0x68] sm:$0xff]
    %v2060 = vld [vmem:[#allocation9 + $0x70] sm:$0xff]
    %v2061 = vld [vmem:[#allocation9 + $0x78] sm:$0xff]
    %v2062 = vld [vmem:[#allocation9 + $0x80] sm:$0xff]
    %v2063 = vld [vmem:[#allocation9 + $0x88] sm:$0xff]
    %v2064 = vld [vmem:[#allocation9 + $0x90] sm:$0xff]
    %v2065 = vld [vmem:[#allocation9 + $0x98] sm:$0xff]
    %v2066 = vld [vmem:[#allocation9 + $0xa0] sm:$0xff]
    %v2067 = vld [vmem:[#allocation9 + $0xa8] sm:$0xff]
    %v2068 = vld [vmem:[#allocation9 + $0xb0] sm:$0xff]
    %v2069 = vld [vmem:[#allocation9 + $0xb8] sm:$0xff]
    %v2070 = vld [vmem:[#allocation9 + $0xc0] sm:$0xff]
    %v2071 = vld [vmem:[#allocation9 + $0xc8] sm:$0xff]
    %v2072 = vld [vmem:[#allocation9 + $0xd0] sm:$0xff]
    %v2073 = vld [vmem:[#allocation9 + $0xd8] sm:$0xff]
    %v2074 = vld [vmem:[#allocation9 + $0xe0] sm:$0xff]
    %v2075 = vld [vmem:[#allocation9 + $0xe8] sm:$0xff]
    %v2076 = vld [vmem:[#allocation9 + $0xf0] sm:$0xff]
    %v2077 = vld [vmem:[#allocation9 + $0xf8] sm:$0xff]
    %v2078 = vld [vmem:[#allocation9 + $0x100] sm:$0xff]
    %v2079 = vld [vmem:[#allocation9 + $0x108] sm:$0xff]
    %v2080 = vld [vmem:[#allocation9 + $0x110] sm:$0xff]
    %v2081 = vld [vmem:[#allocation9 + $0x118] sm:$0xff]
    %v2082 = vld [vmem:[#allocation9 + $0x120] sm:$0xff]
    %v2083 = vld [vmem:[#allocation9 + $0x128] sm:$0xff]
    %v2084 = vld [vmem:[#allocation9 + $0x130] sm:$0xff]
    %v2085 = vld [vmem:[#allocation9 + $0x138] sm:$0xff]
    %v2086 = vld [vmem:[#allocation9 + $0x140] sm:$0xff]
    %v2087 = vld [vmem:[#allocation9 + $0x148] sm:$0xff]
    %v2088 = vld [vmem:[#allocation9 + $0x150] sm:$0xff]
    %v2089 = vld [vmem:[#allocation9 + $0x158] sm:$0xff]
    %v2090 = vld [vmem:[#allocation9 + $0x160] sm:$0xff]
    %v2091 = vld [vmem:[#allocation9 + $0x168] sm:$0xff]
    %v2092 = vld [vmem:[#allocation9 + $0x170] sm:$0xff]
    %v2093 = vld [vmem:[#allocation9 + $0x178] sm:$0xff]
    %v2094 = vld [vmem:[#allocation9 + $0x180] sm:$0xff]
    %v2095 = vld [vmem:[#allocation9 + $0x188] sm:$0xff]
    %v2096 = vld [vmem:[#allocation9 + $0x190] sm:$0xff]
    %v2097 = vld [vmem:[#allocation9 + $0x198] sm:$0xff]
    %v2098 = vld [vmem:[#allocation9 + $0x1a0] sm:$0xff]
    %v2099 = vld [vmem:[#allocation9 + $0x1a8] sm:$0xff]
    %v2100 = vld [vmem:[#allocation9 + $0x1b0] sm:$0xff]
    %v2101 = vld [vmem:[#allocation9 + $0x1b8] sm:$0xff]
    %v2102 = vld [vmem:[#allocation9 + $0x1c0] sm:$0xff]
    %v2103 = vld [vmem:[#allocation9 + $0x1c8] sm:$0xff]
    %v2104 = vld [vmem:[#allocation9 + $0x1d0] sm:$0xff]
    %v2105 = vld [vmem:[#allocation9 + $0x1d8] sm:$0xff]
    %v2106 = vld [vmem:[#allocation9 + $0x1e0] sm:$0xff]
    %v2107 = vld [vmem:[#allocation9 + $0x1e8] sm:$0xff]
    %v2108 = vld [vmem:[#allocation9 + $0x1f0] sm:$0xff]
    %v2109 = vld [vmem:[#allocation9 + $0x1f8] sm:$0xff]
    %v2110 = vld [vmem:[#allocation9 + $0x200] sm:$0xff]
    %v2111 = vld [vmem:[#allocation9 + $0x208] sm:$0xff]
    %v2112 = vld [vmem:[#allocation9 + $0x210] sm:$0xff]
    %v2113 = vld [vmem:[#allocation9 + $0x218] sm:$0xff]
    %v2114 = vld [vmem:[#allocation9 + $0x220] sm:$0xff]
    %v2115 = vld [vmem:[#allocation9 + $0x228] sm:$0xff]
    %v2116 = vld [vmem:[#allocation9 + $0x230] sm:$0xff]
    %v2117 = vld [vmem:[#allocation9 + $0x238] sm:$0xff]
    %v2118 = vld [vmem:[#allocation9 + $0x240] sm:$0xff]
    %v2119 = vld [vmem:[#allocation9 + $0x248] sm:$0xff]
    %v2120 = vld [vmem:[#allocation9 + $0x250] sm:$0xff]
    %v2121 = vld [vmem:[#allocation9 + $0x258] sm:$0xff]
    %v2122 = vld [vmem:[#allocation9 + $0x260] sm:$0xff]
    %v2123 = vld [vmem:[#allocation9 + $0x268] sm:$0xff]
    %v2124 = vld [vmem:[#allocation9 + $0x270] sm:$0xff]
    %v2125 = vld [vmem:[#allocation9 + $0x278] sm:$0xff]
    %v2126 = vld [vmem:[#allocation9 + $0x280] sm:$0xff]
    %v2127 = vld [vmem:[#allocation9 + $0x288] sm:$0xff]
    %v2128 = vld [vmem:[#allocation9 + $0x290] sm:$0xff]
    %v2129 = vld [vmem:[#allocation9 + $0x298] sm:$0xff]
    %v2130 = vld [vmem:[#allocation9 + $0x2a0] sm:$0xff]
    %v2131 = vld [vmem:[#allocation9 + $0x2a8] sm:$0xff]
    %v2132 = vld [vmem:[#allocation9 + $0x2b0] sm:$0xff]
    %v2133 = vld [vmem:[#allocation9 + $0x2b8] sm:$0xff]
    %v2134 = vld [vmem:[#allocation9 + $0x2c0] sm:$0xff]
    %v2135 = vld [vmem:[#allocation9 + $0x2c8] sm:$0xff]
    %v2136 = vld [vmem:[#allocation9 + $0x2d0] sm:$0xff]
    %v2137 = vld [vmem:[#allocation9 + $0x2d8] sm:$0xff]
    %v2138 = vld [vmem:[#allocation9 + $0x2e0] sm:$0xff]
    %v2139 = vld [vmem:[#allocation9 + $0x2e8] sm:$0xff]
    %v2140 = vld [vmem:[#allocation9 + $0x2f0] sm:$0xff]
    %v2141 = vld [vmem:[#allocation9 + $0x2f8] sm:$0xff]
    %v2142 = vld [vmem:[#allocation9 + $0x300] sm:$0xff]
    %v2143 = vld [vmem:[#allocation9 + $0x308] sm:$0xff]
    %v2144 = vld [vmem:[#allocation9 + $0x310] sm:$0xff]
    %v2145 = vld [vmem:[#allocation9 + $0x318] sm:$0xff]
    %v2146 = vld [vmem:[#allocation9 + $0x320] sm:$0xff]
    %v2147 = vld [vmem:[#allocation9 + $0x328] sm:$0xff]
    %v2148 = vld [vmem:[#allocation9 + $0x330] sm:$0xff]
    %v2149 = vld [vmem:[#allocation9 + $0x338] sm:$0xff]
    %v2150 = vld [vmem:[#allocation9 + $0x340] sm:$0xff]
    %v2151 = vld [vmem:[#allocation9 + $0x348] sm:$0xff]
    %v2152 = vld [vmem:[#allocation9 + $0x350] sm:$0xff]
    %v2153 = vld [vmem:[#allocation9 + $0x358] sm:$0xff]
    %v2154 = vld [vmem:[#allocation9 + $0x360] sm:$0xff]
    %v2155 = vld [vmem:[#allocation9 + $0x368] sm:$0xff]
    %v2156 = vld [vmem:[#allocation9 + $0x370] sm:$0xff]
    %v2157 = vld [vmem:[#allocation9 + $0x378] sm:$0xff]
    %v2158 = vld [vmem:[#allocation9 + $0x380] sm:$0xff]
    %v2159 = vld [vmem:[#allocation9 + $0x388] sm:$0xff]
    %v2160 = vld [vmem:[#allocation9 + $0x390] sm:$0xff]
    %v2161 = vld [vmem:[#allocation9 + $0x398] sm:$0xff]
    %v2162 = vld [vmem:[#allocation9 + $0x3a0] sm:$0xff]
    %v2163 = vld [vmem:[#allocation9 + $0x3a8] sm:$0xff]
    %v2164 = vld [vmem:[#allocation9 + $0x3b0] sm:$0xff]
    %v2165 = vld [vmem:[#allocation9 + $0x3b8] sm:$0xff]
    %v2166 = vld [vmem:[#allocation9 + $0x3c0] sm:$0xff]
    %v2167 = vld [vmem:[#allocation9 + $0x3c8] sm:$0xff]
    %v2168 = vld [vmem:[#allocation9 + $0x3d0] sm:$0xff]
    %v2169 = vld [vmem:[#allocation9 + $0x3d8] sm:$0xff]
    %v2170 = vld [vmem:[#allocation9 + $0x3e0] sm:$0xff]
    %v2171 = vld [vmem:[#allocation9 + $0x3e8] sm:$0xff]
    %v2172 = vld [vmem:[#allocation9 + $0x3f0] sm:$0xff]
    %v2173 = vld [vmem:[#allocation9 + $0x3f8] sm:$0xff]
    %v2302 = vunpack.c.l.b16 %v2046
    %v2303 = vunpack.c.h.b16 %v2046
    %v2304 = vunpack.c.l.b16 %v2047
    %v2305 = vunpack.c.h.b16 %v2047
    %v2306 = vunpack.c.l.b16 %v2048
    %v2307 = vunpack.c.h.b16 %v2048
    %v2308 = vunpack.c.l.b16 %v2049
    %v2309 = vunpack.c.h.b16 %v2049
    %v2310 = vunpack.c.l.b16 %v2050
    %v2311 = vunpack.c.h.b16 %v2050
    %v2312 = vunpack.c.l.b16 %v2051
    %v2313 = vunpack.c.h.b16 %v2051
    %v2314 = vunpack.c.l.b16 %v2052
    %v2315 = vunpack.c.h.b16 %v2052
    %v2316 = vunpack.c.l.b16 %v2053
    %v2317 = vunpack.c.h.b16 %v2053
    %v2318 = vunpack.c.l.b16 %v2054
    %v2319 = vunpack.c.h.b16 %v2054
    %v2320 = vunpack.c.l.b16 %v2055
    %v2321 = vunpack.c.h.b16 %v2055
    %v2322 = vunpack.c.l.b16 %v2056
    %v2323 = vunpack.c.h.b16 %v2056
    %v2324 = vunpack.c.l.b16 %v2057
    %v2325 = vunpack.c.h.b16 %v2057
    %v2326 = vunpack.c.l.b16 %v2058
    %v2327 = vunpack.c.h.b16 %v2058
    %v2328 = vunpack.c.l.b16 %v2059
    %v2329 = vunpack.c.h.b16 %v2059
    %v2330 = vunpack.c.l.b16 %v2060
    %v2331 = vunpack.c.h.b16 %v2060
    %v2332 = vunpack.c.l.b16 %v2061
    %v2333 = vunpack.c.h.b16 %v2061
    %v2334 = vunpack.c.l.b16 %v2062
    %v2335 = vunpack.c.h.b16 %v2062
    %v2336 = vunpack.c.l.b16 %v2063
    %v2337 = vunpack.c.h.b16 %v2063
    %v2338 = vunpack.c.l.b16 %v2064
    %v2339 = vunpack.c.h.b16 %v2064
    %v2340 = vunpack.c.l.b16 %v2065
    %v2341 = vunpack.c.h.b16 %v2065
    %v2342 = vunpack.c.l.b16 %v2066
    %v2343 = vunpack.c.h.b16 %v2066
    %v2344 = vunpack.c.l.b16 %v2067
    %v2345 = vunpack.c.h.b16 %v2067
    %v2346 = vunpack.c.l.b16 %v2068
    %v2347 = vunpack.c.h.b16 %v2068
    %v2348 = vunpack.c.l.b16 %v2069
    %v2349 = vunpack.c.h.b16 %v2069
    %v2350 = vunpack.c.l.b16 %v2070
    %v2351 = vunpack.c.h.b16 %v2070
    %v2352 = vunpack.c.l.b16 %v2071
    %v2353 = vunpack.c.h.b16 %v2071
    %v2354 = vunpack.c.l.b16 %v2072
    %v2355 = vunpack.c.h.b16 %v2072
    %v2356 = vunpack.c.l.b16 %v2073
    %v2357 = vunpack.c.h.b16 %v2073
    %v2358 = vunpack.c.l.b16 %v2074
    %v2359 = vunpack.c.h.b16 %v2074
    %v2360 = vunpack.c.l.b16 %v2075
    %v2361 = vunpack.c.h.b16 %v2075
    %v2362 = vunpack.c.l.b16 %v2076
    %v2363 = vunpack.c.h.b16 %v2076
    %v2364 = vunpack.c.l.b16 %v2077
    %v2365 = vunpack.c.h.b16 %v2077
    %v2366 = vunpack.c.l.b16 %v2078
    %v2367 = vunpack.c.h.b16 %v2078
    %v2368 = vunpack.c.l.b16 %v2079
    %v2369 = vunpack.c.h.b16 %v2079
    %v2370 = vunpack.c.l.b16 %v2080
    %v2371 = vunpack.c.h.b16 %v2080
    %v2372 = vunpack.c.l.b16 %v2081
    %v2373 = vunpack.c.h.b16 %v2081
    %v2374 = vunpack.c.l.b16 %v2082
    %v2375 = vunpack.c.h.b16 %v2082
    %v2376 = vunpack.c.l.b16 %v2083
    %v2377 = vunpack.c.h.b16 %v2083
    %v2378 = vunpack.c.l.b16 %v2084
    %v2379 = vunpack.c.h.b16 %v2084
    %v2380 = vunpack.c.l.b16 %v2085
    %v2381 = vunpack.c.h.b16 %v2085
    %v2382 = vunpack.c.l.b16 %v2086
    %v2383 = vunpack.c.h.b16 %v2086
    %v2384 = vunpack.c.l.b16 %v2087
    %v2385 = vunpack.c.h.b16 %v2087
    %v2386 = vunpack.c.l.b16 %v2088
    %v2387 = vunpack.c.h.b16 %v2088
    %v2388 = vunpack.c.l.b16 %v2089
    %v2389 = vunpack.c.h.b16 %v2089
    %v2390 = vunpack.c.l.b16 %v2090
    %v2391 = vunpack.c.h.b16 %v2090
    %v2392 = vunpack.c.l.b16 %v2091
    %v2393 = vunpack.c.h.b16 %v2091
    %v2394 = vunpack.c.l.b16 %v2092
    %v2395 = vunpack.c.h.b16 %v2092
    %v2396 = vunpack.c.l.b16 %v2093
    %v2397 = vunpack.c.h.b16 %v2093
    %v2398 = vunpack.c.l.b16 %v2094
    %v2399 = vunpack.c.h.b16 %v2094
    %v2400 = vunpack.c.l.b16 %v2095
    %v2401 = vunpack.c.h.b16 %v2095
    %v2402 = vunpack.c.l.b16 %v2096
    %v2403 = vunpack.c.h.b16 %v2096
    %v2404 = vunpack.c.l.b16 %v2097
    %v2405 = vunpack.c.h.b16 %v2097
    %v2406 = vunpack.c.l.b16 %v2098
    %v2407 = vunpack.c.h.b16 %v2098
    %v2408 = vunpack.c.l.b16 %v2099
    %v2409 = vunpack.c.h.b16 %v2099
    %v2410 = vunpack.c.l.b16 %v2100
    %v2411 = vunpack.c.h.b16 %v2100
    %v2412 = vunpack.c.l.b16 %v2101
    %v2413 = vunpack.c.h.b16 %v2101
    %v2414 = vunpack.c.l.b16 %v2102
    %v2415 = vunpack.c.h.b16 %v2102
    %v2416 = vunpack.c.l.b16 %v2103
    %v2417 = vunpack.c.h.b16 %v2103
    %v2418 = vunpack.c.l.b16 %v2104
    %v2419 = vunpack.c.h.b16 %v2104
    %v2420 = vunpack.c.l.b16 %v2105
    %v2421 = vunpack.c.h.b16 %v2105
    %v2422 = vunpack.c.l.b16 %v2106
    %v2423 = vunpack.c.h.b16 %v2106
    %v2424 = vunpack.c.l.b16 %v2107
    %v2425 = vunpack.c.h.b16 %v2107
    %v2426 = vunpack.c.l.b16 %v2108
    %v2427 = vunpack.c.h.b16 %v2108
    %v2428 = vunpack.c.l.b16 %v2109
    %v2429 = vunpack.c.h.b16 %v2109
    %v2430 = vunpack.c.l.b16 %v2110
    %v2431 = vunpack.c.h.b16 %v2110
    %v2432 = vunpack.c.l.b16 %v2111
    %v2433 = vunpack.c.h.b16 %v2111
    %v2434 = vunpack.c.l.b16 %v2112
    %v2435 = vunpack.c.h.b16 %v2112
    %v2436 = vunpack.c.l.b16 %v2113
    %v2437 = vunpack.c.h.b16 %v2113
    %v2438 = vunpack.c.l.b16 %v2114
    %v2439 = vunpack.c.h.b16 %v2114
    %v2440 = vunpack.c.l.b16 %v2115
    %v2441 = vunpack.c.h.b16 %v2115
    %v2442 = vunpack.c.l.b16 %v2116
    %v2443 = vunpack.c.h.b16 %v2116
    %v2444 = vunpack.c.l.b16 %v2117
    %v2445 = vunpack.c.h.b16 %v2117
    %v2446 = vunpack.c.l.b16 %v2118
    %v2447 = vunpack.c.h.b16 %v2118
    %v2448 = vunpack.c.l.b16 %v2119
    %v2449 = vunpack.c.h.b16 %v2119
    %v2450 = vunpack.c.l.b16 %v2120
    %v2451 = vunpack.c.h.b16 %v2120
    %v2452 = vunpack.c.l.b16 %v2121
    %v2453 = vunpack.c.h.b16 %v2121
    %v2454 = vunpack.c.l.b16 %v2122
    %v2455 = vunpack.c.h.b16 %v2122
    %v2456 = vunpack.c.l.b16 %v2123
    %v2457 = vunpack.c.h.b16 %v2123
    %v2458 = vunpack.c.l.b16 %v2124
    %v2459 = vunpack.c.h.b16 %v2124
    %v2460 = vunpack.c.l.b16 %v2125
    %v2461 = vunpack.c.h.b16 %v2125
    %v2462 = vunpack.c.l.b16 %v2126
    %v2463 = vunpack.c.h.b16 %v2126
    %v2464 = vunpack.c.l.b16 %v2127
    %v2465 = vunpack.c.h.b16 %v2127
    %v2466 = vunpack.c.l.b16 %v2128
    %v2467 = vunpack.c.h.b16 %v2128
    %v2468 = vunpack.c.l.b16 %v2129
    %v2469 = vunpack.c.h.b16 %v2129
    %v2470 = vunpack.c.l.b16 %v2130
    %v2471 = vunpack.c.h.b16 %v2130
    %v2472 = vunpack.c.l.b16 %v2131
    %v2473 = vunpack.c.h.b16 %v2131
    %v2474 = vunpack.c.l.b16 %v2132
    %v2475 = vunpack.c.h.b16 %v2132
    %v2476 = vunpack.c.l.b16 %v2133
    %v2477 = vunpack.c.h.b16 %v2133
    %v2478 = vunpack.c.l.b16 %v2134
    %v2479 = vunpack.c.h.b16 %v2134
    %v2480 = vunpack.c.l.b16 %v2135
    %v2481 = vunpack.c.h.b16 %v2135
    %v2482 = vunpack.c.l.b16 %v2136
    %v2483 = vunpack.c.h.b16 %v2136
    %v2484 = vunpack.c.l.b16 %v2137
    %v2485 = vunpack.c.h.b16 %v2137
    %v2486 = vunpack.c.l.b16 %v2138
    %v2487 = vunpack.c.h.b16 %v2138
    %v2488 = vunpack.c.l.b16 %v2139
    %v2489 = vunpack.c.h.b16 %v2139
    %v2490 = vunpack.c.l.b16 %v2140
    %v2491 = vunpack.c.h.b16 %v2140
    %v2492 = vunpack.c.l.b16 %v2141
    %v2493 = vunpack.c.h.b16 %v2141
    %v2494 = vunpack.c.l.b16 %v2142
    %v2495 = vunpack.c.h.b16 %v2142
    %v2496 = vunpack.c.l.b16 %v2143
    %v2497 = vunpack.c.h.b16 %v2143
    %v2498 = vunpack.c.l.b16 %v2144
    %v2499 = vunpack.c.h.b16 %v2144
    %v2500 = vunpack.c.l.b16 %v2145
    %v2501 = vunpack.c.h.b16 %v2145
    %v2502 = vunpack.c.l.b16 %v2146
    %v2503 = vunpack.c.h.b16 %v2146
    %v2504 = vunpack.c.l.b16 %v2147
    %v2505 = vunpack.c.h.b16 %v2147
    %v2506 = vunpack.c.l.b16 %v2148
    %v2507 = vunpack.c.h.b16 %v2148
    %v2508 = vunpack.c.l.b16 %v2149
    %v2509 = vunpack.c.h.b16 %v2149
    %v2510 = vunpack.c.l.b16 %v2150
    %v2511 = vunpack.c.h.b16 %v2150
    %v2512 = vunpack.c.l.b16 %v2151
    %v2513 = vunpack.c.h.b16 %v2151
    %v2514 = vunpack.c.l.b16 %v2152
    %v2515 = vunpack.c.h.b16 %v2152
    %v2516 = vunpack.c.l.b16 %v2153
    %v2517 = vunpack.c.h.b16 %v2153
    %v2518 = vunpack.c.l.b16 %v2154
    %v2519 = vunpack.c.h.b16 %v2154
    %v2520 = vunpack.c.l.b16 %v2155
    %v2521 = vunpack.c.h.b16 %v2155
    %v2522 = vunpack.c.l.b16 %v2156
    %v2523 = vunpack.c.h.b16 %v2156
    %v2524 = vunpack.c.l.b16 %v2157
    %v2525 = vunpack.c.h.b16 %v2157
    %v2526 = vunpack.c.l.b16 %v2158
    %v2527 = vunpack.c.h.b16 %v2158
    %v2528 = vunpack.c.l.b16 %v2159
    %v2529 = vunpack.c.h.b16 %v2159
    %v2530 = vunpack.c.l.b16 %v2160
    %v2531 = vunpack.c.h.b16 %v2160
    %v2532 = vunpack.c.l.b16 %v2161
    %v2533 = vunpack.c.h.b16 %v2161
    %v2534 = vunpack.c.l.b16 %v2162
    %v2535 = vunpack.c.h.b16 %v2162
    %v2536 = vunpack.c.l.b16 %v2163
    %v2537 = vunpack.c.h.b16 %v2163
    %v2538 = vunpack.c.l.b16 %v2164
    %v2539 = vunpack.c.h.b16 %v2164
    %v2540 = vunpack.c.l.b16 %v2165
    %v2541 = vunpack.c.h.b16 %v2165
    %v2542 = vunpack.c.l.b16 %v2166
    %v2543 = vunpack.c.h.b16 %v2166
    %v2544 = vunpack.c.l.b16 %v2167
    %v2545 = vunpack.c.h.b16 %v2167
    %v2546 = vunpack.c.l.b16 %v2168
    %v2547 = vunpack.c.h.b16 %v2168
    %v2548 = vunpack.c.l.b16 %v2169
    %v2549 = vunpack.c.h.b16 %v2169
    %v2550 = vunpack.c.l.b16 %v2170
    %v2551 = vunpack.c.h.b16 %v2170
    %v2552 = vunpack.c.l.b16 %v2171
    %v2553 = vunpack.c.h.b16 %v2171
    %v2554 = vunpack.c.l.b16 %v2172
    %v2555 = vunpack.c.h.b16 %v2172
    %v2556 = vunpack.c.l.b16 %v2173
    %v2557 = vunpack.c.h.b16 %v2173
    %v2558 = vpack.c.b16 %v2306, %v2302
    %v2559 = vpack.c.b16 %v2307, %v2303
    %v2560 = vpack.c.b16 %v2308, %v2304
    %v2561 = vpack.c.b16 %v2309, %v2305
    %v2562 = vpack.c.b16 %v2314, %v2310
    %v2563 = vpack.c.b16 %v2315, %v2311
    %v2564 = vpack.c.b16 %v2316, %v2312
    %v2565 = vpack.c.b16 %v2317, %v2313
    %v2566 = vpack.c.b16 %v2322, %v2318
    %v2567 = vpack.c.b16 %v2323, %v2319
    %v2568 = vpack.c.b16 %v2324, %v2320
    %v2569 = vpack.c.b16 %v2325, %v2321
    %v2570 = vpack.c.b16 %v2330, %v2326
    %v2571 = vpack.c.b16 %v2331, %v2327
    %v2572 = vpack.c.b16 %v2332, %v2328
    %v2573 = vpack.c.b16 %v2333, %v2329
    %v2574 = vpack.c.b16 %v2338, %v2334
    %v2575 = vpack.c.b16 %v2339, %v2335
    %v2576 = vpack.c.b16 %v2340, %v2336
    %v2577 = vpack.c.b16 %v2341, %v2337
    %v2578 = vpack.c.b16 %v2346, %v2342
    %v2579 = vpack.c.b16 %v2347, %v2343
    %v2580 = vpack.c.b16 %v2348, %v2344
    %v2581 = vpack.c.b16 %v2349, %v2345
    %v2582 = vpack.c.b16 %v2354, %v2350
    %v2583 = vpack.c.b16 %v2355, %v2351
    %v2584 = vpack.c.b16 %v2356, %v2352
    %v2585 = vpack.c.b16 %v2357, %v2353
    %v2586 = vpack.c.b16 %v2362, %v2358
    %v2587 = vpack.c.b16 %v2363, %v2359
    %v2588 = vpack.c.b16 %v2364, %v2360
    %v2589 = vpack.c.b16 %v2365, %v2361
    %v2590 = vpack.c.b16 %v2370, %v2366
    %v2591 = vpack.c.b16 %v2371, %v2367
    %v2592 = vpack.c.b16 %v2372, %v2368
    %v2593 = vpack.c.b16 %v2373, %v2369
    %v2594 = vpack.c.b16 %v2378, %v2374
    %v2595 = vpack.c.b16 %v2379, %v2375
    %v2596 = vpack.c.b16 %v2380, %v2376
    %v2597 = vpack.c.b16 %v2381, %v2377
    %v2598 = vpack.c.b16 %v2386, %v2382
    %v2599 = vpack.c.b16 %v2387, %v2383
    %v2600 = vpack.c.b16 %v2388, %v2384
    %v2601 = vpack.c.b16 %v2389, %v2385
    %v2602 = vpack.c.b16 %v2394, %v2390
    %v2603 = vpack.c.b16 %v2395, %v2391
    %v2604 = vpack.c.b16 %v2396, %v2392
    %v2605 = vpack.c.b16 %v2397, %v2393
    %v2606 = vpack.c.b16 %v2402, %v2398
    %v2607 = vpack.c.b16 %v2403, %v2399
    %v2608 = vpack.c.b16 %v2404, %v2400
    %v2609 = vpack.c.b16 %v2405, %v2401
    %v2610 = vpack.c.b16 %v2410, %v2406
    %v2611 = vpack.c.b16 %v2411, %v2407
    %v2612 = vpack.c.b16 %v2412, %v2408
    %v2613 = vpack.c.b16 %v2413, %v2409
    %v2614 = vpack.c.b16 %v2418, %v2414
    %v2615 = vpack.c.b16 %v2419, %v2415
    %v2616 = vpack.c.b16 %v2420, %v2416
    %v2617 = vpack.c.b16 %v2421, %v2417
    %v2618 = vpack.c.b16 %v2426, %v2422
    %v2619 = vpack.c.b16 %v2427, %v2423
    %v2620 = vpack.c.b16 %v2428, %v2424
    %v2621 = vpack.c.b16 %v2429, %v2425
    %v2622 = vpack.c.b16 %v2434, %v2430
    %v2623 = vpack.c.b16 %v2435, %v2431
    %v2624 = vpack.c.b16 %v2436, %v2432
    %v2625 = vpack.c.b16 %v2437, %v2433
    %v2626 = vpack.c.b16 %v2442, %v2438
    %v2627 = vpack.c.b16 %v2443, %v2439
    %v2628 = vpack.c.b16 %v2444, %v2440
    %v2629 = vpack.c.b16 %v2445, %v2441
    %v2630 = vpack.c.b16 %v2450, %v2446
    %v2631 = vpack.c.b16 %v2451, %v2447
    %v2632 = vpack.c.b16 %v2452, %v2448
    %v2633 = vpack.c.b16 %v2453, %v2449
    %v2634 = vpack.c.b16 %v2458, %v2454
    %v2635 = vpack.c.b16 %v2459, %v2455
    %v2636 = vpack.c.b16 %v2460, %v2456
    %v2637 = vpack.c.b16 %v2461, %v2457
    %v2638 = vpack.c.b16 %v2466, %v2462
    %v2639 = vpack.c.b16 %v2467, %v2463
    %v2640 = vpack.c.b16 %v2468, %v2464
    %v2641 = vpack.c.b16 %v2469, %v2465
    %v2642 = vpack.c.b16 %v2474, %v2470
    %v2643 = vpack.c.b16 %v2475, %v2471
    %v2644 = vpack.c.b16 %v2476, %v2472
    %v2645 = vpack.c.b16 %v2477, %v2473
    %v2646 = vpack.c.b16 %v2482, %v2478
    %v2647 = vpack.c.b16 %v2483, %v2479
    %v2648 = vpack.c.b16 %v2484, %v2480
    %v2649 = vpack.c.b16 %v2485, %v2481
    %v2650 = vpack.c.b16 %v2490, %v2486
    %v2651 = vpack.c.b16 %v2491, %v2487
    %v2652 = vpack.c.b16 %v2492, %v2488
    %v2653 = vpack.c.b16 %v2493, %v2489
    %v2654 = vpack.c.b16 %v2498, %v2494
    %v2655 = vpack.c.b16 %v2499, %v2495
    %v2656 = vpack.c.b16 %v2500, %v2496
    %v2657 = vpack.c.b16 %v2501, %v2497
    %v2658 = vpack.c.b16 %v2506, %v2502
    %v2659 = vpack.c.b16 %v2507, %v2503
    %v2660 = vpack.c.b16 %v2508, %v2504
    %v2661 = vpack.c.b16 %v2509, %v2505
    %v2662 = vpack.c.b16 %v2514, %v2510
    %v2663 = vpack.c.b16 %v2515, %v2511
    %v2664 = vpack.c.b16 %v2516, %v2512
    %v2665 = vpack.c.b16 %v2517, %v2513
    %v2666 = vpack.c.b16 %v2522, %v2518
    %v2667 = vpack.c.b16 %v2523, %v2519
    %v2668 = vpack.c.b16 %v2524, %v2520
    %v2669 = vpack.c.b16 %v2525, %v2521
    %v2670 = vpack.c.b16 %v2530, %v2526
    %v2671 = vpack.c.b16 %v2531, %v2527
    %v2672 = vpack.c.b16 %v2532, %v2528
    %v2673 = vpack.c.b16 %v2533, %v2529
    %v2674 = vpack.c.b16 %v2538, %v2534
    %v2675 = vpack.c.b16 %v2539, %v2535
    %v2676 = vpack.c.b16 %v2540, %v2536
    %v2677 = vpack.c.b16 %v2541, %v2537
    %v2678 = vpack.c.b16 %v2546, %v2542
    %v2679 = vpack.c.b16 %v2547, %v2543
    %v2680 = vpack.c.b16 %v2548, %v2544
    %v2681 = vpack.c.b16 %v2549, %v2545
    %v2682 = vpack.c.b16 %v2554, %v2550
    %v2683 = vpack.c.b16 %v2555, %v2551
    %v2684 = vpack.c.b16 %v2556, %v2552
    %v2685 = vpack.c.b16 %v2557, %v2553
    %2814 = vmatprep.subr.bf16.mxu0 %v2587
    %2815 = vmatpush1.bf16.msra.mxu0 %v2586
    %2816 = vmatprep.subr.bf16.mxu0 %v2583
    %2817 = vmatpush1.bf16.msra.mxu0 %v2582
    %2818 = vmatprep.subr.bf16.mxu0 %v2579
    %2819 = vmatpush1.bf16.msra.mxu0 %v2578
    %2820 = vmatprep.subr.bf16.mxu0 %v2575
    %2821 = vmatpush1.bf16.msra.mxu0 %v2574
    %2822 = vmatprep.subr.bf16.mxu0 %v2571
    %2823 = vmatpush1.bf16.msra.mxu0 %v2570
    %2824 = vmatprep.subr.bf16.mxu0 %v2567
    %2825 = vmatpush1.bf16.msra.mxu0 %v2566
    %2826 = vmatprep.subr.bf16.mxu0 %v2563
    %2827 = vmatpush1.bf16.msra.mxu0 %v2562
    %2828 = vmatprep.subr.bf16.mxu0 %v2559
    %2829 = vmatpush1.bf16.msra.mxu0 %v2558
    %2830 = vmatprep.subr.bf16.mxu0 %v2619
    %2831 = vmatpush2.bf16.msra.mxu0 %v2618
    %2832 = vmatprep.subr.bf16.mxu0 %v2615
    %2833 = vmatpush2.bf16.msra.mxu0 %v2614
    %2834 = vmatprep.subr.bf16.mxu0 %v2611
    %2835 = vmatpush2.bf16.msra.mxu0 %v2610
    %2836 = vmatprep.subr.bf16.mxu0 %v2607
    %2837 = vmatpush2.bf16.msra.mxu0 %v2606
    %2838 = vmatprep.subr.bf16.mxu0 %v2603
    %2839 = vmatpush2.bf16.msra.mxu0 %v2602
    %2840 = vmatprep.subr.bf16.mxu0 %v2599
    %2841 = vmatpush2.bf16.msra.mxu0 %v2598
    %2842 = vmatprep.subr.bf16.mxu0 %v2595
    %2843 = vmatpush2.bf16.msra.mxu0 %v2594
    %2844 = vmatprep.subr.bf16.mxu0 %v2591
    %2845 = vmatpush2.bf16.msra.mxu0 %v2590
    %2846 = vmatprep.mubr.bf16.mxu0 %v2043
    %2847 = vmatmul.mubr.bf16.gmra.mxu0 %v2042
    %v2848 = vpop.f32.mrf.mxu0
    %v2849 = vadd.f32 0.0, %v2848
    %v2850 = vpop.f32.mrf.mxu0
    %v2851 = vadd.f32 0.0, %v2850
    %v2852 = vpop.f32.mrf.mxu0
    %v2853 = vpop.f32.mrf.mxu0
    %2854 = vdwg.mxu0
    %2855 = vmatprep.subr.bf16.mxu0 %v2651
    %2856 = vmatpush1.bf16.msra.mxu0 %v2650
    %2857 = vmatprep.subr.bf16.mxu0 %v2647
    %2858 = vmatpush1.bf16.msra.mxu0 %v2646
    %2859 = vmatprep.subr.bf16.mxu0 %v2643
    %2860 = vmatpush1.bf16.msra.mxu0 %v2642
    %2861 = vmatprep.subr.bf16.mxu0 %v2639
    %2862 = vmatpush1.bf16.msra.mxu0 %v2638
    %2863 = vmatprep.subr.bf16.mxu0 %v2635
    %2864 = vmatpush1.bf16.msra.mxu0 %v2634
    %2865 = vmatprep.subr.bf16.mxu0 %v2631
    %2866 = vmatpush1.bf16.msra.mxu0 %v2630
    %2867 = vmatprep.subr.bf16.mxu0 %v2627
    %2868 = vmatpush1.bf16.msra.mxu0 %v2626
    %2869 = vmatprep.subr.bf16.mxu0 %v2623
    %2870 = vmatpush1.bf16.msra.mxu0 %v2622
    %2871 = vmatprep.subr.bf16.mxu0 %v2683
    %2872 = vmatpush2.bf16.msra.mxu0 %v2682
    %2873 = vmatprep.subr.bf16.mxu0 %v2679
    %2874 = vmatpush2.bf16.msra.mxu0 %v2678
    %2875 = vmatprep.subr.bf16.mxu0 %v2675
    %2876 = vmatpush2.bf16.msra.mxu0 %v2674
    %2877 = vmatprep.subr.bf16.mxu0 %v2671
    %2878 = vmatpush2.bf16.msra.mxu0 %v2670
    %2879 = vmatprep.subr.bf16.mxu0 %v2667
    %2880 = vmatpush2.bf16.msra.mxu0 %v2666
    %2881 = vmatprep.subr.bf16.mxu0 %v2663
    %2882 = vmatpush2.bf16.msra.mxu0 %v2662
    %2883 = vmatprep.subr.bf16.mxu0 %v2659
    %2884 = vmatpush2.bf16.msra.mxu0 %v2658
    %2885 = vmatprep.subr.bf16.mxu0 %v2655
    %2886 = vmatpush2.bf16.msra.mxu0 %v2654
    %2887 = vmatprep.mubr.bf16.mxu0 %v2045
    %2888 = vmatmul.mubr.bf16.gmra.mxu0 %v2044
    %v2889 = vpop.f32.mrf.mxu0
    %v2890 = vadd.f32 %v2849, %v2889
    %v2891 = vpop.f32.mrf.mxu0
    %v2892 = vadd.f32 %v2851, %v2891
    %v2893 = vpop.f32.mrf.mxu0
    %v2894 = vpop.f32.mrf.mxu0
    %2895 = vdwg.mxu0
    %2896 = vmatprep.subr.bf16.mxu0 %v2589
    %2897 = vmatpush1.bf16.msra.mxu0 %v2588
    %2898 = vmatprep.subr.bf16.mxu0 %v2585
    %2899 = vmatpush1.bf16.msra.mxu0 %v2584
    %2900 = vmatprep.subr.bf16.mxu0 %v2581
    %2901 = vmatpush1.bf16.msra.mxu0 %v2580
    %2902 = vmatprep.subr.bf16.mxu0 %v2577
    %2903 = vmatpush1.bf16.msra.mxu0 %v2576
    %2904 = vmatprep.subr.bf16.mxu0 %v2573
    %2905 = vmatpush1.bf16.msra.mxu0 %v2572
    %2906 = vmatprep.subr.bf16.mxu0 %v2569
    %2907 = vmatpush1.bf16.msra.mxu0 %v2568
    %2908 = vmatprep.subr.bf16.mxu0 %v2565
    %2909 = vmatpush1.bf16.msra.mxu0 %v2564
    %2910 = vmatprep.subr.bf16.mxu0 %v2561
    %2911 = vmatpush1.bf16.msra.mxu0 %v2560
    %2912 = vmatprep.subr.bf16.mxu0 %v2621
    %2913 = vmatpush2.bf16.msra.mxu0 %v2620
    %2914 = vmatprep.subr.bf16.mxu0 %v2617
    %2915 = vmatpush2.bf16.msra.mxu0 %v2616
    %2916 = vmatprep.subr.bf16.mxu0 %v2613
    %2917 = vmatpush2.bf16.msra.mxu0 %v2612
    %2918 = vmatprep.subr.bf16.mxu0 %v2609
    %2919 = vmatpush2.bf16.msra.mxu0 %v2608
    %2920 = vmatprep.subr.bf16.mxu0 %v2605
    %2921 = vmatpush2.bf16.msra.mxu0 %v2604
    %2922 = vmatprep.subr.bf16.mxu0 %v2601
    %2923 = vmatpush2.bf16.msra.mxu0 %v2600
    %2924 = vmatprep.subr.bf16.mxu0 %v2597
    %2925 = vmatpush2.bf16.msra.mxu0 %v2596
    %2926 = vmatprep.subr.bf16.mxu0 %v2593
    %2927 = vmatpush2.bf16.msra.mxu0 %v2592
    %2928 = vmatprep.mubr.bf16.mxu0 %v2043
    %2929 = vmatmul.mubr.bf16.gmra.mxu0 %v2042
    %v2930 = vpop.f32.mrf.mxu0
    %v2931 = vadd.f32 0.0, %v2930
    %v2932 = vpop.f32.mrf.mxu0
    %v2933 = vadd.f32 0.0, %v2932
    %v2934 = vpop.f32.mrf.mxu0
    %v2935 = vpop.f32.mrf.mxu0
    %2936 = vdwg.mxu0
    %2937 = vmatprep.subr.bf16.mxu0 %v2653
    %2938 = vmatpush1.bf16.msra.mxu0 %v2652
    %2939 = vmatprep.subr.bf16.mxu0 %v2649
    %2940 = vmatpush1.bf16.msra.mxu0 %v2648
    %2941 = vmatprep.subr.bf16.mxu0 %v2645
    %2942 = vmatpush1.bf16.msra.mxu0 %v2644
    %2943 = vmatprep.subr.bf16.mxu0 %v2641
    %2944 = vmatpush1.bf16.msra.mxu0 %v2640
    %2945 = vmatprep.subr.bf16.mxu0 %v2637
    %2946 = vmatpush1.bf16.msra.mxu0 %v2636
    %2947 = vmatprep.subr.bf16.mxu0 %v2633
    %2948 = vmatpush1.bf16.msra.mxu0 %v2632
    %2949 = vmatprep.subr.bf16.mxu0 %v2629
    %2950 = vmatpush1.bf16.msra.mxu0 %v2628
    %2951 = vmatprep.subr.bf16.mxu0 %v2625
    %2952 = vmatpush1.bf16.msra.mxu0 %v2624
    %2953 = vmatprep.subr.bf16.mxu0 %v2685
    %2954 = vmatpush2.bf16.msra.mxu0 %v2684
    %2955 = vmatprep.subr.bf16.mxu0 %v2681
    %2956 = vmatpush2.bf16.msra.mxu0 %v2680
    %2957 = vmatprep.subr.bf16.mxu0 %v2677
    %2958 = vmatpush2.bf16.msra.mxu0 %v2676
    %2959 = vmatprep.subr.bf16.mxu0 %v2673
    %2960 = vmatpush2.bf16.msra.mxu0 %v2672
    %2961 = vmatprep.subr.bf16.mxu0 %v2669
    %2962 = vmatpush2.bf16.msra.mxu0 %v2668
    %2963 = vmatprep.subr.bf16.mxu0 %v2665
    %2964 = vmatpush2.bf16.msra.mxu0 %v2664
    %2965 = vmatprep.subr.bf16.mxu0 %v2661
    %2966 = vmatpush2.bf16.msra.mxu0 %v2660
    %2967 = vmatprep.subr.bf16.mxu0 %v2657
    %2968 = vmatpush2.bf16.msra.mxu0 %v2656
    %2969 = vmatprep.mubr.bf16.mxu0 %v2045
    %2970 = vmatmul.mubr.bf16.gmra.mxu0 %v2044
    %v2971 = vpop.f32.mrf.mxu0
    %v2972 = vadd.f32 %v2931, %v2971
    %v2973 = vpop.f32.mrf.mxu0
    %v2974 = vadd.f32 %v2933, %v2973
    %v2975 = vpop.f32.mrf.mxu0
    %v2976 = vpop.f32.mrf.mxu0
    %2977 = vdwg.mxu0
    %v2978 = vmax.f32 %v2890, 0.0
    %v2979 = vmax.f32 %v2892, 0.0
    %v2980 = vmax.f32 %v2972, 0.0
    %v2981 = vmax.f32 %v2974, 0.0
    %v2982 = vpack.c.bf16 %v2978, %v2978
    %v2983 = vpack.c.bf16 %v2979, %v2979
    %v2984 = vpack.c.bf16 %v2980, %v2980
    %v2985 = vpack.c.bf16 %v2981, %v2981
    %v2986 = vld [vmem:[#allocation11] sm:$0xff]
    %v2987 = vld [vmem:[#allocation11 + $0x8] sm:$0xff]
    %v2988 = vld [vmem:[#allocation11 + $0x10] sm:$0xff]
    %v2989 = vld [vmem:[#allocation11 + $0x18] sm:$0xff]
    %v2990 = vld [vmem:[#allocation11 + $0x20] sm:$0xff]
    %v2991 = vld [vmem:[#allocation11 + $0x28] sm:$0xff]
    %v2992 = vld [vmem:[#allocation11 + $0x30] sm:$0xff]
    %v2993 = vld [vmem:[#allocation11 + $0x38] sm:$0xff]
    %v2994 = vld [vmem:[#allocation11 + $0x40] sm:$0xff]
    %v2995 = vld [vmem:[#allocation11 + $0x48] sm:$0xff]
    %v2996 = vld [vmem:[#allocation11 + $0x50] sm:$0xff]
    %v2997 = vld [vmem:[#allocation11 + $0x58] sm:$0xff]
    %v2998 = vld [vmem:[#allocation11 + $0x60] sm:$0xff]
    %v2999 = vld [vmem:[#allocation11 + $0x68] sm:$0xff]
    %v3000 = vld [vmem:[#allocation11 + $0x70] sm:$0xff]
    %v3001 = vld [vmem:[#allocation11 + $0x78] sm:$0xff]
    %v3002 = vld [vmem:[#allocation11 + $0x80] sm:$0xff]
    %v3003 = vld [vmem:[#allocation11 + $0x88] sm:$0xff]
    %v3004 = vld [vmem:[#allocation11 + $0x90] sm:$0xff]
    %v3005 = vld [vmem:[#allocation11 + $0x98] sm:$0xff]
    %v3006 = vld [vmem:[#allocation11 + $0xa0] sm:$0xff]
    %v3007 = vld [vmem:[#allocation11 + $0xa8] sm:$0xff]
    %v3008 = vld [vmem:[#allocation11 + $0xb0] sm:$0xff]
    %v3009 = vld [vmem:[#allocation11 + $0xb8] sm:$0xff]
    %v3010 = vld [vmem:[#allocation11 + $0xc0] sm:$0xff]
    %v3011 = vld [vmem:[#allocation11 + $0xc8] sm:$0xff]
    %v3012 = vld [vmem:[#allocation11 + $0xd0] sm:$0xff]
    %v3013 = vld [vmem:[#allocation11 + $0xd8] sm:$0xff]
    %v3014 = vld [vmem:[#allocation11 + $0xe0] sm:$0xff]
    %v3015 = vld [vmem:[#allocation11 + $0xe8] sm:$0xff]
    %v3016 = vld [vmem:[#allocation11 + $0xf0] sm:$0xff]
    %v3017 = vld [vmem:[#allocation11 + $0xf8] sm:$0xff]
    %v3018 = vld [vmem:[#allocation11 + $0x100] sm:$0xff]
    %v3019 = vld [vmem:[#allocation11 + $0x108] sm:$0xff]
    %v3020 = vld [vmem:[#allocation11 + $0x110] sm:$0xff]
    %v3021 = vld [vmem:[#allocation11 + $0x118] sm:$0xff]
    %v3022 = vld [vmem:[#allocation11 + $0x120] sm:$0xff]
    %v3023 = vld [vmem:[#allocation11 + $0x128] sm:$0xff]
    %v3024 = vld [vmem:[#allocation11 + $0x130] sm:$0xff]
    %v3025 = vld [vmem:[#allocation11 + $0x138] sm:$0xff]
    %v3026 = vld [vmem:[#allocation11 + $0x140] sm:$0xff]
    %v3027 = vld [vmem:[#allocation11 + $0x148] sm:$0xff]
    %v3028 = vld [vmem:[#allocation11 + $0x150] sm:$0xff]
    %v3029 = vld [vmem:[#allocation11 + $0x158] sm:$0xff]
    %v3030 = vld [vmem:[#allocation11 + $0x160] sm:$0xff]
    %v3031 = vld [vmem:[#allocation11 + $0x168] sm:$0xff]
    %v3032 = vld [vmem:[#allocation11 + $0x170] sm:$0xff]
    %v3033 = vld [vmem:[#allocation11 + $0x178] sm:$0xff]
    %v3034 = vld [vmem:[#allocation11 + $0x180] sm:$0xff]
    %v3035 = vld [vmem:[#allocation11 + $0x188] sm:$0xff]
    %v3036 = vld [vmem:[#allocation11 + $0x190] sm:$0xff]
    %v3037 = vld [vmem:[#allocation11 + $0x198] sm:$0xff]
    %v3038 = vld [vmem:[#allocation11 + $0x1a0] sm:$0xff]
    %v3039 = vld [vmem:[#allocation11 + $0x1a8] sm:$0xff]
    %v3040 = vld [vmem:[#allocation11 + $0x1b0] sm:$0xff]
    %v3041 = vld [vmem:[#allocation11 + $0x1b8] sm:$0xff]
    %v3042 = vld [vmem:[#allocation11 + $0x1c0] sm:$0xff]
    %v3043 = vld [vmem:[#allocation11 + $0x1c8] sm:$0xff]
    %v3044 = vld [vmem:[#allocation11 + $0x1d0] sm:$0xff]
    %v3045 = vld [vmem:[#allocation11 + $0x1d8] sm:$0xff]
    %v3046 = vld [vmem:[#allocation11 + $0x1e0] sm:$0xff]
    %v3047 = vld [vmem:[#allocation11 + $0x1e8] sm:$0xff]
    %v3048 = vld [vmem:[#allocation11 + $0x1f0] sm:$0xff]
    %v3049 = vld [vmem:[#allocation11 + $0x1f8] sm:$0xff]
    %v3050 = vld [vmem:[#allocation11 + $0x200] sm:$0xff]
    %v3051 = vld [vmem:[#allocation11 + $0x208] sm:$0xff]
    %v3052 = vld [vmem:[#allocation11 + $0x210] sm:$0xff]
    %v3053 = vld [vmem:[#allocation11 + $0x218] sm:$0xff]
    %v3054 = vld [vmem:[#allocation11 + $0x220] sm:$0xff]
    %v3055 = vld [vmem:[#allocation11 + $0x228] sm:$0xff]
    %v3056 = vld [vmem:[#allocation11 + $0x230] sm:$0xff]
    %v3057 = vld [vmem:[#allocation11 + $0x238] sm:$0xff]
    %v3058 = vld [vmem:[#allocation11 + $0x240] sm:$0xff]
    %v3059 = vld [vmem:[#allocation11 + $0x248] sm:$0xff]
    %v3060 = vld [vmem:[#allocation11 + $0x250] sm:$0xff]
    %v3061 = vld [vmem:[#allocation11 + $0x258] sm:$0xff]
    %v3062 = vld [vmem:[#allocation11 + $0x260] sm:$0xff]
    %v3063 = vld [vmem:[#allocation11 + $0x268] sm:$0xff]
    %v3064 = vld [vmem:[#allocation11 + $0x270] sm:$0xff]
    %v3065 = vld [vmem:[#allocation11 + $0x278] sm:$0xff]
    %v3066 = vld [vmem:[#allocation11 + $0x280] sm:$0xff]
    %v3067 = vld [vmem:[#allocation11 + $0x288] sm:$0xff]
    %v3068 = vld [vmem:[#allocation11 + $0x290] sm:$0xff]
    %v3069 = vld [vmem:[#allocation11 + $0x298] sm:$0xff]
    %v3070 = vld [vmem:[#allocation11 + $0x2a0] sm:$0xff]
    %v3071 = vld [vmem:[#allocation11 + $0x2a8] sm:$0xff]
    %v3072 = vld [vmem:[#allocation11 + $0x2b0] sm:$0xff]
    %v3073 = vld [vmem:[#allocation11 + $0x2b8] sm:$0xff]
    %v3074 = vld [vmem:[#allocation11 + $0x2c0] sm:$0xff]
    %v3075 = vld [vmem:[#allocation11 + $0x2c8] sm:$0xff]
    %v3076 = vld [vmem:[#allocation11 + $0x2d0] sm:$0xff]
    %v3077 = vld [vmem:[#allocation11 + $0x2d8] sm:$0xff]
    %v3078 = vld [vmem:[#allocation11 + $0x2e0] sm:$0xff]
    %v3079 = vld [vmem:[#allocation11 + $0x2e8] sm:$0xff]
    %v3080 = vld [vmem:[#allocation11 + $0x2f0] sm:$0xff]
    %v3081 = vld [vmem:[#allocation11 + $0x2f8] sm:$0xff]
    %v3082 = vld [vmem:[#allocation11 + $0x300] sm:$0xff]
    %v3083 = vld [vmem:[#allocation11 + $0x308] sm:$0xff]
    %v3084 = vld [vmem:[#allocation11 + $0x310] sm:$0xff]
    %v3085 = vld [vmem:[#allocation11 + $0x318] sm:$0xff]
    %v3086 = vld [vmem:[#allocation11 + $0x320] sm:$0xff]
    %v3087 = vld [vmem:[#allocation11 + $0x328] sm:$0xff]
    %v3088 = vld [vmem:[#allocation11 + $0x330] sm:$0xff]
    %v3089 = vld [vmem:[#allocation11 + $0x338] sm:$0xff]
    %v3090 = vld [vmem:[#allocation11 + $0x340] sm:$0xff]
    %v3091 = vld [vmem:[#allocation11 + $0x348] sm:$0xff]
    %v3092 = vld [vmem:[#allocation11 + $0x350] sm:$0xff]
    %v3093 = vld [vmem:[#allocation11 + $0x358] sm:$0xff]
    %v3094 = vld [vmem:[#allocation11 + $0x360] sm:$0xff]
    %v3095 = vld [vmem:[#allocation11 + $0x368] sm:$0xff]
    %v3096 = vld [vmem:[#allocation11 + $0x370] sm:$0xff]
    %v3097 = vld [vmem:[#allocation11 + $0x378] sm:$0xff]
    %v3098 = vld [vmem:[#allocation11 + $0x380] sm:$0xff]
    %v3099 = vld [vmem:[#allocation11 + $0x388] sm:$0xff]
    %v3100 = vld [vmem:[#allocation11 + $0x390] sm:$0xff]
    %v3101 = vld [vmem:[#allocation11 + $0x398] sm:$0xff]
    %v3102 = vld [vmem:[#allocation11 + $0x3a0] sm:$0xff]
    %v3103 = vld [vmem:[#allocation11 + $0x3a8] sm:$0xff]
    %v3104 = vld [vmem:[#allocation11 + $0x3b0] sm:$0xff]
    %v3105 = vld [vmem:[#allocation11 + $0x3b8] sm:$0xff]
    %v3106 = vld [vmem:[#allocation11 + $0x3c0] sm:$0xff]
    %v3107 = vld [vmem:[#allocation11 + $0x3c8] sm:$0xff]
    %v3108 = vld [vmem:[#allocation11 + $0x3d0] sm:$0xff]
    %v3109 = vld [vmem:[#allocation11 + $0x3d8] sm:$0xff]
    %v3110 = vld [vmem:[#allocation11 + $0x3e0] sm:$0xff]
    %v3111 = vld [vmem:[#allocation11 + $0x3e8] sm:$0xff]
    %v3112 = vld [vmem:[#allocation11 + $0x3f0] sm:$0xff]
    %v3113 = vld [vmem:[#allocation11 + $0x3f8] sm:$0xff]
    %v3114 = vld [vmem:[#allocation11 + $0x400] sm:$0xff]
    %v3115 = vld [vmem:[#allocation11 + $0x408] sm:$0xff]
    %v3116 = vld [vmem:[#allocation11 + $0x410] sm:$0xff]
    %v3117 = vld [vmem:[#allocation11 + $0x418] sm:$0xff]
    %v3118 = vld [vmem:[#allocation11 + $0x420] sm:$0xff]
    %v3119 = vld [vmem:[#allocation11 + $0x428] sm:$0xff]
    %v3120 = vld [vmem:[#allocation11 + $0x430] sm:$0xff]
    %v3121 = vld [vmem:[#allocation11 + $0x438] sm:$0xff]
    %v3122 = vld [vmem:[#allocation11 + $0x440] sm:$0xff]
    %v3123 = vld [vmem:[#allocation11 + $0x448] sm:$0xff]
    %v3124 = vld [vmem:[#allocation11 + $0x450] sm:$0xff]
    %v3125 = vld [vmem:[#allocation11 + $0x458] sm:$0xff]
    %v3126 = vld [vmem:[#allocation11 + $0x460] sm:$0xff]
    %v3127 = vld [vmem:[#allocation11 + $0x468] sm:$0xff]
    %v3128 = vld [vmem:[#allocation11 + $0x470] sm:$0xff]
    %v3129 = vld [vmem:[#allocation11 + $0x478] sm:$0xff]
    %v3130 = vld [vmem:[#allocation11 + $0x480] sm:$0xff]
    %v3131 = vld [vmem:[#allocation11 + $0x488] sm:$0xff]
    %v3132 = vld [vmem:[#allocation11 + $0x490] sm:$0xff]
    %v3133 = vld [vmem:[#allocation11 + $0x498] sm:$0xff]
    %v3134 = vld [vmem:[#allocation11 + $0x4a0] sm:$0xff]
    %v3135 = vld [vmem:[#allocation11 + $0x4a8] sm:$0xff]
    %v3136 = vld [vmem:[#allocation11 + $0x4b0] sm:$0xff]
    %v3137 = vld [vmem:[#allocation11 + $0x4b8] sm:$0xff]
    %v3138 = vld [vmem:[#allocation11 + $0x4c0] sm:$0xff]
    %v3139 = vld [vmem:[#allocation11 + $0x4c8] sm:$0xff]
    %v3140 = vld [vmem:[#allocation11 + $0x4d0] sm:$0xff]
    %v3141 = vld [vmem:[#allocation11 + $0x4d8] sm:$0xff]
    %v3142 = vld [vmem:[#allocation11 + $0x4e0] sm:$0xff]
    %v3143 = vld [vmem:[#allocation11 + $0x4e8] sm:$0xff]
    %v3144 = vld [vmem:[#allocation11 + $0x4f0] sm:$0xff]
    %v3145 = vld [vmem:[#allocation11 + $0x4f8] sm:$0xff]
    %v3146 = vld [vmem:[#allocation11 + $0x500] sm:$0xff]
    %v3147 = vld [vmem:[#allocation11 + $0x508] sm:$0xff]
    %v3148 = vld [vmem:[#allocation11 + $0x510] sm:$0xff]
    %v3149 = vld [vmem:[#allocation11 + $0x518] sm:$0xff]
    %v3150 = vld [vmem:[#allocation11 + $0x520] sm:$0xff]
    %v3151 = vld [vmem:[#allocation11 + $0x528] sm:$0xff]
    %v3152 = vld [vmem:[#allocation11 + $0x530] sm:$0xff]
    %v3153 = vld [vmem:[#allocation11 + $0x538] sm:$0xff]
    %v3154 = vld [vmem:[#allocation11 + $0x540] sm:$0xff]
    %v3155 = vld [vmem:[#allocation11 + $0x548] sm:$0xff]
    %v3156 = vld [vmem:[#allocation11 + $0x550] sm:$0xff]
    %v3157 = vld [vmem:[#allocation11 + $0x558] sm:$0xff]
    %v3158 = vld [vmem:[#allocation11 + $0x560] sm:$0xff]
    %v3159 = vld [vmem:[#allocation11 + $0x568] sm:$0xff]
    %v3160 = vld [vmem:[#allocation11 + $0x570] sm:$0xff]
    %v3161 = vld [vmem:[#allocation11 + $0x578] sm:$0xff]
    %v3162 = vld [vmem:[#allocation11 + $0x580] sm:$0xff]
    %v3163 = vld [vmem:[#allocation11 + $0x588] sm:$0xff]
    %v3164 = vld [vmem:[#allocation11 + $0x590] sm:$0xff]
    %v3165 = vld [vmem:[#allocation11 + $0x598] sm:$0xff]
    %v3166 = vld [vmem:[#allocation11 + $0x5a0] sm:$0xff]
    %v3167 = vld [vmem:[#allocation11 + $0x5a8] sm:$0xff]
    %v3168 = vld [vmem:[#allocation11 + $0x5b0] sm:$0xff]
    %v3169 = vld [vmem:[#allocation11 + $0x5b8] sm:$0xff]
    %v3170 = vld [vmem:[#allocation11 + $0x5c0] sm:$0xff]
    %v3171 = vld [vmem:[#allocation11 + $0x5c8] sm:$0xff]
    %v3172 = vld [vmem:[#allocation11 + $0x5d0] sm:$0xff]
    %v3173 = vld [vmem:[#allocation11 + $0x5d8] sm:$0xff]
    %v3174 = vld [vmem:[#allocation11 + $0x5e0] sm:$0xff]
    %v3175 = vld [vmem:[#allocation11 + $0x5e8] sm:$0xff]
    %v3176 = vld [vmem:[#allocation11 + $0x5f0] sm:$0xff]
    %v3177 = vld [vmem:[#allocation11 + $0x5f8] sm:$0xff]
    %v3178 = vld [vmem:[#allocation11 + $0x600] sm:$0xff]
    %v3179 = vld [vmem:[#allocation11 + $0x608] sm:$0xff]
    %v3180 = vld [vmem:[#allocation11 + $0x610] sm:$0xff]
    %v3181 = vld [vmem:[#allocation11 + $0x618] sm:$0xff]
    %v3182 = vld [vmem:[#allocation11 + $0x620] sm:$0xff]
    %v3183 = vld [vmem:[#allocation11 + $0x628] sm:$0xff]
    %v3184 = vld [vmem:[#allocation11 + $0x630] sm:$0xff]
    %v3185 = vld [vmem:[#allocation11 + $0x638] sm:$0xff]
    %v3186 = vld [vmem:[#allocation11 + $0x640] sm:$0xff]
    %v3187 = vld [vmem:[#allocation11 + $0x648] sm:$0xff]
    %v3188 = vld [vmem:[#allocation11 + $0x650] sm:$0xff]
    %v3189 = vld [vmem:[#allocation11 + $0x658] sm:$0xff]
    %v3190 = vld [vmem:[#allocation11 + $0x660] sm:$0xff]
    %v3191 = vld [vmem:[#allocation11 + $0x668] sm:$0xff]
    %v3192 = vld [vmem:[#allocation11 + $0x670] sm:$0xff]
    %v3193 = vld [vmem:[#allocation11 + $0x678] sm:$0xff]
    %v3194 = vld [vmem:[#allocation11 + $0x680] sm:$0xff]
    %v3195 = vld [vmem:[#allocation11 + $0x688] sm:$0xff]
    %v3196 = vld [vmem:[#allocation11 + $0x690] sm:$0xff]
    %v3197 = vld [vmem:[#allocation11 + $0x698] sm:$0xff]
    %v3198 = vld [vmem:[#allocation11 + $0x6a0] sm:$0xff]
    %v3199 = vld [vmem:[#allocation11 + $0x6a8] sm:$0xff]
    %v3200 = vld [vmem:[#allocation11 + $0x6b0] sm:$0xff]
    %v3201 = vld [vmem:[#allocation11 + $0x6b8] sm:$0xff]
    %v3202 = vld [vmem:[#allocation11 + $0x6c0] sm:$0xff]
    %v3203 = vld [vmem:[#allocation11 + $0x6c8] sm:$0xff]
    %v3204 = vld [vmem:[#allocation11 + $0x6d0] sm:$0xff]
    %v3205 = vld [vmem:[#allocation11 + $0x6d8] sm:$0xff]
    %v3206 = vld [vmem:[#allocation11 + $0x6e0] sm:$0xff]
    %v3207 = vld [vmem:[#allocation11 + $0x6e8] sm:$0xff]
    %v3208 = vld [vmem:[#allocation11 + $0x6f0] sm:$0xff]
    %v3209 = vld [vmem:[#allocation11 + $0x6f8] sm:$0xff]
    %v3210 = vld [vmem:[#allocation11 + $0x700] sm:$0xff]
    %v3211 = vld [vmem:[#allocation11 + $0x708] sm:$0xff]
    %v3212 = vld [vmem:[#allocation11 + $0x710] sm:$0xff]
    %v3213 = vld [vmem:[#allocation11 + $0x718] sm:$0xff]
    %v3214 = vld [vmem:[#allocation11 + $0x720] sm:$0xff]
    %v3215 = vld [vmem:[#allocation11 + $0x728] sm:$0xff]
    %v3216 = vld [vmem:[#allocation11 + $0x730] sm:$0xff]
    %v3217 = vld [vmem:[#allocation11 + $0x738] sm:$0xff]
    %v3218 = vld [vmem:[#allocation11 + $0x740] sm:$0xff]
    %v3219 = vld [vmem:[#allocation11 + $0x748] sm:$0xff]
    %v3220 = vld [vmem:[#allocation11 + $0x750] sm:$0xff]
    %v3221 = vld [vmem:[#allocation11 + $0x758] sm:$0xff]
    %v3222 = vld [vmem:[#allocation11 + $0x760] sm:$0xff]
    %v3223 = vld [vmem:[#allocation11 + $0x768] sm:$0xff]
    %v3224 = vld [vmem:[#allocation11 + $0x770] sm:$0xff]
    %v3225 = vld [vmem:[#allocation11 + $0x778] sm:$0xff]
    %v3226 = vld [vmem:[#allocation11 + $0x780] sm:$0xff]
    %v3227 = vld [vmem:[#allocation11 + $0x788] sm:$0xff]
    %v3228 = vld [vmem:[#allocation11 + $0x790] sm:$0xff]
    %v3229 = vld [vmem:[#allocation11 + $0x798] sm:$0xff]
    %v3230 = vld [vmem:[#allocation11 + $0x7a0] sm:$0xff]
    %v3231 = vld [vmem:[#allocation11 + $0x7a8] sm:$0xff]
    %v3232 = vld [vmem:[#allocation11 + $0x7b0] sm:$0xff]
    %v3233 = vld [vmem:[#allocation11 + $0x7b8] sm:$0xff]
    %v3234 = vld [vmem:[#allocation11 + $0x7c0] sm:$0xff]
    %v3235 = vld [vmem:[#allocation11 + $0x7c8] sm:$0xff]
    %v3236 = vld [vmem:[#allocation11 + $0x7d0] sm:$0xff]
    %v3237 = vld [vmem:[#allocation11 + $0x7d8] sm:$0xff]
    %v3238 = vld [vmem:[#allocation11 + $0x7e0] sm:$0xff]
    %v3239 = vld [vmem:[#allocation11 + $0x7e8] sm:$0xff]
    %v3240 = vld [vmem:[#allocation11 + $0x7f0] sm:$0xff]
    %v3241 = vld [vmem:[#allocation11 + $0x7f8] sm:$0xff]
    %v3498 = vunpack.c.l.b16 %v2986
    %v3499 = vunpack.c.h.b16 %v2986
    %v3500 = vunpack.c.l.b16 %v2987
    %v3501 = vunpack.c.h.b16 %v2987
    %v3502 = vunpack.c.l.b16 %v2988
    %v3503 = vunpack.c.h.b16 %v2988
    %v3504 = vunpack.c.l.b16 %v2989
    %v3505 = vunpack.c.h.b16 %v2989
    %v3506 = vunpack.c.l.b16 %v2990
    %v3507 = vunpack.c.h.b16 %v2990
    %v3508 = vunpack.c.l.b16 %v2991
    %v3509 = vunpack.c.h.b16 %v2991
    %v3510 = vunpack.c.l.b16 %v2992
    %v3511 = vunpack.c.h.b16 %v2992
    %v3512 = vunpack.c.l.b16 %v2993
    %v3513 = vunpack.c.h.b16 %v2993
    %v3514 = vunpack.c.l.b16 %v2994
    %v3515 = vunpack.c.h.b16 %v2994
    %v3516 = vunpack.c.l.b16 %v2995
    %v3517 = vunpack.c.h.b16 %v2995
    %v3518 = vunpack.c.l.b16 %v2996
    %v3519 = vunpack.c.h.b16 %v2996
    %v3520 = vunpack.c.l.b16 %v2997
    %v3521 = vunpack.c.h.b16 %v2997
    %v3522 = vunpack.c.l.b16 %v2998
    %v3523 = vunpack.c.h.b16 %v2998
    %v3524 = vunpack.c.l.b16 %v2999
    %v3525 = vunpack.c.h.b16 %v2999
    %v3526 = vunpack.c.l.b16 %v3000
    %v3527 = vunpack.c.h.b16 %v3000
    %v3528 = vunpack.c.l.b16 %v3001
    %v3529 = vunpack.c.h.b16 %v3001
    %v3530 = vunpack.c.l.b16 %v3002
    %v3531 = vunpack.c.h.b16 %v3002
    %v3532 = vunpack.c.l.b16 %v3003
    %v3533 = vunpack.c.h.b16 %v3003
    %v3534 = vunpack.c.l.b16 %v3004
    %v3535 = vunpack.c.h.b16 %v3004
    %v3536 = vunpack.c.l.b16 %v3005
    %v3537 = vunpack.c.h.b16 %v3005
    %v3538 = vunpack.c.l.b16 %v3006
    %v3539 = vunpack.c.h.b16 %v3006
    %v3540 = vunpack.c.l.b16 %v3007
    %v3541 = vunpack.c.h.b16 %v3007
    %v3542 = vunpack.c.l.b16 %v3008
    %v3543 = vunpack.c.h.b16 %v3008
    %v3544 = vunpack.c.l.b16 %v3009
    %v3545 = vunpack.c.h.b16 %v3009
    %v3546 = vunpack.c.l.b16 %v3010
    %v3547 = vunpack.c.h.b16 %v3010
    %v3548 = vunpack.c.l.b16 %v3011
    %v3549 = vunpack.c.h.b16 %v3011
    %v3550 = vunpack.c.l.b16 %v3012
    %v3551 = vunpack.c.h.b16 %v3012
    %v3552 = vunpack.c.l.b16 %v3013
    %v3553 = vunpack.c.h.b16 %v3013
    %v3554 = vunpack.c.l.b16 %v3014
    %v3555 = vunpack.c.h.b16 %v3014
    %v3556 = vunpack.c.l.b16 %v3015
    %v3557 = vunpack.c.h.b16 %v3015
    %v3558 = vunpack.c.l.b16 %v3016
    %v3559 = vunpack.c.h.b16 %v3016
    %v3560 = vunpack.c.l.b16 %v3017
    %v3561 = vunpack.c.h.b16 %v3017
    %v3562 = vunpack.c.l.b16 %v3018
    %v3563 = vunpack.c.h.b16 %v3018
    %v3564 = vunpack.c.l.b16 %v3019
    %v3565 = vunpack.c.h.b16 %v3019
    %v3566 = vunpack.c.l.b16 %v3020
    %v3567 = vunpack.c.h.b16 %v3020
    %v3568 = vunpack.c.l.b16 %v3021
    %v3569 = vunpack.c.h.b16 %v3021
    %v3570 = vunpack.c.l.b16 %v3022
    %v3571 = vunpack.c.h.b16 %v3022
    %v3572 = vunpack.c.l.b16 %v3023
    %v3573 = vunpack.c.h.b16 %v3023
    %v3574 = vunpack.c.l.b16 %v3024
    %v3575 = vunpack.c.h.b16 %v3024
    %v3576 = vunpack.c.l.b16 %v3025
    %v3577 = vunpack.c.h.b16 %v3025
    %v3578 = vunpack.c.l.b16 %v3026
    %v3579 = vunpack.c.h.b16 %v3026
    %v3580 = vunpack.c.l.b16 %v3027
    %v3581 = vunpack.c.h.b16 %v3027
    %v3582 = vunpack.c.l.b16 %v3028
    %v3583 = vunpack.c.h.b16 %v3028
    %v3584 = vunpack.c.l.b16 %v3029
    %v3585 = vunpack.c.h.b16 %v3029
    %v3586 = vunpack.c.l.b16 %v3030
    %v3587 = vunpack.c.h.b16 %v3030
    %v3588 = vunpack.c.l.b16 %v3031
    %v3589 = vunpack.c.h.b16 %v3031
    %v3590 = vunpack.c.l.b16 %v3032
    %v3591 = vunpack.c.h.b16 %v3032
    %v3592 = vunpack.c.l.b16 %v3033
    %v3593 = vunpack.c.h.b16 %v3033
    %v3594 = vunpack.c.l.b16 %v3034
    %v3595 = vunpack.c.h.b16 %v3034
    %v3596 = vunpack.c.l.b16 %v3035
    %v3597 = vunpack.c.h.b16 %v3035
    %v3598 = vunpack.c.l.b16 %v3036
    %v3599 = vunpack.c.h.b16 %v3036
    %v3600 = vunpack.c.l.b16 %v3037
    %v3601 = vunpack.c.h.b16 %v3037
    %v3602 = vunpack.c.l.b16 %v3038
    %v3603 = vunpack.c.h.b16 %v3038
    %v3604 = vunpack.c.l.b16 %v3039
    %v3605 = vunpack.c.h.b16 %v3039
    %v3606 = vunpack.c.l.b16 %v3040
    %v3607 = vunpack.c.h.b16 %v3040
    %v3608 = vunpack.c.l.b16 %v3041
    %v3609 = vunpack.c.h.b16 %v3041
    %v3610 = vunpack.c.l.b16 %v3042
    %v3611 = vunpack.c.h.b16 %v3042
    %v3612 = vunpack.c.l.b16 %v3043
    %v3613 = vunpack.c.h.b16 %v3043
    %v3614 = vunpack.c.l.b16 %v3044
    %v3615 = vunpack.c.h.b16 %v3044
    %v3616 = vunpack.c.l.b16 %v3045
    %v3617 = vunpack.c.h.b16 %v3045
    %v3618 = vunpack.c.l.b16 %v3046
    %v3619 = vunpack.c.h.b16 %v3046
    %v3620 = vunpack.c.l.b16 %v3047
    %v3621 = vunpack.c.h.b16 %v3047
    %v3622 = vunpack.c.l.b16 %v3048
    %v3623 = vunpack.c.h.b16 %v3048
    %v3624 = vunpack.c.l.b16 %v3049
    %v3625 = vunpack.c.h.b16 %v3049
    %v3626 = vunpack.c.l.b16 %v3050
    %v3627 = vunpack.c.h.b16 %v3050
    %v3628 = vunpack.c.l.b16 %v3051
    %v3629 = vunpack.c.h.b16 %v3051
    %v3630 = vunpack.c.l.b16 %v3052
    %v3631 = vunpack.c.h.b16 %v3052
    %v3632 = vunpack.c.l.b16 %v3053
    %v3633 = vunpack.c.h.b16 %v3053
    %v3634 = vunpack.c.l.b16 %v3054
    %v3635 = vunpack.c.h.b16 %v3054
    %v3636 = vunpack.c.l.b16 %v3055
    %v3637 = vunpack.c.h.b16 %v3055
    %v3638 = vunpack.c.l.b16 %v3056
    %v3639 = vunpack.c.h.b16 %v3056
    %v3640 = vunpack.c.l.b16 %v3057
    %v3641 = vunpack.c.h.b16 %v3057
    %v3642 = vunpack.c.l.b16 %v3058
    %v3643 = vunpack.c.h.b16 %v3058
    %v3644 = vunpack.c.l.b16 %v3059
    %v3645 = vunpack.c.h.b16 %v3059
    %v3646 = vunpack.c.l.b16 %v3060
    %v3647 = vunpack.c.h.b16 %v3060
    %v3648 = vunpack.c.l.b16 %v3061
    %v3649 = vunpack.c.h.b16 %v3061
    %v3650 = vunpack.c.l.b16 %v3062
    %v3651 = vunpack.c.h.b16 %v3062
    %v3652 = vunpack.c.l.b16 %v3063
    %v3653 = vunpack.c.h.b16 %v3063
    %v3654 = vunpack.c.l.b16 %v3064
    %v3655 = vunpack.c.h.b16 %v3064
    %v3656 = vunpack.c.l.b16 %v3065
    %v3657 = vunpack.c.h.b16 %v3065
    %v3658 = vunpack.c.l.b16 %v3066
    %v3659 = vunpack.c.h.b16 %v3066
    %v3660 = vunpack.c.l.b16 %v3067
    %v3661 = vunpack.c.h.b16 %v3067
    %v3662 = vunpack.c.l.b16 %v3068
    %v3663 = vunpack.c.h.b16 %v3068
    %v3664 = vunpack.c.l.b16 %v3069
    %v3665 = vunpack.c.h.b16 %v3069
    %v3666 = vunpack.c.l.b16 %v3070
    %v3667 = vunpack.c.h.b16 %v3070
    %v3668 = vunpack.c.l.b16 %v3071
    %v3669 = vunpack.c.h.b16 %v3071
    %v3670 = vunpack.c.l.b16 %v3072
    %v3671 = vunpack.c.h.b16 %v3072
    %v3672 = vunpack.c.l.b16 %v3073
    %v3673 = vunpack.c.h.b16 %v3073
    %v3674 = vunpack.c.l.b16 %v3074
    %v3675 = vunpack.c.h.b16 %v3074
    %v3676 = vunpack.c.l.b16 %v3075
    %v3677 = vunpack.c.h.b16 %v3075
    %v3678 = vunpack.c.l.b16 %v3076
    %v3679 = vunpack.c.h.b16 %v3076
    %v3680 = vunpack.c.l.b16 %v3077
    %v3681 = vunpack.c.h.b16 %v3077
    %v3682 = vunpack.c.l.b16 %v3078
    %v3683 = vunpack.c.h.b16 %v3078
    %v3684 = vunpack.c.l.b16 %v3079
    %v3685 = vunpack.c.h.b16 %v3079
    %v3686 = vunpack.c.l.b16 %v3080
    %v3687 = vunpack.c.h.b16 %v3080
    %v3688 = vunpack.c.l.b16 %v3081
    %v3689 = vunpack.c.h.b16 %v3081
    %v3690 = vunpack.c.l.b16 %v3082
    %v3691 = vunpack.c.h.b16 %v3082
    %v3692 = vunpack.c.l.b16 %v3083
    %v3693 = vunpack.c.h.b16 %v3083
    %v3694 = vunpack.c.l.b16 %v3084
    %v3695 = vunpack.c.h.b16 %v3084
    %v3696 = vunpack.c.l.b16 %v3085
    %v3697 = vunpack.c.h.b16 %v3085
    %v3698 = vunpack.c.l.b16 %v3086
    %v3699 = vunpack.c.h.b16 %v3086
    %v3700 = vunpack.c.l.b16 %v3087
    %v3701 = vunpack.c.h.b16 %v3087
    %v3702 = vunpack.c.l.b16 %v3088
    %v3703 = vunpack.c.h.b16 %v3088
    %v3704 = vunpack.c.l.b16 %v3089
    %v3705 = vunpack.c.h.b16 %v3089
    %v3706 = vunpack.c.l.b16 %v3090
    %v3707 = vunpack.c.h.b16 %v3090
    %v3708 = vunpack.c.l.b16 %v3091
    %v3709 = vunpack.c.h.b16 %v3091
    %v3710 = vunpack.c.l.b16 %v3092
    %v3711 = vunpack.c.h.b16 %v3092
    %v3712 = vunpack.c.l.b16 %v3093
    %v3713 = vunpack.c.h.b16 %v3093
    %v3714 = vunpack.c.l.b16 %v3094
    %v3715 = vunpack.c.h.b16 %v3094
    %v3716 = vunpack.c.l.b16 %v3095
    %v3717 = vunpack.c.h.b16 %v3095
    %v3718 = vunpack.c.l.b16 %v3096
    %v3719 = vunpack.c.h.b16 %v3096
    %v3720 = vunpack.c.l.b16 %v3097
    %v3721 = vunpack.c.h.b16 %v3097
    %v3722 = vunpack.c.l.b16 %v3098
    %v3723 = vunpack.c.h.b16 %v3098
    %v3724 = vunpack.c.l.b16 %v3099
    %v3725 = vunpack.c.h.b16 %v3099
    %v3726 = vunpack.c.l.b16 %v3100
    %v3727 = vunpack.c.h.b16 %v3100
    %v3728 = vunpack.c.l.b16 %v3101
    %v3729 = vunpack.c.h.b16 %v3101
    %v3730 = vunpack.c.l.b16 %v3102
    %v3731 = vunpack.c.h.b16 %v3102
    %v3732 = vunpack.c.l.b16 %v3103
    %v3733 = vunpack.c.h.b16 %v3103
    %v3734 = vunpack.c.l.b16 %v3104
    %v3735 = vunpack.c.h.b16 %v3104
    %v3736 = vunpack.c.l.b16 %v3105
    %v3737 = vunpack.c.h.b16 %v3105
    %v3738 = vunpack.c.l.b16 %v3106
    %v3739 = vunpack.c.h.b16 %v3106
    %v3740 = vunpack.c.l.b16 %v3107
    %v3741 = vunpack.c.h.b16 %v3107
    %v3742 = vunpack.c.l.b16 %v3108
    %v3743 = vunpack.c.h.b16 %v3108
    %v3744 = vunpack.c.l.b16 %v3109
    %v3745 = vunpack.c.h.b16 %v3109
    %v3746 = vunpack.c.l.b16 %v3110
    %v3747 = vunpack.c.h.b16 %v3110
    %v3748 = vunpack.c.l.b16 %v3111
    %v3749 = vunpack.c.h.b16 %v3111
    %v3750 = vunpack.c.l.b16 %v3112
    %v3751 = vunpack.c.h.b16 %v3112
    %v3752 = vunpack.c.l.b16 %v3113
    %v3753 = vunpack.c.h.b16 %v3113
    %v3754 = vunpack.c.l.b16 %v3114
    %v3755 = vunpack.c.h.b16 %v3114
    %v3756 = vunpack.c.l.b16 %v3115
    %v3757 = vunpack.c.h.b16 %v3115
    %v3758 = vunpack.c.l.b16 %v3116
    %v3759 = vunpack.c.h.b16 %v3116
    %v3760 = vunpack.c.l.b16 %v3117
    %v3761 = vunpack.c.h.b16 %v3117
    %v3762 = vunpack.c.l.b16 %v3118
    %v3763 = vunpack.c.h.b16 %v3118
    %v3764 = vunpack.c.l.b16 %v3119
    %v3765 = vunpack.c.h.b16 %v3119
    %v3766 = vunpack.c.l.b16 %v3120
    %v3767 = vunpack.c.h.b16 %v3120
    %v3768 = vunpack.c.l.b16 %v3121
    %v3769 = vunpack.c.h.b16 %v3121
    %v3770 = vunpack.c.l.b16 %v3122
    %v3771 = vunpack.c.h.b16 %v3122
    %v3772 = vunpack.c.l.b16 %v3123
    %v3773 = vunpack.c.h.b16 %v3123
    %v3774 = vunpack.c.l.b16 %v3124
    %v3775 = vunpack.c.h.b16 %v3124
    %v3776 = vunpack.c.l.b16 %v3125
    %v3777 = vunpack.c.h.b16 %v3125
    %v3778 = vunpack.c.l.b16 %v3126
    %v3779 = vunpack.c.h.b16 %v3126
    %v3780 = vunpack.c.l.b16 %v3127
    %v3781 = vunpack.c.h.b16 %v3127
    %v3782 = vunpack.c.l.b16 %v3128
    %v3783 = vunpack.c.h.b16 %v3128
    %v3784 = vunpack.c.l.b16 %v3129
    %v3785 = vunpack.c.h.b16 %v3129
    %v3786 = vunpack.c.l.b16 %v3130
    %v3787 = vunpack.c.h.b16 %v3130
    %v3788 = vunpack.c.l.b16 %v3131
    %v3789 = vunpack.c.h.b16 %v3131
    %v3790 = vunpack.c.l.b16 %v3132
    %v3791 = vunpack.c.h.b16 %v3132
    %v3792 = vunpack.c.l.b16 %v3133
    %v3793 = vunpack.c.h.b16 %v3133
    %v3794 = vunpack.c.l.b16 %v3134
    %v3795 = vunpack.c.h.b16 %v3134
    %v3796 = vunpack.c.l.b16 %v3135
    %v3797 = vunpack.c.h.b16 %v3135
    %v3798 = vunpack.c.l.b16 %v3136
    %v3799 = vunpack.c.h.b16 %v3136
    %v3800 = vunpack.c.l.b16 %v3137
    %v3801 = vunpack.c.h.b16 %v3137
    %v3802 = vunpack.c.l.b16 %v3138
    %v3803 = vunpack.c.h.b16 %v3138
    %v3804 = vunpack.c.l.b16 %v3139
    %v3805 = vunpack.c.h.b16 %v3139
    %v3806 = vunpack.c.l.b16 %v3140
    %v3807 = vunpack.c.h.b16 %v3140
    %v3808 = vunpack.c.l.b16 %v3141
    %v3809 = vunpack.c.h.b16 %v3141
    %v3810 = vunpack.c.l.b16 %v3142
    %v3811 = vunpack.c.h.b16 %v3142
    %v3812 = vunpack.c.l.b16 %v3143
    %v3813 = vunpack.c.h.b16 %v3143
    %v3814 = vunpack.c.l.b16 %v3144
    %v3815 = vunpack.c.h.b16 %v3144
    %v3816 = vunpack.c.l.b16 %v3145
    %v3817 = vunpack.c.h.b16 %v3145
    %v3818 = vunpack.c.l.b16 %v3146
    %v3819 = vunpack.c.h.b16 %v3146
    %v3820 = vunpack.c.l.b16 %v3147
    %v3821 = vunpack.c.h.b16 %v3147
    %v3822 = vunpack.c.l.b16 %v3148
    %v3823 = vunpack.c.h.b16 %v3148
    %v3824 = vunpack.c.l.b16 %v3149
    %v3825 = vunpack.c.h.b16 %v3149
    %v3826 = vunpack.c.l.b16 %v3150
    %v3827 = vunpack.c.h.b16 %v3150
    %v3828 = vunpack.c.l.b16 %v3151
    %v3829 = vunpack.c.h.b16 %v3151
    %v3830 = vunpack.c.l.b16 %v3152
    %v3831 = vunpack.c.h.b16 %v3152
    %v3832 = vunpack.c.l.b16 %v3153
    %v3833 = vunpack.c.h.b16 %v3153
    %v3834 = vunpack.c.l.b16 %v3154
    %v3835 = vunpack.c.h.b16 %v3154
    %v3836 = vunpack.c.l.b16 %v3155
    %v3837 = vunpack.c.h.b16 %v3155
    %v3838 = vunpack.c.l.b16 %v3156
    %v3839 = vunpack.c.h.b16 %v3156
    %v3840 = vunpack.c.l.b16 %v3157
    %v3841 = vunpack.c.h.b16 %v3157
    %v3842 = vunpack.c.l.b16 %v3158
    %v3843 = vunpack.c.h.b16 %v3158
    %v3844 = vunpack.c.l.b16 %v3159
    %v3845 = vunpack.c.h.b16 %v3159
    %v3846 = vunpack.c.l.b16 %v3160
    %v3847 = vunpack.c.h.b16 %v3160
    %v3848 = vunpack.c.l.b16 %v3161
    %v3849 = vunpack.c.h.b16 %v3161
    %v3850 = vunpack.c.l.b16 %v3162
    %v3851 = vunpack.c.h.b16 %v3162
    %v3852 = vunpack.c.l.b16 %v3163
    %v3853 = vunpack.c.h.b16 %v3163
    %v3854 = vunpack.c.l.b16 %v3164
    %v3855 = vunpack.c.h.b16 %v3164
    %v3856 = vunpack.c.l.b16 %v3165
    %v3857 = vunpack.c.h.b16 %v3165
    %v3858 = vunpack.c.l.b16 %v3166
    %v3859 = vunpack.c.h.b16 %v3166
    %v3860 = vunpack.c.l.b16 %v3167
    %v3861 = vunpack.c.h.b16 %v3167
    %v3862 = vunpack.c.l.b16 %v3168
    %v3863 = vunpack.c.h.b16 %v3168
    %v3864 = vunpack.c.l.b16 %v3169
    %v3865 = vunpack.c.h.b16 %v3169
    %v3866 = vunpack.c.l.b16 %v3170
    %v3867 = vunpack.c.h.b16 %v3170
    %v3868 = vunpack.c.l.b16 %v3171
    %v3869 = vunpack.c.h.b16 %v3171
    %v3870 = vunpack.c.l.b16 %v3172
    %v3871 = vunpack.c.h.b16 %v3172
    %v3872 = vunpack.c.l.b16 %v3173
    %v3873 = vunpack.c.h.b16 %v3173
    %v3874 = vunpack.c.l.b16 %v3174
    %v3875 = vunpack.c.h.b16 %v3174
    %v3876 = vunpack.c.l.b16 %v3175
    %v3877 = vunpack.c.h.b16 %v3175
    %v3878 = vunpack.c.l.b16 %v3176
    %v3879 = vunpack.c.h.b16 %v3176
    %v3880 = vunpack.c.l.b16 %v3177
    %v3881 = vunpack.c.h.b16 %v3177
    %v3882 = vunpack.c.l.b16 %v3178
    %v3883 = vunpack.c.h.b16 %v3178
    %v3884 = vunpack.c.l.b16 %v3179
    %v3885 = vunpack.c.h.b16 %v3179
    %v3886 = vunpack.c.l.b16 %v3180
    %v3887 = vunpack.c.h.b16 %v3180
    %v3888 = vunpack.c.l.b16 %v3181
    %v3889 = vunpack.c.h.b16 %v3181
    %v3890 = vunpack.c.l.b16 %v3182
    %v3891 = vunpack.c.h.b16 %v3182
    %v3892 = vunpack.c.l.b16 %v3183
    %v3893 = vunpack.c.h.b16 %v3183
    %v3894 = vunpack.c.l.b16 %v3184
    %v3895 = vunpack.c.h.b16 %v3184
    %v3896 = vunpack.c.l.b16 %v3185
    %v3897 = vunpack.c.h.b16 %v3185
    %v3898 = vunpack.c.l.b16 %v3186
    %v3899 = vunpack.c.h.b16 %v3186
    %v3900 = vunpack.c.l.b16 %v3187
    %v3901 = vunpack.c.h.b16 %v3187
    %v3902 = vunpack.c.l.b16 %v3188
    %v3903 = vunpack.c.h.b16 %v3188
    %v3904 = vunpack.c.l.b16 %v3189
    %v3905 = vunpack.c.h.b16 %v3189
    %v3906 = vunpack.c.l.b16 %v3190
    %v3907 = vunpack.c.h.b16 %v3190
    %v3908 = vunpack.c.l.b16 %v3191
    %v3909 = vunpack.c.h.b16 %v3191
    %v3910 = vunpack.c.l.b16 %v3192
    %v3911 = vunpack.c.h.b16 %v3192
    %v3912 = vunpack.c.l.b16 %v3193
    %v3913 = vunpack.c.h.b16 %v3193
    %v3914 = vunpack.c.l.b16 %v3194
    %v3915 = vunpack.c.h.b16 %v3194
    %v3916 = vunpack.c.l.b16 %v3195
    %v3917 = vunpack.c.h.b16 %v3195
    %v3918 = vunpack.c.l.b16 %v3196
    %v3919 = vunpack.c.h.b16 %v3196
    %v3920 = vunpack.c.l.b16 %v3197
    %v3921 = vunpack.c.h.b16 %v3197
    %v3922 = vunpack.c.l.b16 %v3198
    %v3923 = vunpack.c.h.b16 %v3198
    %v3924 = vunpack.c.l.b16 %v3199
    %v3925 = vunpack.c.h.b16 %v3199
    %v3926 = vunpack.c.l.b16 %v3200
    %v3927 = vunpack.c.h.b16 %v3200
    %v3928 = vunpack.c.l.b16 %v3201
    %v3929 = vunpack.c.h.b16 %v3201
    %v3930 = vunpack.c.l.b16 %v3202
    %v3931 = vunpack.c.h.b16 %v3202
    %v3932 = vunpack.c.l.b16 %v3203
    %v3933 = vunpack.c.h.b16 %v3203
    %v3934 = vunpack.c.l.b16 %v3204
    %v3935 = vunpack.c.h.b16 %v3204
    %v3936 = vunpack.c.l.b16 %v3205
    %v3937 = vunpack.c.h.b16 %v3205
    %v3938 = vunpack.c.l.b16 %v3206
    %v3939 = vunpack.c.h.b16 %v3206
    %v3940 = vunpack.c.l.b16 %v3207
    %v3941 = vunpack.c.h.b16 %v3207
    %v3942 = vunpack.c.l.b16 %v3208
    %v3943 = vunpack.c.h.b16 %v3208
    %v3944 = vunpack.c.l.b16 %v3209
    %v3945 = vunpack.c.h.b16 %v3209
    %v3946 = vunpack.c.l.b16 %v3210
    %v3947 = vunpack.c.h.b16 %v3210
    %v3948 = vunpack.c.l.b16 %v3211
    %v3949 = vunpack.c.h.b16 %v3211
    %v3950 = vunpack.c.l.b16 %v3212
    %v3951 = vunpack.c.h.b16 %v3212
    %v3952 = vunpack.c.l.b16 %v3213
    %v3953 = vunpack.c.h.b16 %v3213
    %v3954 = vunpack.c.l.b16 %v3214
    %v3955 = vunpack.c.h.b16 %v3214
    %v3956 = vunpack.c.l.b16 %v3215
    %v3957 = vunpack.c.h.b16 %v3215
    %v3958 = vunpack.c.l.b16 %v3216
    %v3959 = vunpack.c.h.b16 %v3216
    %v3960 = vunpack.c.l.b16 %v3217
    %v3961 = vunpack.c.h.b16 %v3217
    %v3962 = vunpack.c.l.b16 %v3218
    %v3963 = vunpack.c.h.b16 %v3218
    %v3964 = vunpack.c.l.b16 %v3219
    %v3965 = vunpack.c.h.b16 %v3219
    %v3966 = vunpack.c.l.b16 %v3220
    %v3967 = vunpack.c.h.b16 %v3220
    %v3968 = vunpack.c.l.b16 %v3221
    %v3969 = vunpack.c.h.b16 %v3221
    %v3970 = vunpack.c.l.b16 %v3222
    %v3971 = vunpack.c.h.b16 %v3222
    %v3972 = vunpack.c.l.b16 %v3223
    %v3973 = vunpack.c.h.b16 %v3223
    %v3974 = vunpack.c.l.b16 %v3224
    %v3975 = vunpack.c.h.b16 %v3224
    %v3976 = vunpack.c.l.b16 %v3225
    %v3977 = vunpack.c.h.b16 %v3225
    %v3978 = vunpack.c.l.b16 %v3226
    %v3979 = vunpack.c.h.b16 %v3226
    %v3980 = vunpack.c.l.b16 %v3227
    %v3981 = vunpack.c.h.b16 %v3227
    %v3982 = vunpack.c.l.b16 %v3228
    %v3983 = vunpack.c.h.b16 %v3228
    %v3984 = vunpack.c.l.b16 %v3229
    %v3985 = vunpack.c.h.b16 %v3229
    %v3986 = vunpack.c.l.b16 %v3230
    %v3987 = vunpack.c.h.b16 %v3230
    %v3988 = vunpack.c.l.b16 %v3231
    %v3989 = vunpack.c.h.b16 %v3231
    %v3990 = vunpack.c.l.b16 %v3232
    %v3991 = vunpack.c.h.b16 %v3232
    %v3992 = vunpack.c.l.b16 %v3233
    %v3993 = vunpack.c.h.b16 %v3233
    %v3994 = vunpack.c.l.b16 %v3234
    %v3995 = vunpack.c.h.b16 %v3234
    %v3996 = vunpack.c.l.b16 %v3235
    %v3997 = vunpack.c.h.b16 %v3235
    %v3998 = vunpack.c.l.b16 %v3236
    %v3999 = vunpack.c.h.b16 %v3236
    %v4000 = vunpack.c.l.b16 %v3237
    %v4001 = vunpack.c.h.b16 %v3237
    %v4002 = vunpack.c.l.b16 %v3238
    %v4003 = vunpack.c.h.b16 %v3238
    %v4004 = vunpack.c.l.b16 %v3239
    %v4005 = vunpack.c.h.b16 %v3239
    %v4006 = vunpack.c.l.b16 %v3240
    %v4007 = vunpack.c.h.b16 %v3240
    %v4008 = vunpack.c.l.b16 %v3241
    %v4009 = vunpack.c.h.b16 %v3241
    %v4010 = vpack.c.b16 %v3506, %v3498
    %v4011 = vpack.c.b16 %v3507, %v3499
    %v4012 = vpack.c.b16 %v3508, %v3500
    %v4013 = vpack.c.b16 %v3509, %v3501
    %v4014 = vpack.c.b16 %v3510, %v3502
    %v4015 = vpack.c.b16 %v3511, %v3503
    %v4016 = vpack.c.b16 %v3512, %v3504
    %v4017 = vpack.c.b16 %v3513, %v3505
    %v4018 = vpack.c.b16 %v3522, %v3514
    %v4019 = vpack.c.b16 %v3523, %v3515
    %v4020 = vpack.c.b16 %v3524, %v3516
    %v4021 = vpack.c.b16 %v3525, %v3517
    %v4022 = vpack.c.b16 %v3526, %v3518
    %v4023 = vpack.c.b16 %v3527, %v3519
    %v4024 = vpack.c.b16 %v3528, %v3520
    %v4025 = vpack.c.b16 %v3529, %v3521
    %v4026 = vpack.c.b16 %v3538, %v3530
    %v4027 = vpack.c.b16 %v3539, %v3531
    %v4028 = vpack.c.b16 %v3540, %v3532
    %v4029 = vpack.c.b16 %v3541, %v3533
    %v4030 = vpack.c.b16 %v3542, %v3534
    %v4031 = vpack.c.b16 %v3543, %v3535
    %v4032 = vpack.c.b16 %v3544, %v3536
    %v4033 = vpack.c.b16 %v3545, %v3537
    %v4034 = vpack.c.b16 %v3554, %v3546
    %v4035 = vpack.c.b16 %v3555, %v3547
    %v4036 = vpack.c.b16 %v3556, %v3548
    %v4037 = vpack.c.b16 %v3557, %v3549
    %v4038 = vpack.c.b16 %v3558, %v3550
    %v4039 = vpack.c.b16 %v3559, %v3551
    %v4040 = vpack.c.b16 %v3560, %v3552
    %v4041 = vpack.c.b16 %v3561, %v3553
    %v4042 = vpack.c.b16 %v3570, %v3562
    %v4043 = vpack.c.b16 %v3571, %v3563
    %v4044 = vpack.c.b16 %v3572, %v3564
    %v4045 = vpack.c.b16 %v3573, %v3565
    %v4046 = vpack.c.b16 %v3574, %v3566
    %v4047 = vpack.c.b16 %v3575, %v3567
    %v4048 = vpack.c.b16 %v3576, %v3568
    %v4049 = vpack.c.b16 %v3577, %v3569
    %v4050 = vpack.c.b16 %v3586, %v3578
    %v4051 = vpack.c.b16 %v3587, %v3579
    %v4052 = vpack.c.b16 %v3588, %v3580
    %v4053 = vpack.c.b16 %v3589, %v3581
    %v4054 = vpack.c.b16 %v3590, %v3582
    %v4055 = vpack.c.b16 %v3591, %v3583
    %v4056 = vpack.c.b16 %v3592, %v3584
    %v4057 = vpack.c.b16 %v3593, %v3585
    %v4058 = vpack.c.b16 %v3602, %v3594
    %v4059 = vpack.c.b16 %v3603, %v3595
    %v4060 = vpack.c.b16 %v3604, %v3596
    %v4061 = vpack.c.b16 %v3605, %v3597
    %v4062 = vpack.c.b16 %v3606, %v3598
    %v4063 = vpack.c.b16 %v3607, %v3599
    %v4064 = vpack.c.b16 %v3608, %v3600
    %v4065 = vpack.c.b16 %v3609, %v3601
    %v4066 = vpack.c.b16 %v3618, %v3610
    %v4067 = vpack.c.b16 %v3619, %v3611
    %v4068 = vpack.c.b16 %v3620, %v3612
    %v4069 = vpack.c.b16 %v3621, %v3613
    %v4070 = vpack.c.b16 %v3622, %v3614
    %v4071 = vpack.c.b16 %v3623, %v3615
    %v4072 = vpack.c.b16 %v3624, %v3616
    %v4073 = vpack.c.b16 %v3625, %v3617
    %v4074 = vpack.c.b16 %v3634, %v3626
    %v4075 = vpack.c.b16 %v3635, %v3627
    %v4076 = vpack.c.b16 %v3636, %v3628
    %v4077 = vpack.c.b16 %v3637, %v3629
    %v4078 = vpack.c.b16 %v3638, %v3630
    %v4079 = vpack.c.b16 %v3639, %v3631
    %v4080 = vpack.c.b16 %v3640, %v3632
    %v4081 = vpack.c.b16 %v3641, %v3633
    %v4082 = vpack.c.b16 %v3650, %v3642
    %v4083 = vpack.c.b16 %v3651, %v3643
    %v4084 = vpack.c.b16 %v3652, %v3644
    %v4085 = vpack.c.b16 %v3653, %v3645
    %v4086 = vpack.c.b16 %v3654, %v3646
    %v4087 = vpack.c.b16 %v3655, %v3647
    %v4088 = vpack.c.b16 %v3656, %v3648
    %v4089 = vpack.c.b16 %v3657, %v3649
    %v4090 = vpack.c.b16 %v3666, %v3658
    %v4091 = vpack.c.b16 %v3667, %v3659
    %v4092 = vpack.c.b16 %v3668, %v3660
    %v4093 = vpack.c.b16 %v3669, %v3661
    %v4094 = vpack.c.b16 %v3670, %v3662
    %v4095 = vpack.c.b16 %v3671, %v3663
    %v4096 = vpack.c.b16 %v3672, %v3664
    %v4097 = vpack.c.b16 %v3673, %v3665
    %v4098 = vpack.c.b16 %v3682, %v3674
    %v4099 = vpack.c.b16 %v3683, %v3675
    %v4100 = vpack.c.b16 %v3684, %v3676
    %v4101 = vpack.c.b16 %v3685, %v3677
    %v4102 = vpack.c.b16 %v3686, %v3678
    %v4103 = vpack.c.b16 %v3687, %v3679
    %v4104 = vpack.c.b16 %v3688, %v3680
    %v4105 = vpack.c.b16 %v3689, %v3681
    %v4106 = vpack.c.b16 %v3698, %v3690
    %v4107 = vpack.c.b16 %v3699, %v3691
    %v4108 = vpack.c.b16 %v3700, %v3692
    %v4109 = vpack.c.b16 %v3701, %v3693
    %v4110 = vpack.c.b16 %v3702, %v3694
    %v4111 = vpack.c.b16 %v3703, %v3695
    %v4112 = vpack.c.b16 %v3704, %v3696
    %v4113 = vpack.c.b16 %v3705, %v3697
    %v4114 = vpack.c.b16 %v3714, %v3706
    %v4115 = vpack.c.b16 %v3715, %v3707
    %v4116 = vpack.c.b16 %v3716, %v3708
    %v4117 = vpack.c.b16 %v3717, %v3709
    %v4118 = vpack.c.b16 %v3718, %v3710
    %v4119 = vpack.c.b16 %v3719, %v3711
    %v4120 = vpack.c.b16 %v3720, %v3712
    %v4121 = vpack.c.b16 %v3721, %v3713
    %v4122 = vpack.c.b16 %v3730, %v3722
    %v4123 = vpack.c.b16 %v3731, %v3723
    %v4124 = vpack.c.b16 %v3732, %v3724
    %v4125 = vpack.c.b16 %v3733, %v3725
    %v4126 = vpack.c.b16 %v3734, %v3726
    %v4127 = vpack.c.b16 %v3735, %v3727
    %v4128 = vpack.c.b16 %v3736, %v3728
    %v4129 = vpack.c.b16 %v3737, %v3729
    %v4130 = vpack.c.b16 %v3746, %v3738
    %v4131 = vpack.c.b16 %v3747, %v3739
    %v4132 = vpack.c.b16 %v3748, %v3740
    %v4133 = vpack.c.b16 %v3749, %v3741
    %v4134 = vpack.c.b16 %v3750, %v3742
    %v4135 = vpack.c.b16 %v3751, %v3743
    %v4136 = vpack.c.b16 %v3752, %v3744
    %v4137 = vpack.c.b16 %v3753, %v3745
    %v4138 = vpack.c.b16 %v3762, %v3754
    %v4139 = vpack.c.b16 %v3763, %v3755
    %v4140 = vpack.c.b16 %v3764, %v3756
    %v4141 = vpack.c.b16 %v3765, %v3757
    %v4142 = vpack.c.b16 %v3766, %v3758
    %v4143 = vpack.c.b16 %v3767, %v3759
    %v4144 = vpack.c.b16 %v3768, %v3760
    %v4145 = vpack.c.b16 %v3769, %v3761
    %v4146 = vpack.c.b16 %v3778, %v3770
    %v4147 = vpack.c.b16 %v3779, %v3771
    %v4148 = vpack.c.b16 %v3780, %v3772
    %v4149 = vpack.c.b16 %v3781, %v3773
    %v4150 = vpack.c.b16 %v3782, %v3774
    %v4151 = vpack.c.b16 %v3783, %v3775
    %v4152 = vpack.c.b16 %v3784, %v3776
    %v4153 = vpack.c.b16 %v3785, %v3777
    %v4154 = vpack.c.b16 %v3794, %v3786
    %v4155 = vpack.c.b16 %v3795, %v3787
    %v4156 = vpack.c.b16 %v3796, %v3788
    %v4157 = vpack.c.b16 %v3797, %v3789
    %v4158 = vpack.c.b16 %v3798, %v3790
    %v4159 = vpack.c.b16 %v3799, %v3791
    %v4160 = vpack.c.b16 %v3800, %v3792
    %v4161 = vpack.c.b16 %v3801, %v3793
    %v4162 = vpack.c.b16 %v3810, %v3802
    %v4163 = vpack.c.b16 %v3811, %v3803
    %v4164 = vpack.c.b16 %v3812, %v3804
    %v4165 = vpack.c.b16 %v3813, %v3805
    %v4166 = vpack.c.b16 %v3814, %v3806
    %v4167 = vpack.c.b16 %v3815, %v3807
    %v4168 = vpack.c.b16 %v3816, %v3808
    %v4169 = vpack.c.b16 %v3817, %v3809
    %v4170 = vpack.c.b16 %v3826, %v3818
    %v4171 = vpack.c.b16 %v3827, %v3819
    %v4172 = vpack.c.b16 %v3828, %v3820
    %v4173 = vpack.c.b16 %v3829, %v3821
    %v4174 = vpack.c.b16 %v3830, %v3822
    %v4175 = vpack.c.b16 %v3831, %v3823
    %v4176 = vpack.c.b16 %v3832, %v3824
    %v4177 = vpack.c.b16 %v3833, %v3825
    %v4178 = vpack.c.b16 %v3842, %v3834
    %v4179 = vpack.c.b16 %v3843, %v3835
    %v4180 = vpack.c.b16 %v3844, %v3836
    %v4181 = vpack.c.b16 %v3845, %v3837
    %v4182 = vpack.c.b16 %v3846, %v3838
    %v4183 = vpack.c.b16 %v3847, %v3839
    %v4184 = vpack.c.b16 %v3848, %v3840
    %v4185 = vpack.c.b16 %v3849, %v3841
    %v4186 = vpack.c.b16 %v3858, %v3850
    %v4187 = vpack.c.b16 %v3859, %v3851
    %v4188 = vpack.c.b16 %v3860, %v3852
    %v4189 = vpack.c.b16 %v3861, %v3853
    %v4190 = vpack.c.b16 %v3862, %v3854
    %v4191 = vpack.c.b16 %v3863, %v3855
    %v4192 = vpack.c.b16 %v3864, %v3856
    %v4193 = vpack.c.b16 %v3865, %v3857
    %v4194 = vpack.c.b16 %v3874, %v3866
    %v4195 = vpack.c.b16 %v3875, %v3867
    %v4196 = vpack.c.b16 %v3876, %v3868
    %v4197 = vpack.c.b16 %v3877, %v3869
    %v4198 = vpack.c.b16 %v3878, %v3870
    %v4199 = vpack.c.b16 %v3879, %v3871
    %v4200 = vpack.c.b16 %v3880, %v3872
    %v4201 = vpack.c.b16 %v3881, %v3873
    %v4202 = vpack.c.b16 %v3890, %v3882
    %v4203 = vpack.c.b16 %v3891, %v3883
    %v4204 = vpack.c.b16 %v3892, %v3884
    %v4205 = vpack.c.b16 %v3893, %v3885
    %v4206 = vpack.c.b16 %v3894, %v3886
    %v4207 = vpack.c.b16 %v3895, %v3887
    %v4208 = vpack.c.b16 %v3896, %v3888
    %v4209 = vpack.c.b16 %v3897, %v3889
    %v4210 = vpack.c.b16 %v3906, %v3898
    %v4211 = vpack.c.b16 %v3907, %v3899
    %v4212 = vpack.c.b16 %v3908, %v3900
    %v4213 = vpack.c.b16 %v3909, %v3901
    %v4214 = vpack.c.b16 %v3910, %v3902
    %v4215 = vpack.c.b16 %v3911, %v3903
    %v4216 = vpack.c.b16 %v3912, %v3904
    %v4217 = vpack.c.b16 %v3913, %v3905
    %v4218 = vpack.c.b16 %v3922, %v3914
    %v4219 = vpack.c.b16 %v3923, %v3915
    %v4220 = vpack.c.b16 %v3924, %v3916
    %v4221 = vpack.c.b16 %v3925, %v3917
    %v4222 = vpack.c.b16 %v3926, %v3918
    %v4223 = vpack.c.b16 %v3927, %v3919
    %v4224 = vpack.c.b16 %v3928, %v3920
    %v4225 = vpack.c.b16 %v3929, %v3921
    %v4226 = vpack.c.b16 %v3938, %v3930
    %v4227 = vpack.c.b16 %v3939, %v3931
    %v4228 = vpack.c.b16 %v3940, %v3932
    %v4229 = vpack.c.b16 %v3941, %v3933
    %v4230 = vpack.c.b16 %v3942, %v3934
    %v4231 = vpack.c.b16 %v3943, %v3935
    %v4232 = vpack.c.b16 %v3944, %v3936
    %v4233 = vpack.c.b16 %v3945, %v3937
    %v4234 = vpack.c.b16 %v3954, %v3946
    %v4235 = vpack.c.b16 %v3955, %v3947
    %v4236 = vpack.c.b16 %v3956, %v3948
    %v4237 = vpack.c.b16 %v3957, %v3949
    %v4238 = vpack.c.b16 %v3958, %v3950
    %v4239 = vpack.c.b16 %v3959, %v3951
    %v4240 = vpack.c.b16 %v3960, %v3952
    %v4241 = vpack.c.b16 %v3961, %v3953
    %v4242 = vpack.c.b16 %v3970, %v3962
    %v4243 = vpack.c.b16 %v3971, %v3963
    %v4244 = vpack.c.b16 %v3972, %v3964
    %v4245 = vpack.c.b16 %v3973, %v3965
    %v4246 = vpack.c.b16 %v3974, %v3966
    %v4247 = vpack.c.b16 %v3975, %v3967
    %v4248 = vpack.c.b16 %v3976, %v3968
    %v4249 = vpack.c.b16 %v3977, %v3969
    %v4250 = vpack.c.b16 %v3986, %v3978
    %v4251 = vpack.c.b16 %v3987, %v3979
    %v4252 = vpack.c.b16 %v3988, %v3980
    %v4253 = vpack.c.b16 %v3989, %v3981
    %v4254 = vpack.c.b16 %v3990, %v3982
    %v4255 = vpack.c.b16 %v3991, %v3983
    %v4256 = vpack.c.b16 %v3992, %v3984
    %v4257 = vpack.c.b16 %v3993, %v3985
    %v4258 = vpack.c.b16 %v4002, %v3994
    %v4259 = vpack.c.b16 %v4003, %v3995
    %v4260 = vpack.c.b16 %v4004, %v3996
    %v4261 = vpack.c.b16 %v4005, %v3997
    %v4262 = vpack.c.b16 %v4006, %v3998
    %v4263 = vpack.c.b16 %v4007, %v3999
    %v4264 = vpack.c.b16 %v4008, %v4000
    %v4265 = vpack.c.b16 %v4009, %v4001
    %4522 = vmatprep.subr.bf16.mxu0 %v4067
    %4523 = vmatpush1.bf16.msra.mxu0 %v4066
    %4524 = vmatprep.subr.bf16.mxu0 %v4059
    %4525 = vmatpush1.bf16.msra.mxu0 %v4058
    %4526 = vmatprep.subr.bf16.mxu0 %v4051
    %4527 = vmatpush1.bf16.msra.mxu0 %v4050
    %4528 = vmatprep.subr.bf16.mxu0 %v4043
    %4529 = vmatpush1.bf16.msra.mxu0 %v4042
    %4530 = vmatprep.subr.bf16.mxu0 %v4035
    %4531 = vmatpush1.bf16.msra.mxu0 %v4034
    %4532 = vmatprep.subr.bf16.mxu0 %v4027
    %4533 = vmatpush1.bf16.msra.mxu0 %v4026
    %4534 = vmatprep.subr.bf16.mxu0 %v4019
    %4535 = vmatpush1.bf16.msra.mxu0 %v4018
    %4536 = vmatprep.subr.bf16.mxu0 %v4011
    %4537 = vmatpush1.bf16.msra.mxu0 %v4010
    %4538 = vmatprep.subr.bf16.mxu0 %v4131
    %4539 = vmatpush2.bf16.msra.mxu0 %v4130
    %4540 = vmatprep.subr.bf16.mxu0 %v4123
    %4541 = vmatpush2.bf16.msra.mxu0 %v4122
    %4542 = vmatprep.subr.bf16.mxu0 %v4115
    %4543 = vmatpush2.bf16.msra.mxu0 %v4114
    %4544 = vmatprep.subr.bf16.mxu0 %v4107
    %4545 = vmatpush2.bf16.msra.mxu0 %v4106
    %4546 = vmatprep.subr.bf16.mxu0 %v4099
    %4547 = vmatpush2.bf16.msra.mxu0 %v4098
    %4548 = vmatprep.subr.bf16.mxu0 %v4091
    %4549 = vmatpush2.bf16.msra.mxu0 %v4090
    %4550 = vmatprep.subr.bf16.mxu0 %v4083
    %4551 = vmatpush2.bf16.msra.mxu0 %v4082
    %4552 = vmatprep.subr.bf16.mxu0 %v4075
    %4553 = vmatpush2.bf16.msra.mxu0 %v4074
    %4554 = vmatprep.mubr.bf16.mxu0 %v2983
    %4555 = vmatmul.mubr.bf16.gmra.mxu0 %v2982
    %v4556 = vpop.f32.mrf.mxu0
    %v4557 = vadd.f32 0.0, %v4556
    %v4558 = vpop.f32.mrf.mxu0
    %v4559 = vadd.f32 0.0, %v4558
    %v4560 = vpop.f32.mrf.mxu0
    %v4561 = vpop.f32.mrf.mxu0
    %4562 = vdwg.mxu0
    %4563 = vmatprep.subr.bf16.mxu0 %v4195
    %4564 = vmatpush1.bf16.msra.mxu0 %v4194
    %4565 = vmatprep.subr.bf16.mxu0 %v4187
    %4566 = vmatpush1.bf16.msra.mxu0 %v4186
    %4567 = vmatprep.subr.bf16.mxu0 %v4179
    %4568 = vmatpush1.bf16.msra.mxu0 %v4178
    %4569 = vmatprep.subr.bf16.mxu0 %v4171
    %4570 = vmatpush1.bf16.msra.mxu0 %v4170
    %4571 = vmatprep.subr.bf16.mxu0 %v4163
    %4572 = vmatpush1.bf16.msra.mxu0 %v4162
    %4573 = vmatprep.subr.bf16.mxu0 %v4155
    %4574 = vmatpush1.bf16.msra.mxu0 %v4154
    %4575 = vmatprep.subr.bf16.mxu0 %v4147
    %4576 = vmatpush1.bf16.msra.mxu0 %v4146
    %4577 = vmatprep.subr.bf16.mxu0 %v4139
    %4578 = vmatpush1.bf16.msra.mxu0 %v4138
    %4579 = vmatprep.subr.bf16.mxu0 %v4259
    %4580 = vmatpush2.bf16.msra.mxu0 %v4258
    %4581 = vmatprep.subr.bf16.mxu0 %v4251
    %4582 = vmatpush2.bf16.msra.mxu0 %v4250
    %4583 = vmatprep.subr.bf16.mxu0 %v4243
    %4584 = vmatpush2.bf16.msra.mxu0 %v4242
    %4585 = vmatprep.subr.bf16.mxu0 %v4235
    %4586 = vmatpush2.bf16.msra.mxu0 %v4234
    %4587 = vmatprep.subr.bf16.mxu0 %v4227
    %4588 = vmatpush2.bf16.msra.mxu0 %v4226
    %4589 = vmatprep.subr.bf16.mxu0 %v4219
    %4590 = vmatpush2.bf16.msra.mxu0 %v4218
    %4591 = vmatprep.subr.bf16.mxu0 %v4211
    %4592 = vmatpush2.bf16.msra.mxu0 %v4210
    %4593 = vmatprep.subr.bf16.mxu0 %v4203
    %4594 = vmatpush2.bf16.msra.mxu0 %v4202
    %4595 = vmatprep.mubr.bf16.mxu0 %v2985
    %4596 = vmatmul.mubr.bf16.gmra.mxu0 %v2984
    %v4597 = vpop.f32.mrf.mxu0
    %v4598 = vadd.f32 %v4557, %v4597
    %v4599 = vpop.f32.mrf.mxu0
    %v4600 = vadd.f32 %v4559, %v4599
    %v4601 = vpop.f32.mrf.mxu0
    %v4602 = vpop.f32.mrf.mxu0
    %4603 = vdwg.mxu0
    %4604 = vmatprep.subr.bf16.mxu0 %v4069
    %4605 = vmatpush1.bf16.msra.mxu0 %v4068
    %4606 = vmatprep.subr.bf16.mxu0 %v4061
    %4607 = vmatpush1.bf16.msra.mxu0 %v4060
    %4608 = vmatprep.subr.bf16.mxu0 %v4053
    %4609 = vmatpush1.bf16.msra.mxu0 %v4052
    %4610 = vmatprep.subr.bf16.mxu0 %v4045
    %4611 = vmatpush1.bf16.msra.mxu0 %v4044
    %4612 = vmatprep.subr.bf16.mxu0 %v4037
    %4613 = vmatpush1.bf16.msra.mxu0 %v4036
    %4614 = vmatprep.subr.bf16.mxu0 %v4029
    %4615 = vmatpush1.bf16.msra.mxu0 %v4028
    %4616 = vmatprep.subr.bf16.mxu0 %v4021
    %4617 = vmatpush1.bf16.msra.mxu0 %v4020
    %4618 = vmatprep.subr.bf16.mxu0 %v4013
    %4619 = vmatpush1.bf16.msra.mxu0 %v4012
    %4620 = vmatprep.subr.bf16.mxu0 %v4133
    %4621 = vmatpush2.bf16.msra.mxu0 %v4132
    %4622 = vmatprep.subr.bf16.mxu0 %v4125
    %4623 = vmatpush2.bf16.msra.mxu0 %v4124
    %4624 = vmatprep.subr.bf16.mxu0 %v4117
    %4625 = vmatpush2.bf16.msra.mxu0 %v4116
    %4626 = vmatprep.subr.bf16.mxu0 %v4109
    %4627 = vmatpush2.bf16.msra.mxu0 %v4108
    %4628 = vmatprep.subr.bf16.mxu0 %v4101
    %4629 = vmatpush2.bf16.msra.mxu0 %v4100
    %4630 = vmatprep.subr.bf16.mxu0 %v4093
    %4631 = vmatpush2.bf16.msra.mxu0 %v4092
    %4632 = vmatprep.subr.bf16.mxu0 %v4085
    %4633 = vmatpush2.bf16.msra.mxu0 %v4084
    %4634 = vmatprep.subr.bf16.mxu0 %v4077
    %4635 = vmatpush2.bf16.msra.mxu0 %v4076
    %4636 = vmatprep.mubr.bf16.mxu0 %v2983
    %4637 = vmatmul.mubr.bf16.gmra.mxu0 %v2982
    %v4638 = vpop.f32.mrf.mxu0
    %v4639 = vadd.f32 0.0, %v4638
    %v4640 = vpop.f32.mrf.mxu0
    %v4641 = vadd.f32 0.0, %v4640
    %v4642 = vpop.f32.mrf.mxu0
    %v4643 = vpop.f32.mrf.mxu0
    %4644 = vdwg.mxu0
    %4645 = vmatprep.subr.bf16.mxu0 %v4197
    %4646 = vmatpush1.bf16.msra.mxu0 %v4196
    %4647 = vmatprep.subr.bf16.mxu0 %v4189
    %4648 = vmatpush1.bf16.msra.mxu0 %v4188
    %4649 = vmatprep.subr.bf16.mxu0 %v4181
    %4650 = vmatpush1.bf16.msra.mxu0 %v4180
    %4651 = vmatprep.subr.bf16.mxu0 %v4173
    %4652 = vmatpush1.bf16.msra.mxu0 %v4172
    %4653 = vmatprep.subr.bf16.mxu0 %v4165
    %4654 = vmatpush1.bf16.msra.mxu0 %v4164
    %4655 = vmatprep.subr.bf16.mxu0 %v4157
    %4656 = vmatpush1.bf16.msra.mxu0 %v4156
    %4657 = vmatprep.subr.bf16.mxu0 %v4149
    %4658 = vmatpush1.bf16.msra.mxu0 %v4148
    %4659 = vmatprep.subr.bf16.mxu0 %v4141
    %4660 = vmatpush1.bf16.msra.mxu0 %v4140
    %4661 = vmatprep.subr.bf16.mxu0 %v4261
    %4662 = vmatpush2.bf16.msra.mxu0 %v4260
    %4663 = vmatprep.subr.bf16.mxu0 %v4253
    %4664 = vmatpush2.bf16.msra.mxu0 %v4252
    %4665 = vmatprep.subr.bf16.mxu0 %v4245
    %4666 = vmatpush2.bf16.msra.mxu0 %v4244
    %4667 = vmatprep.subr.bf16.mxu0 %v4237
    %4668 = vmatpush2.bf16.msra.mxu0 %v4236
    %4669 = vmatprep.subr.bf16.mxu0 %v4229
    %4670 = vmatpush2.bf16.msra.mxu0 %v4228
    %4671 = vmatprep.subr.bf16.mxu0 %v4221
    %4672 = vmatpush2.bf16.msra.mxu0 %v4220
    %4673 = vmatprep.subr.bf16.mxu0 %v4213
    %4674 = vmatpush2.bf16.msra.mxu0 %v4212
    %4675 = vmatprep.subr.bf16.mxu0 %v4205
    %4676 = vmatpush2.bf16.msra.mxu0 %v4204
    %4677 = vmatprep.mubr.bf16.mxu0 %v2985
    %4678 = vmatmul.mubr.bf16.gmra.mxu0 %v2984
    %v4679 = vpop.f32.mrf.mxu0
    %v4680 = vadd.f32 %v4639, %v4679
    %v4681 = vpop.f32.mrf.mxu0
    %v4682 = vadd.f32 %v4641, %v4681
    %v4683 = vpop.f32.mrf.mxu0
    %v4684 = vpop.f32.mrf.mxu0
    %4685 = vdwg.mxu0
    %4686 = vmatprep.subr.bf16.mxu0 %v4071
    %4687 = vmatpush1.bf16.msra.mxu0 %v4070
    %4688 = vmatprep.subr.bf16.mxu0 %v4063
    %4689 = vmatpush1.bf16.msra.mxu0 %v4062
    %4690 = vmatprep.subr.bf16.mxu0 %v4055
    %4691 = vmatpush1.bf16.msra.mxu0 %v4054
    %4692 = vmatprep.subr.bf16.mxu0 %v4047
    %4693 = vmatpush1.bf16.msra.mxu0 %v4046
    %4694 = vmatprep.subr.bf16.mxu0 %v4039
    %4695 = vmatpush1.bf16.msra.mxu0 %v4038
    %4696 = vmatprep.subr.bf16.mxu0 %v4031
    %4697 = vmatpush1.bf16.msra.mxu0 %v4030
    %4698 = vmatprep.subr.bf16.mxu0 %v4023
    %4699 = vmatpush1.bf16.msra.mxu0 %v4022
    %4700 = vmatprep.subr.bf16.mxu0 %v4015
    %4701 = vmatpush1.bf16.msra.mxu0 %v4014
    %4702 = vmatprep.subr.bf16.mxu0 %v4135
    %4703 = vmatpush2.bf16.msra.mxu0 %v4134
    %4704 = vmatprep.subr.bf16.mxu0 %v4127
    %4705 = vmatpush2.bf16.msra.mxu0 %v4126
    %4706 = vmatprep.subr.bf16.mxu0 %v4119
    %4707 = vmatpush2.bf16.msra.mxu0 %v4118
    %4708 = vmatprep.subr.bf16.mxu0 %v4111
    %4709 = vmatpush2.bf16.msra.mxu0 %v4110
    %4710 = vmatprep.subr.bf16.mxu0 %v4103
    %4711 = vmatpush2.bf16.msra.mxu0 %v4102
    %4712 = vmatprep.subr.bf16.mxu0 %v4095
    %4713 = vmatpush2.bf16.msra.mxu0 %v4094
    %4714 = vmatprep.subr.bf16.mxu0 %v4087
    %4715 = vmatpush2.bf16.msra.mxu0 %v4086
    %4716 = vmatprep.subr.bf16.mxu0 %v4079
    %4717 = vmatpush2.bf16.msra.mxu0 %v4078
    %4718 = vmatprep.mubr.bf16.mxu0 %v2983
    %4719 = vmatmul.mubr.bf16.gmra.mxu0 %v2982
    %v4720 = vpop.f32.mrf.mxu0
    %v4721 = vadd.f32 0.0, %v4720
    %v4722 = vpop.f32.mrf.mxu0
    %v4723 = vadd.f32 0.0, %v4722
    %v4724 = vpop.f32.mrf.mxu0
    %v4725 = vpop.f32.mrf.mxu0
    %4726 = vdwg.mxu0
    %4727 = vmatprep.subr.bf16.mxu0 %v4199
    %4728 = vmatpush1.bf16.msra.mxu0 %v4198
    %4729 = vmatprep.subr.bf16.mxu0 %v4191
    %4730 = vmatpush1.bf16.msra.mxu0 %v4190
    %4731 = vmatprep.subr.bf16.mxu0 %v4183
    %4732 = vmatpush1.bf16.msra.mxu0 %v4182
    %4733 = vmatprep.subr.bf16.mxu0 %v4175
    %4734 = vmatpush1.bf16.msra.mxu0 %v4174
    %4735 = vmatprep.subr.bf16.mxu0 %v4167
    %4736 = vmatpush1.bf16.msra.mxu0 %v4166
    %4737 = vmatprep.subr.bf16.mxu0 %v4159
    %4738 = vmatpush1.bf16.msra.mxu0 %v4158
    %4739 = vmatprep.subr.bf16.mxu0 %v4151
    %4740 = vmatpush1.bf16.msra.mxu0 %v4150
    %4741 = vmatprep.subr.bf16.mxu0 %v4143
    %4742 = vmatpush1.bf16.msra.mxu0 %v4142
    %4743 = vmatprep.subr.bf16.mxu0 %v4263
    %4744 = vmatpush2.bf16.msra.mxu0 %v4262
    %4745 = vmatprep.subr.bf16.mxu0 %v4255
    %4746 = vmatpush2.bf16.msra.mxu0 %v4254
    %4747 = vmatprep.subr.bf16.mxu0 %v4247
    %4748 = vmatpush2.bf16.msra.mxu0 %v4246
    %4749 = vmatprep.subr.bf16.mxu0 %v4239
    %4750 = vmatpush2.bf16.msra.mxu0 %v4238
    %4751 = vmatprep.subr.bf16.mxu0 %v4231
    %4752 = vmatpush2.bf16.msra.mxu0 %v4230
    %4753 = vmatprep.subr.bf16.mxu0 %v4223
    %4754 = vmatpush2.bf16.msra.mxu0 %v4222
    %4755 = vmatprep.subr.bf16.mxu0 %v4215
    %4756 = vmatpush2.bf16.msra.mxu0 %v4214
    %4757 = vmatprep.subr.bf16.mxu0 %v4207
    %4758 = vmatpush2.bf16.msra.mxu0 %v4206
    %4759 = vmatprep.mubr.bf16.mxu0 %v2985
    %4760 = vmatmul.mubr.bf16.gmra.mxu0 %v2984
    %v4761 = vpop.f32.mrf.mxu0
    %v4762 = vadd.f32 %v4721, %v4761
    %v4763 = vpop.f32.mrf.mxu0
    %v4764 = vadd.f32 %v4723, %v4763
    %v4765 = vpop.f32.mrf.mxu0
    %v4766 = vpop.f32.mrf.mxu0
    %4767 = vdwg.mxu0
    %4768 = vmatprep.subr.bf16.mxu0 %v4073
    %4769 = vmatpush1.bf16.msra.mxu0 %v4072
    %4770 = vmatprep.subr.bf16.mxu0 %v4065
    %4771 = vmatpush1.bf16.msra.mxu0 %v4064
    %4772 = vmatprep.subr.bf16.mxu0 %v4057
    %4773 = vmatpush1.bf16.msra.mxu0 %v4056
    %4774 = vmatprep.subr.bf16.mxu0 %v4049
    %4775 = vmatpush1.bf16.msra.mxu0 %v4048
    %4776 = vmatprep.subr.bf16.mxu0 %v4041
    %4777 = vmatpush1.bf16.msra.mxu0 %v4040
    %4778 = vmatprep.subr.bf16.mxu0 %v4033
    %4779 = vmatpush1.bf16.msra.mxu0 %v4032
    %4780 = vmatprep.subr.bf16.mxu0 %v4025
    %4781 = vmatpush1.bf16.msra.mxu0 %v4024
    %4782 = vmatprep.subr.bf16.mxu0 %v4017
    %4783 = vmatpush1.bf16.msra.mxu0 %v4016
    %4784 = vmatprep.subr.bf16.mxu0 %v4137
    %4785 = vmatpush2.bf16.msra.mxu0 %v4136
    %4786 = vmatprep.subr.bf16.mxu0 %v4129
    %4787 = vmatpush2.bf16.msra.mxu0 %v4128
    %4788 = vmatprep.subr.bf16.mxu0 %v4121
    %4789 = vmatpush2.bf16.msra.mxu0 %v4120
    %4790 = vmatprep.subr.bf16.mxu0 %v4113
    %4791 = vmatpush2.bf16.msra.mxu0 %v4112
    %4792 = vmatprep.subr.bf16.mxu0 %v4105
    %4793 = vmatpush2.bf16.msra.mxu0 %v4104
    %4794 = vmatprep.subr.bf16.mxu0 %v4097
    %4795 = vmatpush2.bf16.msra.mxu0 %v4096
    %4796 = vmatprep.subr.bf16.mxu0 %v4089
    %4797 = vmatpush2.bf16.msra.mxu0 %v4088
    %4798 = vmatprep.subr.bf16.mxu0 %v4081
    %4799 = vmatpush2.bf16.msra.mxu0 %v4080
    %4800 = vmatprep.mubr.bf16.mxu0 %v2983
    %4801 = vmatmul.mubr.bf16.gmra.mxu0 %v2982
    %v4802 = vpop.f32.mrf.mxu0
    %v4803 = vadd.f32 0.0, %v4802
    %v4804 = vpop.f32.mrf.mxu0
    %v4805 = vadd.f32 0.0, %v4804
    %v4806 = vpop.f32.mrf.mxu0
    %v4807 = vpop.f32.mrf.mxu0
    %4808 = vdwg.mxu0
    %4809 = vmatprep.subr.bf16.mxu0 %v4201
    %4810 = vmatpush1.bf16.msra.mxu0 %v4200
    %4811 = vmatprep.subr.bf16.mxu0 %v4193
    %4812 = vmatpush1.bf16.msra.mxu0 %v4192
    %4813 = vmatprep.subr.bf16.mxu0 %v4185
    %4814 = vmatpush1.bf16.msra.mxu0 %v4184
    %4815 = vmatprep.subr.bf16.mxu0 %v4177
    %4816 = vmatpush1.bf16.msra.mxu0 %v4176
    %4817 = vmatprep.subr.bf16.mxu0 %v4169
    %4818 = vmatpush1.bf16.msra.mxu0 %v4168
    %4819 = vmatprep.subr.bf16.mxu0 %v4161
    %4820 = vmatpush1.bf16.msra.mxu0 %v4160
    %4821 = vmatprep.subr.bf16.mxu0 %v4153
    %4822 = vmatpush1.bf16.msra.mxu0 %v4152
    %4823 = vmatprep.subr.bf16.mxu0 %v4145
    %4824 = vmatpush1.bf16.msra.mxu0 %v4144
    %4825 = vmatprep.subr.bf16.mxu0 %v4265
    %4826 = vmatpush2.bf16.msra.mxu0 %v4264
    %4827 = vmatprep.subr.bf16.mxu0 %v4257
    %4828 = vmatpush2.bf16.msra.mxu0 %v4256
    %4829 = vmatprep.subr.bf16.mxu0 %v4249
    %4830 = vmatpush2.bf16.msra.mxu0 %v4248
    %4831 = vmatprep.subr.bf16.mxu0 %v4241
    %4832 = vmatpush2.bf16.msra.mxu0 %v4240
    %4833 = vmatprep.subr.bf16.mxu0 %v4233
    %4834 = vmatpush2.bf16.msra.mxu0 %v4232
    %4835 = vmatprep.subr.bf16.mxu0 %v4225
    %4836 = vmatpush2.bf16.msra.mxu0 %v4224
    %4837 = vmatprep.subr.bf16.mxu0 %v4217
    %4838 = vmatpush2.bf16.msra.mxu0 %v4216
    %4839 = vmatprep.subr.bf16.mxu0 %v4209
    %4840 = vmatpush2.bf16.msra.mxu0 %v4208
    %4841 = vmatprep.mubr.bf16.mxu0 %v2985
    %4842 = vmatmul.mubr.bf16.gmra.mxu0 %v2984
    %v4843 = vpop.f32.mrf.mxu0
    %v4844 = vadd.f32 %v4803, %v4843
    %v4845 = vpop.f32.mrf.mxu0
    %v4846 = vadd.f32 %v4805, %v4845
    %v4847 = vpop.f32.mrf.mxu0
    %v4848 = vpop.f32.mrf.mxu0
    %4849 = vdwg.mxu0
    %v4850 = vld [vmem:[#allocation6] sm:$0xff]
    %v4851 = vld [vmem:[#allocation6 + $0x8] sm:$0xff]
    %v4852 = vld [vmem:[#allocation6 + $0x10] sm:$0xff]
    %v4853 = vld [vmem:[#allocation6 + $0x18] sm:$0xff]
    %v4854 = vld [vmem:[#allocation6 + $0x20] sm:$0xff]
    %v4855 = vld [vmem:[#allocation6 + $0x28] sm:$0xff]
    %v4856 = vld [vmem:[#allocation6 + $0x30] sm:$0xff]
    %v4857 = vld [vmem:[#allocation6 + $0x38] sm:$0xff]
    %v4858 = vld [vmem:[#allocation6 + $0x40] sm:$0xff]
    %v4859 = vld [vmem:[#allocation6 + $0x48] sm:$0xff]
    %v4860 = vld [vmem:[#allocation6 + $0x50] sm:$0xff]
    %v4861 = vld [vmem:[#allocation6 + $0x58] sm:$0xff]
    %v4862 = vld [vmem:[#allocation6 + $0x60] sm:$0xff]
    %v4863 = vld [vmem:[#allocation6 + $0x68] sm:$0xff]
    %v4864 = vld [vmem:[#allocation6 + $0x70] sm:$0xff]
    %v4865 = vld [vmem:[#allocation6 + $0x78] sm:$0xff]
    %v4866 = vld [vmem:[#allocation6 + $0x80] sm:$0xff]
    %v4867 = vld [vmem:[#allocation6 + $0x88] sm:$0xff]
    %v4868 = vld [vmem:[#allocation6 + $0x90] sm:$0xff]
    %v4869 = vld [vmem:[#allocation6 + $0x98] sm:$0xff]
    %v4870 = vld [vmem:[#allocation6 + $0xa0] sm:$0xff]
    %v4871 = vld [vmem:[#allocation6 + $0xa8] sm:$0xff]
    %v4872 = vld [vmem:[#allocation6 + $0xb0] sm:$0xff]
    %v4873 = vld [vmem:[#allocation6 + $0xb8] sm:$0xff]
    %v4874 = vld [vmem:[#allocation6 + $0xc0] sm:$0xff]
    %v4875 = vld [vmem:[#allocation6 + $0xc8] sm:$0xff]
    %v4876 = vld [vmem:[#allocation6 + $0xd0] sm:$0xff]
    %v4877 = vld [vmem:[#allocation6 + $0xd8] sm:$0xff]
    %v4878 = vld [vmem:[#allocation6 + $0xe0] sm:$0xff]
    %v4879 = vld [vmem:[#allocation6 + $0xe8] sm:$0xff]
    %v4880 = vld [vmem:[#allocation6 + $0xf0] sm:$0xff]
    %v4881 = vld [vmem:[#allocation6 + $0xf8] sm:$0xff]
    %v4882 = vld [vmem:[#allocation6 + $0x100] sm:$0xff]
    %v4883 = vld [vmem:[#allocation6 + $0x108] sm:$0xff]
    %v4884 = vld [vmem:[#allocation6 + $0x110] sm:$0xff]
    %v4885 = vld [vmem:[#allocation6 + $0x118] sm:$0xff]
    %v4886 = vld [vmem:[#allocation6 + $0x120] sm:$0xff]
    %v4887 = vld [vmem:[#allocation6 + $0x128] sm:$0xff]
    %v4888 = vld [vmem:[#allocation6 + $0x130] sm:$0xff]
    %v4889 = vld [vmem:[#allocation6 + $0x138] sm:$0xff]
    %v4890 = vld [vmem:[#allocation6 + $0x140] sm:$0xff]
    %v4891 = vld [vmem:[#allocation6 + $0x148] sm:$0xff]
    %v4892 = vld [vmem:[#allocation6 + $0x150] sm:$0xff]
    %v4893 = vld [vmem:[#allocation6 + $0x158] sm:$0xff]
    %v4894 = vld [vmem:[#allocation6 + $0x160] sm:$0xff]
    %v4895 = vld [vmem:[#allocation6 + $0x168] sm:$0xff]
    %v4896 = vld [vmem:[#allocation6 + $0x170] sm:$0xff]
    %v4897 = vld [vmem:[#allocation6 + $0x178] sm:$0xff]
    %v4898 = vld [vmem:[#allocation6 + $0x180] sm:$0xff]
    %v4899 = vld [vmem:[#allocation6 + $0x188] sm:$0xff]
    %v4900 = vld [vmem:[#allocation6 + $0x190] sm:$0xff]
    %v4901 = vld [vmem:[#allocation6 + $0x198] sm:$0xff]
    %v4902 = vld [vmem:[#allocation6 + $0x1a0] sm:$0xff]
    %v4903 = vld [vmem:[#allocation6 + $0x1a8] sm:$0xff]
    %v4904 = vld [vmem:[#allocation6 + $0x1b0] sm:$0xff]
    %v4905 = vld [vmem:[#allocation6 + $0x1b8] sm:$0xff]
    %v4906 = vld [vmem:[#allocation6 + $0x1c0] sm:$0xff]
    %v4907 = vld [vmem:[#allocation6 + $0x1c8] sm:$0xff]
    %v4908 = vld [vmem:[#allocation6 + $0x1d0] sm:$0xff]
    %v4909 = vld [vmem:[#allocation6 + $0x1d8] sm:$0xff]
    %v4910 = vld [vmem:[#allocation6 + $0x1e0] sm:$0xff]
    %v4911 = vld [vmem:[#allocation6 + $0x1e8] sm:$0xff]
    %v4912 = vld [vmem:[#allocation6 + $0x1f0] sm:$0xff]
    %v4913 = vld [vmem:[#allocation6 + $0x1f8] sm:$0xff]
    %v4914 = vld [vmem:[#allocation12] sm:$0xff]
    %v4915 = vld [vmem:[#allocation12 + $0x8] sm:$0xff]
    %v4916 = vld [vmem:[#allocation12 + $0x10] sm:$0xff]
    %v4917 = vld [vmem:[#allocation12 + $0x18] sm:$0xff]
    %v4918 = vld [vmem:[#allocation12 + $0x20] sm:$0xff]
    %v4919 = vld [vmem:[#allocation12 + $0x28] sm:$0xff]
    %v4920 = vld [vmem:[#allocation12 + $0x30] sm:$0xff]
    %v4921 = vld [vmem:[#allocation12 + $0x38] sm:$0xff]
    %v4922 = vld [vmem:[#allocation12 + $0x40] sm:$0xff]
    %v4923 = vld [vmem:[#allocation12 + $0x48] sm:$0xff]
    %v4924 = vld [vmem:[#allocation12 + $0x50] sm:$0xff]
    %v4925 = vld [vmem:[#allocation12 + $0x58] sm:$0xff]
    %v4926 = vld [vmem:[#allocation12 + $0x60] sm:$0xff]
    %v4927 = vld [vmem:[#allocation12 + $0x68] sm:$0xff]
    %v4928 = vld [vmem:[#allocation12 + $0x70] sm:$0xff]
    %v4929 = vld [vmem:[#allocation12 + $0x78] sm:$0xff]
    %v4930 = vld [vmem:[#allocation12 + $0x80] sm:$0xff]
    %v4931 = vld [vmem:[#allocation12 + $0x88] sm:$0xff]
    %v4932 = vld [vmem:[#allocation12 + $0x90] sm:$0xff]
    %v4933 = vld [vmem:[#allocation12 + $0x98] sm:$0xff]
    %v4934 = vld [vmem:[#allocation12 + $0xa0] sm:$0xff]
    %v4935 = vld [vmem:[#allocation12 + $0xa8] sm:$0xff]
    %v4936 = vld [vmem:[#allocation12 + $0xb0] sm:$0xff]
    %v4937 = vld [vmem:[#allocation12 + $0xb8] sm:$0xff]
    %v4938 = vld [vmem:[#allocation12 + $0xc0] sm:$0xff]
    %v4939 = vld [vmem:[#allocation12 + $0xc8] sm:$0xff]
    %v4940 = vld [vmem:[#allocation12 + $0xd0] sm:$0xff]
    %v4941 = vld [vmem:[#allocation12 + $0xd8] sm:$0xff]
    %v4942 = vld [vmem:[#allocation12 + $0xe0] sm:$0xff]
    %v4943 = vld [vmem:[#allocation12 + $0xe8] sm:$0xff]
    %v4944 = vld [vmem:[#allocation12 + $0xf0] sm:$0xff]
    %v4945 = vld [vmem:[#allocation12 + $0xf8] sm:$0xff]
    %v4946 = vld [vmem:[#allocation12 + $0x100] sm:$0xff]
    %v4947 = vld [vmem:[#allocation12 + $0x108] sm:$0xff]
    %v4948 = vld [vmem:[#allocation12 + $0x110] sm:$0xff]
    %v4949 = vld [vmem:[#allocation12 + $0x118] sm:$0xff]
    %v4950 = vld [vmem:[#allocation12 + $0x120] sm:$0xff]
    %v4951 = vld [vmem:[#allocation12 + $0x128] sm:$0xff]
    %v4952 = vld [vmem:[#allocation12 + $0x130] sm:$0xff]
    %v4953 = vld [vmem:[#allocation12 + $0x138] sm:$0xff]
    %v4954 = vld [vmem:[#allocation12 + $0x140] sm:$0xff]
    %v4955 = vld [vmem:[#allocation12 + $0x148] sm:$0xff]
    %v4956 = vld [vmem:[#allocation12 + $0x150] sm:$0xff]
    %v4957 = vld [vmem:[#allocation12 + $0x158] sm:$0xff]
    %v4958 = vld [vmem:[#allocation12 + $0x160] sm:$0xff]
    %v4959 = vld [vmem:[#allocation12 + $0x168] sm:$0xff]
    %v4960 = vld [vmem:[#allocation12 + $0x170] sm:$0xff]
    %v4961 = vld [vmem:[#allocation12 + $0x178] sm:$0xff]
    %v4962 = vld [vmem:[#allocation12 + $0x180] sm:$0xff]
    %v4963 = vld [vmem:[#allocation12 + $0x188] sm:$0xff]
    %v4964 = vld [vmem:[#allocation12 + $0x190] sm:$0xff]
    %v4965 = vld [vmem:[#allocation12 + $0x198] sm:$0xff]
    %v4966 = vld [vmem:[#allocation12 + $0x1a0] sm:$0xff]
    %v4967 = vld [vmem:[#allocation12 + $0x1a8] sm:$0xff]
    %v4968 = vld [vmem:[#allocation12 + $0x1b0] sm:$0xff]
    %v4969 = vld [vmem:[#allocation12 + $0x1b8] sm:$0xff]
    %v4970 = vld [vmem:[#allocation12 + $0x1c0] sm:$0xff]
    %v4971 = vld [vmem:[#allocation12 + $0x1c8] sm:$0xff]
    %v4972 = vld [vmem:[#allocation12 + $0x1d0] sm:$0xff]
    %v4973 = vld [vmem:[#allocation12 + $0x1d8] sm:$0xff]
    %v4974 = vld [vmem:[#allocation12 + $0x1e0] sm:$0xff]
    %v4975 = vld [vmem:[#allocation12 + $0x1e8] sm:$0xff]
    %v4976 = vld [vmem:[#allocation12 + $0x1f0] sm:$0xff]
    %v4977 = vld [vmem:[#allocation12 + $0x1f8] sm:$0xff]
    %v4978 = vld [vmem:[#allocation12 + $0x200] sm:$0xff]
    %v4979 = vld [vmem:[#allocation12 + $0x208] sm:$0xff]
    %v4980 = vld [vmem:[#allocation12 + $0x210] sm:$0xff]
    %v4981 = vld [vmem:[#allocation12 + $0x218] sm:$0xff]
    %v4982 = vld [vmem:[#allocation12 + $0x220] sm:$0xff]
    %v4983 = vld [vmem:[#allocation12 + $0x228] sm:$0xff]
    %v4984 = vld [vmem:[#allocation12 + $0x230] sm:$0xff]
    %v4985 = vld [vmem:[#allocation12 + $0x238] sm:$0xff]
    %v4986 = vld [vmem:[#allocation12 + $0x240] sm:$0xff]
    %v4987 = vld [vmem:[#allocation12 + $0x248] sm:$0xff]
    %v4988 = vld [vmem:[#allocation12 + $0x250] sm:$0xff]
    %v4989 = vld [vmem:[#allocation12 + $0x258] sm:$0xff]
    %v4990 = vld [vmem:[#allocation12 + $0x260] sm:$0xff]
    %v4991 = vld [vmem:[#allocation12 + $0x268] sm:$0xff]
    %v4992 = vld [vmem:[#allocation12 + $0x270] sm:$0xff]
    %v4993 = vld [vmem:[#allocation12 + $0x278] sm:$0xff]
    %v4994 = vld [vmem:[#allocation12 + $0x280] sm:$0xff]
    %v4995 = vld [vmem:[#allocation12 + $0x288] sm:$0xff]
    %v4996 = vld [vmem:[#allocation12 + $0x290] sm:$0xff]
    %v4997 = vld [vmem:[#allocation12 + $0x298] sm:$0xff]
    %v4998 = vld [vmem:[#allocation12 + $0x2a0] sm:$0xff]
    %v4999 = vld [vmem:[#allocation12 + $0x2a8] sm:$0xff]
    %v5000 = vld [vmem:[#allocation12 + $0x2b0] sm:$0xff]
    %v5001 = vld [vmem:[#allocation12 + $0x2b8] sm:$0xff]
    %v5002 = vld [vmem:[#allocation12 + $0x2c0] sm:$0xff]
    %v5003 = vld [vmem:[#allocation12 + $0x2c8] sm:$0xff]
    %v5004 = vld [vmem:[#allocation12 + $0x2d0] sm:$0xff]
    %v5005 = vld [vmem:[#allocation12 + $0x2d8] sm:$0xff]
    %v5006 = vld [vmem:[#allocation12 + $0x2e0] sm:$0xff]
    %v5007 = vld [vmem:[#allocation12 + $0x2e8] sm:$0xff]
    %v5008 = vld [vmem:[#allocation12 + $0x2f0] sm:$0xff]
    %v5009 = vld [vmem:[#allocation12 + $0x2f8] sm:$0xff]
    %v5010 = vld [vmem:[#allocation12 + $0x300] sm:$0xff]
    %v5011 = vld [vmem:[#allocation12 + $0x308] sm:$0xff]
    %v5012 = vld [vmem:[#allocation12 + $0x310] sm:$0xff]
    %v5013 = vld [vmem:[#allocation12 + $0x318] sm:$0xff]
    %v5014 = vld [vmem:[#allocation12 + $0x320] sm:$0xff]
    %v5015 = vld [vmem:[#allocation12 + $0x328] sm:$0xff]
    %v5016 = vld [vmem:[#allocation12 + $0x330] sm:$0xff]
    %v5017 = vld [vmem:[#allocation12 + $0x338] sm:$0xff]
    %v5018 = vld [vmem:[#allocation12 + $0x340] sm:$0xff]
    %v5019 = vld [vmem:[#allocation12 + $0x348] sm:$0xff]
    %v5020 = vld [vmem:[#allocation12 + $0x350] sm:$0xff]
    %v5021 = vld [vmem:[#allocation12 + $0x358] sm:$0xff]
    %v5022 = vld [vmem:[#allocation12 + $0x360] sm:$0xff]
    %v5023 = vld [vmem:[#allocation12 + $0x368] sm:$0xff]
    %v5024 = vld [vmem:[#allocation12 + $0x370] sm:$0xff]
    %v5025 = vld [vmem:[#allocation12 + $0x378] sm:$0xff]
    %v5026 = vld [vmem:[#allocation12 + $0x380] sm:$0xff]
    %v5027 = vld [vmem:[#allocation12 + $0x388] sm:$0xff]
    %v5028 = vld [vmem:[#allocation12 + $0x390] sm:$0xff]
    %v5029 = vld [vmem:[#allocation12 + $0x398] sm:$0xff]
    %v5030 = vld [vmem:[#allocation12 + $0x3a0] sm:$0xff]
    %v5031 = vld [vmem:[#allocation12 + $0x3a8] sm:$0xff]
    %v5032 = vld [vmem:[#allocation12 + $0x3b0] sm:$0xff]
    %v5033 = vld [vmem:[#allocation12 + $0x3b8] sm:$0xff]
    %v5034 = vld [vmem:[#allocation12 + $0x3c0] sm:$0xff]
    %v5035 = vld [vmem:[#allocation12 + $0x3c8] sm:$0xff]
    %v5036 = vld [vmem:[#allocation12 + $0x3d0] sm:$0xff]
    %v5037 = vld [vmem:[#allocation12 + $0x3d8] sm:$0xff]
    %v5038 = vld [vmem:[#allocation12 + $0x3e0] sm:$0xff]
    %v5039 = vld [vmem:[#allocation12 + $0x3e8] sm:$0xff]
    %v5040 = vld [vmem:[#allocation12 + $0x3f0] sm:$0xff]
    %v5041 = vld [vmem:[#allocation12 + $0x3f8] sm:$0xff]
    %v5042 = vld [vmem:[#allocation12 + $0x400] sm:$0xff]
    %v5043 = vld [vmem:[#allocation12 + $0x408] sm:$0xff]
    %v5044 = vld [vmem:[#allocation12 + $0x410] sm:$0xff]
    %v5045 = vld [vmem:[#allocation12 + $0x418] sm:$0xff]
    %v5046 = vld [vmem:[#allocation12 + $0x420] sm:$0xff]
    %v5047 = vld [vmem:[#allocation12 + $0x428] sm:$0xff]
    %v5048 = vld [vmem:[#allocation12 + $0x430] sm:$0xff]
    %v5049 = vld [vmem:[#allocation12 + $0x438] sm:$0xff]
    %v5050 = vld [vmem:[#allocation12 + $0x440] sm:$0xff]
    %v5051 = vld [vmem:[#allocation12 + $0x448] sm:$0xff]
    %v5052 = vld [vmem:[#allocation12 + $0x450] sm:$0xff]
    %v5053 = vld [vmem:[#allocation12 + $0x458] sm:$0xff]
    %v5054 = vld [vmem:[#allocation12 + $0x460] sm:$0xff]
    %v5055 = vld [vmem:[#allocation12 + $0x468] sm:$0xff]
    %v5056 = vld [vmem:[#allocation12 + $0x470] sm:$0xff]
    %v5057 = vld [vmem:[#allocation12 + $0x478] sm:$0xff]
    %v5058 = vld [vmem:[#allocation12 + $0x480] sm:$0xff]
    %v5059 = vld [vmem:[#allocation12 + $0x488] sm:$0xff]
    %v5060 = vld [vmem:[#allocation12 + $0x490] sm:$0xff]
    %v5061 = vld [vmem:[#allocation12 + $0x498] sm:$0xff]
    %v5062 = vld [vmem:[#allocation12 + $0x4a0] sm:$0xff]
    %v5063 = vld [vmem:[#allocation12 + $0x4a8] sm:$0xff]
    %v5064 = vld [vmem:[#allocation12 + $0x4b0] sm:$0xff]
    %v5065 = vld [vmem:[#allocation12 + $0x4b8] sm:$0xff]
    %v5066 = vld [vmem:[#allocation12 + $0x4c0] sm:$0xff]
    %v5067 = vld [vmem:[#allocation12 + $0x4c8] sm:$0xff]
    %v5068 = vld [vmem:[#allocation12 + $0x4d0] sm:$0xff]
    %v5069 = vld [vmem:[#allocation12 + $0x4d8] sm:$0xff]
    %v5070 = vld [vmem:[#allocation12 + $0x4e0] sm:$0xff]
    %v5071 = vld [vmem:[#allocation12 + $0x4e8] sm:$0xff]
    %v5072 = vld [vmem:[#allocation12 + $0x4f0] sm:$0xff]
    %v5073 = vld [vmem:[#allocation12 + $0x4f8] sm:$0xff]
    %v5074 = vld [vmem:[#allocation12 + $0x500] sm:$0xff]
    %v5075 = vld [vmem:[#allocation12 + $0x508] sm:$0xff]
    %v5076 = vld [vmem:[#allocation12 + $0x510] sm:$0xff]
    %v5077 = vld [vmem:[#allocation12 + $0x518] sm:$0xff]
    %v5078 = vld [vmem:[#allocation12 + $0x520] sm:$0xff]
    %v5079 = vld [vmem:[#allocation12 + $0x528] sm:$0xff]
    %v5080 = vld [vmem:[#allocation12 + $0x530] sm:$0xff]
    %v5081 = vld [vmem:[#allocation12 + $0x538] sm:$0xff]
    %v5082 = vld [vmem:[#allocation12 + $0x540] sm:$0xff]
    %v5083 = vld [vmem:[#allocation12 + $0x548] sm:$0xff]
    %v5084 = vld [vmem:[#allocation12 + $0x550] sm:$0xff]
    %v5085 = vld [vmem:[#allocation12 + $0x558] sm:$0xff]
    %v5086 = vld [vmem:[#allocation12 + $0x560] sm:$0xff]
    %v5087 = vld [vmem:[#allocation12 + $0x568] sm:$0xff]
    %v5088 = vld [vmem:[#allocation12 + $0x570] sm:$0xff]
    %v5089 = vld [vmem:[#allocation12 + $0x578] sm:$0xff]
    %v5090 = vld [vmem:[#allocation12 + $0x580] sm:$0xff]
    %v5091 = vld [vmem:[#allocation12 + $0x588] sm:$0xff]
    %v5092 = vld [vmem:[#allocation12 + $0x590] sm:$0xff]
    %v5093 = vld [vmem:[#allocation12 + $0x598] sm:$0xff]
    %v5094 = vld [vmem:[#allocation12 + $0x5a0] sm:$0xff]
    %v5095 = vld [vmem:[#allocation12 + $0x5a8] sm:$0xff]
    %v5096 = vld [vmem:[#allocation12 + $0x5b0] sm:$0xff]
    %v5097 = vld [vmem:[#allocation12 + $0x5b8] sm:$0xff]
    %v5098 = vld [vmem:[#allocation12 + $0x5c0] sm:$0xff]
    %v5099 = vld [vmem:[#allocation12 + $0x5c8] sm:$0xff]
    %v5100 = vld [vmem:[#allocation12 + $0x5d0] sm:$0xff]
    %v5101 = vld [vmem:[#allocation12 + $0x5d8] sm:$0xff]
    %v5102 = vld [vmem:[#allocation12 + $0x5e0] sm:$0xff]
    %v5103 = vld [vmem:[#allocation12 + $0x5e8] sm:$0xff]
    %v5104 = vld [vmem:[#allocation12 + $0x5f0] sm:$0xff]
    %v5105 = vld [vmem:[#allocation12 + $0x5f8] sm:$0xff]
    %v5106 = vld [vmem:[#allocation12 + $0x600] sm:$0xff]
    %v5107 = vld [vmem:[#allocation12 + $0x608] sm:$0xff]
    %v5108 = vld [vmem:[#allocation12 + $0x610] sm:$0xff]
    %v5109 = vld [vmem:[#allocation12 + $0x618] sm:$0xff]
    %v5110 = vld [vmem:[#allocation12 + $0x620] sm:$0xff]
    %v5111 = vld [vmem:[#allocation12 + $0x628] sm:$0xff]
    %v5112 = vld [vmem:[#allocation12 + $0x630] sm:$0xff]
    %v5113 = vld [vmem:[#allocation12 + $0x638] sm:$0xff]
    %v5114 = vld [vmem:[#allocation12 + $0x640] sm:$0xff]
    %v5115 = vld [vmem:[#allocation12 + $0x648] sm:$0xff]
    %v5116 = vld [vmem:[#allocation12 + $0x650] sm:$0xff]
    %v5117 = vld [vmem:[#allocation12 + $0x658] sm:$0xff]
    %v5118 = vld [vmem:[#allocation12 + $0x660] sm:$0xff]
    %v5119 = vld [vmem:[#allocation12 + $0x668] sm:$0xff]
    %v5120 = vld [vmem:[#allocation12 + $0x670] sm:$0xff]
    %v5121 = vld [vmem:[#allocation12 + $0x678] sm:$0xff]
    %v5122 = vld [vmem:[#allocation12 + $0x680] sm:$0xff]
    %v5123 = vld [vmem:[#allocation12 + $0x688] sm:$0xff]
    %v5124 = vld [vmem:[#allocation12 + $0x690] sm:$0xff]
    %v5125 = vld [vmem:[#allocation12 + $0x698] sm:$0xff]
    %v5126 = vld [vmem:[#allocation12 + $0x6a0] sm:$0xff]
    %v5127 = vld [vmem:[#allocation12 + $0x6a8] sm:$0xff]
    %v5128 = vld [vmem:[#allocation12 + $0x6b0] sm:$0xff]
    %v5129 = vld [vmem:[#allocation12 + $0x6b8] sm:$0xff]
    %v5130 = vld [vmem:[#allocation12 + $0x6c0] sm:$0xff]
    %v5131 = vld [vmem:[#allocation12 + $0x6c8] sm:$0xff]
    %v5132 = vld [vmem:[#allocation12 + $0x6d0] sm:$0xff]
    %v5133 = vld [vmem:[#allocation12 + $0x6d8] sm:$0xff]
    %v5134 = vld [vmem:[#allocation12 + $0x6e0] sm:$0xff]
    %v5135 = vld [vmem:[#allocation12 + $0x6e8] sm:$0xff]
    %v5136 = vld [vmem:[#allocation12 + $0x6f0] sm:$0xff]
    %v5137 = vld [vmem:[#allocation12 + $0x6f8] sm:$0xff]
    %v5138 = vld [vmem:[#allocation12 + $0x700] sm:$0xff]
    %v5139 = vld [vmem:[#allocation12 + $0x708] sm:$0xff]
    %v5140 = vld [vmem:[#allocation12 + $0x710] sm:$0xff]
    %v5141 = vld [vmem:[#allocation12 + $0x718] sm:$0xff]
    %v5142 = vld [vmem:[#allocation12 + $0x720] sm:$0xff]
    %v5143 = vld [vmem:[#allocation12 + $0x728] sm:$0xff]
    %v5144 = vld [vmem:[#allocation12 + $0x730] sm:$0xff]
    %v5145 = vld [vmem:[#allocation12 + $0x738] sm:$0xff]
    %v5146 = vld [vmem:[#allocation12 + $0x740] sm:$0xff]
    %v5147 = vld [vmem:[#allocation12 + $0x748] sm:$0xff]
    %v5148 = vld [vmem:[#allocation12 + $0x750] sm:$0xff]
    %v5149 = vld [vmem:[#allocation12 + $0x758] sm:$0xff]
    %v5150 = vld [vmem:[#allocation12 + $0x760] sm:$0xff]
    %v5151 = vld [vmem:[#allocation12 + $0x768] sm:$0xff]
    %v5152 = vld [vmem:[#allocation12 + $0x770] sm:$0xff]
    %v5153 = vld [vmem:[#allocation12 + $0x778] sm:$0xff]
    %v5154 = vld [vmem:[#allocation12 + $0x780] sm:$0xff]
    %v5155 = vld [vmem:[#allocation12 + $0x788] sm:$0xff]
    %v5156 = vld [vmem:[#allocation12 + $0x790] sm:$0xff]
    %v5157 = vld [vmem:[#allocation12 + $0x798] sm:$0xff]
    %v5158 = vld [vmem:[#allocation12 + $0x7a0] sm:$0xff]
    %v5159 = vld [vmem:[#allocation12 + $0x7a8] sm:$0xff]
    %v5160 = vld [vmem:[#allocation12 + $0x7b0] sm:$0xff]
    %v5161 = vld [vmem:[#allocation12 + $0x7b8] sm:$0xff]
    %v5162 = vld [vmem:[#allocation12 + $0x7c0] sm:$0xff]
    %v5163 = vld [vmem:[#allocation12 + $0x7c8] sm:$0xff]
    %v5164 = vld [vmem:[#allocation12 + $0x7d0] sm:$0xff]
    %v5165 = vld [vmem:[#allocation12 + $0x7d8] sm:$0xff]
    %v5166 = vld [vmem:[#allocation12 + $0x7e0] sm:$0xff]
    %v5167 = vld [vmem:[#allocation12 + $0x7e8] sm:$0xff]
    %v5168 = vld [vmem:[#allocation12 + $0x7f0] sm:$0xff]
    %v5169 = vld [vmem:[#allocation12 + $0x7f8] sm:$0xff]
    %v5234 = vunpack.c.l.b16 %v4850
    %v5235 = vunpack.c.h.b16 %v4850
    %v5236 = vunpack.c.l.b16 %v4851
    %v5237 = vunpack.c.h.b16 %v4851
    %v5238 = vunpack.c.l.b16 %v4852
    %v5239 = vunpack.c.h.b16 %v4852
    %v5240 = vunpack.c.l.b16 %v4853
    %v5241 = vunpack.c.h.b16 %v4853
    %v5242 = vunpack.c.l.b16 %v4854
    %v5243 = vunpack.c.h.b16 %v4854
    %v5244 = vunpack.c.l.b16 %v4855
    %v5245 = vunpack.c.h.b16 %v4855
    %v5246 = vunpack.c.l.b16 %v4856
    %v5247 = vunpack.c.h.b16 %v4856
    %v5248 = vunpack.c.l.b16 %v4857
    %v5249 = vunpack.c.h.b16 %v4857
    %v5250 = vunpack.c.l.b16 %v4858
    %v5251 = vunpack.c.h.b16 %v4858
    %v5252 = vunpack.c.l.b16 %v4859
    %v5253 = vunpack.c.h.b16 %v4859
    %v5254 = vunpack.c.l.b16 %v4860
    %v5255 = vunpack.c.h.b16 %v4860
    %v5256 = vunpack.c.l.b16 %v4861
    %v5257 = vunpack.c.h.b16 %v4861
    %v5258 = vunpack.c.l.b16 %v4862
    %v5259 = vunpack.c.h.b16 %v4862
    %v5260 = vunpack.c.l.b16 %v4863
    %v5261 = vunpack.c.h.b16 %v4863
    %v5262 = vunpack.c.l.b16 %v4864
    %v5263 = vunpack.c.h.b16 %v4864
    %v5264 = vunpack.c.l.b16 %v4865
    %v5265 = vunpack.c.h.b16 %v4865
    %v5266 = vunpack.c.l.b16 %v4866
    %v5267 = vunpack.c.h.b16 %v4866
    %v5268 = vunpack.c.l.b16 %v4867
    %v5269 = vunpack.c.h.b16 %v4867
    %v5270 = vunpack.c.l.b16 %v4868
    %v5271 = vunpack.c.h.b16 %v4868
    %v5272 = vunpack.c.l.b16 %v4869
    %v5273 = vunpack.c.h.b16 %v4869
    %v5274 = vunpack.c.l.b16 %v4870
    %v5275 = vunpack.c.h.b16 %v4870
    %v5276 = vunpack.c.l.b16 %v4871
    %v5277 = vunpack.c.h.b16 %v4871
    %v5278 = vunpack.c.l.b16 %v4872
    %v5279 = vunpack.c.h.b16 %v4872
    %v5280 = vunpack.c.l.b16 %v4873
    %v5281 = vunpack.c.h.b16 %v4873
    %v5282 = vunpack.c.l.b16 %v4874
    %v5283 = vunpack.c.h.b16 %v4874
    %v5284 = vunpack.c.l.b16 %v4875
    %v5285 = vunpack.c.h.b16 %v4875
    %v5286 = vunpack.c.l.b16 %v4876
    %v5287 = vunpack.c.h.b16 %v4876
    %v5288 = vunpack.c.l.b16 %v4877
    %v5289 = vunpack.c.h.b16 %v4877
    %v5290 = vunpack.c.l.b16 %v4878
    %v5291 = vunpack.c.h.b16 %v4878
    %v5292 = vunpack.c.l.b16 %v4879
    %v5293 = vunpack.c.h.b16 %v4879
    %v5294 = vunpack.c.l.b16 %v4880
    %v5295 = vunpack.c.h.b16 %v4880
    %v5296 = vunpack.c.l.b16 %v4881
    %v5297 = vunpack.c.h.b16 %v4881
    %v5298 = vunpack.c.l.b16 %v4882
    %v5299 = vunpack.c.h.b16 %v4882
    %v5300 = vunpack.c.l.b16 %v4883
    %v5301 = vunpack.c.h.b16 %v4883
    %v5302 = vunpack.c.l.b16 %v4884
    %v5303 = vunpack.c.h.b16 %v4884
    %v5304 = vunpack.c.l.b16 %v4885
    %v5305 = vunpack.c.h.b16 %v4885
    %v5306 = vunpack.c.l.b16 %v4886
    %v5307 = vunpack.c.h.b16 %v4886
    %v5308 = vunpack.c.l.b16 %v4887
    %v5309 = vunpack.c.h.b16 %v4887
    %v5310 = vunpack.c.l.b16 %v4888
    %v5311 = vunpack.c.h.b16 %v4888
    %v5312 = vunpack.c.l.b16 %v4889
    %v5313 = vunpack.c.h.b16 %v4889
    %v5314 = vunpack.c.l.b16 %v4890
    %v5315 = vunpack.c.h.b16 %v4890
    %v5316 = vunpack.c.l.b16 %v4891
    %v5317 = vunpack.c.h.b16 %v4891
    %v5318 = vunpack.c.l.b16 %v4892
    %v5319 = vunpack.c.h.b16 %v4892
    %v5320 = vunpack.c.l.b16 %v4893
    %v5321 = vunpack.c.h.b16 %v4893
    %v5322 = vunpack.c.l.b16 %v4894
    %v5323 = vunpack.c.h.b16 %v4894
    %v5324 = vunpack.c.l.b16 %v4895
    %v5325 = vunpack.c.h.b16 %v4895
    %v5326 = vunpack.c.l.b16 %v4896
    %v5327 = vunpack.c.h.b16 %v4896
    %v5328 = vunpack.c.l.b16 %v4897
    %v5329 = vunpack.c.h.b16 %v4897
    %v5330 = vunpack.c.l.b16 %v4898
    %v5331 = vunpack.c.h.b16 %v4898
    %v5332 = vunpack.c.l.b16 %v4899
    %v5333 = vunpack.c.h.b16 %v4899
    %v5334 = vunpack.c.l.b16 %v4900
    %v5335 = vunpack.c.h.b16 %v4900
    %v5336 = vunpack.c.l.b16 %v4901
    %v5337 = vunpack.c.h.b16 %v4901
    %v5338 = vunpack.c.l.b16 %v4902
    %v5339 = vunpack.c.h.b16 %v4902
    %v5340 = vunpack.c.l.b16 %v4903
    %v5341 = vunpack.c.h.b16 %v4903
    %v5342 = vunpack.c.l.b16 %v4904
    %v5343 = vunpack.c.h.b16 %v4904
    %v5344 = vunpack.c.l.b16 %v4905
    %v5345 = vunpack.c.h.b16 %v4905
    %v5346 = vunpack.c.l.b16 %v4906
    %v5347 = vunpack.c.h.b16 %v4906
    %v5348 = vunpack.c.l.b16 %v4907
    %v5349 = vunpack.c.h.b16 %v4907
    %v5350 = vunpack.c.l.b16 %v4908
    %v5351 = vunpack.c.h.b16 %v4908
    %v5352 = vunpack.c.l.b16 %v4909
    %v5353 = vunpack.c.h.b16 %v4909
    %v5354 = vunpack.c.l.b16 %v4910
    %v5355 = vunpack.c.h.b16 %v4910
    %v5356 = vunpack.c.l.b16 %v4911
    %v5357 = vunpack.c.h.b16 %v4911
    %v5358 = vunpack.c.l.b16 %v4912
    %v5359 = vunpack.c.h.b16 %v4912
    %v5360 = vunpack.c.l.b16 %v4913
    %v5361 = vunpack.c.h.b16 %v4913
    %v5362 = vpack.c.b16 %v5242, %v5234
    %v5363 = vpack.c.b16 %v5243, %v5235
    %v5364 = vpack.c.b16 %v5244, %v5236
    %v5365 = vpack.c.b16 %v5245, %v5237
    %v5366 = vpack.c.b16 %v5246, %v5238
    %v5367 = vpack.c.b16 %v5247, %v5239
    %v5368 = vpack.c.b16 %v5248, %v5240
    %v5369 = vpack.c.b16 %v5249, %v5241
    %v5370 = vpack.c.b16 %v5258, %v5250
    %v5371 = vpack.c.b16 %v5259, %v5251
    %v5372 = vpack.c.b16 %v5260, %v5252
    %v5373 = vpack.c.b16 %v5261, %v5253
    %v5374 = vpack.c.b16 %v5262, %v5254
    %v5375 = vpack.c.b16 %v5263, %v5255
    %v5376 = vpack.c.b16 %v5264, %v5256
    %v5377 = vpack.c.b16 %v5265, %v5257
    %v5378 = vpack.c.b16 %v5274, %v5266
    %v5379 = vpack.c.b16 %v5275, %v5267
    %v5380 = vpack.c.b16 %v5276, %v5268
    %v5381 = vpack.c.b16 %v5277, %v5269
    %v5382 = vpack.c.b16 %v5278, %v5270
    %v5383 = vpack.c.b16 %v5279, %v5271
    %v5384 = vpack.c.b16 %v5280, %v5272
    %v5385 = vpack.c.b16 %v5281, %v5273
    %v5386 = vpack.c.b16 %v5290, %v5282
    %v5387 = vpack.c.b16 %v5291, %v5283
    %v5388 = vpack.c.b16 %v5292, %v5284
    %v5389 = vpack.c.b16 %v5293, %v5285
    %v5390 = vpack.c.b16 %v5294, %v5286
    %v5391 = vpack.c.b16 %v5295, %v5287
    %v5392 = vpack.c.b16 %v5296, %v5288
    %v5393 = vpack.c.b16 %v5297, %v5289
    %v5394 = vpack.c.b16 %v5306, %v5298
    %v5395 = vpack.c.b16 %v5307, %v5299
    %v5396 = vpack.c.b16 %v5308, %v5300
    %v5397 = vpack.c.b16 %v5309, %v5301
    %v5398 = vpack.c.b16 %v5310, %v5302
    %v5399 = vpack.c.b16 %v5311, %v5303
    %v5400 = vpack.c.b16 %v5312, %v5304
    %v5401 = vpack.c.b16 %v5313, %v5305
    %v5402 = vpack.c.b16 %v5322, %v5314
    %v5403 = vpack.c.b16 %v5323, %v5315
    %v5404 = vpack.c.b16 %v5324, %v5316
    %v5405 = vpack.c.b16 %v5325, %v5317
    %v5406 = vpack.c.b16 %v5326, %v5318
    %v5407 = vpack.c.b16 %v5327, %v5319
    %v5408 = vpack.c.b16 %v5328, %v5320
    %v5409 = vpack.c.b16 %v5329, %v5321
    %v5410 = vpack.c.b16 %v5338, %v5330
    %v5411 = vpack.c.b16 %v5339, %v5331
    %v5412 = vpack.c.b16 %v5340, %v5332
    %v5413 = vpack.c.b16 %v5341, %v5333
    %v5414 = vpack.c.b16 %v5342, %v5334
    %v5415 = vpack.c.b16 %v5343, %v5335
    %v5416 = vpack.c.b16 %v5344, %v5336
    %v5417 = vpack.c.b16 %v5345, %v5337
    %v5418 = vpack.c.b16 %v5354, %v5346
    %v5419 = vpack.c.b16 %v5355, %v5347
    %v5420 = vpack.c.b16 %v5356, %v5348
    %v5421 = vpack.c.b16 %v5357, %v5349
    %v5422 = vpack.c.b16 %v5358, %v5350
    %v5423 = vpack.c.b16 %v5359, %v5351
    %v5424 = vpack.c.b16 %v5360, %v5352
    %v5425 = vpack.c.b16 %v5361, %v5353
    %v5746 = vunpack.c.l.b16 %v4914
    %v5747 = vunpack.c.h.b16 %v4914
    %v5748 = vunpack.c.l.b16 %v4915
    %v5749 = vunpack.c.h.b16 %v4915
    %v5750 = vunpack.c.l.b16 %v4916
    %v5751 = vunpack.c.h.b16 %v4916
    %v5752 = vunpack.c.l.b16 %v4917
    %v5753 = vunpack.c.h.b16 %v4917
    %v5754 = vunpack.c.l.b16 %v4918
    %v5755 = vunpack.c.h.b16 %v4918
    %v5756 = vunpack.c.l.b16 %v4919
    %v5757 = vunpack.c.h.b16 %v4919
    %v5758 = vunpack.c.l.b16 %v4920
    %v5759 = vunpack.c.h.b16 %v4920
    %v5760 = vunpack.c.l.b16 %v4921
    %v5761 = vunpack.c.h.b16 %v4921
    %v5762 = vunpack.c.l.b16 %v4922
    %v5763 = vunpack.c.h.b16 %v4922
    %v5764 = vunpack.c.l.b16 %v4923
    %v5765 = vunpack.c.h.b16 %v4923
    %v5766 = vunpack.c.l.b16 %v4924
    %v5767 = vunpack.c.h.b16 %v4924
    %v5768 = vunpack.c.l.b16 %v4925
    %v5769 = vunpack.c.h.b16 %v4925
    %v5770 = vunpack.c.l.b16 %v4926
    %v5771 = vunpack.c.h.b16 %v4926
    %v5772 = vunpack.c.l.b16 %v4927
    %v5773 = vunpack.c.h.b16 %v4927
    %v5774 = vunpack.c.l.b16 %v4928
    %v5775 = vunpack.c.h.b16 %v4928
    %v5776 = vunpack.c.l.b16 %v4929
    %v5777 = vunpack.c.h.b16 %v4929
    %v5778 = vunpack.c.l.b16 %v4930
    %v5779 = vunpack.c.h.b16 %v4930
    %v5780 = vunpack.c.l.b16 %v4931
    %v5781 = vunpack.c.h.b16 %v4931
    %v5782 = vunpack.c.l.b16 %v4932
    %v5783 = vunpack.c.h.b16 %v4932
    %v5784 = vunpack.c.l.b16 %v4933
    %v5785 = vunpack.c.h.b16 %v4933
    %v5786 = vunpack.c.l.b16 %v4934
    %v5787 = vunpack.c.h.b16 %v4934
    %v5788 = vunpack.c.l.b16 %v4935
    %v5789 = vunpack.c.h.b16 %v4935
    %v5790 = vunpack.c.l.b16 %v4936
    %v5791 = vunpack.c.h.b16 %v4936
    %v5792 = vunpack.c.l.b16 %v4937
    %v5793 = vunpack.c.h.b16 %v4937
    %v5794 = vunpack.c.l.b16 %v4938
    %v5795 = vunpack.c.h.b16 %v4938
    %v5796 = vunpack.c.l.b16 %v4939
    %v5797 = vunpack.c.h.b16 %v4939
    %v5798 = vunpack.c.l.b16 %v4940
    %v5799 = vunpack.c.h.b16 %v4940
    %v5800 = vunpack.c.l.b16 %v4941
    %v5801 = vunpack.c.h.b16 %v4941
    %v5802 = vunpack.c.l.b16 %v4942
    %v5803 = vunpack.c.h.b16 %v4942
    %v5804 = vunpack.c.l.b16 %v4943
    %v5805 = vunpack.c.h.b16 %v4943
    %v5806 = vunpack.c.l.b16 %v4944
    %v5807 = vunpack.c.h.b16 %v4944
    %v5808 = vunpack.c.l.b16 %v4945
    %v5809 = vunpack.c.h.b16 %v4945
    %v5810 = vunpack.c.l.b16 %v4946
    %v5811 = vunpack.c.h.b16 %v4946
    %v5812 = vunpack.c.l.b16 %v4947
    %v5813 = vunpack.c.h.b16 %v4947
    %v5814 = vunpack.c.l.b16 %v4948
    %v5815 = vunpack.c.h.b16 %v4948
    %v5816 = vunpack.c.l.b16 %v4949
    %v5817 = vunpack.c.h.b16 %v4949
    %v5818 = vunpack.c.l.b16 %v4950
    %v5819 = vunpack.c.h.b16 %v4950
    %v5820 = vunpack.c.l.b16 %v4951
    %v5821 = vunpack.c.h.b16 %v4951
    %v5822 = vunpack.c.l.b16 %v4952
    %v5823 = vunpack.c.h.b16 %v4952
    %v5824 = vunpack.c.l.b16 %v4953
    %v5825 = vunpack.c.h.b16 %v4953
    %v5826 = vunpack.c.l.b16 %v4954
    %v5827 = vunpack.c.h.b16 %v4954
    %v5828 = vunpack.c.l.b16 %v4955
    %v5829 = vunpack.c.h.b16 %v4955
    %v5830 = vunpack.c.l.b16 %v4956
    %v5831 = vunpack.c.h.b16 %v4956
    %v5832 = vunpack.c.l.b16 %v4957
    %v5833 = vunpack.c.h.b16 %v4957
    %v5834 = vunpack.c.l.b16 %v4958
    %v5835 = vunpack.c.h.b16 %v4958
    %v5836 = vunpack.c.l.b16 %v4959
    %v5837 = vunpack.c.h.b16 %v4959
    %v5838 = vunpack.c.l.b16 %v4960
    %v5839 = vunpack.c.h.b16 %v4960
    %v5840 = vunpack.c.l.b16 %v4961
    %v5841 = vunpack.c.h.b16 %v4961
    %v5842 = vunpack.c.l.b16 %v4962
    %v5843 = vunpack.c.h.b16 %v4962
    %v5844 = vunpack.c.l.b16 %v4963
    %v5845 = vunpack.c.h.b16 %v4963
    %v5846 = vunpack.c.l.b16 %v4964
    %v5847 = vunpack.c.h.b16 %v4964
    %v5848 = vunpack.c.l.b16 %v4965
    %v5849 = vunpack.c.h.b16 %v4965
    %v5850 = vunpack.c.l.b16 %v4966
    %v5851 = vunpack.c.h.b16 %v4966
    %v5852 = vunpack.c.l.b16 %v4967
    %v5853 = vunpack.c.h.b16 %v4967
    %v5854 = vunpack.c.l.b16 %v4968
    %v5855 = vunpack.c.h.b16 %v4968
    %v5856 = vunpack.c.l.b16 %v4969
    %v5857 = vunpack.c.h.b16 %v4969
    %v5858 = vunpack.c.l.b16 %v4970
    %v5859 = vunpack.c.h.b16 %v4970
    %v5860 = vunpack.c.l.b16 %v4971
    %v5861 = vunpack.c.h.b16 %v4971
    %v5862 = vunpack.c.l.b16 %v4972
    %v5863 = vunpack.c.h.b16 %v4972
    %v5864 = vunpack.c.l.b16 %v4973
    %v5865 = vunpack.c.h.b16 %v4973
    %v5866 = vunpack.c.l.b16 %v4974
    %v5867 = vunpack.c.h.b16 %v4974
    %v5868 = vunpack.c.l.b16 %v4975
    %v5869 = vunpack.c.h.b16 %v4975
    %v5870 = vunpack.c.l.b16 %v4976
    %v5871 = vunpack.c.h.b16 %v4976
    %v5872 = vunpack.c.l.b16 %v4977
    %v5873 = vunpack.c.h.b16 %v4977
    %v5874 = vunpack.c.l.b16 %v4978
    %v5875 = vunpack.c.h.b16 %v4978
    %v5876 = vunpack.c.l.b16 %v4979
    %v5877 = vunpack.c.h.b16 %v4979
    %v5878 = vunpack.c.l.b16 %v4980
    %v5879 = vunpack.c.h.b16 %v4980
    %v5880 = vunpack.c.l.b16 %v4981
    %v5881 = vunpack.c.h.b16 %v4981
    %v5882 = vunpack.c.l.b16 %v4982
    %v5883 = vunpack.c.h.b16 %v4982
    %v5884 = vunpack.c.l.b16 %v4983
    %v5885 = vunpack.c.h.b16 %v4983
    %v5886 = vunpack.c.l.b16 %v4984
    %v5887 = vunpack.c.h.b16 %v4984
    %v5888 = vunpack.c.l.b16 %v4985
    %v5889 = vunpack.c.h.b16 %v4985
    %v5890 = vunpack.c.l.b16 %v4986
    %v5891 = vunpack.c.h.b16 %v4986
    %v5892 = vunpack.c.l.b16 %v4987
    %v5893 = vunpack.c.h.b16 %v4987
    %v5894 = vunpack.c.l.b16 %v4988
    %v5895 = vunpack.c.h.b16 %v4988
    %v5896 = vunpack.c.l.b16 %v4989
    %v5897 = vunpack.c.h.b16 %v4989
    %v5898 = vunpack.c.l.b16 %v4990
    %v5899 = vunpack.c.h.b16 %v4990
    %v5900 = vunpack.c.l.b16 %v4991
    %v5901 = vunpack.c.h.b16 %v4991
    %v5902 = vunpack.c.l.b16 %v4992
    %v5903 = vunpack.c.h.b16 %v4992
    %v5904 = vunpack.c.l.b16 %v4993
    %v5905 = vunpack.c.h.b16 %v4993
    %v5906 = vunpack.c.l.b16 %v4994
    %v5907 = vunpack.c.h.b16 %v4994
    %v5908 = vunpack.c.l.b16 %v4995
    %v5909 = vunpack.c.h.b16 %v4995
    %v5910 = vunpack.c.l.b16 %v4996
    %v5911 = vunpack.c.h.b16 %v4996
    %v5912 = vunpack.c.l.b16 %v4997
    %v5913 = vunpack.c.h.b16 %v4997
    %v5914 = vunpack.c.l.b16 %v4998
    %v5915 = vunpack.c.h.b16 %v4998
    %v5916 = vunpack.c.l.b16 %v4999
    %v5917 = vunpack.c.h.b16 %v4999
    %v5918 = vunpack.c.l.b16 %v5000
    %v5919 = vunpack.c.h.b16 %v5000
    %v5920 = vunpack.c.l.b16 %v5001
    %v5921 = vunpack.c.h.b16 %v5001
    %v5922 = vunpack.c.l.b16 %v5002
    %v5923 = vunpack.c.h.b16 %v5002
    %v5924 = vunpack.c.l.b16 %v5003
    %v5925 = vunpack.c.h.b16 %v5003
    %v5926 = vunpack.c.l.b16 %v5004
    %v5927 = vunpack.c.h.b16 %v5004
    %v5928 = vunpack.c.l.b16 %v5005
    %v5929 = vunpack.c.h.b16 %v5005
    %v5930 = vunpack.c.l.b16 %v5006
    %v5931 = vunpack.c.h.b16 %v5006
    %v5932 = vunpack.c.l.b16 %v5007
    %v5933 = vunpack.c.h.b16 %v5007
    %v5934 = vunpack.c.l.b16 %v5008
    %v5935 = vunpack.c.h.b16 %v5008
    %v5936 = vunpack.c.l.b16 %v5009
    %v5937 = vunpack.c.h.b16 %v5009
    %v5938 = vunpack.c.l.b16 %v5010
    %v5939 = vunpack.c.h.b16 %v5010
    %v5940 = vunpack.c.l.b16 %v5011
    %v5941 = vunpack.c.h.b16 %v5011
    %v5942 = vunpack.c.l.b16 %v5012
    %v5943 = vunpack.c.h.b16 %v5012
    %v5944 = vunpack.c.l.b16 %v5013
    %v5945 = vunpack.c.h.b16 %v5013
    %v5946 = vunpack.c.l.b16 %v5014
    %v5947 = vunpack.c.h.b16 %v5014
    %v5948 = vunpack.c.l.b16 %v5015
    %v5949 = vunpack.c.h.b16 %v5015
    %v5950 = vunpack.c.l.b16 %v5016
    %v5951 = vunpack.c.h.b16 %v5016
    %v5952 = vunpack.c.l.b16 %v5017
    %v5953 = vunpack.c.h.b16 %v5017
    %v5954 = vunpack.c.l.b16 %v5018
    %v5955 = vunpack.c.h.b16 %v5018
    %v5956 = vunpack.c.l.b16 %v5019
    %v5957 = vunpack.c.h.b16 %v5019
    %v5958 = vunpack.c.l.b16 %v5020
    %v5959 = vunpack.c.h.b16 %v5020
    %v5960 = vunpack.c.l.b16 %v5021
    %v5961 = vunpack.c.h.b16 %v5021
    %v5962 = vunpack.c.l.b16 %v5022
    %v5963 = vunpack.c.h.b16 %v5022
    %v5964 = vunpack.c.l.b16 %v5023
    %v5965 = vunpack.c.h.b16 %v5023
    %v5966 = vunpack.c.l.b16 %v5024
    %v5967 = vunpack.c.h.b16 %v5024
    %v5968 = vunpack.c.l.b16 %v5025
    %v5969 = vunpack.c.h.b16 %v5025
    %v5970 = vunpack.c.l.b16 %v5026
    %v5971 = vunpack.c.h.b16 %v5026
    %v5972 = vunpack.c.l.b16 %v5027
    %v5973 = vunpack.c.h.b16 %v5027
    %v5974 = vunpack.c.l.b16 %v5028
    %v5975 = vunpack.c.h.b16 %v5028
    %v5976 = vunpack.c.l.b16 %v5029
    %v5977 = vunpack.c.h.b16 %v5029
    %v5978 = vunpack.c.l.b16 %v5030
    %v5979 = vunpack.c.h.b16 %v5030
    %v5980 = vunpack.c.l.b16 %v5031
    %v5981 = vunpack.c.h.b16 %v5031
    %v5982 = vunpack.c.l.b16 %v5032
    %v5983 = vunpack.c.h.b16 %v5032
    %v5984 = vunpack.c.l.b16 %v5033
    %v5985 = vunpack.c.h.b16 %v5033
    %v5986 = vunpack.c.l.b16 %v5034
    %v5987 = vunpack.c.h.b16 %v5034
    %v5988 = vunpack.c.l.b16 %v5035
    %v5989 = vunpack.c.h.b16 %v5035
    %v5990 = vunpack.c.l.b16 %v5036
    %v5991 = vunpack.c.h.b16 %v5036
    %v5992 = vunpack.c.l.b16 %v5037
    %v5993 = vunpack.c.h.b16 %v5037
    %v5994 = vunpack.c.l.b16 %v5038
    %v5995 = vunpack.c.h.b16 %v5038
    %v5996 = vunpack.c.l.b16 %v5039
    %v5997 = vunpack.c.h.b16 %v5039
    %v5998 = vunpack.c.l.b16 %v5040
    %v5999 = vunpack.c.h.b16 %v5040
    %v6000 = vunpack.c.l.b16 %v5041
    %v6001 = vunpack.c.h.b16 %v5041
    %v6002 = vunpack.c.l.b16 %v5042
    %v6003 = vunpack.c.h.b16 %v5042
    %v6004 = vunpack.c.l.b16 %v5043
    %v6005 = vunpack.c.h.b16 %v5043
    %v6006 = vunpack.c.l.b16 %v5044
    %v6007 = vunpack.c.h.b16 %v5044
    %v6008 = vunpack.c.l.b16 %v5045
    %v6009 = vunpack.c.h.b16 %v5045
    %v6010 = vunpack.c.l.b16 %v5046
    %v6011 = vunpack.c.h.b16 %v5046
    %v6012 = vunpack.c.l.b16 %v5047
    %v6013 = vunpack.c.h.b16 %v5047
    %v6014 = vunpack.c.l.b16 %v5048
    %v6015 = vunpack.c.h.b16 %v5048
    %v6016 = vunpack.c.l.b16 %v5049
    %v6017 = vunpack.c.h.b16 %v5049
    %v6018 = vunpack.c.l.b16 %v5050
    %v6019 = vunpack.c.h.b16 %v5050
    %v6020 = vunpack.c.l.b16 %v5051
    %v6021 = vunpack.c.h.b16 %v5051
    %v6022 = vunpack.c.l.b16 %v5052
    %v6023 = vunpack.c.h.b16 %v5052
    %v6024 = vunpack.c.l.b16 %v5053
    %v6025 = vunpack.c.h.b16 %v5053
    %v6026 = vunpack.c.l.b16 %v5054
    %v6027 = vunpack.c.h.b16 %v5054
    %v6028 = vunpack.c.l.b16 %v5055
    %v6029 = vunpack.c.h.b16 %v5055
    %v6030 = vunpack.c.l.b16 %v5056
    %v6031 = vunpack.c.h.b16 %v5056
    %v6032 = vunpack.c.l.b16 %v5057
    %v6033 = vunpack.c.h.b16 %v5057
    %v6034 = vunpack.c.l.b16 %v5058
    %v6035 = vunpack.c.h.b16 %v5058
    %v6036 = vunpack.c.l.b16 %v5059
    %v6037 = vunpack.c.h.b16 %v5059
    %v6038 = vunpack.c.l.b16 %v5060
    %v6039 = vunpack.c.h.b16 %v5060
    %v6040 = vunpack.c.l.b16 %v5061
    %v6041 = vunpack.c.h.b16 %v5061
    %v6042 = vunpack.c.l.b16 %v5062
    %v6043 = vunpack.c.h.b16 %v5062
    %v6044 = vunpack.c.l.b16 %v5063
    %v6045 = vunpack.c.h.b16 %v5063
    %v6046 = vunpack.c.l.b16 %v5064
    %v6047 = vunpack.c.h.b16 %v5064
    %v6048 = vunpack.c.l.b16 %v5065
    %v6049 = vunpack.c.h.b16 %v5065
    %v6050 = vunpack.c.l.b16 %v5066
    %v6051 = vunpack.c.h.b16 %v5066
    %v6052 = vunpack.c.l.b16 %v5067
    %v6053 = vunpack.c.h.b16 %v5067
    %v6054 = vunpack.c.l.b16 %v5068
    %v6055 = vunpack.c.h.b16 %v5068
    %v6056 = vunpack.c.l.b16 %v5069
    %v6057 = vunpack.c.h.b16 %v5069
    %v6058 = vunpack.c.l.b16 %v5070
    %v6059 = vunpack.c.h.b16 %v5070
    %v6060 = vunpack.c.l.b16 %v5071
    %v6061 = vunpack.c.h.b16 %v5071
    %v6062 = vunpack.c.l.b16 %v5072
    %v6063 = vunpack.c.h.b16 %v5072
    %v6064 = vunpack.c.l.b16 %v5073
    %v6065 = vunpack.c.h.b16 %v5073
    %v6066 = vunpack.c.l.b16 %v5074
    %v6067 = vunpack.c.h.b16 %v5074
    %v6068 = vunpack.c.l.b16 %v5075
    %v6069 = vunpack.c.h.b16 %v5075
    %v6070 = vunpack.c.l.b16 %v5076
    %v6071 = vunpack.c.h.b16 %v5076
    %v6072 = vunpack.c.l.b16 %v5077
    %v6073 = vunpack.c.h.b16 %v5077
    %v6074 = vunpack.c.l.b16 %v5078
    %v6075 = vunpack.c.h.b16 %v5078
    %v6076 = vunpack.c.l.b16 %v5079
    %v6077 = vunpack.c.h.b16 %v5079
    %v6078 = vunpack.c.l.b16 %v5080
    %v6079 = vunpack.c.h.b16 %v5080
    %v6080 = vunpack.c.l.b16 %v5081
    %v6081 = vunpack.c.h.b16 %v5081
    %v6082 = vunpack.c.l.b16 %v5082
    %v6083 = vunpack.c.h.b16 %v5082
    %v6084 = vunpack.c.l.b16 %v5083
    %v6085 = vunpack.c.h.b16 %v5083
    %v6086 = vunpack.c.l.b16 %v5084
    %v6087 = vunpack.c.h.b16 %v5084
    %v6088 = vunpack.c.l.b16 %v5085
    %v6089 = vunpack.c.h.b16 %v5085
    %v6090 = vunpack.c.l.b16 %v5086
    %v6091 = vunpack.c.h.b16 %v5086
    %v6092 = vunpack.c.l.b16 %v5087
    %v6093 = vunpack.c.h.b16 %v5087
    %v6094 = vunpack.c.l.b16 %v5088
    %v6095 = vunpack.c.h.b16 %v5088
    %v6096 = vunpack.c.l.b16 %v5089
    %v6097 = vunpack.c.h.b16 %v5089
    %v6098 = vunpack.c.l.b16 %v5090
    %v6099 = vunpack.c.h.b16 %v5090
    %v6100 = vunpack.c.l.b16 %v5091
    %v6101 = vunpack.c.h.b16 %v5091
    %v6102 = vunpack.c.l.b16 %v5092
    %v6103 = vunpack.c.h.b16 %v5092
    %v6104 = vunpack.c.l.b16 %v5093
    %v6105 = vunpack.c.h.b16 %v5093
    %v6106 = vunpack.c.l.b16 %v5094
    %v6107 = vunpack.c.h.b16 %v5094
    %v6108 = vunpack.c.l.b16 %v5095
    %v6109 = vunpack.c.h.b16 %v5095
    %v6110 = vunpack.c.l.b16 %v5096
    %v6111 = vunpack.c.h.b16 %v5096
    %v6112 = vunpack.c.l.b16 %v5097
    %v6113 = vunpack.c.h.b16 %v5097
    %v6114 = vunpack.c.l.b16 %v5098
    %v6115 = vunpack.c.h.b16 %v5098
    %v6116 = vunpack.c.l.b16 %v5099
    %v6117 = vunpack.c.h.b16 %v5099
    %v6118 = vunpack.c.l.b16 %v5100
    %v6119 = vunpack.c.h.b16 %v5100
    %v6120 = vunpack.c.l.b16 %v5101
    %v6121 = vunpack.c.h.b16 %v5101
    %v6122 = vunpack.c.l.b16 %v5102
    %v6123 = vunpack.c.h.b16 %v5102
    %v6124 = vunpack.c.l.b16 %v5103
    %v6125 = vunpack.c.h.b16 %v5103
    %v6126 = vunpack.c.l.b16 %v5104
    %v6127 = vunpack.c.h.b16 %v5104
    %v6128 = vunpack.c.l.b16 %v5105
    %v6129 = vunpack.c.h.b16 %v5105
    %v6130 = vunpack.c.l.b16 %v5106
    %v6131 = vunpack.c.h.b16 %v5106
    %v6132 = vunpack.c.l.b16 %v5107
    %v6133 = vunpack.c.h.b16 %v5107
    %v6134 = vunpack.c.l.b16 %v5108
    %v6135 = vunpack.c.h.b16 %v5108
    %v6136 = vunpack.c.l.b16 %v5109
    %v6137 = vunpack.c.h.b16 %v5109
    %v6138 = vunpack.c.l.b16 %v5110
    %v6139 = vunpack.c.h.b16 %v5110
    %v6140 = vunpack.c.l.b16 %v5111
    %v6141 = vunpack.c.h.b16 %v5111
    %v6142 = vunpack.c.l.b16 %v5112
    %v6143 = vunpack.c.h.b16 %v5112
    %v6144 = vunpack.c.l.b16 %v5113
    %v6145 = vunpack.c.h.b16 %v5113
    %v6146 = vunpack.c.l.b16 %v5114
    %v6147 = vunpack.c.h.b16 %v5114
    %v6148 = vunpack.c.l.b16 %v5115
    %v6149 = vunpack.c.h.b16 %v5115
    %v6150 = vunpack.c.l.b16 %v5116
    %v6151 = vunpack.c.h.b16 %v5116
    %v6152 = vunpack.c.l.b16 %v5117
    %v6153 = vunpack.c.h.b16 %v5117
    %v6154 = vunpack.c.l.b16 %v5118
    %v6155 = vunpack.c.h.b16 %v5118
    %v6156 = vunpack.c.l.b16 %v5119
    %v6157 = vunpack.c.h.b16 %v5119
    %v6158 = vunpack.c.l.b16 %v5120
    %v6159 = vunpack.c.h.b16 %v5120
    %v6160 = vunpack.c.l.b16 %v5121
    %v6161 = vunpack.c.h.b16 %v5121
    %v6162 = vunpack.c.l.b16 %v5122
    %v6163 = vunpack.c.h.b16 %v5122
    %v6164 = vunpack.c.l.b16 %v5123
    %v6165 = vunpack.c.h.b16 %v5123
    %v6166 = vunpack.c.l.b16 %v5124
    %v6167 = vunpack.c.h.b16 %v5124
    %v6168 = vunpack.c.l.b16 %v5125
    %v6169 = vunpack.c.h.b16 %v5125
    %v6170 = vunpack.c.l.b16 %v5126
    %v6171 = vunpack.c.h.b16 %v5126
    %v6172 = vunpack.c.l.b16 %v5127
    %v6173 = vunpack.c.h.b16 %v5127
    %v6174 = vunpack.c.l.b16 %v5128
    %v6175 = vunpack.c.h.b16 %v5128
    %v6176 = vunpack.c.l.b16 %v5129
    %v6177 = vunpack.c.h.b16 %v5129
    %v6178 = vunpack.c.l.b16 %v5130
    %v6179 = vunpack.c.h.b16 %v5130
    %v6180 = vunpack.c.l.b16 %v5131
    %v6181 = vunpack.c.h.b16 %v5131
    %v6182 = vunpack.c.l.b16 %v5132
    %v6183 = vunpack.c.h.b16 %v5132
    %v6184 = vunpack.c.l.b16 %v5133
    %v6185 = vunpack.c.h.b16 %v5133
    %v6186 = vunpack.c.l.b16 %v5134
    %v6187 = vunpack.c.h.b16 %v5134
    %v6188 = vunpack.c.l.b16 %v5135
    %v6189 = vunpack.c.h.b16 %v5135
    %v6190 = vunpack.c.l.b16 %v5136
    %v6191 = vunpack.c.h.b16 %v5136
    %v6192 = vunpack.c.l.b16 %v5137
    %v6193 = vunpack.c.h.b16 %v5137
    %v6194 = vunpack.c.l.b16 %v5138
    %v6195 = vunpack.c.h.b16 %v5138
    %v6196 = vunpack.c.l.b16 %v5139
    %v6197 = vunpack.c.h.b16 %v5139
    %v6198 = vunpack.c.l.b16 %v5140
    %v6199 = vunpack.c.h.b16 %v5140
    %v6200 = vunpack.c.l.b16 %v5141
    %v6201 = vunpack.c.h.b16 %v5141
    %v6202 = vunpack.c.l.b16 %v5142
    %v6203 = vunpack.c.h.b16 %v5142
    %v6204 = vunpack.c.l.b16 %v5143
    %v6205 = vunpack.c.h.b16 %v5143
    %v6206 = vunpack.c.l.b16 %v5144
    %v6207 = vunpack.c.h.b16 %v5144
    %v6208 = vunpack.c.l.b16 %v5145
    %v6209 = vunpack.c.h.b16 %v5145
    %v6210 = vunpack.c.l.b16 %v5146
    %v6211 = vunpack.c.h.b16 %v5146
    %v6212 = vunpack.c.l.b16 %v5147
    %v6213 = vunpack.c.h.b16 %v5147
    %v6214 = vunpack.c.l.b16 %v5148
    %v6215 = vunpack.c.h.b16 %v5148
    %v6216 = vunpack.c.l.b16 %v5149
    %v6217 = vunpack.c.h.b16 %v5149
    %v6218 = vunpack.c.l.b16 %v5150
    %v6219 = vunpack.c.h.b16 %v5150
    %v6220 = vunpack.c.l.b16 %v5151
    %v6221 = vunpack.c.h.b16 %v5151
    %v6222 = vunpack.c.l.b16 %v5152
    %v6223 = vunpack.c.h.b16 %v5152
    %v6224 = vunpack.c.l.b16 %v5153
    %v6225 = vunpack.c.h.b16 %v5153
    %v6226 = vunpack.c.l.b16 %v5154
    %v6227 = vunpack.c.h.b16 %v5154
    %v6228 = vunpack.c.l.b16 %v5155
    %v6229 = vunpack.c.h.b16 %v5155
    %v6230 = vunpack.c.l.b16 %v5156
    %v6231 = vunpack.c.h.b16 %v5156
    %v6232 = vunpack.c.l.b16 %v5157
    %v6233 = vunpack.c.h.b16 %v5157
    %v6234 = vunpack.c.l.b16 %v5158
    %v6235 = vunpack.c.h.b16 %v5158
    %v6236 = vunpack.c.l.b16 %v5159
    %v6237 = vunpack.c.h.b16 %v5159
    %v6238 = vunpack.c.l.b16 %v5160
    %v6239 = vunpack.c.h.b16 %v5160
    %v6240 = vunpack.c.l.b16 %v5161
    %v6241 = vunpack.c.h.b16 %v5161
    %v6242 = vunpack.c.l.b16 %v5162
    %v6243 = vunpack.c.h.b16 %v5162
    %v6244 = vunpack.c.l.b16 %v5163
    %v6245 = vunpack.c.h.b16 %v5163
    %v6246 = vunpack.c.l.b16 %v5164
    %v6247 = vunpack.c.h.b16 %v5164
    %v6248 = vunpack.c.l.b16 %v5165
    %v6249 = vunpack.c.h.b16 %v5165
    %v6250 = vunpack.c.l.b16 %v5166
    %v6251 = vunpack.c.h.b16 %v5166
    %v6252 = vunpack.c.l.b16 %v5167
    %v6253 = vunpack.c.h.b16 %v5167
    %v6254 = vunpack.c.l.b16 %v5168
    %v6255 = vunpack.c.h.b16 %v5168
    %v6256 = vunpack.c.l.b16 %v5169
    %v6257 = vunpack.c.h.b16 %v5169
    %v6258 = vpack.c.b16 %v5750, %v5746
    %v6259 = vpack.c.b16 %v5751, %v5747
    %v6260 = vpack.c.b16 %v5752, %v5748
    %v6261 = vpack.c.b16 %v5753, %v5749
    %v6262 = vpack.c.b16 %v5758, %v5754
    %v6263 = vpack.c.b16 %v5759, %v5755
    %v6264 = vpack.c.b16 %v5760, %v5756
    %v6265 = vpack.c.b16 %v5761, %v5757
    %v6266 = vpack.c.b16 %v5766, %v5762
    %v6267 = vpack.c.b16 %v5767, %v5763
    %v6268 = vpack.c.b16 %v5768, %v5764
    %v6269 = vpack.c.b16 %v5769, %v5765
    %v6270 = vpack.c.b16 %v5774, %v5770
    %v6271 = vpack.c.b16 %v5775, %v5771
    %v6272 = vpack.c.b16 %v5776, %v5772
    %v6273 = vpack.c.b16 %v5777, %v5773
    %v6274 = vpack.c.b16 %v5782, %v5778
    %v6275 = vpack.c.b16 %v5783, %v5779
    %v6276 = vpack.c.b16 %v5784, %v5780
    %v6277 = vpack.c.b16 %v5785, %v5781
    %v6278 = vpack.c.b16 %v5790, %v5786
    %v6279 = vpack.c.b16 %v5791, %v5787
    %v6280 = vpack.c.b16 %v5792, %v5788
    %v6281 = vpack.c.b16 %v5793, %v5789
    %v6282 = vpack.c.b16 %v5798, %v5794
    %v6283 = vpack.c.b16 %v5799, %v5795
    %v6284 = vpack.c.b16 %v5800, %v5796
    %v6285 = vpack.c.b16 %v5801, %v5797
    %v6286 = vpack.c.b16 %v5806, %v5802
    %v6287 = vpack.c.b16 %v5807, %v5803
    %v6288 = vpack.c.b16 %v5808, %v5804
    %v6289 = vpack.c.b16 %v5809, %v5805
    %v6290 = vpack.c.b16 %v5814, %v5810
    %v6291 = vpack.c.b16 %v5815, %v5811
    %v6292 = vpack.c.b16 %v5816, %v5812
    %v6293 = vpack.c.b16 %v5817, %v5813
    %v6294 = vpack.c.b16 %v5822, %v5818
    %v6295 = vpack.c.b16 %v5823, %v5819
    %v6296 = vpack.c.b16 %v5824, %v5820
    %v6297 = vpack.c.b16 %v5825, %v5821
    %v6298 = vpack.c.b16 %v5830, %v5826
    %v6299 = vpack.c.b16 %v5831, %v5827
    %v6300 = vpack.c.b16 %v5832, %v5828
    %v6301 = vpack.c.b16 %v5833, %v5829
    %v6302 = vpack.c.b16 %v5838, %v5834
    %v6303 = vpack.c.b16 %v5839, %v5835
    %v6304 = vpack.c.b16 %v5840, %v5836
    %v6305 = vpack.c.b16 %v5841, %v5837
    %v6306 = vpack.c.b16 %v5846, %v5842
    %v6307 = vpack.c.b16 %v5847, %v5843
    %v6308 = vpack.c.b16 %v5848, %v5844
    %v6309 = vpack.c.b16 %v5849, %v5845
    %v6310 = vpack.c.b16 %v5854, %v5850
    %v6311 = vpack.c.b16 %v5855, %v5851
    %v6312 = vpack.c.b16 %v5856, %v5852
    %v6313 = vpack.c.b16 %v5857, %v5853
    %v6314 = vpack.c.b16 %v5862, %v5858
    %v6315 = vpack.c.b16 %v5863, %v5859
    %v6316 = vpack.c.b16 %v5864, %v5860
    %v6317 = vpack.c.b16 %v5865, %v5861
    %v6318 = vpack.c.b16 %v5870, %v5866
    %v6319 = vpack.c.b16 %v5871, %v5867
    %v6320 = vpack.c.b16 %v5872, %v5868
    %v6321 = vpack.c.b16 %v5873, %v5869
    %v6322 = vpack.c.b16 %v5878, %v5874
    %v6323 = vpack.c.b16 %v5879, %v5875
    %v6324 = vpack.c.b16 %v5880, %v5876
    %v6325 = vpack.c.b16 %v5881, %v5877
    %v6326 = vpack.c.b16 %v5886, %v5882
    %v6327 = vpack.c.b16 %v5887, %v5883
    %v6328 = vpack.c.b16 %v5888, %v5884
    %v6329 = vpack.c.b16 %v5889, %v5885
    %v6330 = vpack.c.b16 %v5894, %v5890
    %v6331 = vpack.c.b16 %v5895, %v5891
    %v6332 = vpack.c.b16 %v5896, %v5892
    %v6333 = vpack.c.b16 %v5897, %v5893
    %v6334 = vpack.c.b16 %v5902, %v5898
    %v6335 = vpack.c.b16 %v5903, %v5899
    %v6336 = vpack.c.b16 %v5904, %v5900
    %v6337 = vpack.c.b16 %v5905, %v5901
    %v6338 = vpack.c.b16 %v5910, %v5906
    %v6339 = vpack.c.b16 %v5911, %v5907
    %v6340 = vpack.c.b16 %v5912, %v5908
    %v6341 = vpack.c.b16 %v5913, %v5909
    %v6342 = vpack.c.b16 %v5918, %v5914
    %v6343 = vpack.c.b16 %v5919, %v5915
    %v6344 = vpack.c.b16 %v5920, %v5916
    %v6345 = vpack.c.b16 %v5921, %v5917
    %v6346 = vpack.c.b16 %v5926, %v5922
    %v6347 = vpack.c.b16 %v5927, %v5923
    %v6348 = vpack.c.b16 %v5928, %v5924
    %v6349 = vpack.c.b16 %v5929, %v5925
    %v6350 = vpack.c.b16 %v5934, %v5930
    %v6351 = vpack.c.b16 %v5935, %v5931
    %v6352 = vpack.c.b16 %v5936, %v5932
    %v6353 = vpack.c.b16 %v5937, %v5933
    %v6354 = vpack.c.b16 %v5942, %v5938
    %v6355 = vpack.c.b16 %v5943, %v5939
    %v6356 = vpack.c.b16 %v5944, %v5940
    %v6357 = vpack.c.b16 %v5945, %v5941
    %v6358 = vpack.c.b16 %v5950, %v5946
    %v6359 = vpack.c.b16 %v5951, %v5947
    %v6360 = vpack.c.b16 %v5952, %v5948
    %v6361 = vpack.c.b16 %v5953, %v5949
    %v6362 = vpack.c.b16 %v5958, %v5954
    %v6363 = vpack.c.b16 %v5959, %v5955
    %v6364 = vpack.c.b16 %v5960, %v5956
    %v6365 = vpack.c.b16 %v5961, %v5957
    %v6366 = vpack.c.b16 %v5966, %v5962
    %v6367 = vpack.c.b16 %v5967, %v5963
    %v6368 = vpack.c.b16 %v5968, %v5964
    %v6369 = vpack.c.b16 %v5969, %v5965
    %v6370 = vpack.c.b16 %v5974, %v5970
    %v6371 = vpack.c.b16 %v5975, %v5971
    %v6372 = vpack.c.b16 %v5976, %v5972
    %v6373 = vpack.c.b16 %v5977, %v5973
    %v6374 = vpack.c.b16 %v5982, %v5978
    %v6375 = vpack.c.b16 %v5983, %v5979
    %v6376 = vpack.c.b16 %v5984, %v5980
    %v6377 = vpack.c.b16 %v5985, %v5981
    %v6378 = vpack.c.b16 %v5990, %v5986
    %v6379 = vpack.c.b16 %v5991, %v5987
    %v6380 = vpack.c.b16 %v5992, %v5988
    %v6381 = vpack.c.b16 %v5993, %v5989
    %v6382 = vpack.c.b16 %v5998, %v5994
    %v6383 = vpack.c.b16 %v5999, %v5995
    %v6384 = vpack.c.b16 %v6000, %v5996
    %v6385 = vpack.c.b16 %v6001, %v5997
    %v6386 = vpack.c.b16 %v6006, %v6002
    %v6387 = vpack.c.b16 %v6007, %v6003
    %v6388 = vpack.c.b16 %v6008, %v6004
    %v6389 = vpack.c.b16 %v6009, %v6005
    %v6390 = vpack.c.b16 %v6014, %v6010
    %v6391 = vpack.c.b16 %v6015, %v6011
    %v6392 = vpack.c.b16 %v6016, %v6012
    %v6393 = vpack.c.b16 %v6017, %v6013
    %v6394 = vpack.c.b16 %v6022, %v6018
    %v6395 = vpack.c.b16 %v6023, %v6019
    %v6396 = vpack.c.b16 %v6024, %v6020
    %v6397 = vpack.c.b16 %v6025, %v6021
    %v6398 = vpack.c.b16 %v6030, %v6026
    %v6399 = vpack.c.b16 %v6031, %v6027
    %v6400 = vpack.c.b16 %v6032, %v6028
    %v6401 = vpack.c.b16 %v6033, %v6029
    %v6402 = vpack.c.b16 %v6038, %v6034
    %v6403 = vpack.c.b16 %v6039, %v6035
    %v6404 = vpack.c.b16 %v6040, %v6036
    %v6405 = vpack.c.b16 %v6041, %v6037
    %v6406 = vpack.c.b16 %v6046, %v6042
    %v6407 = vpack.c.b16 %v6047, %v6043
    %v6408 = vpack.c.b16 %v6048, %v6044
    %v6409 = vpack.c.b16 %v6049, %v6045
    %v6410 = vpack.c.b16 %v6054, %v6050
    %v6411 = vpack.c.b16 %v6055, %v6051
    %v6412 = vpack.c.b16 %v6056, %v6052
    %v6413 = vpack.c.b16 %v6057, %v6053
    %v6414 = vpack.c.b16 %v6062, %v6058
    %v6415 = vpack.c.b16 %v6063, %v6059
    %v6416 = vpack.c.b16 %v6064, %v6060
    %v6417 = vpack.c.b16 %v6065, %v6061
    %v6418 = vpack.c.b16 %v6070, %v6066
    %v6419 = vpack.c.b16 %v6071, %v6067
    %v6420 = vpack.c.b16 %v6072, %v6068
    %v6421 = vpack.c.b16 %v6073, %v6069
    %v6422 = vpack.c.b16 %v6078, %v6074
    %v6423 = vpack.c.b16 %v6079, %v6075
    %v6424 = vpack.c.b16 %v6080, %v6076
    %v6425 = vpack.c.b16 %v6081, %v6077
    %v6426 = vpack.c.b16 %v6086, %v6082
    %v6427 = vpack.c.b16 %v6087, %v6083
    %v6428 = vpack.c.b16 %v6088, %v6084
    %v6429 = vpack.c.b16 %v6089, %v6085
    %v6430 = vpack.c.b16 %v6094, %v6090
    %v6431 = vpack.c.b16 %v6095, %v6091
    %v6432 = vpack.c.b16 %v6096, %v6092
    %v6433 = vpack.c.b16 %v6097, %v6093
    %v6434 = vpack.c.b16 %v6102, %v6098
    %v6435 = vpack.c.b16 %v6103, %v6099
    %v6436 = vpack.c.b16 %v6104, %v6100
    %v6437 = vpack.c.b16 %v6105, %v6101
    %v6438 = vpack.c.b16 %v6110, %v6106
    %v6439 = vpack.c.b16 %v6111, %v6107
    %v6440 = vpack.c.b16 %v6112, %v6108
    %v6441 = vpack.c.b16 %v6113, %v6109
    %v6442 = vpack.c.b16 %v6118, %v6114
    %v6443 = vpack.c.b16 %v6119, %v6115
    %v6444 = vpack.c.b16 %v6120, %v6116
    %v6445 = vpack.c.b16 %v6121, %v6117
    %v6446 = vpack.c.b16 %v6126, %v6122
    %v6447 = vpack.c.b16 %v6127, %v6123
    %v6448 = vpack.c.b16 %v6128, %v6124
    %v6449 = vpack.c.b16 %v6129, %v6125
    %v6450 = vpack.c.b16 %v6134, %v6130
    %v6451 = vpack.c.b16 %v6135, %v6131
    %v6452 = vpack.c.b16 %v6136, %v6132
    %v6453 = vpack.c.b16 %v6137, %v6133
    %v6454 = vpack.c.b16 %v6142, %v6138
    %v6455 = vpack.c.b16 %v6143, %v6139
    %v6456 = vpack.c.b16 %v6144, %v6140
    %v6457 = vpack.c.b16 %v6145, %v6141
    %v6458 = vpack.c.b16 %v6150, %v6146
    %v6459 = vpack.c.b16 %v6151, %v6147
    %v6460 = vpack.c.b16 %v6152, %v6148
    %v6461 = vpack.c.b16 %v6153, %v6149
    %v6462 = vpack.c.b16 %v6158, %v6154
    %v6463 = vpack.c.b16 %v6159, %v6155
    %v6464 = vpack.c.b16 %v6160, %v6156
    %v6465 = vpack.c.b16 %v6161, %v6157
    %v6466 = vpack.c.b16 %v6166, %v6162
    %v6467 = vpack.c.b16 %v6167, %v6163
    %v6468 = vpack.c.b16 %v6168, %v6164
    %v6469 = vpack.c.b16 %v6169, %v6165
    %v6470 = vpack.c.b16 %v6174, %v6170
    %v6471 = vpack.c.b16 %v6175, %v6171
    %v6472 = vpack.c.b16 %v6176, %v6172
    %v6473 = vpack.c.b16 %v6177, %v6173
    %v6474 = vpack.c.b16 %v6182, %v6178
    %v6475 = vpack.c.b16 %v6183, %v6179
    %v6476 = vpack.c.b16 %v6184, %v6180
    %v6477 = vpack.c.b16 %v6185, %v6181
    %v6478 = vpack.c.b16 %v6190, %v6186
    %v6479 = vpack.c.b16 %v6191, %v6187
    %v6480 = vpack.c.b16 %v6192, %v6188
    %v6481 = vpack.c.b16 %v6193, %v6189
    %v6482 = vpack.c.b16 %v6198, %v6194
    %v6483 = vpack.c.b16 %v6199, %v6195
    %v6484 = vpack.c.b16 %v6200, %v6196
    %v6485 = vpack.c.b16 %v6201, %v6197
    %v6486 = vpack.c.b16 %v6206, %v6202
    %v6487 = vpack.c.b16 %v6207, %v6203
    %v6488 = vpack.c.b16 %v6208, %v6204
    %v6489 = vpack.c.b16 %v6209, %v6205
    %v6490 = vpack.c.b16 %v6214, %v6210
    %v6491 = vpack.c.b16 %v6215, %v6211
    %v6492 = vpack.c.b16 %v6216, %v6212
    %v6493 = vpack.c.b16 %v6217, %v6213
    %v6494 = vpack.c.b16 %v6222, %v6218
    %v6495 = vpack.c.b16 %v6223, %v6219
    %v6496 = vpack.c.b16 %v6224, %v6220
    %v6497 = vpack.c.b16 %v6225, %v6221
    %v6498 = vpack.c.b16 %v6230, %v6226
    %v6499 = vpack.c.b16 %v6231, %v6227
    %v6500 = vpack.c.b16 %v6232, %v6228
    %v6501 = vpack.c.b16 %v6233, %v6229
    %v6502 = vpack.c.b16 %v6238, %v6234
    %v6503 = vpack.c.b16 %v6239, %v6235
    %v6504 = vpack.c.b16 %v6240, %v6236
    %v6505 = vpack.c.b16 %v6241, %v6237
    %v6506 = vpack.c.b16 %v6246, %v6242
    %v6507 = vpack.c.b16 %v6247, %v6243
    %v6508 = vpack.c.b16 %v6248, %v6244
    %v6509 = vpack.c.b16 %v6249, %v6245
    %v6510 = vpack.c.b16 %v6254, %v6250
    %v6511 = vpack.c.b16 %v6255, %v6251
    %v6512 = vpack.c.b16 %v6256, %v6252
    %v6513 = vpack.c.b16 %v6257, %v6253
    %6770 = vmatprep.subr.bf16.mxu0 %v6287
    %6771 = vmatpush1.bf16.msra.mxu0 %v6286
    %6772 = vmatprep.subr.bf16.mxu0 %v6283
    %6773 = vmatpush1.bf16.msra.mxu0 %v6282
    %6774 = vmatprep.subr.bf16.mxu0 %v6279
    %6775 = vmatpush1.bf16.msra.mxu0 %v6278
    %6776 = vmatprep.subr.bf16.mxu0 %v6275
    %6777 = vmatpush1.bf16.msra.mxu0 %v6274
    %6778 = vmatprep.subr.bf16.mxu0 %v6271
    %6779 = vmatpush1.bf16.msra.mxu0 %v6270
    %6780 = vmatprep.subr.bf16.mxu0 %v6267
    %6781 = vmatpush1.bf16.msra.mxu0 %v6266
    %6782 = vmatprep.subr.bf16.mxu0 %v6263
    %6783 = vmatpush1.bf16.msra.mxu0 %v6262
    %6784 = vmatprep.subr.bf16.mxu0 %v6259
    %6785 = vmatpush1.bf16.msra.mxu0 %v6258
    %6786 = vmatprep.subr.bf16.mxu0 %v6319
    %6787 = vmatpush2.bf16.msra.mxu0 %v6318
    %6788 = vmatprep.subr.bf16.mxu0 %v6315
    %6789 = vmatpush2.bf16.msra.mxu0 %v6314
    %6790 = vmatprep.subr.bf16.mxu0 %v6311
    %6791 = vmatpush2.bf16.msra.mxu0 %v6310
    %6792 = vmatprep.subr.bf16.mxu0 %v6307
    %6793 = vmatpush2.bf16.msra.mxu0 %v6306
    %6794 = vmatprep.subr.bf16.mxu0 %v6303
    %6795 = vmatpush2.bf16.msra.mxu0 %v6302
    %6796 = vmatprep.subr.bf16.mxu0 %v6299
    %6797 = vmatpush2.bf16.msra.mxu0 %v6298
    %6798 = vmatprep.subr.bf16.mxu0 %v6295
    %6799 = vmatpush2.bf16.msra.mxu0 %v6294
    %6800 = vmatprep.subr.bf16.mxu0 %v6291
    %6801 = vmatpush2.bf16.msra.mxu0 %v6290
    %6802 = vmatprep.mubr.bf16.mxu0 %v5363
    %6803 = vmatmul.mubr.bf16.gmra.mxu0 %v5362
    %v6804 = vpop.f32.mrf.mxu0
    %v6805 = vadd.f32 0.0, %v6804
    %v6806 = vpop.f32.mrf.mxu0
    %v6807 = vadd.f32 0.0, %v6806
    %v6808 = vpop.f32.mrf.mxu0
    %v6809 = vadd.f32 0.0, %v6808
    %v6810 = vpop.f32.mrf.mxu0
    %v6811 = vadd.f32 0.0, %v6810
    %6812 = vmatprep.mubr.bf16.mxu0 %v5371
    %6813 = vmatmul.mubr.bf16.gmra.mxu0 %v5370
    %v6814 = vpop.f32.mrf.mxu0
    %v6815 = vadd.f32 0.0, %v6814
    %v6816 = vpop.f32.mrf.mxu0
    %v6817 = vadd.f32 0.0, %v6816
    %v6818 = vpop.f32.mrf.mxu0
    %v6819 = vadd.f32 0.0, %v6818
    %v6820 = vpop.f32.mrf.mxu0
    %v6821 = vadd.f32 0.0, %v6820
    %6822 = vmatprep.mubr.bf16.mxu0 %v5379
    %6823 = vmatmul.mubr.bf16.gmra.mxu0 %v5378
    %v6824 = vpop.f32.mrf.mxu0
    %v6825 = vadd.f32 0.0, %v6824
    %v6826 = vpop.f32.mrf.mxu0
    %v6827 = vadd.f32 0.0, %v6826
    %v6828 = vpop.f32.mrf.mxu0
    %v6829 = vadd.f32 0.0, %v6828
    %v6830 = vpop.f32.mrf.mxu0
    %v6831 = vadd.f32 0.0, %v6830
    %6832 = vmatprep.mubr.bf16.mxu0 %v5387
    %6833 = vmatmul.mubr.bf16.gmra.mxu0 %v5386
    %v6834 = vpop.f32.mrf.mxu0
    %v6835 = vadd.f32 0.0, %v6834
    %v6836 = vpop.f32.mrf.mxu0
    %v6837 = vadd.f32 0.0, %v6836
    %v6838 = vpop.f32.mrf.mxu0
    %v6839 = vadd.f32 0.0, %v6838
    %v6840 = vpop.f32.mrf.mxu0
    %v6841 = vadd.f32 0.0, %v6840
    %6842 = vmatprep.mubr.bf16.mxu0 %v5395
    %6843 = vmatmul.mubr.bf16.gmra.mxu0 %v5394
    %v6844 = vpop.f32.mrf.mxu0
    %v6845 = vadd.f32 0.0, %v6844
    %v6846 = vpop.f32.mrf.mxu0
    %v6847 = vadd.f32 0.0, %v6846
    %v6848 = vpop.f32.mrf.mxu0
    %v6849 = vadd.f32 0.0, %v6848
    %v6850 = vpop.f32.mrf.mxu0
    %v6851 = vadd.f32 0.0, %v6850
    %6852 = vmatprep.mubr.bf16.mxu0 %v5403
    %6853 = vmatmul.mubr.bf16.gmra.mxu0 %v5402
    %v6854 = vpop.f32.mrf.mxu0
    %v6855 = vadd.f32 0.0, %v6854
    %v6856 = vpop.f32.mrf.mxu0
    %v6857 = vadd.f32 0.0, %v6856
    %v6858 = vpop.f32.mrf.mxu0
    %v6859 = vadd.f32 0.0, %v6858
    %v6860 = vpop.f32.mrf.mxu0
    %v6861 = vadd.f32 0.0, %v6860
    %6862 = vmatprep.mubr.bf16.mxu0 %v5411
    %6863 = vmatmul.mubr.bf16.gmra.mxu0 %v5410
    %v6864 = vpop.f32.mrf.mxu0
    %v6865 = vadd.f32 0.0, %v6864
    %v6866 = vpop.f32.mrf.mxu0
    %v6867 = vadd.f32 0.0, %v6866
    %v6868 = vpop.f32.mrf.mxu0
    %v6869 = vadd.f32 0.0, %v6868
    %v6870 = vpop.f32.mrf.mxu0
    %v6871 = vadd.f32 0.0, %v6870
    %6872 = vmatprep.mubr.bf16.mxu0 %v5419
    %6873 = vmatmul.mubr.bf16.gmra.mxu0 %v5418
    %v6874 = vpop.f32.mrf.mxu0
    %v6875 = vadd.f32 0.0, %v6874
    %v6876 = vpop.f32.mrf.mxu0
    %v6877 = vadd.f32 0.0, %v6876
    %v6878 = vpop.f32.mrf.mxu0
    %v6879 = vadd.f32 0.0, %v6878
    %v6880 = vpop.f32.mrf.mxu0
    %v6881 = vadd.f32 0.0, %v6880
    %6882 = vdwg.mxu0
    %6883 = vmatprep.subr.bf16.mxu0 %v6351
    %6884 = vmatpush1.bf16.msra.mxu0 %v6350
    %6885 = vmatprep.subr.bf16.mxu0 %v6347
    %6886 = vmatpush1.bf16.msra.mxu0 %v6346
    %6887 = vmatprep.subr.bf16.mxu0 %v6343
    %6888 = vmatpush1.bf16.msra.mxu0 %v6342
    %6889 = vmatprep.subr.bf16.mxu0 %v6339
    %6890 = vmatpush1.bf16.msra.mxu0 %v6338
    %6891 = vmatprep.subr.bf16.mxu0 %v6335
    %6892 = vmatpush1.bf16.msra.mxu0 %v6334
    %6893 = vmatprep.subr.bf16.mxu0 %v6331
    %6894 = vmatpush1.bf16.msra.mxu0 %v6330
    %6895 = vmatprep.subr.bf16.mxu0 %v6327
    %6896 = vmatpush1.bf16.msra.mxu0 %v6326
    %6897 = vmatprep.subr.bf16.mxu0 %v6323
    %6898 = vmatpush1.bf16.msra.mxu0 %v6322
    %6899 = vmatprep.subr.bf16.mxu0 %v6383
    %6900 = vmatpush2.bf16.msra.mxu0 %v6382
    %6901 = vmatprep.subr.bf16.mxu0 %v6379
    %6902 = vmatpush2.bf16.msra.mxu0 %v6378
    %6903 = vmatprep.subr.bf16.mxu0 %v6375
    %6904 = vmatpush2.bf16.msra.mxu0 %v6374
    %6905 = vmatprep.subr.bf16.mxu0 %v6371
    %6906 = vmatpush2.bf16.msra.mxu0 %v6370
    %6907 = vmatprep.subr.bf16.mxu0 %v6367
    %6908 = vmatpush2.bf16.msra.mxu0 %v6366
    %6909 = vmatprep.subr.bf16.mxu0 %v6363
    %6910 = vmatpush2.bf16.msra.mxu0 %v6362
    %6911 = vmatprep.subr.bf16.mxu0 %v6359
    %6912 = vmatpush2.bf16.msra.mxu0 %v6358
    %6913 = vmatprep.subr.bf16.mxu0 %v6355
    %6914 = vmatpush2.bf16.msra.mxu0 %v6354
    %6915 = vmatprep.mubr.bf16.mxu0 %v5365
    %6916 = vmatmul.mubr.bf16.gmra.mxu0 %v5364
    %v6917 = vpop.f32.mrf.mxu0
    %v6918 = vadd.f32 %v6805, %v6917
    %v6919 = vpop.f32.mrf.mxu0
    %v6920 = vadd.f32 %v6807, %v6919
    %v6921 = vpop.f32.mrf.mxu0
    %v6922 = vadd.f32 %v6809, %v6921
    %v6923 = vpop.f32.mrf.mxu0
    %v6924 = vadd.f32 %v6811, %v6923
    %6925 = vmatprep.mubr.bf16.mxu0 %v5373
    %6926 = vmatmul.mubr.bf16.gmra.mxu0 %v5372
    %v6927 = vpop.f32.mrf.mxu0
    %v6928 = vadd.f32 %v6815, %v6927
    %v6929 = vpop.f32.mrf.mxu0
    %v6930 = vadd.f32 %v6817, %v6929
    %v6931 = vpop.f32.mrf.mxu0
    %v6932 = vadd.f32 %v6819, %v6931
    %v6933 = vpop.f32.mrf.mxu0
    %v6934 = vadd.f32 %v6821, %v6933
    %6935 = vmatprep.mubr.bf16.mxu0 %v5381
    %6936 = vmatmul.mubr.bf16.gmra.mxu0 %v5380
    %v6937 = vpop.f32.mrf.mxu0
    %v6938 = vadd.f32 %v6825, %v6937
    %v6939 = vpop.f32.mrf.mxu0
    %v6940 = vadd.f32 %v6827, %v6939
    %v6941 = vpop.f32.mrf.mxu0
    %v6942 = vadd.f32 %v6829, %v6941
    %v6943 = vpop.f32.mrf.mxu0
    %v6944 = vadd.f32 %v6831, %v6943
    %6945 = vmatprep.mubr.bf16.mxu0 %v5389
    %6946 = vmatmul.mubr.bf16.gmra.mxu0 %v5388
    %v6947 = vpop.f32.mrf.mxu0
    %v6948 = vadd.f32 %v6835, %v6947
    %v6949 = vpop.f32.mrf.mxu0
    %v6950 = vadd.f32 %v6837, %v6949
    %v6951 = vpop.f32.mrf.mxu0
    %v6952 = vadd.f32 %v6839, %v6951
    %v6953 = vpop.f32.mrf.mxu0
    %v6954 = vadd.f32 %v6841, %v6953
    %6955 = vmatprep.mubr.bf16.mxu0 %v5397
    %6956 = vmatmul.mubr.bf16.gmra.mxu0 %v5396
    %v6957 = vpop.f32.mrf.mxu0
    %v6958 = vadd.f32 %v6845, %v6957
    %v6959 = vpop.f32.mrf.mxu0
    %v6960 = vadd.f32 %v6847, %v6959
    %v6961 = vpop.f32.mrf.mxu0
    %v6962 = vadd.f32 %v6849, %v6961
    %v6963 = vpop.f32.mrf.mxu0
    %v6964 = vadd.f32 %v6851, %v6963
    %6965 = vmatprep.mubr.bf16.mxu0 %v5405
    %6966 = vmatmul.mubr.bf16.gmra.mxu0 %v5404
    %v6967 = vpop.f32.mrf.mxu0
    %v6968 = vadd.f32 %v6855, %v6967
    %v6969 = vpop.f32.mrf.mxu0
    %v6970 = vadd.f32 %v6857, %v6969
    %v6971 = vpop.f32.mrf.mxu0
    %v6972 = vadd.f32 %v6859, %v6971
    %v6973 = vpop.f32.mrf.mxu0
    %v6974 = vadd.f32 %v6861, %v6973
    %6975 = vmatprep.mubr.bf16.mxu0 %v5413
    %6976 = vmatmul.mubr.bf16.gmra.mxu0 %v5412
    %v6977 = vpop.f32.mrf.mxu0
    %v6978 = vadd.f32 %v6865, %v6977
    %v6979 = vpop.f32.mrf.mxu0
    %v6980 = vadd.f32 %v6867, %v6979
    %v6981 = vpop.f32.mrf.mxu0
    %v6982 = vadd.f32 %v6869, %v6981
    %v6983 = vpop.f32.mrf.mxu0
    %v6984 = vadd.f32 %v6871, %v6983
    %6985 = vmatprep.mubr.bf16.mxu0 %v5421
    %6986 = vmatmul.mubr.bf16.gmra.mxu0 %v5420
    %v6987 = vpop.f32.mrf.mxu0
    %v6988 = vadd.f32 %v6875, %v6987
    %v6989 = vpop.f32.mrf.mxu0
    %v6990 = vadd.f32 %v6877, %v6989
    %v6991 = vpop.f32.mrf.mxu0
    %v6992 = vadd.f32 %v6879, %v6991
    %v6993 = vpop.f32.mrf.mxu0
    %v6994 = vadd.f32 %v6881, %v6993
    %6995 = vdwg.mxu0
    %6996 = vmatprep.subr.bf16.mxu0 %v6415
    %6997 = vmatpush1.bf16.msra.mxu0 %v6414
    %6998 = vmatprep.subr.bf16.mxu0 %v6411
    %6999 = vmatpush1.bf16.msra.mxu0 %v6410
    %7000 = vmatprep.subr.bf16.mxu0 %v6407
    %7001 = vmatpush1.bf16.msra.mxu0 %v6406
    %7002 = vmatprep.subr.bf16.mxu0 %v6403
    %7003 = vmatpush1.bf16.msra.mxu0 %v6402
    %7004 = vmatprep.subr.bf16.mxu0 %v6399
    %7005 = vmatpush1.bf16.msra.mxu0 %v6398
    %7006 = vmatprep.subr.bf16.mxu0 %v6395
    %7007 = vmatpush1.bf16.msra.mxu0 %v6394
    %7008 = vmatprep.subr.bf16.mxu0 %v6391
    %7009 = vmatpush1.bf16.msra.mxu0 %v6390
    %7010 = vmatprep.subr.bf16.mxu0 %v6387
    %7011 = vmatpush1.bf16.msra.mxu0 %v6386
    %7012 = vmatprep.subr.bf16.mxu0 %v6447
    %7013 = vmatpush2.bf16.msra.mxu0 %v6446
    %7014 = vmatprep.subr.bf16.mxu0 %v6443
    %7015 = vmatpush2.bf16.msra.mxu0 %v6442
    %7016 = vmatprep.subr.bf16.mxu0 %v6439
    %7017 = vmatpush2.bf16.msra.mxu0 %v6438
    %7018 = vmatprep.subr.bf16.mxu0 %v6435
    %7019 = vmatpush2.bf16.msra.mxu0 %v6434
    %7020 = vmatprep.subr.bf16.mxu0 %v6431
    %7021 = vmatpush2.bf16.msra.mxu0 %v6430
    %7022 = vmatprep.subr.bf16.mxu0 %v6427
    %7023 = vmatpush2.bf16.msra.mxu0 %v6426
    %7024 = vmatprep.subr.bf16.mxu0 %v6423
    %7025 = vmatpush2.bf16.msra.mxu0 %v6422
    %7026 = vmatprep.subr.bf16.mxu0 %v6419
    %7027 = vmatpush2.bf16.msra.mxu0 %v6418
    %7028 = vmatprep.mubr.bf16.mxu0 %v5367
    %7029 = vmatmul.mubr.bf16.gmra.mxu0 %v5366
    %v7030 = vpop.f32.mrf.mxu0
    %v7031 = vadd.f32 %v6918, %v7030
    %v7032 = vpop.f32.mrf.mxu0
    %v7033 = vadd.f32 %v6920, %v7032
    %v7034 = vpop.f32.mrf.mxu0
    %v7035 = vadd.f32 %v6922, %v7034
    %v7036 = vpop.f32.mrf.mxu0
    %v7037 = vadd.f32 %v6924, %v7036
    %7038 = vmatprep.mubr.bf16.mxu0 %v5375
    %7039 = vmatmul.mubr.bf16.gmra.mxu0 %v5374
    %v7040 = vpop.f32.mrf.mxu0
    %v7041 = vadd.f32 %v6928, %v7040
    %v7042 = vpop.f32.mrf.mxu0
    %v7043 = vadd.f32 %v6930, %v7042
    %v7044 = vpop.f32.mrf.mxu0
    %v7045 = vadd.f32 %v6932, %v7044
    %v7046 = vpop.f32.mrf.mxu0
    %v7047 = vadd.f32 %v6934, %v7046
    %7048 = vmatprep.mubr.bf16.mxu0 %v5383
    %7049 = vmatmul.mubr.bf16.gmra.mxu0 %v5382
    %v7050 = vpop.f32.mrf.mxu0
    %v7051 = vadd.f32 %v6938, %v7050
    %v7052 = vpop.f32.mrf.mxu0
    %v7053 = vadd.f32 %v6940, %v7052
    %v7054 = vpop.f32.mrf.mxu0
    %v7055 = vadd.f32 %v6942, %v7054
    %v7056 = vpop.f32.mrf.mxu0
    %v7057 = vadd.f32 %v6944, %v7056
    %7058 = vmatprep.mubr.bf16.mxu0 %v5391
    %7059 = vmatmul.mubr.bf16.gmra.mxu0 %v5390
    %v7060 = vpop.f32.mrf.mxu0
    %v7061 = vadd.f32 %v6948, %v7060
    %v7062 = vpop.f32.mrf.mxu0
    %v7063 = vadd.f32 %v6950, %v7062
    %v7064 = vpop.f32.mrf.mxu0
    %v7065 = vadd.f32 %v6952, %v7064
    %v7066 = vpop.f32.mrf.mxu0
    %v7067 = vadd.f32 %v6954, %v7066
    %7068 = vmatprep.mubr.bf16.mxu0 %v5399
    %7069 = vmatmul.mubr.bf16.gmra.mxu0 %v5398
    %v7070 = vpop.f32.mrf.mxu0
    %v7071 = vadd.f32 %v6958, %v7070
    %v7072 = vpop.f32.mrf.mxu0
    %v7073 = vadd.f32 %v6960, %v7072
    %v7074 = vpop.f32.mrf.mxu0
    %v7075 = vadd.f32 %v6962, %v7074
    %v7076 = vpop.f32.mrf.mxu0
    %v7077 = vadd.f32 %v6964, %v7076
    %7078 = vmatprep.mubr.bf16.mxu0 %v5407
    %7079 = vmatmul.mubr.bf16.gmra.mxu0 %v5406
    %v7080 = vpop.f32.mrf.mxu0
    %v7081 = vadd.f32 %v6968, %v7080
    %v7082 = vpop.f32.mrf.mxu0
    %v7083 = vadd.f32 %v6970, %v7082
    %v7084 = vpop.f32.mrf.mxu0
    %v7085 = vadd.f32 %v6972, %v7084
    %v7086 = vpop.f32.mrf.mxu0
    %v7087 = vadd.f32 %v6974, %v7086
    %7088 = vmatprep.mubr.bf16.mxu0 %v5415
    %7089 = vmatmul.mubr.bf16.gmra.mxu0 %v5414
    %v7090 = vpop.f32.mrf.mxu0
    %v7091 = vadd.f32 %v6978, %v7090
    %v7092 = vpop.f32.mrf.mxu0
    %v7093 = vadd.f32 %v6980, %v7092
    %v7094 = vpop.f32.mrf.mxu0
    %v7095 = vadd.f32 %v6982, %v7094
    %v7096 = vpop.f32.mrf.mxu0
    %v7097 = vadd.f32 %v6984, %v7096
    %7098 = vmatprep.mubr.bf16.mxu0 %v5423
    %7099 = vmatmul.mubr.bf16.gmra.mxu0 %v5422
    %v7100 = vpop.f32.mrf.mxu0
    %v7101 = vadd.f32 %v6988, %v7100
    %v7102 = vpop.f32.mrf.mxu0
    %v7103 = vadd.f32 %v6990, %v7102
    %v7104 = vpop.f32.mrf.mxu0
    %v7105 = vadd.f32 %v6992, %v7104
    %v7106 = vpop.f32.mrf.mxu0
    %v7107 = vadd.f32 %v6994, %v7106
    %7108 = vdwg.mxu0
    %7109 = vmatprep.subr.bf16.mxu0 %v6479
    %7110 = vmatpush1.bf16.msra.mxu0 %v6478
    %7111 = vmatprep.subr.bf16.mxu0 %v6475
    %7112 = vmatpush1.bf16.msra.mxu0 %v6474
    %7113 = vmatprep.subr.bf16.mxu0 %v6471
    %7114 = vmatpush1.bf16.msra.mxu0 %v6470
    %7115 = vmatprep.subr.bf16.mxu0 %v6467
    %7116 = vmatpush1.bf16.msra.mxu0 %v6466
    %7117 = vmatprep.subr.bf16.mxu0 %v6463
    %7118 = vmatpush1.bf16.msra.mxu0 %v6462
    %7119 = vmatprep.subr.bf16.mxu0 %v6459
    %7120 = vmatpush1.bf16.msra.mxu0 %v6458
    %7121 = vmatprep.subr.bf16.mxu0 %v6455
    %7122 = vmatpush1.bf16.msra.mxu0 %v6454
    %7123 = vmatprep.subr.bf16.mxu0 %v6451
    %7124 = vmatpush1.bf16.msra.mxu0 %v6450
    %7125 = vmatprep.subr.bf16.mxu0 %v6511
    %7126 = vmatpush2.bf16.msra.mxu0 %v6510
    %7127 = vmatprep.subr.bf16.mxu0 %v6507
    %7128 = vmatpush2.bf16.msra.mxu0 %v6506
    %7129 = vmatprep.subr.bf16.mxu0 %v6503
    %7130 = vmatpush2.bf16.msra.mxu0 %v6502
    %7131 = vmatprep.subr.bf16.mxu0 %v6499
    %7132 = vmatpush2.bf16.msra.mxu0 %v6498
    %7133 = vmatprep.subr.bf16.mxu0 %v6495
    %7134 = vmatpush2.bf16.msra.mxu0 %v6494
    %7135 = vmatprep.subr.bf16.mxu0 %v6491
    %7136 = vmatpush2.bf16.msra.mxu0 %v6490
    %7137 = vmatprep.subr.bf16.mxu0 %v6487
    %7138 = vmatpush2.bf16.msra.mxu0 %v6486
    %7139 = vmatprep.subr.bf16.mxu0 %v6483
    %7140 = vmatpush2.bf16.msra.mxu0 %v6482
    %7141 = vmatprep.mubr.bf16.mxu0 %v5369
    %7142 = vmatmul.mubr.bf16.gmra.mxu0 %v5368
    %v7143 = vpop.f32.mrf.mxu0
    %v7144 = vadd.f32 %v7031, %v7143
    %v7145 = vpop.f32.mrf.mxu0
    %v7146 = vadd.f32 %v7033, %v7145
    %v7147 = vpop.f32.mrf.mxu0
    %v7148 = vadd.f32 %v7035, %v7147
    %v7149 = vpop.f32.mrf.mxu0
    %v7150 = vadd.f32 %v7037, %v7149
    %7151 = vmatprep.mubr.bf16.mxu0 %v5377
    %7152 = vmatmul.mubr.bf16.gmra.mxu0 %v5376
    %v7153 = vpop.f32.mrf.mxu0
    %v7154 = vadd.f32 %v7041, %v7153
    %v7155 = vpop.f32.mrf.mxu0
    %v7156 = vadd.f32 %v7043, %v7155
    %v7157 = vpop.f32.mrf.mxu0
    %v7158 = vadd.f32 %v7045, %v7157
    %v7159 = vpop.f32.mrf.mxu0
    %v7160 = vadd.f32 %v7047, %v7159
    %7161 = vmatprep.mubr.bf16.mxu0 %v5385
    %7162 = vmatmul.mubr.bf16.gmra.mxu0 %v5384
    %v7163 = vpop.f32.mrf.mxu0
    %v7164 = vadd.f32 %v7051, %v7163
    %v7165 = vpop.f32.mrf.mxu0
    %v7166 = vadd.f32 %v7053, %v7165
    %v7167 = vpop.f32.mrf.mxu0
    %v7168 = vadd.f32 %v7055, %v7167
    %v7169 = vpop.f32.mrf.mxu0
    %v7170 = vadd.f32 %v7057, %v7169
    %7171 = vmatprep.mubr.bf16.mxu0 %v5393
    %7172 = vmatmul.mubr.bf16.gmra.mxu0 %v5392
    %v7173 = vpop.f32.mrf.mxu0
    %v7174 = vadd.f32 %v7061, %v7173
    %v7175 = vpop.f32.mrf.mxu0
    %v7176 = vadd.f32 %v7063, %v7175
    %v7177 = vpop.f32.mrf.mxu0
    %v7178 = vadd.f32 %v7065, %v7177
    %v7179 = vpop.f32.mrf.mxu0
    %v7180 = vadd.f32 %v7067, %v7179
    %7181 = vmatprep.mubr.bf16.mxu0 %v5401
    %7182 = vmatmul.mubr.bf16.gmra.mxu0 %v5400
    %v7183 = vpop.f32.mrf.mxu0
    %v7184 = vadd.f32 %v7071, %v7183
    %v7185 = vpop.f32.mrf.mxu0
    %v7186 = vadd.f32 %v7073, %v7185
    %v7187 = vpop.f32.mrf.mxu0
    %v7188 = vadd.f32 %v7075, %v7187
    %v7189 = vpop.f32.mrf.mxu0
    %v7190 = vadd.f32 %v7077, %v7189
    %7191 = vmatprep.mubr.bf16.mxu0 %v5409
    %7192 = vmatmul.mubr.bf16.gmra.mxu0 %v5408
    %v7193 = vpop.f32.mrf.mxu0
    %v7194 = vadd.f32 %v7081, %v7193
    %v7195 = vpop.f32.mrf.mxu0
    %v7196 = vadd.f32 %v7083, %v7195
    %v7197 = vpop.f32.mrf.mxu0
    %v7198 = vadd.f32 %v7085, %v7197
    %v7199 = vpop.f32.mrf.mxu0
    %v7200 = vadd.f32 %v7087, %v7199
    %7201 = vmatprep.mubr.bf16.mxu0 %v5417
    %7202 = vmatmul.mubr.bf16.gmra.mxu0 %v5416
    %v7203 = vpop.f32.mrf.mxu0
    %v7204 = vadd.f32 %v7091, %v7203
    %v7205 = vpop.f32.mrf.mxu0
    %v7206 = vadd.f32 %v7093, %v7205
    %v7207 = vpop.f32.mrf.mxu0
    %v7208 = vadd.f32 %v7095, %v7207
    %v7209 = vpop.f32.mrf.mxu0
    %v7210 = vadd.f32 %v7097, %v7209
    %7211 = vmatprep.mubr.bf16.mxu0 %v5425
    %7212 = vmatmul.mubr.bf16.gmra.mxu0 %v5424
    %v7213 = vpop.f32.mrf.mxu0
    %v7214 = vadd.f32 %v7101, %v7213
    %v7215 = vpop.f32.mrf.mxu0
    %v7216 = vadd.f32 %v7103, %v7215
    %v7217 = vpop.f32.mrf.mxu0
    %v7218 = vadd.f32 %v7105, %v7217
    %v7219 = vpop.f32.mrf.mxu0
    %v7220 = vadd.f32 %v7107, %v7219
    %7221 = vdwg.mxu0
    %7222 = vmatprep.subr.bf16.mxu0 %v6289
    %7223 = vmatpush1.bf16.msra.mxu0 %v6288
    %7224 = vmatprep.subr.bf16.mxu0 %v6285
    %7225 = vmatpush1.bf16.msra.mxu0 %v6284
    %7226 = vmatprep.subr.bf16.mxu0 %v6281
    %7227 = vmatpush1.bf16.msra.mxu0 %v6280
    %7228 = vmatprep.subr.bf16.mxu0 %v6277
    %7229 = vmatpush1.bf16.msra.mxu0 %v6276
    %7230 = vmatprep.subr.bf16.mxu0 %v6273
    %7231 = vmatpush1.bf16.msra.mxu0 %v6272
    %7232 = vmatprep.subr.bf16.mxu0 %v6269
    %7233 = vmatpush1.bf16.msra.mxu0 %v6268
    %7234 = vmatprep.subr.bf16.mxu0 %v6265
    %7235 = vmatpush1.bf16.msra.mxu0 %v6264
    %7236 = vmatprep.subr.bf16.mxu0 %v6261
    %7237 = vmatpush1.bf16.msra.mxu0 %v6260
    %7238 = vmatprep.subr.bf16.mxu0 %v6321
    %7239 = vmatpush2.bf16.msra.mxu0 %v6320
    %7240 = vmatprep.subr.bf16.mxu0 %v6317
    %7241 = vmatpush2.bf16.msra.mxu0 %v6316
    %7242 = vmatprep.subr.bf16.mxu0 %v6313
    %7243 = vmatpush2.bf16.msra.mxu0 %v6312
    %7244 = vmatprep.subr.bf16.mxu0 %v6309
    %7245 = vmatpush2.bf16.msra.mxu0 %v6308
    %7246 = vmatprep.subr.bf16.mxu0 %v6305
    %7247 = vmatpush2.bf16.msra.mxu0 %v6304
    %7248 = vmatprep.subr.bf16.mxu0 %v6301
    %7249 = vmatpush2.bf16.msra.mxu0 %v6300
    %7250 = vmatprep.subr.bf16.mxu0 %v6297
    %7251 = vmatpush2.bf16.msra.mxu0 %v6296
    %7252 = vmatprep.subr.bf16.mxu0 %v6293
    %7253 = vmatpush2.bf16.msra.mxu0 %v6292
    %7254 = vmatprep.mubr.bf16.mxu0 %v5363
    %7255 = vmatmul.mubr.bf16.gmra.mxu0 %v5362
    %v7256 = vpop.f32.mrf.mxu0
    %v7257 = vadd.f32 0.0, %v7256
    %v7258 = vpop.f32.mrf.mxu0
    %v7259 = vadd.f32 0.0, %v7258
    %v7260 = vpop.f32.mrf.mxu0
    %v7261 = vadd.f32 0.0, %v7260
    %v7262 = vpop.f32.mrf.mxu0
    %v7263 = vadd.f32 0.0, %v7262
    %7264 = vmatprep.mubr.bf16.mxu0 %v5371
    %7265 = vmatmul.mubr.bf16.gmra.mxu0 %v5370
    %v7266 = vpop.f32.mrf.mxu0
    %v7267 = vadd.f32 0.0, %v7266
    %v7268 = vpop.f32.mrf.mxu0
    %v7269 = vadd.f32 0.0, %v7268
    %v7270 = vpop.f32.mrf.mxu0
    %v7271 = vadd.f32 0.0, %v7270
    %v7272 = vpop.f32.mrf.mxu0
    %v7273 = vadd.f32 0.0, %v7272
    %7274 = vmatprep.mubr.bf16.mxu0 %v5379
    %7275 = vmatmul.mubr.bf16.gmra.mxu0 %v5378
    %v7276 = vpop.f32.mrf.mxu0
    %v7277 = vadd.f32 0.0, %v7276
    %v7278 = vpop.f32.mrf.mxu0
    %v7279 = vadd.f32 0.0, %v7278
    %v7280 = vpop.f32.mrf.mxu0
    %v7281 = vadd.f32 0.0, %v7280
    %v7282 = vpop.f32.mrf.mxu0
    %v7283 = vadd.f32 0.0, %v7282
    %7284 = vmatprep.mubr.bf16.mxu0 %v5387
    %7285 = vmatmul.mubr.bf16.gmra.mxu0 %v5386
    %v7286 = vpop.f32.mrf.mxu0
    %v7287 = vadd.f32 0.0, %v7286
    %v7288 = vpop.f32.mrf.mxu0
    %v7289 = vadd.f32 0.0, %v7288
    %v7290 = vpop.f32.mrf.mxu0
    %v7291 = vadd.f32 0.0, %v7290
    %v7292 = vpop.f32.mrf.mxu0
    %v7293 = vadd.f32 0.0, %v7292
    %7294 = vmatprep.mubr.bf16.mxu0 %v5395
    %7295 = vmatmul.mubr.bf16.gmra.mxu0 %v5394
    %v7296 = vpop.f32.mrf.mxu0
    %v7297 = vadd.f32 0.0, %v7296
    %v7298 = vpop.f32.mrf.mxu0
    %v7299 = vadd.f32 0.0, %v7298
    %v7300 = vpop.f32.mrf.mxu0
    %v7301 = vadd.f32 0.0, %v7300
    %v7302 = vpop.f32.mrf.mxu0
    %v7303 = vadd.f32 0.0, %v7302
    %7304 = vmatprep.mubr.bf16.mxu0 %v5403
    %7305 = vmatmul.mubr.bf16.gmra.mxu0 %v5402
    %v7306 = vpop.f32.mrf.mxu0
    %v7307 = vadd.f32 0.0, %v7306
    %v7308 = vpop.f32.mrf.mxu0
    %v7309 = vadd.f32 0.0, %v7308
    %v7310 = vpop.f32.mrf.mxu0
    %v7311 = vadd.f32 0.0, %v7310
    %v7312 = vpop.f32.mrf.mxu0
    %v7313 = vadd.f32 0.0, %v7312
    %7314 = vmatprep.mubr.bf16.mxu0 %v5411
    %7315 = vmatmul.mubr.bf16.gmra.mxu0 %v5410
    %v7316 = vpop.f32.mrf.mxu0
    %v7317 = vadd.f32 0.0, %v7316
    %v7318 = vpop.f32.mrf.mxu0
    %v7319 = vadd.f32 0.0, %v7318
    %v7320 = vpop.f32.mrf.mxu0
    %v7321 = vadd.f32 0.0, %v7320
    %v7322 = vpop.f32.mrf.mxu0
    %v7323 = vadd.f32 0.0, %v7322
    %7324 = vmatprep.mubr.bf16.mxu0 %v5419
    %7325 = vmatmul.mubr.bf16.gmra.mxu0 %v5418
    %v7326 = vpop.f32.mrf.mxu0
    %v7327 = vadd.f32 0.0, %v7326
    %v7328 = vpop.f32.mrf.mxu0
    %v7329 = vadd.f32 0.0, %v7328
    %v7330 = vpop.f32.mrf.mxu0
    %v7331 = vadd.f32 0.0, %v7330
    %v7332 = vpop.f32.mrf.mxu0
    %v7333 = vadd.f32 0.0, %v7332
    %7334 = vdwg.mxu0
    %7335 = vmatprep.subr.bf16.mxu0 %v6353
    %7336 = vmatpush1.bf16.msra.mxu0 %v6352
    %7337 = vmatprep.subr.bf16.mxu0 %v6349
    %7338 = vmatpush1.bf16.msra.mxu0 %v6348
    %7339 = vmatprep.subr.bf16.mxu0 %v6345
    %7340 = vmatpush1.bf16.msra.mxu0 %v6344
    %7341 = vmatprep.subr.bf16.mxu0 %v6341
    %7342 = vmatpush1.bf16.msra.mxu0 %v6340
    %7343 = vmatprep.subr.bf16.mxu0 %v6337
    %7344 = vmatpush1.bf16.msra.mxu0 %v6336
    %7345 = vmatprep.subr.bf16.mxu0 %v6333
    %7346 = vmatpush1.bf16.msra.mxu0 %v6332
    %7347 = vmatprep.subr.bf16.mxu0 %v6329
    %7348 = vmatpush1.bf16.msra.mxu0 %v6328
    %7349 = vmatprep.subr.bf16.mxu0 %v6325
    %7350 = vmatpush1.bf16.msra.mxu0 %v6324
    %7351 = vmatprep.subr.bf16.mxu0 %v6385
    %7352 = vmatpush2.bf16.msra.mxu0 %v6384
    %7353 = vmatprep.subr.bf16.mxu0 %v6381
    %7354 = vmatpush2.bf16.msra.mxu0 %v6380
    %7355 = vmatprep.subr.bf16.mxu0 %v6377
    %7356 = vmatpush2.bf16.msra.mxu0 %v6376
    %7357 = vmatprep.subr.bf16.mxu0 %v6373
    %7358 = vmatpush2.bf16.msra.mxu0 %v6372
    %7359 = vmatprep.subr.bf16.mxu0 %v6369
    %7360 = vmatpush2.bf16.msra.mxu0 %v6368
    %7361 = vmatprep.subr.bf16.mxu0 %v6365
    %7362 = vmatpush2.bf16.msra.mxu0 %v6364
    %7363 = vmatprep.subr.bf16.mxu0 %v6361
    %7364 = vmatpush2.bf16.msra.mxu0 %v6360
    %7365 = vmatprep.subr.bf16.mxu0 %v6357
    %7366 = vmatpush2.bf16.msra.mxu0 %v6356
    %7367 = vmatprep.mubr.bf16.mxu0 %v5365
    %7368 = vmatmul.mubr.bf16.gmra.mxu0 %v5364
    %v7369 = vpop.f32.mrf.mxu0
    %v7370 = vadd.f32 %v7257, %v7369
    %v7371 = vpop.f32.mrf.mxu0
    %v7372 = vadd.f32 %v7259, %v7371
    %v7373 = vpop.f32.mrf.mxu0
    %v7374 = vadd.f32 %v7261, %v7373
    %v7375 = vpop.f32.mrf.mxu0
    %v7376 = vadd.f32 %v7263, %v7375
    %7377 = vmatprep.mubr.bf16.mxu0 %v5373
    %7378 = vmatmul.mubr.bf16.gmra.mxu0 %v5372
    %v7379 = vpop.f32.mrf.mxu0
    %v7380 = vadd.f32 %v7267, %v7379
    %v7381 = vpop.f32.mrf.mxu0
    %v7382 = vadd.f32 %v7269, %v7381
    %v7383 = vpop.f32.mrf.mxu0
    %v7384 = vadd.f32 %v7271, %v7383
    %v7385 = vpop.f32.mrf.mxu0
    %v7386 = vadd.f32 %v7273, %v7385
    %7387 = vmatprep.mubr.bf16.mxu0 %v5381
    %7388 = vmatmul.mubr.bf16.gmra.mxu0 %v5380
    %v7389 = vpop.f32.mrf.mxu0
    %v7390 = vadd.f32 %v7277, %v7389
    %v7391 = vpop.f32.mrf.mxu0
    %v7392 = vadd.f32 %v7279, %v7391
    %v7393 = vpop.f32.mrf.mxu0
    %v7394 = vadd.f32 %v7281, %v7393
    %v7395 = vpop.f32.mrf.mxu0
    %v7396 = vadd.f32 %v7283, %v7395
    %7397 = vmatprep.mubr.bf16.mxu0 %v5389
    %7398 = vmatmul.mubr.bf16.gmra.mxu0 %v5388
    %v7399 = vpop.f32.mrf.mxu0
    %v7400 = vadd.f32 %v7287, %v7399
    %v7401 = vpop.f32.mrf.mxu0
    %v7402 = vadd.f32 %v7289, %v7401
    %v7403 = vpop.f32.mrf.mxu0
    %v7404 = vadd.f32 %v7291, %v7403
    %v7405 = vpop.f32.mrf.mxu0
    %v7406 = vadd.f32 %v7293, %v7405
    %7407 = vmatprep.mubr.bf16.mxu0 %v5397
    %7408 = vmatmul.mubr.bf16.gmra.mxu0 %v5396
    %v7409 = vpop.f32.mrf.mxu0
    %v7410 = vadd.f32 %v7297, %v7409
    %v7411 = vpop.f32.mrf.mxu0
    %v7412 = vadd.f32 %v7299, %v7411
    %v7413 = vpop.f32.mrf.mxu0
    %v7414 = vadd.f32 %v7301, %v7413
    %v7415 = vpop.f32.mrf.mxu0
    %v7416 = vadd.f32 %v7303, %v7415
    %7417 = vmatprep.mubr.bf16.mxu0 %v5405
    %7418 = vmatmul.mubr.bf16.gmra.mxu0 %v5404
    %v7419 = vpop.f32.mrf.mxu0
    %v7420 = vadd.f32 %v7307, %v7419
    %v7421 = vpop.f32.mrf.mxu0
    %v7422 = vadd.f32 %v7309, %v7421
    %v7423 = vpop.f32.mrf.mxu0
    %v7424 = vadd.f32 %v7311, %v7423
    %v7425 = vpop.f32.mrf.mxu0
    %v7426 = vadd.f32 %v7313, %v7425
    %7427 = vmatprep.mubr.bf16.mxu0 %v5413
    %7428 = vmatmul.mubr.bf16.gmra.mxu0 %v5412
    %v7429 = vpop.f32.mrf.mxu0
    %v7430 = vadd.f32 %v7317, %v7429
    %v7431 = vpop.f32.mrf.mxu0
    %v7432 = vadd.f32 %v7319, %v7431
    %v7433 = vpop.f32.mrf.mxu0
    %v7434 = vadd.f32 %v7321, %v7433
    %v7435 = vpop.f32.mrf.mxu0
    %v7436 = vadd.f32 %v7323, %v7435
    %7437 = vmatprep.mubr.bf16.mxu0 %v5421
    %7438 = vmatmul.mubr.bf16.gmra.mxu0 %v5420
    %v7439 = vpop.f32.mrf.mxu0
    %v7440 = vadd.f32 %v7327, %v7439
    %v7441 = vpop.f32.mrf.mxu0
    %v7442 = vadd.f32 %v7329, %v7441
    %v7443 = vpop.f32.mrf.mxu0
    %v7444 = vadd.f32 %v7331, %v7443
    %v7445 = vpop.f32.mrf.mxu0
    %v7446 = vadd.f32 %v7333, %v7445
    %7447 = vdwg.mxu0
    %7448 = vmatprep.subr.bf16.mxu0 %v6417
    %7449 = vmatpush1.bf16.msra.mxu0 %v6416
    %7450 = vmatprep.subr.bf16.mxu0 %v6413
    %7451 = vmatpush1.bf16.msra.mxu0 %v6412
    %7452 = vmatprep.subr.bf16.mxu0 %v6409
    %7453 = vmatpush1.bf16.msra.mxu0 %v6408
    %7454 = vmatprep.subr.bf16.mxu0 %v6405
    %7455 = vmatpush1.bf16.msra.mxu0 %v6404
    %7456 = vmatprep.subr.bf16.mxu0 %v6401
    %7457 = vmatpush1.bf16.msra.mxu0 %v6400
    %7458 = vmatprep.subr.bf16.mxu0 %v6397
    %7459 = vmatpush1.bf16.msra.mxu0 %v6396
    %7460 = vmatprep.subr.bf16.mxu0 %v6393
    %7461 = vmatpush1.bf16.msra.mxu0 %v6392
    %7462 = vmatprep.subr.bf16.mxu0 %v6389
    %7463 = vmatpush1.bf16.msra.mxu0 %v6388
    %7464 = vmatprep.subr.bf16.mxu0 %v6449
    %7465 = vmatpush2.bf16.msra.mxu0 %v6448
    %7466 = vmatprep.subr.bf16.mxu0 %v6445
    %7467 = vmatpush2.bf16.msra.mxu0 %v6444
    %7468 = vmatprep.subr.bf16.mxu0 %v6441
    %7469 = vmatpush2.bf16.msra.mxu0 %v6440
    %7470 = vmatprep.subr.bf16.mxu0 %v6437
    %7471 = vmatpush2.bf16.msra.mxu0 %v6436
    %7472 = vmatprep.subr.bf16.mxu0 %v6433
    %7473 = vmatpush2.bf16.msra.mxu0 %v6432
    %7474 = vmatprep.subr.bf16.mxu0 %v6429
    %7475 = vmatpush2.bf16.msra.mxu0 %v6428
    %7476 = vmatprep.subr.bf16.mxu0 %v6425
    %7477 = vmatpush2.bf16.msra.mxu0 %v6424
    %7478 = vmatprep.subr.bf16.mxu0 %v6421
    %7479 = vmatpush2.bf16.msra.mxu0 %v6420
    %7480 = vmatprep.mubr.bf16.mxu0 %v5367
    %7481 = vmatmul.mubr.bf16.gmra.mxu0 %v5366
    %v7482 = vpop.f32.mrf.mxu0
    %v7483 = vadd.f32 %v7370, %v7482
    %v7484 = vpop.f32.mrf.mxu0
    %v7485 = vadd.f32 %v7372, %v7484
    %v7486 = vpop.f32.mrf.mxu0
    %v7487 = vadd.f32 %v7374, %v7486
    %v7488 = vpop.f32.mrf.mxu0
    %v7489 = vadd.f32 %v7376, %v7488
    %7490 = vmatprep.mubr.bf16.mxu0 %v5375
    %7491 = vmatmul.mubr.bf16.gmra.mxu0 %v5374
    %v7492 = vpop.f32.mrf.mxu0
    %v7493 = vadd.f32 %v7380, %v7492
    %v7494 = vpop.f32.mrf.mxu0
    %v7495 = vadd.f32 %v7382, %v7494
    %v7496 = vpop.f32.mrf.mxu0
    %v7497 = vadd.f32 %v7384, %v7496
    %v7498 = vpop.f32.mrf.mxu0
    %v7499 = vadd.f32 %v7386, %v7498
    %7500 = vmatprep.mubr.bf16.mxu0 %v5383
    %7501 = vmatmul.mubr.bf16.gmra.mxu0 %v5382
    %v7502 = vpop.f32.mrf.mxu0
    %v7503 = vadd.f32 %v7390, %v7502
    %v7504 = vpop.f32.mrf.mxu0
    %v7505 = vadd.f32 %v7392, %v7504
    %v7506 = vpop.f32.mrf.mxu0
    %v7507 = vadd.f32 %v7394, %v7506
    %v7508 = vpop.f32.mrf.mxu0
    %v7509 = vadd.f32 %v7396, %v7508
    %7510 = vmatprep.mubr.bf16.mxu0 %v5391
    %7511 = vmatmul.mubr.bf16.gmra.mxu0 %v5390
    %v7512 = vpop.f32.mrf.mxu0
    %v7513 = vadd.f32 %v7400, %v7512
    %v7514 = vpop.f32.mrf.mxu0
    %v7515 = vadd.f32 %v7402, %v7514
    %v7516 = vpop.f32.mrf.mxu0
    %v7517 = vadd.f32 %v7404, %v7516
    %v7518 = vpop.f32.mrf.mxu0
    %v7519 = vadd.f32 %v7406, %v7518
    %7520 = vmatprep.mubr.bf16.mxu0 %v5399
    %7521 = vmatmul.mubr.bf16.gmra.mxu0 %v5398
    %v7522 = vpop.f32.mrf.mxu0
    %v7523 = vadd.f32 %v7410, %v7522
    %v7524 = vpop.f32.mrf.mxu0
    %v7525 = vadd.f32 %v7412, %v7524
    %v7526 = vpop.f32.mrf.mxu0
    %v7527 = vadd.f32 %v7414, %v7526
    %v7528 = vpop.f32.mrf.mxu0
    %v7529 = vadd.f32 %v7416, %v7528
    %7530 = vmatprep.mubr.bf16.mxu0 %v5407
    %7531 = vmatmul.mubr.bf16.gmra.mxu0 %v5406
    %v7532 = vpop.f32.mrf.mxu0
    %v7533 = vadd.f32 %v7420, %v7532
    %v7534 = vpop.f32.mrf.mxu0
    %v7535 = vadd.f32 %v7422, %v7534
    %v7536 = vpop.f32.mrf.mxu0
    %v7537 = vadd.f32 %v7424, %v7536
    %v7538 = vpop.f32.mrf.mxu0
    %v7539 = vadd.f32 %v7426, %v7538
    %7540 = vmatprep.mubr.bf16.mxu0 %v5415
    %7541 = vmatmul.mubr.bf16.gmra.mxu0 %v5414
    %v7542 = vpop.f32.mrf.mxu0
    %v7543 = vadd.f32 %v7430, %v7542
    %v7544 = vpop.f32.mrf.mxu0
    %v7545 = vadd.f32 %v7432, %v7544
    %v7546 = vpop.f32.mrf.mxu0
    %v7547 = vadd.f32 %v7434, %v7546
    %v7548 = vpop.f32.mrf.mxu0
    %v7549 = vadd.f32 %v7436, %v7548
    %7550 = vmatprep.mubr.bf16.mxu0 %v5423
    %7551 = vmatmul.mubr.bf16.gmra.mxu0 %v5422
    %v7552 = vpop.f32.mrf.mxu0
    %v7553 = vadd.f32 %v7440, %v7552
    %v7554 = vpop.f32.mrf.mxu0
    %v7555 = vadd.f32 %v7442, %v7554
    %v7556 = vpop.f32.mrf.mxu0
    %v7557 = vadd.f32 %v7444, %v7556
    %v7558 = vpop.f32.mrf.mxu0
    %v7559 = vadd.f32 %v7446, %v7558
    %7560 = vdwg.mxu0
    %7561 = vmatprep.subr.bf16.mxu0 %v6481
    %7562 = vmatpush1.bf16.msra.mxu0 %v6480
    %7563 = vmatprep.subr.bf16.mxu0 %v6477
    %7564 = vmatpush1.bf16.msra.mxu0 %v6476
    %7565 = vmatprep.subr.bf16.mxu0 %v6473
    %7566 = vmatpush1.bf16.msra.mxu0 %v6472
    %7567 = vmatprep.subr.bf16.mxu0 %v6469
    %7568 = vmatpush1.bf16.msra.mxu0 %v6468
    %7569 = vmatprep.subr.bf16.mxu0 %v6465
    %7570 = vmatpush1.bf16.msra.mxu0 %v6464
    %7571 = vmatprep.subr.bf16.mxu0 %v6461
    %7572 = vmatpush1.bf16.msra.mxu0 %v6460
    %7573 = vmatprep.subr.bf16.mxu0 %v6457
    %7574 = vmatpush1.bf16.msra.mxu0 %v6456
    %7575 = vmatprep.subr.bf16.mxu0 %v6453
    %7576 = vmatpush1.bf16.msra.mxu0 %v6452
    %7577 = vmatprep.subr.bf16.mxu0 %v6513
    %7578 = vmatpush2.bf16.msra.mxu0 %v6512
    %7579 = vmatprep.subr.bf16.mxu0 %v6509
    %7580 = vmatpush2.bf16.msra.mxu0 %v6508
    %7581 = vmatprep.subr.bf16.mxu0 %v6505
    %7582 = vmatpush2.bf16.msra.mxu0 %v6504
    %7583 = vmatprep.subr.bf16.mxu0 %v6501
    %7584 = vmatpush2.bf16.msra.mxu0 %v6500
    %7585 = vmatprep.subr.bf16.mxu0 %v6497
    %7586 = vmatpush2.bf16.msra.mxu0 %v6496
    %7587 = vmatprep.subr.bf16.mxu0 %v6493
    %7588 = vmatpush2.bf16.msra.mxu0 %v6492
    %7589 = vmatprep.subr.bf16.mxu0 %v6489
    %7590 = vmatpush2.bf16.msra.mxu0 %v6488
    %7591 = vmatprep.subr.bf16.mxu0 %v6485
    %7592 = vmatpush2.bf16.msra.mxu0 %v6484
    %7593 = vmatprep.mubr.bf16.mxu0 %v5369
    %7594 = vmatmul.mubr.bf16.gmra.mxu0 %v5368
    %v7595 = vpop.f32.mrf.mxu0
    %v7596 = vadd.f32 %v7483, %v7595
    %v7597 = vpop.f32.mrf.mxu0
    %v7598 = vadd.f32 %v7485, %v7597
    %v7599 = vpop.f32.mrf.mxu0
    %v7600 = vadd.f32 %v7487, %v7599
    %v7601 = vpop.f32.mrf.mxu0
    %v7602 = vadd.f32 %v7489, %v7601
    %7603 = vmatprep.mubr.bf16.mxu0 %v5377
    %7604 = vmatmul.mubr.bf16.gmra.mxu0 %v5376
    %v7605 = vpop.f32.mrf.mxu0
    %v7606 = vadd.f32 %v7493, %v7605
    %v7607 = vpop.f32.mrf.mxu0
    %v7608 = vadd.f32 %v7495, %v7607
    %v7609 = vpop.f32.mrf.mxu0
    %v7610 = vadd.f32 %v7497, %v7609
    %v7611 = vpop.f32.mrf.mxu0
    %v7612 = vadd.f32 %v7499, %v7611
    %7613 = vmatprep.mubr.bf16.mxu0 %v5385
    %7614 = vmatmul.mubr.bf16.gmra.mxu0 %v5384
    %v7615 = vpop.f32.mrf.mxu0
    %v7616 = vadd.f32 %v7503, %v7615
    %v7617 = vpop.f32.mrf.mxu0
    %v7618 = vadd.f32 %v7505, %v7617
    %v7619 = vpop.f32.mrf.mxu0
    %v7620 = vadd.f32 %v7507, %v7619
    %v7621 = vpop.f32.mrf.mxu0
    %v7622 = vadd.f32 %v7509, %v7621
    %7623 = vmatprep.mubr.bf16.mxu0 %v5393
    %7624 = vmatmul.mubr.bf16.gmra.mxu0 %v5392
    %v7625 = vpop.f32.mrf.mxu0
    %v7626 = vadd.f32 %v7513, %v7625
    %v7627 = vpop.f32.mrf.mxu0
    %v7628 = vadd.f32 %v7515, %v7627
    %v7629 = vpop.f32.mrf.mxu0
    %v7630 = vadd.f32 %v7517, %v7629
    %v7631 = vpop.f32.mrf.mxu0
    %v7632 = vadd.f32 %v7519, %v7631
    %7633 = vmatprep.mubr.bf16.mxu0 %v5401
    %7634 = vmatmul.mubr.bf16.gmra.mxu0 %v5400
    %v7635 = vpop.f32.mrf.mxu0
    %v7636 = vadd.f32 %v7523, %v7635
    %v7637 = vpop.f32.mrf.mxu0
    %v7638 = vadd.f32 %v7525, %v7637
    %v7639 = vpop.f32.mrf.mxu0
    %v7640 = vadd.f32 %v7527, %v7639
    %v7641 = vpop.f32.mrf.mxu0
    %v7642 = vadd.f32 %v7529, %v7641
    %7643 = vmatprep.mubr.bf16.mxu0 %v5409
    %7644 = vmatmul.mubr.bf16.gmra.mxu0 %v5408
    %v7645 = vpop.f32.mrf.mxu0
    %v7646 = vadd.f32 %v7533, %v7645
    %v7647 = vpop.f32.mrf.mxu0
    %v7648 = vadd.f32 %v7535, %v7647
    %v7649 = vpop.f32.mrf.mxu0
    %v7650 = vadd.f32 %v7537, %v7649
    %v7651 = vpop.f32.mrf.mxu0
    %v7652 = vadd.f32 %v7539, %v7651
    %7653 = vmatprep.mubr.bf16.mxu0 %v5417
    %7654 = vmatmul.mubr.bf16.gmra.mxu0 %v5416
    %v7655 = vpop.f32.mrf.mxu0
    %v7656 = vadd.f32 %v7543, %v7655
    %v7657 = vpop.f32.mrf.mxu0
    %v7658 = vadd.f32 %v7545, %v7657
    %v7659 = vpop.f32.mrf.mxu0
    %v7660 = vadd.f32 %v7547, %v7659
    %v7661 = vpop.f32.mrf.mxu0
    %v7662 = vadd.f32 %v7549, %v7661
    %7663 = vmatprep.mubr.bf16.mxu0 %v5425
    %7664 = vmatmul.mubr.bf16.gmra.mxu0 %v5424
    %v7665 = vpop.f32.mrf.mxu0
    %v7666 = vadd.f32 %v7553, %v7665
    %v7667 = vpop.f32.mrf.mxu0
    %v7668 = vadd.f32 %v7555, %v7667
    %v7669 = vpop.f32.mrf.mxu0
    %v7670 = vadd.f32 %v7557, %v7669
    %v7671 = vpop.f32.mrf.mxu0
    %v7672 = vadd.f32 %v7559, %v7671
    %7673 = vdwg.mxu0
    %v7674 = vxor.u32 %v7144, 2147483648
    %v7675 = vxor.u32 %v7146, 2147483648
    %v7676 = vxor.u32 %v7596, 2147483648
    %v7677 = vxor.u32 %v7598, 2147483648
    %v7678 = vxor.u32 %v7148, 2147483648
    %v7679 = vxor.u32 %v7150, 2147483648
    %v7680 = vxor.u32 %v7600, 2147483648
    %v7681 = vxor.u32 %v7602, 2147483648
    %v7682 = vxor.u32 %v7154, 2147483648
    %v7683 = vxor.u32 %v7156, 2147483648
    %v7684 = vxor.u32 %v7606, 2147483648
    %v7685 = vxor.u32 %v7608, 2147483648
    %v7686 = vxor.u32 %v7158, 2147483648
    %v7687 = vxor.u32 %v7160, 2147483648
    %v7688 = vxor.u32 %v7610, 2147483648
    %v7689 = vxor.u32 %v7612, 2147483648
    %v7690 = vxor.u32 %v7164, 2147483648
    %v7691 = vxor.u32 %v7166, 2147483648
    %v7692 = vxor.u32 %v7616, 2147483648
    %v7693 = vxor.u32 %v7618, 2147483648
    %v7694 = vxor.u32 %v7168, 2147483648
    %v7695 = vxor.u32 %v7170, 2147483648
    %v7696 = vxor.u32 %v7620, 2147483648
    %v7697 = vxor.u32 %v7622, 2147483648
    %v7698 = vxor.u32 %v7174, 2147483648
    %v7699 = vxor.u32 %v7176, 2147483648
    %v7700 = vxor.u32 %v7626, 2147483648
    %v7701 = vxor.u32 %v7628, 2147483648
    %v7702 = vxor.u32 %v7178, 2147483648
    %v7703 = vxor.u32 %v7180, 2147483648
    %v7704 = vxor.u32 %v7630, 2147483648
    %v7705 = vxor.u32 %v7632, 2147483648
    %v7706 = vxor.u32 %v7184, 2147483648
    %v7707 = vxor.u32 %v7186, 2147483648
    %v7708 = vxor.u32 %v7636, 2147483648
    %v7709 = vxor.u32 %v7638, 2147483648
    %v7710 = vxor.u32 %v7188, 2147483648
    %v7711 = vxor.u32 %v7190, 2147483648
    %v7712 = vxor.u32 %v7640, 2147483648
    %v7713 = vxor.u32 %v7642, 2147483648
    %v7714 = vxor.u32 %v7194, 2147483648
    %v7715 = vxor.u32 %v7196, 2147483648
    %v7716 = vxor.u32 %v7646, 2147483648
    %v7717 = vxor.u32 %v7648, 2147483648
    %v7718 = vxor.u32 %v7198, 2147483648
    %v7719 = vxor.u32 %v7200, 2147483648
    %v7720 = vxor.u32 %v7650, 2147483648
    %v7721 = vxor.u32 %v7652, 2147483648
    %v7722 = vxor.u32 %v7204, 2147483648
    %v7723 = vxor.u32 %v7206, 2147483648
    %v7724 = vxor.u32 %v7656, 2147483648
    %v7725 = vxor.u32 %v7658, 2147483648
    %v7726 = vxor.u32 %v7208, 2147483648
    %v7727 = vxor.u32 %v7210, 2147483648
    %v7728 = vxor.u32 %v7660, 2147483648
    %v7729 = vxor.u32 %v7662, 2147483648
    %v7730 = vxor.u32 %v7214, 2147483648
    %v7731 = vxor.u32 %v7216, 2147483648
    %v7732 = vxor.u32 %v7666, 2147483648
    %v7733 = vxor.u32 %v7668, 2147483648
    %v7734 = vxor.u32 %v7218, 2147483648
    %v7735 = vxor.u32 %v7220, 2147483648
    %v7736 = vxor.u32 %v7670, 2147483648
    %v7737 = vxor.u32 %v7672, 2147483648
    %v7738 = vmul.f32 %v7674, 1.442695
    %v7739 = vpow.pop %v7738
    %v7740 = vmul.f32 %v7675, 1.442695
    %v7741 = vpow.pop %v7740
    %v7742 = vmul.f32 %v7676, 1.442695
    %v7743 = vpow.pop %v7742
    %v7744 = vmul.f32 %v7677, 1.442695
    %v7745 = vpow.pop %v7744
    %v7746 = vmul.f32 %v7678, 1.442695
    %v7747 = vpow.pop %v7746
    %v7748 = vmul.f32 %v7679, 1.442695
    %v7749 = vpow.pop %v7748
    %v7750 = vmul.f32 %v7680, 1.442695
    %v7751 = vpow.pop %v7750
    %v7752 = vmul.f32 %v7681, 1.442695
    %v7753 = vpow.pop %v7752
    %v7754 = vmul.f32 %v7682, 1.442695
    %v7755 = vpow.pop %v7754
    %v7756 = vmul.f32 %v7683, 1.442695
    %v7757 = vpow.pop %v7756
    %v7758 = vmul.f32 %v7684, 1.442695
    %v7759 = vpow.pop %v7758
    %v7760 = vmul.f32 %v7685, 1.442695
    %v7761 = vpow.pop %v7760
    %v7762 = vmul.f32 %v7686, 1.442695
    %v7763 = vpow.pop %v7762
    %v7764 = vmul.f32 %v7687, 1.442695
    %v7765 = vpow.pop %v7764
    %v7766 = vmul.f32 %v7688, 1.442695
    %v7767 = vpow.pop %v7766
    %v7768 = vmul.f32 %v7689, 1.442695
    %v7769 = vpow.pop %v7768
    %v7770 = vmul.f32 %v7690, 1.442695
    %v7771 = vpow.pop %v7770
    %v7772 = vmul.f32 %v7691, 1.442695
    %v7773 = vpow.pop %v7772
    %v7774 = vmul.f32 %v7692, 1.442695
    %v7775 = vpow.pop %v7774
    %v7776 = vmul.f32 %v7693, 1.442695
    %v7777 = vpow.pop %v7776
    %v7778 = vmul.f32 %v7694, 1.442695
    %v7779 = vpow.pop %v7778
    %v7780 = vmul.f32 %v7695, 1.442695
    %v7781 = vpow.pop %v7780
    %v7782 = vmul.f32 %v7696, 1.442695
    %v7783 = vpow.pop %v7782
    %v7784 = vmul.f32 %v7697, 1.442695
    %v7785 = vpow.pop %v7784
    %v7786 = vmul.f32 %v7698, 1.442695
    %v7787 = vpow.pop %v7786
    %v7788 = vmul.f32 %v7699, 1.442695
    %v7789 = vpow.pop %v7788
    %v7790 = vmul.f32 %v7700, 1.442695
    %v7791 = vpow.pop %v7790
    %v7792 = vmul.f32 %v7701, 1.442695
    %v7793 = vpow.pop %v7792
    %v7794 = vmul.f32 %v7702, 1.442695
    %v7795 = vpow.pop %v7794
    %v7796 = vmul.f32 %v7703, 1.442695
    %v7797 = vpow.pop %v7796
    %v7798 = vmul.f32 %v7704, 1.442695
    %v7799 = vpow.pop %v7798
    %v7800 = vmul.f32 %v7705, 1.442695
    %v7801 = vpow.pop %v7800
    %v7802 = vmul.f32 %v7706, 1.442695
    %v7803 = vpow.pop %v7802
    %v7804 = vmul.f32 %v7707, 1.442695
    %v7805 = vpow.pop %v7804
    %v7806 = vmul.f32 %v7708, 1.442695
    %v7807 = vpow.pop %v7806
    %v7808 = vmul.f32 %v7709, 1.442695
    %v7809 = vpow.pop %v7808
    %v7810 = vmul.f32 %v7710, 1.442695
    %v7811 = vpow.pop %v7810
    %v7812 = vmul.f32 %v7711, 1.442695
    %v7813 = vpow.pop %v7812
    %v7814 = vmul.f32 %v7712, 1.442695
    %v7815 = vpow.pop %v7814
    %v7816 = vmul.f32 %v7713, 1.442695
    %v7817 = vpow.pop %v7816
    %v7818 = vmul.f32 %v7714, 1.442695
    %v7819 = vpow.pop %v7818
    %v7820 = vmul.f32 %v7715, 1.442695
    %v7821 = vpow.pop %v7820
    %v7822 = vmul.f32 %v7716, 1.442695
    %v7823 = vpow.pop %v7822
    %v7824 = vmul.f32 %v7717, 1.442695
    %v7825 = vpow.pop %v7824
    %v7826 = vmul.f32 %v7718, 1.442695
    %v7827 = vpow.pop %v7826
    %v7828 = vmul.f32 %v7719, 1.442695
    %v7829 = vpow.pop %v7828
    %v7830 = vmul.f32 %v7720, 1.442695
    %v7831 = vpow.pop %v7830
    %v7832 = vmul.f32 %v7721, 1.442695
    %v7833 = vpow.pop %v7832
    %v7834 = vmul.f32 %v7722, 1.442695
    %v7835 = vpow.pop %v7834
    %v7836 = vmul.f32 %v7723, 1.442695
    %v7837 = vpow.pop %v7836
    %v7838 = vmul.f32 %v7724, 1.442695
    %v7839 = vpow.pop %v7838
    %v7840 = vmul.f32 %v7725, 1.442695
    %v7841 = vpow.pop %v7840
    %v7842 = vmul.f32 %v7726, 1.442695
    %v7843 = vpow.pop %v7842
    %v7844 = vmul.f32 %v7727, 1.442695
    %v7845 = vpow.pop %v7844
    %v7846 = vmul.f32 %v7728, 1.442695
    %v7847 = vpow.pop %v7846
    %v7848 = vmul.f32 %v7729, 1.442695
    %v7849 = vpow.pop %v7848
    %v7850 = vmul.f32 %v7730, 1.442695
    %v7851 = vpow.pop %v7850
    %v7852 = vmul.f32 %v7731, 1.442695
    %v7853 = vpow.pop %v7852
    %v7854 = vmul.f32 %v7732, 1.442695
    %v7855 = vpow.pop %v7854
    %v7856 = vmul.f32 %v7733, 1.442695
    %v7857 = vpow.pop %v7856
    %v7858 = vmul.f32 %v7734, 1.442695
    %v7859 = vpow.pop %v7858
    %v7860 = vmul.f32 %v7735, 1.442695
    %v7861 = vpow.pop %v7860
    %v7862 = vmul.f32 %v7736, 1.442695
    %v7863 = vpow.pop %v7862
    %v7864 = vmul.f32 %v7737, 1.442695
    %v7865 = vpow.pop %v7864
    %v7866 = vadd.f32 %v7739, 1.0
    %v7867 = vadd.f32 %v7741, 1.0
    %v7868 = vadd.f32 %v7743, 1.0
    %v7869 = vadd.f32 %v7745, 1.0
    %v7870 = vadd.f32 %v7747, 1.0
    %v7871 = vadd.f32 %v7749, 1.0
    %v7872 = vadd.f32 %v7751, 1.0
    %v7873 = vadd.f32 %v7753, 1.0
    %v7874 = vadd.f32 %v7755, 1.0
    %v7875 = vadd.f32 %v7757, 1.0
    %v7876 = vadd.f32 %v7759, 1.0
    %v7877 = vadd.f32 %v7761, 1.0
    %v7878 = vadd.f32 %v7763, 1.0
    %v7879 = vadd.f32 %v7765, 1.0
    %v7880 = vadd.f32 %v7767, 1.0
    %v7881 = vadd.f32 %v7769, 1.0
    %v7882 = vadd.f32 %v7771, 1.0
    %v7883 = vadd.f32 %v7773, 1.0
    %v7884 = vadd.f32 %v7775, 1.0
    %v7885 = vadd.f32 %v7777, 1.0
    %v7886 = vadd.f32 %v7779, 1.0
    %v7887 = vadd.f32 %v7781, 1.0
    %v7888 = vadd.f32 %v7783, 1.0
    %v7889 = vadd.f32 %v7785, 1.0
    %v7890 = vadd.f32 %v7787, 1.0
    %v7891 = vadd.f32 %v7789, 1.0
    %v7892 = vadd.f32 %v7791, 1.0
    %v7893 = vadd.f32 %v7793, 1.0
    %v7894 = vadd.f32 %v7795, 1.0
    %v7895 = vadd.f32 %v7797, 1.0
    %v7896 = vadd.f32 %v7799, 1.0
    %v7897 = vadd.f32 %v7801, 1.0
    %v7898 = vadd.f32 %v7803, 1.0
    %v7899 = vadd.f32 %v7805, 1.0
    %v7900 = vadd.f32 %v7807, 1.0
    %v7901 = vadd.f32 %v7809, 1.0
    %v7902 = vadd.f32 %v7811, 1.0
    %v7903 = vadd.f32 %v7813, 1.0
    %v7904 = vadd.f32 %v7815, 1.0
    %v7905 = vadd.f32 %v7817, 1.0
    %v7906 = vadd.f32 %v7819, 1.0
    %v7907 = vadd.f32 %v7821, 1.0
    %v7908 = vadd.f32 %v7823, 1.0
    %v7909 = vadd.f32 %v7825, 1.0
    %v7910 = vadd.f32 %v7827, 1.0
    %v7911 = vadd.f32 %v7829, 1.0
    %v7912 = vadd.f32 %v7831, 1.0
    %v7913 = vadd.f32 %v7833, 1.0
    %v7914 = vadd.f32 %v7835, 1.0
    %v7915 = vadd.f32 %v7837, 1.0
    %v7916 = vadd.f32 %v7839, 1.0
    %v7917 = vadd.f32 %v7841, 1.0
    %v7918 = vadd.f32 %v7843, 1.0
    %v7919 = vadd.f32 %v7845, 1.0
    %v7920 = vadd.f32 %v7847, 1.0
    %v7921 = vadd.f32 %v7849, 1.0
    %v7922 = vadd.f32 %v7851, 1.0
    %v7923 = vadd.f32 %v7853, 1.0
    %v7924 = vadd.f32 %v7855, 1.0
    %v7925 = vadd.f32 %v7857, 1.0
    %v7926 = vadd.f32 %v7859, 1.0
    %v7927 = vadd.f32 %v7861, 1.0
    %v7928 = vadd.f32 %v7863, 1.0
    %v7929 = vadd.f32 %v7865, 1.0
    %v7930 = vrcp.pop %v7866
    %v7931 = vmul.f32 1.0, %v7930
    %v7932 = vrcp.pop %v7867
    %v7933 = vmul.f32 1.0, %v7932
    %v7934 = vrcp.pop %v7868
    %v7935 = vmul.f32 1.0, %v7934
    %v7936 = vrcp.pop %v7869
    %v7937 = vmul.f32 1.0, %v7936
    %v7938 = vrcp.pop %v7870
    %v7939 = vmul.f32 1.0, %v7938
    %v7940 = vrcp.pop %v7871
    %v7941 = vmul.f32 1.0, %v7940
    %v7942 = vrcp.pop %v7872
    %v7943 = vmul.f32 1.0, %v7942
    %v7944 = vrcp.pop %v7873
    %v7945 = vmul.f32 1.0, %v7944
    %v7946 = vrcp.pop %v7874
    %v7947 = vmul.f32 1.0, %v7946
    %v7948 = vrcp.pop %v7875
    %v7949 = vmul.f32 1.0, %v7948
    %v7950 = vrcp.pop %v7876
    %v7951 = vmul.f32 1.0, %v7950
    %v7952 = vrcp.pop %v7877
    %v7953 = vmul.f32 1.0, %v7952
    %v7954 = vrcp.pop %v7878
    %v7955 = vmul.f32 1.0, %v7954
    %v7956 = vrcp.pop %v7879
    %v7957 = vmul.f32 1.0, %v7956
    %v7958 = vrcp.pop %v7880
    %v7959 = vmul.f32 1.0, %v7958
    %v7960 = vrcp.pop %v7881
    %v7961 = vmul.f32 1.0, %v7960
    %v7962 = vrcp.pop %v7882
    %v7963 = vmul.f32 1.0, %v7962
    %v7964 = vrcp.pop %v7883
    %v7965 = vmul.f32 1.0, %v7964
    %v7966 = vrcp.pop %v7884
    %v7967 = vmul.f32 1.0, %v7966
    %v7968 = vrcp.pop %v7885
    %v7969 = vmul.f32 1.0, %v7968
    %v7970 = vrcp.pop %v7886
    %v7971 = vmul.f32 1.0, %v7970
    %v7972 = vrcp.pop %v7887
    %v7973 = vmul.f32 1.0, %v7972
    %v7974 = vrcp.pop %v7888
    %v7975 = vmul.f32 1.0, %v7974
    %v7976 = vrcp.pop %v7889
    %v7977 = vmul.f32 1.0, %v7976
    %v7978 = vrcp.pop %v7890
    %v7979 = vmul.f32 1.0, %v7978
    %v7980 = vrcp.pop %v7891
    %v7981 = vmul.f32 1.0, %v7980
    %v7982 = vrcp.pop %v7892
    %v7983 = vmul.f32 1.0, %v7982
    %v7984 = vrcp.pop %v7893
    %v7985 = vmul.f32 1.0, %v7984
    %v7986 = vrcp.pop %v7894
    %v7987 = vmul.f32 1.0, %v7986
    %v7988 = vrcp.pop %v7895
    %v7989 = vmul.f32 1.0, %v7988
    %v7990 = vrcp.pop %v7896
    %v7991 = vmul.f32 1.0, %v7990
    %v7992 = vrcp.pop %v7897
    %v7993 = vmul.f32 1.0, %v7992
    %v7994 = vrcp.pop %v7898
    %v7995 = vmul.f32 1.0, %v7994
    %v7996 = vrcp.pop %v7899
    %v7997 = vmul.f32 1.0, %v7996
    %v7998 = vrcp.pop %v7900
    %v7999 = vmul.f32 1.0, %v7998
    %v8000 = vrcp.pop %v7901
    %v8001 = vmul.f32 1.0, %v8000
    %v8002 = vrcp.pop %v7902
    %v8003 = vmul.f32 1.0, %v8002
    %v8004 = vrcp.pop %v7903
    %v8005 = vmul.f32 1.0, %v8004
    %v8006 = vrcp.pop %v7904
    %v8007 = vmul.f32 1.0, %v8006
    %v8008 = vrcp.pop %v7905
    %v8009 = vmul.f32 1.0, %v8008
    %v8010 = vrcp.pop %v7906
    %v8011 = vmul.f32 1.0, %v8010
    %v8012 = vrcp.pop %v7907
    %v8013 = vmul.f32 1.0, %v8012
    %v8014 = vrcp.pop %v7908
    %v8015 = vmul.f32 1.0, %v8014
    %v8016 = vrcp.pop %v7909
    %v8017 = vmul.f32 1.0, %v8016
    %v8018 = vrcp.pop %v7910
    %v8019 = vmul.f32 1.0, %v8018
    %v8020 = vrcp.pop %v7911
    %v8021 = vmul.f32 1.0, %v8020
    %v8022 = vrcp.pop %v7912
    %v8023 = vmul.f32 1.0, %v8022
    %v8024 = vrcp.pop %v7913
    %v8025 = vmul.f32 1.0, %v8024
    %v8026 = vrcp.pop %v7914
    %v8027 = vmul.f32 1.0, %v8026
    %v8028 = vrcp.pop %v7915
    %v8029 = vmul.f32 1.0, %v8028
    %v8030 = vrcp.pop %v7916
    %v8031 = vmul.f32 1.0, %v8030
    %v8032 = vrcp.pop %v7917
    %v8033 = vmul.f32 1.0, %v8032
    %v8034 = vrcp.pop %v7918
    %v8035 = vmul.f32 1.0, %v8034
    %v8036 = vrcp.pop %v7919
    %v8037 = vmul.f32 1.0, %v8036
    %v8038 = vrcp.pop %v7920
    %v8039 = vmul.f32 1.0, %v8038
    %v8040 = vrcp.pop %v7921
    %v8041 = vmul.f32 1.0, %v8040
    %v8042 = vrcp.pop %v7922
    %v8043 = vmul.f32 1.0, %v8042
    %v8044 = vrcp.pop %v7923
    %v8045 = vmul.f32 1.0, %v8044
    %v8046 = vrcp.pop %v7924
    %v8047 = vmul.f32 1.0, %v8046
    %v8048 = vrcp.pop %v7925
    %v8049 = vmul.f32 1.0, %v8048
    %v8050 = vrcp.pop %v7926
    %v8051 = vmul.f32 1.0, %v8050
    %v8052 = vrcp.pop %v7927
    %v8053 = vmul.f32 1.0, %v8052
    %v8054 = vrcp.pop %v7928
    %v8055 = vmul.f32 1.0, %v8054
    %v8056 = vrcp.pop %v7929
    %v8057 = vmul.f32 1.0, %v8056
    %v8058 = vpack.c.bf16 %v7939, %v7931
    %v8059 = vpack.c.bf16 %v7941, %v7933
    %v8060 = vpack.c.bf16 %v7943, %v7935
    %v8061 = vpack.c.bf16 %v7945, %v7937
    %v8062 = vpack.c.bf16 %v7955, %v7947
    %v8063 = vpack.c.bf16 %v7957, %v7949
    %v8064 = vpack.c.bf16 %v7959, %v7951
    %v8065 = vpack.c.bf16 %v7961, %v7953
    %v8066 = vpack.c.bf16 %v7971, %v7963
    %v8067 = vpack.c.bf16 %v7973, %v7965
    %v8068 = vpack.c.bf16 %v7975, %v7967
    %v8069 = vpack.c.bf16 %v7977, %v7969
    %v8070 = vpack.c.bf16 %v7987, %v7979
    %v8071 = vpack.c.bf16 %v7989, %v7981
    %v8072 = vpack.c.bf16 %v7991, %v7983
    %v8073 = vpack.c.bf16 %v7993, %v7985
    %v8074 = vpack.c.bf16 %v8003, %v7995
    %v8075 = vpack.c.bf16 %v8005, %v7997
    %v8076 = vpack.c.bf16 %v8007, %v7999
    %v8077 = vpack.c.bf16 %v8009, %v8001
    %v8078 = vpack.c.bf16 %v8019, %v8011
    %v8079 = vpack.c.bf16 %v8021, %v8013
    %v8080 = vpack.c.bf16 %v8023, %v8015
    %v8081 = vpack.c.bf16 %v8025, %v8017
    %v8082 = vpack.c.bf16 %v8035, %v8027
    %v8083 = vpack.c.bf16 %v8037, %v8029
    %v8084 = vpack.c.bf16 %v8039, %v8031
    %v8085 = vpack.c.bf16 %v8041, %v8033
    %v8086 = vpack.c.bf16 %v8051, %v8043
    %v8087 = vpack.c.bf16 %v8053, %v8045
    %v8088 = vpack.c.bf16 %v8055, %v8047
    %v8089 = vpack.c.bf16 %v8057, %v8049
    %v8090 = vld [vmem:[#allocation14] sm:$0xff]
    %v8091 = vld [vmem:[#allocation14 + $0x8] sm:$0xff]
    %v8092 = vld [vmem:[#allocation14 + $0x10] sm:$0xff]
    %v8093 = vld [vmem:[#allocation14 + $0x18] sm:$0xff]
    %v8094 = vld [vmem:[#allocation14 + $0x20] sm:$0xff]
    %v8095 = vld [vmem:[#allocation14 + $0x28] sm:$0xff]
    %v8096 = vld [vmem:[#allocation14 + $0x30] sm:$0xff]
    %v8097 = vld [vmem:[#allocation14 + $0x38] sm:$0xff]
    %v8098 = vld [vmem:[#allocation14 + $0x40] sm:$0xff]
    %v8099 = vld [vmem:[#allocation14 + $0x48] sm:$0xff]
    %v8100 = vld [vmem:[#allocation14 + $0x50] sm:$0xff]
    %v8101 = vld [vmem:[#allocation14 + $0x58] sm:$0xff]
    %v8102 = vld [vmem:[#allocation14 + $0x60] sm:$0xff]
    %v8103 = vld [vmem:[#allocation14 + $0x68] sm:$0xff]
    %v8104 = vld [vmem:[#allocation14 + $0x70] sm:$0xff]
    %v8105 = vld [vmem:[#allocation14 + $0x78] sm:$0xff]
    %v8106 = vld [vmem:[#allocation14 + $0x80] sm:$0xff]
    %v8107 = vld [vmem:[#allocation14 + $0x88] sm:$0xff]
    %v8108 = vld [vmem:[#allocation14 + $0x90] sm:$0xff]
    %v8109 = vld [vmem:[#allocation14 + $0x98] sm:$0xff]
    %v8110 = vld [vmem:[#allocation14 + $0xa0] sm:$0xff]
    %v8111 = vld [vmem:[#allocation14 + $0xa8] sm:$0xff]
    %v8112 = vld [vmem:[#allocation14 + $0xb0] sm:$0xff]
    %v8113 = vld [vmem:[#allocation14 + $0xb8] sm:$0xff]
    %v8114 = vld [vmem:[#allocation14 + $0xc0] sm:$0xff]
    %v8115 = vld [vmem:[#allocation14 + $0xc8] sm:$0xff]
    %v8116 = vld [vmem:[#allocation14 + $0xd0] sm:$0xff]
    %v8117 = vld [vmem:[#allocation14 + $0xd8] sm:$0xff]
    %v8118 = vld [vmem:[#allocation14 + $0xe0] sm:$0xff]
    %v8119 = vld [vmem:[#allocation14 + $0xe8] sm:$0xff]
    %v8120 = vld [vmem:[#allocation14 + $0xf0] sm:$0xff]
    %v8121 = vld [vmem:[#allocation14 + $0xf8] sm:$0xff]
    %v8122 = vld [vmem:[#allocation14 + $0x100] sm:$0xff]
    %v8123 = vld [vmem:[#allocation14 + $0x108] sm:$0xff]
    %v8124 = vld [vmem:[#allocation14 + $0x110] sm:$0xff]
    %v8125 = vld [vmem:[#allocation14 + $0x118] sm:$0xff]
    %v8126 = vld [vmem:[#allocation14 + $0x120] sm:$0xff]
    %v8127 = vld [vmem:[#allocation14 + $0x128] sm:$0xff]
    %v8128 = vld [vmem:[#allocation14 + $0x130] sm:$0xff]
    %v8129 = vld [vmem:[#allocation14 + $0x138] sm:$0xff]
    %v8130 = vld [vmem:[#allocation14 + $0x140] sm:$0xff]
    %v8131 = vld [vmem:[#allocation14 + $0x148] sm:$0xff]
    %v8132 = vld [vmem:[#allocation14 + $0x150] sm:$0xff]
    %v8133 = vld [vmem:[#allocation14 + $0x158] sm:$0xff]
    %v8134 = vld [vmem:[#allocation14 + $0x160] sm:$0xff]
    %v8135 = vld [vmem:[#allocation14 + $0x168] sm:$0xff]
    %v8136 = vld [vmem:[#allocation14 + $0x170] sm:$0xff]
    %v8137 = vld [vmem:[#allocation14 + $0x178] sm:$0xff]
    %v8138 = vld [vmem:[#allocation14 + $0x180] sm:$0xff]
    %v8139 = vld [vmem:[#allocation14 + $0x188] sm:$0xff]
    %v8140 = vld [vmem:[#allocation14 + $0x190] sm:$0xff]
    %v8141 = vld [vmem:[#allocation14 + $0x198] sm:$0xff]
    %v8142 = vld [vmem:[#allocation14 + $0x1a0] sm:$0xff]
    %v8143 = vld [vmem:[#allocation14 + $0x1a8] sm:$0xff]
    %v8144 = vld [vmem:[#allocation14 + $0x1b0] sm:$0xff]
    %v8145 = vld [vmem:[#allocation14 + $0x1b8] sm:$0xff]
    %v8146 = vld [vmem:[#allocation14 + $0x1c0] sm:$0xff]
    %v8147 = vld [vmem:[#allocation14 + $0x1c8] sm:$0xff]
    %v8148 = vld [vmem:[#allocation14 + $0x1d0] sm:$0xff]
    %v8149 = vld [vmem:[#allocation14 + $0x1d8] sm:$0xff]
    %v8150 = vld [vmem:[#allocation14 + $0x1e0] sm:$0xff]
    %v8151 = vld [vmem:[#allocation14 + $0x1e8] sm:$0xff]
    %v8152 = vld [vmem:[#allocation14 + $0x1f0] sm:$0xff]
    %v8153 = vld [vmem:[#allocation14 + $0x1f8] sm:$0xff]
    %v8154 = vld [vmem:[#allocation14 + $0x200] sm:$0xff]
    %v8155 = vld [vmem:[#allocation14 + $0x208] sm:$0xff]
    %v8156 = vld [vmem:[#allocation14 + $0x210] sm:$0xff]
    %v8157 = vld [vmem:[#allocation14 + $0x218] sm:$0xff]
    %v8158 = vld [vmem:[#allocation14 + $0x220] sm:$0xff]
    %v8159 = vld [vmem:[#allocation14 + $0x228] sm:$0xff]
    %v8160 = vld [vmem:[#allocation14 + $0x230] sm:$0xff]
    %v8161 = vld [vmem:[#allocation14 + $0x238] sm:$0xff]
    %v8162 = vld [vmem:[#allocation14 + $0x240] sm:$0xff]
    %v8163 = vld [vmem:[#allocation14 + $0x248] sm:$0xff]
    %v8164 = vld [vmem:[#allocation14 + $0x250] sm:$0xff]
    %v8165 = vld [vmem:[#allocation14 + $0x258] sm:$0xff]
    %v8166 = vld [vmem:[#allocation14 + $0x260] sm:$0xff]
    %v8167 = vld [vmem:[#allocation14 + $0x268] sm:$0xff]
    %v8168 = vld [vmem:[#allocation14 + $0x270] sm:$0xff]
    %v8169 = vld [vmem:[#allocation14 + $0x278] sm:$0xff]
    %v8170 = vld [vmem:[#allocation14 + $0x280] sm:$0xff]
    %v8171 = vld [vmem:[#allocation14 + $0x288] sm:$0xff]
    %v8172 = vld [vmem:[#allocation14 + $0x290] sm:$0xff]
    %v8173 = vld [vmem:[#allocation14 + $0x298] sm:$0xff]
    %v8174 = vld [vmem:[#allocation14 + $0x2a0] sm:$0xff]
    %v8175 = vld [vmem:[#allocation14 + $0x2a8] sm:$0xff]
    %v8176 = vld [vmem:[#allocation14 + $0x2b0] sm:$0xff]
    %v8177 = vld [vmem:[#allocation14 + $0x2b8] sm:$0xff]
    %v8178 = vld [vmem:[#allocation14 + $0x2c0] sm:$0xff]
    %v8179 = vld [vmem:[#allocation14 + $0x2c8] sm:$0xff]
    %v8180 = vld [vmem:[#allocation14 + $0x2d0] sm:$0xff]
    %v8181 = vld [vmem:[#allocation14 + $0x2d8] sm:$0xff]
    %v8182 = vld [vmem:[#allocation14 + $0x2e0] sm:$0xff]
    %v8183 = vld [vmem:[#allocation14 + $0x2e8] sm:$0xff]
    %v8184 = vld [vmem:[#allocation14 + $0x2f0] sm:$0xff]
    %v8185 = vld [vmem:[#allocation14 + $0x2f8] sm:$0xff]
    %v8186 = vld [vmem:[#allocation14 + $0x300] sm:$0xff]
    %v8187 = vld [vmem:[#allocation14 + $0x308] sm:$0xff]
    %v8188 = vld [vmem:[#allocation14 + $0x310] sm:$0xff]
    %v8189 = vld [vmem:[#allocation14 + $0x318] sm:$0xff]
    %v8190 = vld [vmem:[#allocation14 + $0x320] sm:$0xff]
    %v8191 = vld [vmem:[#allocation14 + $0x328] sm:$0xff]
    %v8192 = vld [vmem:[#allocation14 + $0x330] sm:$0xff]
    %v8193 = vld [vmem:[#allocation14 + $0x338] sm:$0xff]
    %v8194 = vld [vmem:[#allocation14 + $0x340] sm:$0xff]
    %v8195 = vld [vmem:[#allocation14 + $0x348] sm:$0xff]
    %v8196 = vld [vmem:[#allocation14 + $0x350] sm:$0xff]
    %v8197 = vld [vmem:[#allocation14 + $0x358] sm:$0xff]
    %v8198 = vld [vmem:[#allocation14 + $0x360] sm:$0xff]
    %v8199 = vld [vmem:[#allocation14 + $0x368] sm:$0xff]
    %v8200 = vld [vmem:[#allocation14 + $0x370] sm:$0xff]
    %v8201 = vld [vmem:[#allocation14 + $0x378] sm:$0xff]
    %v8202 = vld [vmem:[#allocation14 + $0x380] sm:$0xff]
    %v8203 = vld [vmem:[#allocation14 + $0x388] sm:$0xff]
    %v8204 = vld [vmem:[#allocation14 + $0x390] sm:$0xff]
    %v8205 = vld [vmem:[#allocation14 + $0x398] sm:$0xff]
    %v8206 = vld [vmem:[#allocation14 + $0x3a0] sm:$0xff]
    %v8207 = vld [vmem:[#allocation14 + $0x3a8] sm:$0xff]
    %v8208 = vld [vmem:[#allocation14 + $0x3b0] sm:$0xff]
    %v8209 = vld [vmem:[#allocation14 + $0x3b8] sm:$0xff]
    %v8210 = vld [vmem:[#allocation14 + $0x3c0] sm:$0xff]
    %v8211 = vld [vmem:[#allocation14 + $0x3c8] sm:$0xff]
    %v8212 = vld [vmem:[#allocation14 + $0x3d0] sm:$0xff]
    %v8213 = vld [vmem:[#allocation14 + $0x3d8] sm:$0xff]
    %v8214 = vld [vmem:[#allocation14 + $0x3e0] sm:$0xff]
    %v8215 = vld [vmem:[#allocation14 + $0x3e8] sm:$0xff]
    %v8216 = vld [vmem:[#allocation14 + $0x3f0] sm:$0xff]
    %v8217 = vld [vmem:[#allocation14 + $0x3f8] sm:$0xff]
    %v8346 = vunpack.c.l.b16 %v8090
    %v8347 = vunpack.c.h.b16 %v8090
    %v8348 = vunpack.c.l.b16 %v8091
    %v8349 = vunpack.c.h.b16 %v8091
    %v8350 = vunpack.c.l.b16 %v8092
    %v8351 = vunpack.c.h.b16 %v8092
    %v8352 = vunpack.c.l.b16 %v8093
    %v8353 = vunpack.c.h.b16 %v8093
    %v8354 = vunpack.c.l.b16 %v8094
    %v8355 = vunpack.c.h.b16 %v8094
    %v8356 = vunpack.c.l.b16 %v8095
    %v8357 = vunpack.c.h.b16 %v8095
    %v8358 = vunpack.c.l.b16 %v8096
    %v8359 = vunpack.c.h.b16 %v8096
    %v8360 = vunpack.c.l.b16 %v8097
    %v8361 = vunpack.c.h.b16 %v8097
    %v8362 = vunpack.c.l.b16 %v8098
    %v8363 = vunpack.c.h.b16 %v8098
    %v8364 = vunpack.c.l.b16 %v8099
    %v8365 = vunpack.c.h.b16 %v8099
    %v8366 = vunpack.c.l.b16 %v8100
    %v8367 = vunpack.c.h.b16 %v8100
    %v8368 = vunpack.c.l.b16 %v8101
    %v8369 = vunpack.c.h.b16 %v8101
    %v8370 = vunpack.c.l.b16 %v8102
    %v8371 = vunpack.c.h.b16 %v8102
    %v8372 = vunpack.c.l.b16 %v8103
    %v8373 = vunpack.c.h.b16 %v8103
    %v8374 = vunpack.c.l.b16 %v8104
    %v8375 = vunpack.c.h.b16 %v8104
    %v8376 = vunpack.c.l.b16 %v8105
    %v8377 = vunpack.c.h.b16 %v8105
    %v8378 = vunpack.c.l.b16 %v8106
    %v8379 = vunpack.c.h.b16 %v8106
    %v8380 = vunpack.c.l.b16 %v8107
    %v8381 = vunpack.c.h.b16 %v8107
    %v8382 = vunpack.c.l.b16 %v8108
    %v8383 = vunpack.c.h.b16 %v8108
    %v8384 = vunpack.c.l.b16 %v8109
    %v8385 = vunpack.c.h.b16 %v8109
    %v8386 = vunpack.c.l.b16 %v8110
    %v8387 = vunpack.c.h.b16 %v8110
    %v8388 = vunpack.c.l.b16 %v8111
    %v8389 = vunpack.c.h.b16 %v8111
    %v8390 = vunpack.c.l.b16 %v8112
    %v8391 = vunpack.c.h.b16 %v8112
    %v8392 = vunpack.c.l.b16 %v8113
    %v8393 = vunpack.c.h.b16 %v8113
    %v8394 = vunpack.c.l.b16 %v8114
    %v8395 = vunpack.c.h.b16 %v8114
    %v8396 = vunpack.c.l.b16 %v8115
    %v8397 = vunpack.c.h.b16 %v8115
    %v8398 = vunpack.c.l.b16 %v8116
    %v8399 = vunpack.c.h.b16 %v8116
    %v8400 = vunpack.c.l.b16 %v8117
    %v8401 = vunpack.c.h.b16 %v8117
    %v8402 = vunpack.c.l.b16 %v8118
    %v8403 = vunpack.c.h.b16 %v8118
    %v8404 = vunpack.c.l.b16 %v8119
    %v8405 = vunpack.c.h.b16 %v8119
    %v8406 = vunpack.c.l.b16 %v8120
    %v8407 = vunpack.c.h.b16 %v8120
    %v8408 = vunpack.c.l.b16 %v8121
    %v8409 = vunpack.c.h.b16 %v8121
    %v8410 = vunpack.c.l.b16 %v8122
    %v8411 = vunpack.c.h.b16 %v8122
    %v8412 = vunpack.c.l.b16 %v8123
    %v8413 = vunpack.c.h.b16 %v8123
    %v8414 = vunpack.c.l.b16 %v8124
    %v8415 = vunpack.c.h.b16 %v8124
    %v8416 = vunpack.c.l.b16 %v8125
    %v8417 = vunpack.c.h.b16 %v8125
    %v8418 = vunpack.c.l.b16 %v8126
    %v8419 = vunpack.c.h.b16 %v8126
    %v8420 = vunpack.c.l.b16 %v8127
    %v8421 = vunpack.c.h.b16 %v8127
    %v8422 = vunpack.c.l.b16 %v8128
    %v8423 = vunpack.c.h.b16 %v8128
    %v8424 = vunpack.c.l.b16 %v8129
    %v8425 = vunpack.c.h.b16 %v8129
    %v8426 = vunpack.c.l.b16 %v8130
    %v8427 = vunpack.c.h.b16 %v8130
    %v8428 = vunpack.c.l.b16 %v8131
    %v8429 = vunpack.c.h.b16 %v8131
    %v8430 = vunpack.c.l.b16 %v8132
    %v8431 = vunpack.c.h.b16 %v8132
    %v8432 = vunpack.c.l.b16 %v8133
    %v8433 = vunpack.c.h.b16 %v8133
    %v8434 = vunpack.c.l.b16 %v8134
    %v8435 = vunpack.c.h.b16 %v8134
    %v8436 = vunpack.c.l.b16 %v8135
    %v8437 = vunpack.c.h.b16 %v8135
    %v8438 = vunpack.c.l.b16 %v8136
    %v8439 = vunpack.c.h.b16 %v8136
    %v8440 = vunpack.c.l.b16 %v8137
    %v8441 = vunpack.c.h.b16 %v8137
    %v8442 = vunpack.c.l.b16 %v8138
    %v8443 = vunpack.c.h.b16 %v8138
    %v8444 = vunpack.c.l.b16 %v8139
    %v8445 = vunpack.c.h.b16 %v8139
    %v8446 = vunpack.c.l.b16 %v8140
    %v8447 = vunpack.c.h.b16 %v8140
    %v8448 = vunpack.c.l.b16 %v8141
    %v8449 = vunpack.c.h.b16 %v8141
    %v8450 = vunpack.c.l.b16 %v8142
    %v8451 = vunpack.c.h.b16 %v8142
    %v8452 = vunpack.c.l.b16 %v8143
    %v8453 = vunpack.c.h.b16 %v8143
    %v8454 = vunpack.c.l.b16 %v8144
    %v8455 = vunpack.c.h.b16 %v8144
    %v8456 = vunpack.c.l.b16 %v8145
    %v8457 = vunpack.c.h.b16 %v8145
    %v8458 = vunpack.c.l.b16 %v8146
    %v8459 = vunpack.c.h.b16 %v8146
    %v8460 = vunpack.c.l.b16 %v8147
    %v8461 = vunpack.c.h.b16 %v8147
    %v8462 = vunpack.c.l.b16 %v8148
    %v8463 = vunpack.c.h.b16 %v8148
    %v8464 = vunpack.c.l.b16 %v8149
    %v8465 = vunpack.c.h.b16 %v8149
    %v8466 = vunpack.c.l.b16 %v8150
    %v8467 = vunpack.c.h.b16 %v8150
    %v8468 = vunpack.c.l.b16 %v8151
    %v8469 = vunpack.c.h.b16 %v8151
    %v8470 = vunpack.c.l.b16 %v8152
    %v8471 = vunpack.c.h.b16 %v8152
    %v8472 = vunpack.c.l.b16 %v8153
    %v8473 = vunpack.c.h.b16 %v8153
    %v8474 = vunpack.c.l.b16 %v8154
    %v8475 = vunpack.c.h.b16 %v8154
    %v8476 = vunpack.c.l.b16 %v8155
    %v8477 = vunpack.c.h.b16 %v8155
    %v8478 = vunpack.c.l.b16 %v8156
    %v8479 = vunpack.c.h.b16 %v8156
    %v8480 = vunpack.c.l.b16 %v8157
    %v8481 = vunpack.c.h.b16 %v8157
    %v8482 = vunpack.c.l.b16 %v8158
    %v8483 = vunpack.c.h.b16 %v8158
    %v8484 = vunpack.c.l.b16 %v8159
    %v8485 = vunpack.c.h.b16 %v8159
    %v8486 = vunpack.c.l.b16 %v8160
    %v8487 = vunpack.c.h.b16 %v8160
    %v8488 = vunpack.c.l.b16 %v8161
    %v8489 = vunpack.c.h.b16 %v8161
    %v8490 = vunpack.c.l.b16 %v8162
    %v8491 = vunpack.c.h.b16 %v8162
    %v8492 = vunpack.c.l.b16 %v8163
    %v8493 = vunpack.c.h.b16 %v8163
    %v8494 = vunpack.c.l.b16 %v8164
    %v8495 = vunpack.c.h.b16 %v8164
    %v8496 = vunpack.c.l.b16 %v8165
    %v8497 = vunpack.c.h.b16 %v8165
    %v8498 = vunpack.c.l.b16 %v8166
    %v8499 = vunpack.c.h.b16 %v8166
    %v8500 = vunpack.c.l.b16 %v8167
    %v8501 = vunpack.c.h.b16 %v8167
    %v8502 = vunpack.c.l.b16 %v8168
    %v8503 = vunpack.c.h.b16 %v8168
    %v8504 = vunpack.c.l.b16 %v8169
    %v8505 = vunpack.c.h.b16 %v8169
    %v8506 = vunpack.c.l.b16 %v8170
    %v8507 = vunpack.c.h.b16 %v8170
    %v8508 = vunpack.c.l.b16 %v8171
    %v8509 = vunpack.c.h.b16 %v8171
    %v8510 = vunpack.c.l.b16 %v8172
    %v8511 = vunpack.c.h.b16 %v8172
    %v8512 = vunpack.c.l.b16 %v8173
    %v8513 = vunpack.c.h.b16 %v8173
    %v8514 = vunpack.c.l.b16 %v8174
    %v8515 = vunpack.c.h.b16 %v8174
    %v8516 = vunpack.c.l.b16 %v8175
    %v8517 = vunpack.c.h.b16 %v8175
    %v8518 = vunpack.c.l.b16 %v8176
    %v8519 = vunpack.c.h.b16 %v8176
    %v8520 = vunpack.c.l.b16 %v8177
    %v8521 = vunpack.c.h.b16 %v8177
    %v8522 = vunpack.c.l.b16 %v8178
    %v8523 = vunpack.c.h.b16 %v8178
    %v8524 = vunpack.c.l.b16 %v8179
    %v8525 = vunpack.c.h.b16 %v8179
    %v8526 = vunpack.c.l.b16 %v8180
    %v8527 = vunpack.c.h.b16 %v8180
    %v8528 = vunpack.c.l.b16 %v8181
    %v8529 = vunpack.c.h.b16 %v8181
    %v8530 = vunpack.c.l.b16 %v8182
    %v8531 = vunpack.c.h.b16 %v8182
    %v8532 = vunpack.c.l.b16 %v8183
    %v8533 = vunpack.c.h.b16 %v8183
    %v8534 = vunpack.c.l.b16 %v8184
    %v8535 = vunpack.c.h.b16 %v8184
    %v8536 = vunpack.c.l.b16 %v8185
    %v8537 = vunpack.c.h.b16 %v8185
    %v8538 = vunpack.c.l.b16 %v8186
    %v8539 = vunpack.c.h.b16 %v8186
    %v8540 = vunpack.c.l.b16 %v8187
    %v8541 = vunpack.c.h.b16 %v8187
    %v8542 = vunpack.c.l.b16 %v8188
    %v8543 = vunpack.c.h.b16 %v8188
    %v8544 = vunpack.c.l.b16 %v8189
    %v8545 = vunpack.c.h.b16 %v8189
    %v8546 = vunpack.c.l.b16 %v8190
    %v8547 = vunpack.c.h.b16 %v8190
    %v8548 = vunpack.c.l.b16 %v8191
    %v8549 = vunpack.c.h.b16 %v8191
    %v8550 = vunpack.c.l.b16 %v8192
    %v8551 = vunpack.c.h.b16 %v8192
    %v8552 = vunpack.c.l.b16 %v8193
    %v8553 = vunpack.c.h.b16 %v8193
    %v8554 = vunpack.c.l.b16 %v8194
    %v8555 = vunpack.c.h.b16 %v8194
    %v8556 = vunpack.c.l.b16 %v8195
    %v8557 = vunpack.c.h.b16 %v8195
    %v8558 = vunpack.c.l.b16 %v8196
    %v8559 = vunpack.c.h.b16 %v8196
    %v8560 = vunpack.c.l.b16 %v8197
    %v8561 = vunpack.c.h.b16 %v8197
    %v8562 = vunpack.c.l.b16 %v8198
    %v8563 = vunpack.c.h.b16 %v8198
    %v8564 = vunpack.c.l.b16 %v8199
    %v8565 = vunpack.c.h.b16 %v8199
    %v8566 = vunpack.c.l.b16 %v8200
    %v8567 = vunpack.c.h.b16 %v8200
    %v8568 = vunpack.c.l.b16 %v8201
    %v8569 = vunpack.c.h.b16 %v8201
    %v8570 = vunpack.c.l.b16 %v8202
    %v8571 = vunpack.c.h.b16 %v8202
    %v8572 = vunpack.c.l.b16 %v8203
    %v8573 = vunpack.c.h.b16 %v8203
    %v8574 = vunpack.c.l.b16 %v8204
    %v8575 = vunpack.c.h.b16 %v8204
    %v8576 = vunpack.c.l.b16 %v8205
    %v8577 = vunpack.c.h.b16 %v8205
    %v8578 = vunpack.c.l.b16 %v8206
    %v8579 = vunpack.c.h.b16 %v8206
    %v8580 = vunpack.c.l.b16 %v8207
    %v8581 = vunpack.c.h.b16 %v8207
    %v8582 = vunpack.c.l.b16 %v8208
    %v8583 = vunpack.c.h.b16 %v8208
    %v8584 = vunpack.c.l.b16 %v8209
    %v8585 = vunpack.c.h.b16 %v8209
    %v8586 = vunpack.c.l.b16 %v8210
    %v8587 = vunpack.c.h.b16 %v8210
    %v8588 = vunpack.c.l.b16 %v8211
    %v8589 = vunpack.c.h.b16 %v8211
    %v8590 = vunpack.c.l.b16 %v8212
    %v8591 = vunpack.c.h.b16 %v8212
    %v8592 = vunpack.c.l.b16 %v8213
    %v8593 = vunpack.c.h.b16 %v8213
    %v8594 = vunpack.c.l.b16 %v8214
    %v8595 = vunpack.c.h.b16 %v8214
    %v8596 = vunpack.c.l.b16 %v8215
    %v8597 = vunpack.c.h.b16 %v8215
    %v8598 = vunpack.c.l.b16 %v8216
    %v8599 = vunpack.c.h.b16 %v8216
    %v8600 = vunpack.c.l.b16 %v8217
    %v8601 = vunpack.c.h.b16 %v8217
    %v8602 = vpack.c.b16 %v8350, %v8346
    %v8603 = vpack.c.b16 %v8351, %v8347
    %v8604 = vpack.c.b16 %v8352, %v8348
    %v8605 = vpack.c.b16 %v8353, %v8349
    %v8606 = vpack.c.b16 %v8358, %v8354
    %v8607 = vpack.c.b16 %v8359, %v8355
    %v8608 = vpack.c.b16 %v8360, %v8356
    %v8609 = vpack.c.b16 %v8361, %v8357
    %v8610 = vpack.c.b16 %v8366, %v8362
    %v8611 = vpack.c.b16 %v8367, %v8363
    %v8612 = vpack.c.b16 %v8368, %v8364
    %v8613 = vpack.c.b16 %v8369, %v8365
    %v8614 = vpack.c.b16 %v8374, %v8370
    %v8615 = vpack.c.b16 %v8375, %v8371
    %v8616 = vpack.c.b16 %v8376, %v8372
    %v8617 = vpack.c.b16 %v8377, %v8373
    %v8618 = vpack.c.b16 %v8382, %v8378
    %v8619 = vpack.c.b16 %v8383, %v8379
    %v8620 = vpack.c.b16 %v8384, %v8380
    %v8621 = vpack.c.b16 %v8385, %v8381
    %v8622 = vpack.c.b16 %v8390, %v8386
    %v8623 = vpack.c.b16 %v8391, %v8387
    %v8624 = vpack.c.b16 %v8392, %v8388
    %v8625 = vpack.c.b16 %v8393, %v8389
    %v8626 = vpack.c.b16 %v8398, %v8394
    %v8627 = vpack.c.b16 %v8399, %v8395
    %v8628 = vpack.c.b16 %v8400, %v8396
    %v8629 = vpack.c.b16 %v8401, %v8397
    %v8630 = vpack.c.b16 %v8406, %v8402
    %v8631 = vpack.c.b16 %v8407, %v8403
    %v8632 = vpack.c.b16 %v8408, %v8404
    %v8633 = vpack.c.b16 %v8409, %v8405
    %v8634 = vpack.c.b16 %v8414, %v8410
    %v8635 = vpack.c.b16 %v8415, %v8411
    %v8636 = vpack.c.b16 %v8416, %v8412
    %v8637 = vpack.c.b16 %v8417, %v8413
    %v8638 = vpack.c.b16 %v8422, %v8418
    %v8639 = vpack.c.b16 %v8423, %v8419
    %v8640 = vpack.c.b16 %v8424, %v8420
    %v8641 = vpack.c.b16 %v8425, %v8421
    %v8642 = vpack.c.b16 %v8430, %v8426
    %v8643 = vpack.c.b16 %v8431, %v8427
    %v8644 = vpack.c.b16 %v8432, %v8428
    %v8645 = vpack.c.b16 %v8433, %v8429
    %v8646 = vpack.c.b16 %v8438, %v8434
    %v8647 = vpack.c.b16 %v8439, %v8435
    %v8648 = vpack.c.b16 %v8440, %v8436
    %v8649 = vpack.c.b16 %v8441, %v8437
    %v8650 = vpack.c.b16 %v8446, %v8442
    %v8651 = vpack.c.b16 %v8447, %v8443
    %v8652 = vpack.c.b16 %v8448, %v8444
    %v8653 = vpack.c.b16 %v8449, %v8445
    %v8654 = vpack.c.b16 %v8454, %v8450
    %v8655 = vpack.c.b16 %v8455, %v8451
    %v8656 = vpack.c.b16 %v8456, %v8452
    %v8657 = vpack.c.b16 %v8457, %v8453
    %v8658 = vpack.c.b16 %v8462, %v8458
    %v8659 = vpack.c.b16 %v8463, %v8459
    %v8660 = vpack.c.b16 %v8464, %v8460
    %v8661 = vpack.c.b16 %v8465, %v8461
    %v8662 = vpack.c.b16 %v8470, %v8466
    %v8663 = vpack.c.b16 %v8471, %v8467
    %v8664 = vpack.c.b16 %v8472, %v8468
    %v8665 = vpack.c.b16 %v8473, %v8469
    %v8666 = vpack.c.b16 %v8478, %v8474
    %v8667 = vpack.c.b16 %v8479, %v8475
    %v8668 = vpack.c.b16 %v8480, %v8476
    %v8669 = vpack.c.b16 %v8481, %v8477
    %v8670 = vpack.c.b16 %v8486, %v8482
    %v8671 = vpack.c.b16 %v8487, %v8483
    %v8672 = vpack.c.b16 %v8488, %v8484
    %v8673 = vpack.c.b16 %v8489, %v8485
    %v8674 = vpack.c.b16 %v8494, %v8490
    %v8675 = vpack.c.b16 %v8495, %v8491
    %v8676 = vpack.c.b16 %v8496, %v8492
    %v8677 = vpack.c.b16 %v8497, %v8493
    %v8678 = vpack.c.b16 %v8502, %v8498
    %v8679 = vpack.c.b16 %v8503, %v8499
    %v8680 = vpack.c.b16 %v8504, %v8500
    %v8681 = vpack.c.b16 %v8505, %v8501
    %v8682 = vpack.c.b16 %v8510, %v8506
    %v8683 = vpack.c.b16 %v8511, %v8507
    %v8684 = vpack.c.b16 %v8512, %v8508
    %v8685 = vpack.c.b16 %v8513, %v8509
    %v8686 = vpack.c.b16 %v8518, %v8514
    %v8687 = vpack.c.b16 %v8519, %v8515
    %v8688 = vpack.c.b16 %v8520, %v8516
    %v8689 = vpack.c.b16 %v8521, %v8517
    %v8690 = vpack.c.b16 %v8526, %v8522
    %v8691 = vpack.c.b16 %v8527, %v8523
    %v8692 = vpack.c.b16 %v8528, %v8524
    %v8693 = vpack.c.b16 %v8529, %v8525
    %v8694 = vpack.c.b16 %v8534, %v8530
    %v8695 = vpack.c.b16 %v8535, %v8531
    %v8696 = vpack.c.b16 %v8536, %v8532
    %v8697 = vpack.c.b16 %v8537, %v8533
    %v8698 = vpack.c.b16 %v8542, %v8538
    %v8699 = vpack.c.b16 %v8543, %v8539
    %v8700 = vpack.c.b16 %v8544, %v8540
    %v8701 = vpack.c.b16 %v8545, %v8541
    %v8702 = vpack.c.b16 %v8550, %v8546
    %v8703 = vpack.c.b16 %v8551, %v8547
    %v8704 = vpack.c.b16 %v8552, %v8548
    %v8705 = vpack.c.b16 %v8553, %v8549
    %v8706 = vpack.c.b16 %v8558, %v8554
    %v8707 = vpack.c.b16 %v8559, %v8555
    %v8708 = vpack.c.b16 %v8560, %v8556
    %v8709 = vpack.c.b16 %v8561, %v8557
    %v8710 = vpack.c.b16 %v8566, %v8562
    %v8711 = vpack.c.b16 %v8567, %v8563
    %v8712 = vpack.c.b16 %v8568, %v8564
    %v8713 = vpack.c.b16 %v8569, %v8565
    %v8714 = vpack.c.b16 %v8574, %v8570
    %v8715 = vpack.c.b16 %v8575, %v8571
    %v8716 = vpack.c.b16 %v8576, %v8572
    %v8717 = vpack.c.b16 %v8577, %v8573
    %v8718 = vpack.c.b16 %v8582, %v8578
    %v8719 = vpack.c.b16 %v8583, %v8579
    %v8720 = vpack.c.b16 %v8584, %v8580
    %v8721 = vpack.c.b16 %v8585, %v8581
    %v8722 = vpack.c.b16 %v8590, %v8586
    %v8723 = vpack.c.b16 %v8591, %v8587
    %v8724 = vpack.c.b16 %v8592, %v8588
    %v8725 = vpack.c.b16 %v8593, %v8589
    %v8726 = vpack.c.b16 %v8598, %v8594
    %v8727 = vpack.c.b16 %v8599, %v8595
    %v8728 = vpack.c.b16 %v8600, %v8596
    %v8729 = vpack.c.b16 %v8601, %v8597
    %8858 = vmatprep.subr.bf16.mxu0 %v8631
    %8859 = vmatpush1.bf16.msra.mxu0 %v8630
    %8860 = vmatprep.subr.bf16.mxu0 %v8627
    %8861 = vmatpush1.bf16.msra.mxu0 %v8626
    %8862 = vmatprep.subr.bf16.mxu0 %v8623
    %8863 = vmatpush1.bf16.msra.mxu0 %v8622
    %8864 = vmatprep.subr.bf16.mxu0 %v8619
    %8865 = vmatpush1.bf16.msra.mxu0 %v8618
    %8866 = vmatprep.subr.bf16.mxu0 %v8615
    %8867 = vmatpush1.bf16.msra.mxu0 %v8614
    %8868 = vmatprep.subr.bf16.mxu0 %v8611
    %8869 = vmatpush1.bf16.msra.mxu0 %v8610
    %8870 = vmatprep.subr.bf16.mxu0 %v8607
    %8871 = vmatpush1.bf16.msra.mxu0 %v8606
    %8872 = vmatprep.subr.bf16.mxu0 %v8603
    %8873 = vmatpush1.bf16.msra.mxu0 %v8602
    %8874 = vmatprep.subr.bf16.mxu0 %v8663
    %8875 = vmatpush2.bf16.msra.mxu0 %v8662
    %8876 = vmatprep.subr.bf16.mxu0 %v8659
    %8877 = vmatpush2.bf16.msra.mxu0 %v8658
    %8878 = vmatprep.subr.bf16.mxu0 %v8655
    %8879 = vmatpush2.bf16.msra.mxu0 %v8654
    %8880 = vmatprep.subr.bf16.mxu0 %v8651
    %8881 = vmatpush2.bf16.msra.mxu0 %v8650
    %8882 = vmatprep.subr.bf16.mxu0 %v8647
    %8883 = vmatpush2.bf16.msra.mxu0 %v8646
    %8884 = vmatprep.subr.bf16.mxu0 %v8643
    %8885 = vmatpush2.bf16.msra.mxu0 %v8642
    %8886 = vmatprep.subr.bf16.mxu0 %v8639
    %8887 = vmatpush2.bf16.msra.mxu0 %v8638
    %8888 = vmatprep.subr.bf16.mxu0 %v8635
    %8889 = vmatpush2.bf16.msra.mxu0 %v8634
    %8890 = vmatprep.mubr.bf16.mxu0 %v8059
    %8891 = vmatmul.mubr.bf16.gmra.mxu0 %v8058
    %v8892 = vpop.f32.mrf.mxu0
    %v8893 = vadd.f32 0.0, %v8892
    %v8894 = vpop.f32.mrf.mxu0
    %v8895 = vadd.f32 0.0, %v8894
    %v8896 = vpop.f32.mrf.mxu0
    %v8897 = vadd.f32 0.0, %v8896
    %v8898 = vpop.f32.mrf.mxu0
    %v8899 = vadd.f32 0.0, %v8898
    %8900 = vmatprep.mubr.bf16.mxu0 %v8063
    %8901 = vmatmul.mubr.bf16.gmra.mxu0 %v8062
    %v8902 = vpop.f32.mrf.mxu0
    %v8903 = vadd.f32 0.0, %v8902
    %v8904 = vpop.f32.mrf.mxu0
    %v8905 = vadd.f32 0.0, %v8904
    %v8906 = vpop.f32.mrf.mxu0
    %v8907 = vadd.f32 0.0, %v8906
    %v8908 = vpop.f32.mrf.mxu0
    %v8909 = vadd.f32 0.0, %v8908
    %8910 = vmatprep.mubr.bf16.mxu0 %v8067
    %8911 = vmatmul.mubr.bf16.gmra.mxu0 %v8066
    %v8912 = vpop.f32.mrf.mxu0
    %v8913 = vadd.f32 0.0, %v8912
    %v8914 = vpop.f32.mrf.mxu0
    %v8915 = vadd.f32 0.0, %v8914
    %v8916 = vpop.f32.mrf.mxu0
    %v8917 = vadd.f32 0.0, %v8916
    %v8918 = vpop.f32.mrf.mxu0
    %v8919 = vadd.f32 0.0, %v8918
    %8920 = vmatprep.mubr.bf16.mxu0 %v8071
    %8921 = vmatmul.mubr.bf16.gmra.mxu0 %v8070
    %v8922 = vpop.f32.mrf.mxu0
    %v8923 = vadd.f32 0.0, %v8922
    %v8924 = vpop.f32.mrf.mxu0
    %v8925 = vadd.f32 0.0, %v8924
    %v8926 = vpop.f32.mrf.mxu0
    %v8927 = vadd.f32 0.0, %v8926
    %v8928 = vpop.f32.mrf.mxu0
    %v8929 = vadd.f32 0.0, %v8928
    %8930 = vmatprep.mubr.bf16.mxu0 %v8075
    %8931 = vmatmul.mubr.bf16.gmra.mxu0 %v8074
    %v8932 = vpop.f32.mrf.mxu0
    %v8933 = vadd.f32 0.0, %v8932
    %v8934 = vpop.f32.mrf.mxu0
    %v8935 = vadd.f32 0.0, %v8934
    %v8936 = vpop.f32.mrf.mxu0
    %v8937 = vadd.f32 0.0, %v8936
    %v8938 = vpop.f32.mrf.mxu0
    %v8939 = vadd.f32 0.0, %v8938
    %8940 = vmatprep.mubr.bf16.mxu0 %v8079
    %8941 = vmatmul.mubr.bf16.gmra.mxu0 %v8078
    %v8942 = vpop.f32.mrf.mxu0
    %v8943 = vadd.f32 0.0, %v8942
    %v8944 = vpop.f32.mrf.mxu0
    %v8945 = vadd.f32 0.0, %v8944
    %v8946 = vpop.f32.mrf.mxu0
    %v8947 = vadd.f32 0.0, %v8946
    %v8948 = vpop.f32.mrf.mxu0
    %v8949 = vadd.f32 0.0, %v8948
    %8950 = vmatprep.mubr.bf16.mxu0 %v8083
    %8951 = vmatmul.mubr.bf16.gmra.mxu0 %v8082
    %v8952 = vpop.f32.mrf.mxu0
    %v8953 = vadd.f32 0.0, %v8952
    %v8954 = vpop.f32.mrf.mxu0
    %v8955 = vadd.f32 0.0, %v8954
    %v8956 = vpop.f32.mrf.mxu0
    %v8957 = vadd.f32 0.0, %v8956
    %v8958 = vpop.f32.mrf.mxu0
    %v8959 = vadd.f32 0.0, %v8958
    %8960 = vmatprep.mubr.bf16.mxu0 %v8087
    %8961 = vmatmul.mubr.bf16.gmra.mxu0 %v8086
    %v8962 = vpop.f32.mrf.mxu0
    %v8963 = vadd.f32 0.0, %v8962
    %v8964 = vpop.f32.mrf.mxu0
    %v8965 = vadd.f32 0.0, %v8964
    %v8966 = vpop.f32.mrf.mxu0
    %v8967 = vadd.f32 0.0, %v8966
    %v8968 = vpop.f32.mrf.mxu0
    %v8969 = vadd.f32 0.0, %v8968
    %8970 = vdwg.mxu0
    %8971 = vmatprep.subr.bf16.mxu0 %v8695
    %8972 = vmatpush1.bf16.msra.mxu0 %v8694
    %8973 = vmatprep.subr.bf16.mxu0 %v8691
    %8974 = vmatpush1.bf16.msra.mxu0 %v8690
    %8975 = vmatprep.subr.bf16.mxu0 %v8687
    %8976 = vmatpush1.bf16.msra.mxu0 %v8686
    %8977 = vmatprep.subr.bf16.mxu0 %v8683
    %8978 = vmatpush1.bf16.msra.mxu0 %v8682
    %8979 = vmatprep.subr.bf16.mxu0 %v8679
    %8980 = vmatpush1.bf16.msra.mxu0 %v8678
    %8981 = vmatprep.subr.bf16.mxu0 %v8675
    %8982 = vmatpush1.bf16.msra.mxu0 %v8674
    %8983 = vmatprep.subr.bf16.mxu0 %v8671
    %8984 = vmatpush1.bf16.msra.mxu0 %v8670
    %8985 = vmatprep.subr.bf16.mxu0 %v8667
    %8986 = vmatpush1.bf16.msra.mxu0 %v8666
    %8987 = vmatprep.subr.bf16.mxu0 %v8727
    %8988 = vmatpush2.bf16.msra.mxu0 %v8726
    %8989 = vmatprep.subr.bf16.mxu0 %v8723
    %8990 = vmatpush2.bf16.msra.mxu0 %v8722
    %8991 = vmatprep.subr.bf16.mxu0 %v8719
    %8992 = vmatpush2.bf16.msra.mxu0 %v8718
    %8993 = vmatprep.subr.bf16.mxu0 %v8715
    %8994 = vmatpush2.bf16.msra.mxu0 %v8714
    %8995 = vmatprep.subr.bf16.mxu0 %v8711
    %8996 = vmatpush2.bf16.msra.mxu0 %v8710
    %8997 = vmatprep.subr.bf16.mxu0 %v8707
    %8998 = vmatpush2.bf16.msra.mxu0 %v8706
    %8999 = vmatprep.subr.bf16.mxu0 %v8703
    %9000 = vmatpush2.bf16.msra.mxu0 %v8702
    %9001 = vmatprep.subr.bf16.mxu0 %v8699
    %9002 = vmatpush2.bf16.msra.mxu0 %v8698
    %9003 = vmatprep.mubr.bf16.mxu0 %v8061
    %9004 = vmatmul.mubr.bf16.gmra.mxu0 %v8060
    %v9005 = vpop.f32.mrf.mxu0
    %v9006 = vadd.f32 %v8893, %v9005
    %v9007 = vpop.f32.mrf.mxu0
    %v9008 = vadd.f32 %v8895, %v9007
    %v9009 = vpop.f32.mrf.mxu0
    %v9010 = vadd.f32 %v8897, %v9009
    %v9011 = vpop.f32.mrf.mxu0
    %v9012 = vadd.f32 %v8899, %v9011
    %9013 = vmatprep.mubr.bf16.mxu0 %v8065
    %9014 = vmatmul.mubr.bf16.gmra.mxu0 %v8064
    %v9015 = vpop.f32.mrf.mxu0
    %v9016 = vadd.f32 %v8903, %v9015
    %v9017 = vpop.f32.mrf.mxu0
    %v9018 = vadd.f32 %v8905, %v9017
    %v9019 = vpop.f32.mrf.mxu0
    %v9020 = vadd.f32 %v8907, %v9019
    %v9021 = vpop.f32.mrf.mxu0
    %v9022 = vadd.f32 %v8909, %v9021
    %9023 = vmatprep.mubr.bf16.mxu0 %v8069
    %9024 = vmatmul.mubr.bf16.gmra.mxu0 %v8068
    %v9025 = vpop.f32.mrf.mxu0
    %v9026 = vadd.f32 %v8913, %v9025
    %v9027 = vpop.f32.mrf.mxu0
    %v9028 = vadd.f32 %v8915, %v9027
    %v9029 = vpop.f32.mrf.mxu0
    %v9030 = vadd.f32 %v8917, %v9029
    %v9031 = vpop.f32.mrf.mxu0
    %v9032 = vadd.f32 %v8919, %v9031
    %9033 = vmatprep.mubr.bf16.mxu0 %v8073
    %9034 = vmatmul.mubr.bf16.gmra.mxu0 %v8072
    %v9035 = vpop.f32.mrf.mxu0
    %v9036 = vadd.f32 %v8923, %v9035
    %v9037 = vpop.f32.mrf.mxu0
    %v9038 = vadd.f32 %v8925, %v9037
    %v9039 = vpop.f32.mrf.mxu0
    %v9040 = vadd.f32 %v8927, %v9039
    %v9041 = vpop.f32.mrf.mxu0
    %v9042 = vadd.f32 %v8929, %v9041
    %9043 = vmatprep.mubr.bf16.mxu0 %v8077
    %9044 = vmatmul.mubr.bf16.gmra.mxu0 %v8076
    %v9045 = vpop.f32.mrf.mxu0
    %v9046 = vadd.f32 %v8933, %v9045
    %v9047 = vpop.f32.mrf.mxu0
    %v9048 = vadd.f32 %v8935, %v9047
    %v9049 = vpop.f32.mrf.mxu0
    %v9050 = vadd.f32 %v8937, %v9049
    %v9051 = vpop.f32.mrf.mxu0
    %v9052 = vadd.f32 %v8939, %v9051
    %9053 = vmatprep.mubr.bf16.mxu0 %v8081
    %9054 = vmatmul.mubr.bf16.gmra.mxu0 %v8080
    %v9055 = vpop.f32.mrf.mxu0
    %v9056 = vadd.f32 %v8943, %v9055
    %v9057 = vpop.f32.mrf.mxu0
    %v9058 = vadd.f32 %v8945, %v9057
    %v9059 = vpop.f32.mrf.mxu0
    %v9060 = vadd.f32 %v8947, %v9059
    %v9061 = vpop.f32.mrf.mxu0
    %v9062 = vadd.f32 %v8949, %v9061
    %9063 = vmatprep.mubr.bf16.mxu0 %v8085
    %9064 = vmatmul.mubr.bf16.gmra.mxu0 %v8084
    %v9065 = vpop.f32.mrf.mxu0
    %v9066 = vadd.f32 %v8953, %v9065
    %v9067 = vpop.f32.mrf.mxu0
    %v9068 = vadd.f32 %v8955, %v9067
    %v9069 = vpop.f32.mrf.mxu0
    %v9070 = vadd.f32 %v8957, %v9069
    %v9071 = vpop.f32.mrf.mxu0
    %v9072 = vadd.f32 %v8959, %v9071
    %9073 = vmatprep.mubr.bf16.mxu0 %v8089
    %9074 = vmatmul.mubr.bf16.gmra.mxu0 %v8088
    %v9075 = vpop.f32.mrf.mxu0
    %v9076 = vadd.f32 %v8963, %v9075
    %v9077 = vpop.f32.mrf.mxu0
    %v9078 = vadd.f32 %v8965, %v9077
    %v9079 = vpop.f32.mrf.mxu0
    %v9080 = vadd.f32 %v8967, %v9079
    %v9081 = vpop.f32.mrf.mxu0
    %v9082 = vadd.f32 %v8969, %v9081
    %9083 = vdwg.mxu0
    %9084 = vmatprep.subr.bf16.mxu0 %v8633
    %9085 = vmatpush1.bf16.msra.mxu0 %v8632
    %9086 = vmatprep.subr.bf16.mxu0 %v8629
    %9087 = vmatpush1.bf16.msra.mxu0 %v8628
    %9088 = vmatprep.subr.bf16.mxu0 %v8625
    %9089 = vmatpush1.bf16.msra.mxu0 %v8624
    %9090 = vmatprep.subr.bf16.mxu0 %v8621
    %9091 = vmatpush1.bf16.msra.mxu0 %v8620
    %9092 = vmatprep.subr.bf16.mxu0 %v8617
    %9093 = vmatpush1.bf16.msra.mxu0 %v8616
    %9094 = vmatprep.subr.bf16.mxu0 %v8613
    %9095 = vmatpush1.bf16.msra.mxu0 %v8612
    %9096 = vmatprep.subr.bf16.mxu0 %v8609
    %9097 = vmatpush1.bf16.msra.mxu0 %v8608
    %9098 = vmatprep.subr.bf16.mxu0 %v8605
    %9099 = vmatpush1.bf16.msra.mxu0 %v8604
    %9100 = vmatprep.subr.bf16.mxu0 %v8665
    %9101 = vmatpush2.bf16.msra.mxu0 %v8664
    %9102 = vmatprep.subr.bf16.mxu0 %v8661
    %9103 = vmatpush2.bf16.msra.mxu0 %v8660
    %9104 = vmatprep.subr.bf16.mxu0 %v8657
    %9105 = vmatpush2.bf16.msra.mxu0 %v8656
    %9106 = vmatprep.subr.bf16.mxu0 %v8653
    %9107 = vmatpush2.bf16.msra.mxu0 %v8652
    %9108 = vmatprep.subr.bf16.mxu0 %v8649
    %9109 = vmatpush2.bf16.msra.mxu0 %v8648
    %9110 = vmatprep.subr.bf16.mxu0 %v8645
    %9111 = vmatpush2.bf16.msra.mxu0 %v8644
    %9112 = vmatprep.subr.bf16.mxu0 %v8641
    %9113 = vmatpush2.bf16.msra.mxu0 %v8640
    %9114 = vmatprep.subr.bf16.mxu0 %v8637
    %9115 = vmatpush2.bf16.msra.mxu0 %v8636
    %9116 = vmatprep.mubr.bf16.mxu0 %v8059
    %9117 = vmatmul.mubr.bf16.gmra.mxu0 %v8058
    %v9118 = vpop.f32.mrf.mxu0
    %v9119 = vadd.f32 0.0, %v9118
    %v9120 = vpop.f32.mrf.mxu0
    %v9121 = vadd.f32 0.0, %v9120
    %v9122 = vpop.f32.mrf.mxu0
    %v9123 = vadd.f32 0.0, %v9122
    %v9124 = vpop.f32.mrf.mxu0
    %v9125 = vadd.f32 0.0, %v9124
    %9126 = vmatprep.mubr.bf16.mxu0 %v8063
    %9127 = vmatmul.mubr.bf16.gmra.mxu0 %v8062
    %v9128 = vpop.f32.mrf.mxu0
    %v9129 = vadd.f32 0.0, %v9128
    %v9130 = vpop.f32.mrf.mxu0
    %v9131 = vadd.f32 0.0, %v9130
    %v9132 = vpop.f32.mrf.mxu0
    %v9133 = vadd.f32 0.0, %v9132
    %v9134 = vpop.f32.mrf.mxu0
    %v9135 = vadd.f32 0.0, %v9134
    %9136 = vmatprep.mubr.bf16.mxu0 %v8067
    %9137 = vmatmul.mubr.bf16.gmra.mxu0 %v8066
    %v9138 = vpop.f32.mrf.mxu0
    %v9139 = vadd.f32 0.0, %v9138
    %v9140 = vpop.f32.mrf.mxu0
    %v9141 = vadd.f32 0.0, %v9140
    %v9142 = vpop.f32.mrf.mxu0
    %v9143 = vadd.f32 0.0, %v9142
    %v9144 = vpop.f32.mrf.mxu0
    %v9145 = vadd.f32 0.0, %v9144
    %9146 = vmatprep.mubr.bf16.mxu0 %v8071
    %9147 = vmatmul.mubr.bf16.gmra.mxu0 %v8070
    %v9148 = vpop.f32.mrf.mxu0
    %v9149 = vadd.f32 0.0, %v9148
    %v9150 = vpop.f32.mrf.mxu0
    %v9151 = vadd.f32 0.0, %v9150
    %v9152 = vpop.f32.mrf.mxu0
    %v9153 = vadd.f32 0.0, %v9152
    %v9154 = vpop.f32.mrf.mxu0
    %v9155 = vadd.f32 0.0, %v9154
    %9156 = vmatprep.mubr.bf16.mxu0 %v8075
    %9157 = vmatmul.mubr.bf16.gmra.mxu0 %v8074
    %v9158 = vpop.f32.mrf.mxu0
    %v9159 = vadd.f32 0.0, %v9158
    %v9160 = vpop.f32.mrf.mxu0
    %v9161 = vadd.f32 0.0, %v9160
    %v9162 = vpop.f32.mrf.mxu0
    %v9163 = vadd.f32 0.0, %v9162
    %v9164 = vpop.f32.mrf.mxu0
    %v9165 = vadd.f32 0.0, %v9164
    %9166 = vmatprep.mubr.bf16.mxu0 %v8079
    %9167 = vmatmul.mubr.bf16.gmra.mxu0 %v8078
    %v9168 = vpop.f32.mrf.mxu0
    %v9169 = vadd.f32 0.0, %v9168
    %v9170 = vpop.f32.mrf.mxu0
    %v9171 = vadd.f32 0.0, %v9170
    %v9172 = vpop.f32.mrf.mxu0
    %v9173 = vadd.f32 0.0, %v9172
    %v9174 = vpop.f32.mrf.mxu0
    %v9175 = vadd.f32 0.0, %v9174
    %9176 = vmatprep.mubr.bf16.mxu0 %v8083
    %9177 = vmatmul.mubr.bf16.gmra.mxu0 %v8082
    %v9178 = vpop.f32.mrf.mxu0
    %v9179 = vadd.f32 0.0, %v9178
    %v9180 = vpop.f32.mrf.mxu0
    %v9181 = vadd.f32 0.0, %v9180
    %v9182 = vpop.f32.mrf.mxu0
    %v9183 = vadd.f32 0.0, %v9182
    %v9184 = vpop.f32.mrf.mxu0
    %v9185 = vadd.f32 0.0, %v9184
    %9186 = vmatprep.mubr.bf16.mxu0 %v8087
    %9187 = vmatmul.mubr.bf16.gmra.mxu0 %v8086
    %v9188 = vpop.f32.mrf.mxu0
    %v9189 = vadd.f32 0.0, %v9188
    %v9190 = vpop.f32.mrf.mxu0
    %v9191 = vadd.f32 0.0, %v9190
    %v9192 = vpop.f32.mrf.mxu0
    %v9193 = vadd.f32 0.0, %v9192
    %v9194 = vpop.f32.mrf.mxu0
    %v9195 = vadd.f32 0.0, %v9194
    %9196 = vdwg.mxu0
    %9197 = vmatprep.subr.bf16.mxu0 %v8697
    %9198 = vmatpush1.bf16.msra.mxu0 %v8696
    %9199 = vmatprep.subr.bf16.mxu0 %v8693
    %9200 = vmatpush1.bf16.msra.mxu0 %v8692
    %9201 = vmatprep.subr.bf16.mxu0 %v8689
    %9202 = vmatpush1.bf16.msra.mxu0 %v8688
    %9203 = vmatprep.subr.bf16.mxu0 %v8685
    %9204 = vmatpush1.bf16.msra.mxu0 %v8684
    %9205 = vmatprep.subr.bf16.mxu0 %v8681
    %9206 = vmatpush1.bf16.msra.mxu0 %v8680
    %9207 = vmatprep.subr.bf16.mxu0 %v8677
    %9208 = vmatpush1.bf16.msra.mxu0 %v8676
    %9209 = vmatprep.subr.bf16.mxu0 %v8673
    %9210 = vmatpush1.bf16.msra.mxu0 %v8672
    %9211 = vmatprep.subr.bf16.mxu0 %v8669
    %9212 = vmatpush1.bf16.msra.mxu0 %v8668
    %9213 = vmatprep.subr.bf16.mxu0 %v8729
    %9214 = vmatpush2.bf16.msra.mxu0 %v8728
    %9215 = vmatprep.subr.bf16.mxu0 %v8725
    %9216 = vmatpush2.bf16.msra.mxu0 %v8724
    %9217 = vmatprep.subr.bf16.mxu0 %v8721
    %9218 = vmatpush2.bf16.msra.mxu0 %v8720
    %9219 = vmatprep.subr.bf16.mxu0 %v8717
    %9220 = vmatpush2.bf16.msra.mxu0 %v8716
    %9221 = vmatprep.subr.bf16.mxu0 %v8713
    %9222 = vmatpush2.bf16.msra.mxu0 %v8712
    %9223 = vmatprep.subr.bf16.mxu0 %v8709
    %9224 = vmatpush2.bf16.msra.mxu0 %v8708
    %9225 = vmatprep.subr.bf16.mxu0 %v8705
    %9226 = vmatpush2.bf16.msra.mxu0 %v8704
    %9227 = vmatprep.subr.bf16.mxu0 %v8701
    %9228 = vmatpush2.bf16.msra.mxu0 %v8700
    %9229 = vmatprep.mubr.bf16.mxu0 %v8061
    %9230 = vmatmul.mubr.bf16.gmra.mxu0 %v8060
    %v9231 = vpop.f32.mrf.mxu0
    %v9232 = vadd.f32 %v9119, %v9231
    %v9233 = vpop.f32.mrf.mxu0
    %v9234 = vadd.f32 %v9121, %v9233
    %v9235 = vpop.f32.mrf.mxu0
    %v9236 = vadd.f32 %v9123, %v9235
    %v9237 = vpop.f32.mrf.mxu0
    %v9238 = vadd.f32 %v9125, %v9237
    %9239 = vmatprep.mubr.bf16.mxu0 %v8065
    %9240 = vmatmul.mubr.bf16.gmra.mxu0 %v8064
    %v9241 = vpop.f32.mrf.mxu0
    %v9242 = vadd.f32 %v9129, %v9241
    %v9243 = vpop.f32.mrf.mxu0
    %v9244 = vadd.f32 %v9131, %v9243
    %v9245 = vpop.f32.mrf.mxu0
    %v9246 = vadd.f32 %v9133, %v9245
    %v9247 = vpop.f32.mrf.mxu0
    %v9248 = vadd.f32 %v9135, %v9247
    %9249 = vmatprep.mubr.bf16.mxu0 %v8069
    %9250 = vmatmul.mubr.bf16.gmra.mxu0 %v8068
    %v9251 = vpop.f32.mrf.mxu0
    %v9252 = vadd.f32 %v9139, %v9251
    %v9253 = vpop.f32.mrf.mxu0
    %v9254 = vadd.f32 %v9141, %v9253
    %v9255 = vpop.f32.mrf.mxu0
    %v9256 = vadd.f32 %v9143, %v9255
    %v9257 = vpop.f32.mrf.mxu0
    %v9258 = vadd.f32 %v9145, %v9257
    %9259 = vmatprep.mubr.bf16.mxu0 %v8073
    %9260 = vmatmul.mubr.bf16.gmra.mxu0 %v8072
    %v9261 = vpop.f32.mrf.mxu0
    %v9262 = vadd.f32 %v9149, %v9261
    %v9263 = vpop.f32.mrf.mxu0
    %v9264 = vadd.f32 %v9151, %v9263
    %v9265 = vpop.f32.mrf.mxu0
    %v9266 = vadd.f32 %v9153, %v9265
    %v9267 = vpop.f32.mrf.mxu0
    %v9268 = vadd.f32 %v9155, %v9267
    %9269 = vmatprep.mubr.bf16.mxu0 %v8077
    %9270 = vmatmul.mubr.bf16.gmra.mxu0 %v8076
    %v9271 = vpop.f32.mrf.mxu0
    %v9272 = vadd.f32 %v9159, %v9271
    %v9273 = vpop.f32.mrf.mxu0
    %v9274 = vadd.f32 %v9161, %v9273
    %v9275 = vpop.f32.mrf.mxu0
    %v9276 = vadd.f32 %v9163, %v9275
    %v9277 = vpop.f32.mrf.mxu0
    %v9278 = vadd.f32 %v9165, %v9277
    %9279 = vmatprep.mubr.bf16.mxu0 %v8081
    %9280 = vmatmul.mubr.bf16.gmra.mxu0 %v8080
    %v9281 = vpop.f32.mrf.mxu0
    %v9282 = vadd.f32 %v9169, %v9281
    %v9283 = vpop.f32.mrf.mxu0
    %v9284 = vadd.f32 %v9171, %v9283
    %v9285 = vpop.f32.mrf.mxu0
    %v9286 = vadd.f32 %v9173, %v9285
    %v9287 = vpop.f32.mrf.mxu0
    %v9288 = vadd.f32 %v9175, %v9287
    %9289 = vmatprep.mubr.bf16.mxu0 %v8085
    %9290 = vmatmul.mubr.bf16.gmra.mxu0 %v8084
    %v9291 = vpop.f32.mrf.mxu0
    %v9292 = vadd.f32 %v9179, %v9291
    %v9293 = vpop.f32.mrf.mxu0
    %v9294 = vadd.f32 %v9181, %v9293
    %v9295 = vpop.f32.mrf.mxu0
    %v9296 = vadd.f32 %v9183, %v9295
    %v9297 = vpop.f32.mrf.mxu0
    %v9298 = vadd.f32 %v9185, %v9297
    %9299 = vmatprep.mubr.bf16.mxu0 %v8089
    %9300 = vmatmul.mubr.bf16.gmra.mxu0 %v8088
    %v9301 = vpop.f32.mrf.mxu0
    %v9302 = vadd.f32 %v9189, %v9301
    %v9303 = vpop.f32.mrf.mxu0
    %v9304 = vadd.f32 %v9191, %v9303
    %v9305 = vpop.f32.mrf.mxu0
    %v9306 = vadd.f32 %v9193, %v9305
    %v9307 = vpop.f32.mrf.mxu0
    %v9308 = vadd.f32 %v9195, %v9307
    %9309 = vdwg.mxu0
    %v9310 = vxor.u32 %v9006, 2147483648
    %v9311 = vxor.u32 %v9008, 2147483648
    %v9312 = vxor.u32 %v9232, 2147483648
    %v9313 = vxor.u32 %v9234, 2147483648
    %v9314 = vxor.u32 %v9010, 2147483648
    %v9315 = vxor.u32 %v9012, 2147483648
    %v9316 = vxor.u32 %v9236, 2147483648
    %v9317 = vxor.u32 %v9238, 2147483648
    %v9318 = vxor.u32 %v9016, 2147483648
    %v9319 = vxor.u32 %v9018, 2147483648
    %v9320 = vxor.u32 %v9242, 2147483648
    %v9321 = vxor.u32 %v9244, 2147483648
    %v9322 = vxor.u32 %v9020, 2147483648
    %v9323 = vxor.u32 %v9022, 2147483648
    %v9324 = vxor.u32 %v9246, 2147483648
    %v9325 = vxor.u32 %v9248, 2147483648
    %v9326 = vxor.u32 %v9026, 2147483648
    %v9327 = vxor.u32 %v9028, 2147483648
    %v9328 = vxor.u32 %v9252, 2147483648
    %v9329 = vxor.u32 %v9254, 2147483648
    %v9330 = vxor.u32 %v9030, 2147483648
    %v9331 = vxor.u32 %v9032, 2147483648
    %v9332 = vxor.u32 %v9256, 2147483648
    %v9333 = vxor.u32 %v9258, 2147483648
    %v9334 = vxor.u32 %v9036, 2147483648
    %v9335 = vxor.u32 %v9038, 2147483648
    %v9336 = vxor.u32 %v9262, 2147483648
    %v9337 = vxor.u32 %v9264, 2147483648
    %v9338 = vxor.u32 %v9040, 2147483648
    %v9339 = vxor.u32 %v9042, 2147483648
    %v9340 = vxor.u32 %v9266, 2147483648
    %v9341 = vxor.u32 %v9268, 2147483648
    %v9342 = vxor.u32 %v9046, 2147483648
    %v9343 = vxor.u32 %v9048, 2147483648
    %v9344 = vxor.u32 %v9272, 2147483648
    %v9345 = vxor.u32 %v9274, 2147483648
    %v9346 = vxor.u32 %v9050, 2147483648
    %v9347 = vxor.u32 %v9052, 2147483648
    %v9348 = vxor.u32 %v9276, 2147483648
    %v9349 = vxor.u32 %v9278, 2147483648
    %v9350 = vxor.u32 %v9056, 2147483648
    %v9351 = vxor.u32 %v9058, 2147483648
    %v9352 = vxor.u32 %v9282, 2147483648
    %v9353 = vxor.u32 %v9284, 2147483648
    %v9354 = vxor.u32 %v9060, 2147483648
    %v9355 = vxor.u32 %v9062, 2147483648
    %v9356 = vxor.u32 %v9286, 2147483648
    %v9357 = vxor.u32 %v9288, 2147483648
    %v9358 = vxor.u32 %v9066, 2147483648
    %v9359 = vxor.u32 %v9068, 2147483648
    %v9360 = vxor.u32 %v9292, 2147483648
    %v9361 = vxor.u32 %v9294, 2147483648
    %v9362 = vxor.u32 %v9070, 2147483648
    %v9363 = vxor.u32 %v9072, 2147483648
    %v9364 = vxor.u32 %v9296, 2147483648
    %v9365 = vxor.u32 %v9298, 2147483648
    %v9366 = vxor.u32 %v9076, 2147483648
    %v9367 = vxor.u32 %v9078, 2147483648
    %v9368 = vxor.u32 %v9302, 2147483648
    %v9369 = vxor.u32 %v9304, 2147483648
    %v9370 = vxor.u32 %v9080, 2147483648
    %v9371 = vxor.u32 %v9082, 2147483648
    %v9372 = vxor.u32 %v9306, 2147483648
    %v9373 = vxor.u32 %v9308, 2147483648
    %v9374 = vmul.f32 %v9310, 1.442695
    %v9375 = vpow.pop %v9374
    %v9376 = vmul.f32 %v9311, 1.442695
    %v9377 = vpow.pop %v9376
    %v9378 = vmul.f32 %v9312, 1.442695
    %v9379 = vpow.pop %v9378
    %v9380 = vmul.f32 %v9313, 1.442695
    %v9381 = vpow.pop %v9380
    %v9382 = vmul.f32 %v9314, 1.442695
    %v9383 = vpow.pop %v9382
    %v9384 = vmul.f32 %v9315, 1.442695
    %v9385 = vpow.pop %v9384
    %v9386 = vmul.f32 %v9316, 1.442695
    %v9387 = vpow.pop %v9386
    %v9388 = vmul.f32 %v9317, 1.442695
    %v9389 = vpow.pop %v9388
    %v9390 = vmul.f32 %v9318, 1.442695
    %v9391 = vpow.pop %v9390
    %v9392 = vmul.f32 %v9319, 1.442695
    %v9393 = vpow.pop %v9392
    %v9394 = vmul.f32 %v9320, 1.442695
    %v9395 = vpow.pop %v9394
    %v9396 = vmul.f32 %v9321, 1.442695
    %v9397 = vpow.pop %v9396
    %v9398 = vmul.f32 %v9322, 1.442695
    %v9399 = vpow.pop %v9398
    %v9400 = vmul.f32 %v9323, 1.442695
    %v9401 = vpow.pop %v9400
    %v9402 = vmul.f32 %v9324, 1.442695
    %v9403 = vpow.pop %v9402
    %v9404 = vmul.f32 %v9325, 1.442695
    %v9405 = vpow.pop %v9404
    %v9406 = vmul.f32 %v9326, 1.442695
    %v9407 = vpow.pop %v9406
    %v9408 = vmul.f32 %v9327, 1.442695
    %v9409 = vpow.pop %v9408
    %v9410 = vmul.f32 %v9328, 1.442695
    %v9411 = vpow.pop %v9410
    %v9412 = vmul.f32 %v9329, 1.442695
    %v9413 = vpow.pop %v9412
    %v9414 = vmul.f32 %v9330, 1.442695
    %v9415 = vpow.pop %v9414
    %v9416 = vmul.f32 %v9331, 1.442695
    %v9417 = vpow.pop %v9416
    %v9418 = vmul.f32 %v9332, 1.442695
    %v9419 = vpow.pop %v9418
    %v9420 = vmul.f32 %v9333, 1.442695
    %v9421 = vpow.pop %v9420
    %v9422 = vmul.f32 %v9334, 1.442695
    %v9423 = vpow.pop %v9422
    %v9424 = vmul.f32 %v9335, 1.442695
    %v9425 = vpow.pop %v9424
    %v9426 = vmul.f32 %v9336, 1.442695
    %v9427 = vpow.pop %v9426
    %v9428 = vmul.f32 %v9337, 1.442695
    %v9429 = vpow.pop %v9428
    %v9430 = vmul.f32 %v9338, 1.442695
    %v9431 = vpow.pop %v9430
    %v9432 = vmul.f32 %v9339, 1.442695
    %v9433 = vpow.pop %v9432
    %v9434 = vmul.f32 %v9340, 1.442695
    %v9435 = vpow.pop %v9434
    %v9436 = vmul.f32 %v9341, 1.442695
    %v9437 = vpow.pop %v9436
    %v9438 = vmul.f32 %v9342, 1.442695
    %v9439 = vpow.pop %v9438
    %v9440 = vmul.f32 %v9343, 1.442695
    %v9441 = vpow.pop %v9440
    %v9442 = vmul.f32 %v9344, 1.442695
    %v9443 = vpow.pop %v9442
    %v9444 = vmul.f32 %v9345, 1.442695
    %v9445 = vpow.pop %v9444
    %v9446 = vmul.f32 %v9346, 1.442695
    %v9447 = vpow.pop %v9446
    %v9448 = vmul.f32 %v9347, 1.442695
    %v9449 = vpow.pop %v9448
    %v9450 = vmul.f32 %v9348, 1.442695
    %v9451 = vpow.pop %v9450
    %v9452 = vmul.f32 %v9349, 1.442695
    %v9453 = vpow.pop %v9452
    %v9454 = vmul.f32 %v9350, 1.442695
    %v9455 = vpow.pop %v9454
    %v9456 = vmul.f32 %v9351, 1.442695
    %v9457 = vpow.pop %v9456
    %v9458 = vmul.f32 %v9352, 1.442695
    %v9459 = vpow.pop %v9458
    %v9460 = vmul.f32 %v9353, 1.442695
    %v9461 = vpow.pop %v9460
    %v9462 = vmul.f32 %v9354, 1.442695
    %v9463 = vpow.pop %v9462
    %v9464 = vmul.f32 %v9355, 1.442695
    %v9465 = vpow.pop %v9464
    %v9466 = vmul.f32 %v9356, 1.442695
    %v9467 = vpow.pop %v9466
    %v9468 = vmul.f32 %v9357, 1.442695
    %v9469 = vpow.pop %v9468
    %v9470 = vmul.f32 %v9358, 1.442695
    %v9471 = vpow.pop %v9470
    %v9472 = vmul.f32 %v9359, 1.442695
    %v9473 = vpow.pop %v9472
    %v9474 = vmul.f32 %v9360, 1.442695
    %v9475 = vpow.pop %v9474
    %v9476 = vmul.f32 %v9361, 1.442695
    %v9477 = vpow.pop %v9476
    %v9478 = vmul.f32 %v9362, 1.442695
    %v9479 = vpow.pop %v9478
    %v9480 = vmul.f32 %v9363, 1.442695
    %v9481 = vpow.pop %v9480
    %v9482 = vmul.f32 %v9364, 1.442695
    %v9483 = vpow.pop %v9482
    %v9484 = vmul.f32 %v9365, 1.442695
    %v9485 = vpow.pop %v9484
    %v9486 = vmul.f32 %v9366, 1.442695
    %v9487 = vpow.pop %v9486
    %v9488 = vmul.f32 %v9367, 1.442695
    %v9489 = vpow.pop %v9488
    %v9490 = vmul.f32 %v9368, 1.442695
    %v9491 = vpow.pop %v9490
    %v9492 = vmul.f32 %v9369, 1.442695
    %v9493 = vpow.pop %v9492
    %v9494 = vmul.f32 %v9370, 1.442695
    %v9495 = vpow.pop %v9494
    %v9496 = vmul.f32 %v9371, 1.442695
    %v9497 = vpow.pop %v9496
    %v9498 = vmul.f32 %v9372, 1.442695
    %v9499 = vpow.pop %v9498
    %v9500 = vmul.f32 %v9373, 1.442695
    %v9501 = vpow.pop %v9500
    %v9502 = vadd.f32 %v9375, 1.0
    %v9503 = vadd.f32 %v9377, 1.0
    %v9504 = vadd.f32 %v9379, 1.0
    %v9505 = vadd.f32 %v9381, 1.0
    %v9506 = vadd.f32 %v9383, 1.0
    %v9507 = vadd.f32 %v9385, 1.0
    %v9508 = vadd.f32 %v9387, 1.0
    %v9509 = vadd.f32 %v9389, 1.0
    %v9510 = vadd.f32 %v9391, 1.0
    %v9511 = vadd.f32 %v9393, 1.0
    %v9512 = vadd.f32 %v9395, 1.0
    %v9513 = vadd.f32 %v9397, 1.0
    %v9514 = vadd.f32 %v9399, 1.0
    %v9515 = vadd.f32 %v9401, 1.0
    %v9516 = vadd.f32 %v9403, 1.0
    %v9517 = vadd.f32 %v9405, 1.0
    %v9518 = vadd.f32 %v9407, 1.0
    %v9519 = vadd.f32 %v9409, 1.0
    %v9520 = vadd.f32 %v9411, 1.0
    %v9521 = vadd.f32 %v9413, 1.0
    %v9522 = vadd.f32 %v9415, 1.0
    %v9523 = vadd.f32 %v9417, 1.0
    %v9524 = vadd.f32 %v9419, 1.0
    %v9525 = vadd.f32 %v9421, 1.0
    %v9526 = vadd.f32 %v9423, 1.0
    %v9527 = vadd.f32 %v9425, 1.0
    %v9528 = vadd.f32 %v9427, 1.0
    %v9529 = vadd.f32 %v9429, 1.0
    %v9530 = vadd.f32 %v9431, 1.0
    %v9531 = vadd.f32 %v9433, 1.0
    %v9532 = vadd.f32 %v9435, 1.0
    %v9533 = vadd.f32 %v9437, 1.0
    %v9534 = vadd.f32 %v9439, 1.0
    %v9535 = vadd.f32 %v9441, 1.0
    %v9536 = vadd.f32 %v9443, 1.0
    %v9537 = vadd.f32 %v9445, 1.0
    %v9538 = vadd.f32 %v9447, 1.0
    %v9539 = vadd.f32 %v9449, 1.0
    %v9540 = vadd.f32 %v9451, 1.0
    %v9541 = vadd.f32 %v9453, 1.0
    %v9542 = vadd.f32 %v9455, 1.0
    %v9543 = vadd.f32 %v9457, 1.0
    %v9544 = vadd.f32 %v9459, 1.0
    %v9545 = vadd.f32 %v9461, 1.0
    %v9546 = vadd.f32 %v9463, 1.0
    %v9547 = vadd.f32 %v9465, 1.0
    %v9548 = vadd.f32 %v9467, 1.0
    %v9549 = vadd.f32 %v9469, 1.0
    %v9550 = vadd.f32 %v9471, 1.0
    %v9551 = vadd.f32 %v9473, 1.0
    %v9552 = vadd.f32 %v9475, 1.0
    %v9553 = vadd.f32 %v9477, 1.0
    %v9554 = vadd.f32 %v9479, 1.0
    %v9555 = vadd.f32 %v9481, 1.0
    %v9556 = vadd.f32 %v9483, 1.0
    %v9557 = vadd.f32 %v9485, 1.0
    %v9558 = vadd.f32 %v9487, 1.0
    %v9559 = vadd.f32 %v9489, 1.0
    %v9560 = vadd.f32 %v9491, 1.0
    %v9561 = vadd.f32 %v9493, 1.0
    %v9562 = vadd.f32 %v9495, 1.0
    %v9563 = vadd.f32 %v9497, 1.0
    %v9564 = vadd.f32 %v9499, 1.0
    %v9565 = vadd.f32 %v9501, 1.0
    %v9566 = vrcp.pop %v9502
    %v9567 = vmul.f32 1.0, %v9566
    %v9568 = vrcp.pop %v9503
    %v9569 = vmul.f32 1.0, %v9568
    %v9570 = vrcp.pop %v9504
    %v9571 = vmul.f32 1.0, %v9570
    %v9572 = vrcp.pop %v9505
    %v9573 = vmul.f32 1.0, %v9572
    %v9574 = vrcp.pop %v9506
    %v9575 = vmul.f32 1.0, %v9574
    %v9576 = vrcp.pop %v9507
    %v9577 = vmul.f32 1.0, %v9576
    %v9578 = vrcp.pop %v9508
    %v9579 = vmul.f32 1.0, %v9578
    %v9580 = vrcp.pop %v9509
    %v9581 = vmul.f32 1.0, %v9580
    %v9582 = vrcp.pop %v9510
    %v9583 = vmul.f32 1.0, %v9582
    %v9584 = vrcp.pop %v9511
    %v9585 = vmul.f32 1.0, %v9584
    %v9586 = vrcp.pop %v9512
    %v9587 = vmul.f32 1.0, %v9586
    %v9588 = vrcp.pop %v9513
    %v9589 = vmul.f32 1.0, %v9588
    %v9590 = vrcp.pop %v9514
    %v9591 = vmul.f32 1.0, %v9590
    %v9592 = vrcp.pop %v9515
    %v9593 = vmul.f32 1.0, %v9592
    %v9594 = vrcp.pop %v9516
    %v9595 = vmul.f32 1.0, %v9594
    %v9596 = vrcp.pop %v9517
    %v9597 = vmul.f32 1.0, %v9596
    %v9598 = vrcp.pop %v9518
    %v9599 = vmul.f32 1.0, %v9598
    %v9600 = vrcp.pop %v9519
    %v9601 = vmul.f32 1.0, %v9600
    %v9602 = vrcp.pop %v9520
    %v9603 = vmul.f32 1.0, %v9602
    %v9604 = vrcp.pop %v9521
    %v9605 = vmul.f32 1.0, %v9604
    %v9606 = vrcp.pop %v9522
    %v9607 = vmul.f32 1.0, %v9606
    %v9608 = vrcp.pop %v9523
    %v9609 = vmul.f32 1.0, %v9608
    %v9610 = vrcp.pop %v9524
    %v9611 = vmul.f32 1.0, %v9610
    %v9612 = vrcp.pop %v9525
    %v9613 = vmul.f32 1.0, %v9612
    %v9614 = vrcp.pop %v9526
    %v9615 = vmul.f32 1.0, %v9614
    %v9616 = vrcp.pop %v9527
    %v9617 = vmul.f32 1.0, %v9616
    %v9618 = vrcp.pop %v9528
    %v9619 = vmul.f32 1.0, %v9618
    %v9620 = vrcp.pop %v9529
    %v9621 = vmul.f32 1.0, %v9620
    %v9622 = vrcp.pop %v9530
    %v9623 = vmul.f32 1.0, %v9622
    %v9624 = vrcp.pop %v9531
    %v9625 = vmul.f32 1.0, %v9624
    %v9626 = vrcp.pop %v9532
    %v9627 = vmul.f32 1.0, %v9626
    %v9628 = vrcp.pop %v9533
    %v9629 = vmul.f32 1.0, %v9628
    %v9630 = vrcp.pop %v9534
    %v9631 = vmul.f32 1.0, %v9630
    %v9632 = vrcp.pop %v9535
    %v9633 = vmul.f32 1.0, %v9632
    %v9634 = vrcp.pop %v9536
    %v9635 = vmul.f32 1.0, %v9634
    %v9636 = vrcp.pop %v9537
    %v9637 = vmul.f32 1.0, %v9636
    %v9638 = vrcp.pop %v9538
    %v9639 = vmul.f32 1.0, %v9638
    %v9640 = vrcp.pop %v9539
    %v9641 = vmul.f32 1.0, %v9640
    %v9642 = vrcp.pop %v9540
    %v9643 = vmul.f32 1.0, %v9642
    %v9644 = vrcp.pop %v9541
    %v9645 = vmul.f32 1.0, %v9644
    %v9646 = vrcp.pop %v9542
    %v9647 = vmul.f32 1.0, %v9646
    %v9648 = vrcp.pop %v9543
    %v9649 = vmul.f32 1.0, %v9648
    %v9650 = vrcp.pop %v9544
    %v9651 = vmul.f32 1.0, %v9650
    %v9652 = vrcp.pop %v9545
    %v9653 = vmul.f32 1.0, %v9652
    %v9654 = vrcp.pop %v9546
    %v9655 = vmul.f32 1.0, %v9654
    %v9656 = vrcp.pop %v9547
    %v9657 = vmul.f32 1.0, %v9656
    %v9658 = vrcp.pop %v9548
    %v9659 = vmul.f32 1.0, %v9658
    %v9660 = vrcp.pop %v9549
    %v9661 = vmul.f32 1.0, %v9660
    %v9662 = vrcp.pop %v9550
    %v9663 = vmul.f32 1.0, %v9662
    %v9664 = vrcp.pop %v9551
    %v9665 = vmul.f32 1.0, %v9664
    %v9666 = vrcp.pop %v9552
    %v9667 = vmul.f32 1.0, %v9666
    %v9668 = vrcp.pop %v9553
    %v9669 = vmul.f32 1.0, %v9668
    %v9670 = vrcp.pop %v9554
    %v9671 = vmul.f32 1.0, %v9670
    %v9672 = vrcp.pop %v9555
    %v9673 = vmul.f32 1.0, %v9672
    %v9674 = vrcp.pop %v9556
    %v9675 = vmul.f32 1.0, %v9674
    %v9676 = vrcp.pop %v9557
    %v9677 = vmul.f32 1.0, %v9676
    %v9678 = vrcp.pop %v9558
    %v9679 = vmul.f32 1.0, %v9678
    %v9680 = vrcp.pop %v9559
    %v9681 = vmul.f32 1.0, %v9680
    %v9682 = vrcp.pop %v9560
    %v9683 = vmul.f32 1.0, %v9682
    %v9684 = vrcp.pop %v9561
    %v9685 = vmul.f32 1.0, %v9684
    %v9686 = vrcp.pop %v9562
    %v9687 = vmul.f32 1.0, %v9686
    %v9688 = vrcp.pop %v9563
    %v9689 = vmul.f32 1.0, %v9688
    %v9690 = vrcp.pop %v9564
    %v9691 = vmul.f32 1.0, %v9690
    %v9692 = vrcp.pop %v9565
    %v9693 = vmul.f32 1.0, %v9692
    %v9694 = vpack.c.bf16 %v9575, %v9567
    %v9695 = vpack.c.bf16 %v9577, %v9569
    %v9696 = vpack.c.bf16 %v9579, %v9571
    %v9697 = vpack.c.bf16 %v9581, %v9573
    %v9698 = vpack.c.bf16 %v9591, %v9583
    %v9699 = vpack.c.bf16 %v9593, %v9585
    %v9700 = vpack.c.bf16 %v9595, %v9587
    %v9701 = vpack.c.bf16 %v9597, %v9589
    %v9702 = vpack.c.bf16 %v9607, %v9599
    %v9703 = vpack.c.bf16 %v9609, %v9601
    %v9704 = vpack.c.bf16 %v9611, %v9603
    %v9705 = vpack.c.bf16 %v9613, %v9605
    %v9706 = vpack.c.bf16 %v9623, %v9615
    %v9707 = vpack.c.bf16 %v9625, %v9617
    %v9708 = vpack.c.bf16 %v9627, %v9619
    %v9709 = vpack.c.bf16 %v9629, %v9621
    %v9710 = vpack.c.bf16 %v9639, %v9631
    %v9711 = vpack.c.bf16 %v9641, %v9633
    %v9712 = vpack.c.bf16 %v9643, %v9635
    %v9713 = vpack.c.bf16 %v9645, %v9637
    %v9714 = vpack.c.bf16 %v9655, %v9647
    %v9715 = vpack.c.bf16 %v9657, %v9649
    %v9716 = vpack.c.bf16 %v9659, %v9651
    %v9717 = vpack.c.bf16 %v9661, %v9653
    %v9718 = vpack.c.bf16 %v9671, %v9663
    %v9719 = vpack.c.bf16 %v9673, %v9665
    %v9720 = vpack.c.bf16 %v9675, %v9667
    %v9721 = vpack.c.bf16 %v9677, %v9669
    %v9722 = vpack.c.bf16 %v9687, %v9679
    %v9723 = vpack.c.bf16 %v9689, %v9681
    %v9724 = vpack.c.bf16 %v9691, %v9683
    %v9725 = vpack.c.bf16 %v9693, %v9685
    %v9726 = vld [vmem:[#allocation15] sm:$0xff]
    %v9727 = vld [vmem:[#allocation15 + $0x8] sm:$0xff]
    %v9728 = vld [vmem:[#allocation15 + $0x10] sm:$0xff]
    %v9729 = vld [vmem:[#allocation15 + $0x18] sm:$0xff]
    %v9730 = vld [vmem:[#allocation15 + $0x20] sm:$0xff]
    %v9731 = vld [vmem:[#allocation15 + $0x28] sm:$0xff]
    %v9732 = vld [vmem:[#allocation15 + $0x30] sm:$0xff]
    %v9733 = vld [vmem:[#allocation15 + $0x38] sm:$0xff]
    %v9734 = vld [vmem:[#allocation15 + $0x40] sm:$0xff]
    %v9735 = vld [vmem:[#allocation15 + $0x48] sm:$0xff]
    %v9736 = vld [vmem:[#allocation15 + $0x50] sm:$0xff]
    %v9737 = vld [vmem:[#allocation15 + $0x58] sm:$0xff]
    %v9738 = vld [vmem:[#allocation15 + $0x60] sm:$0xff]
    %v9739 = vld [vmem:[#allocation15 + $0x68] sm:$0xff]
    %v9740 = vld [vmem:[#allocation15 + $0x70] sm:$0xff]
    %v9741 = vld [vmem:[#allocation15 + $0x78] sm:$0xff]
    %v9742 = vld [vmem:[#allocation15 + $0x80] sm:$0xff]
    %v9743 = vld [vmem:[#allocation15 + $0x88] sm:$0xff]
    %v9744 = vld [vmem:[#allocation15 + $0x90] sm:$0xff]
    %v9745 = vld [vmem:[#allocation15 + $0x98] sm:$0xff]
    %v9746 = vld [vmem:[#allocation15 + $0xa0] sm:$0xff]
    %v9747 = vld [vmem:[#allocation15 + $0xa8] sm:$0xff]
    %v9748 = vld [vmem:[#allocation15 + $0xb0] sm:$0xff]
    %v9749 = vld [vmem:[#allocation15 + $0xb8] sm:$0xff]
    %v9750 = vld [vmem:[#allocation15 + $0xc0] sm:$0xff]
    %v9751 = vld [vmem:[#allocation15 + $0xc8] sm:$0xff]
    %v9752 = vld [vmem:[#allocation15 + $0xd0] sm:$0xff]
    %v9753 = vld [vmem:[#allocation15 + $0xd8] sm:$0xff]
    %v9754 = vld [vmem:[#allocation15 + $0xe0] sm:$0xff]
    %v9755 = vld [vmem:[#allocation15 + $0xe8] sm:$0xff]
    %v9756 = vld [vmem:[#allocation15 + $0xf0] sm:$0xff]
    %v9757 = vld [vmem:[#allocation15 + $0xf8] sm:$0xff]
    %v9758 = vld [vmem:[#allocation15 + $0x100] sm:$0xff]
    %v9759 = vld [vmem:[#allocation15 + $0x108] sm:$0xff]
    %v9760 = vld [vmem:[#allocation15 + $0x110] sm:$0xff]
    %v9761 = vld [vmem:[#allocation15 + $0x118] sm:$0xff]
    %v9762 = vld [vmem:[#allocation15 + $0x120] sm:$0xff]
    %v9763 = vld [vmem:[#allocation15 + $0x128] sm:$0xff]
    %v9764 = vld [vmem:[#allocation15 + $0x130] sm:$0xff]
    %v9765 = vld [vmem:[#allocation15 + $0x138] sm:$0xff]
    %v9766 = vld [vmem:[#allocation15 + $0x140] sm:$0xff]
    %v9767 = vld [vmem:[#allocation15 + $0x148] sm:$0xff]
    %v9768 = vld [vmem:[#allocation15 + $0x150] sm:$0xff]
    %v9769 = vld [vmem:[#allocation15 + $0x158] sm:$0xff]
    %v9770 = vld [vmem:[#allocation15 + $0x160] sm:$0xff]
    %v9771 = vld [vmem:[#allocation15 + $0x168] sm:$0xff]
    %v9772 = vld [vmem:[#allocation15 + $0x170] sm:$0xff]
    %v9773 = vld [vmem:[#allocation15 + $0x178] sm:$0xff]
    %v9774 = vld [vmem:[#allocation15 + $0x180] sm:$0xff]
    %v9775 = vld [vmem:[#allocation15 + $0x188] sm:$0xff]
    %v9776 = vld [vmem:[#allocation15 + $0x190] sm:$0xff]
    %v9777 = vld [vmem:[#allocation15 + $0x198] sm:$0xff]
    %v9778 = vld [vmem:[#allocation15 + $0x1a0] sm:$0xff]
    %v9779 = vld [vmem:[#allocation15 + $0x1a8] sm:$0xff]
    %v9780 = vld [vmem:[#allocation15 + $0x1b0] sm:$0xff]
    %v9781 = vld [vmem:[#allocation15 + $0x1b8] sm:$0xff]
    %v9782 = vld [vmem:[#allocation15 + $0x1c0] sm:$0xff]
    %v9783 = vld [vmem:[#allocation15 + $0x1c8] sm:$0xff]
    %v9784 = vld [vmem:[#allocation15 + $0x1d0] sm:$0xff]
    %v9785 = vld [vmem:[#allocation15 + $0x1d8] sm:$0xff]
    %v9786 = vld [vmem:[#allocation15 + $0x1e0] sm:$0xff]
    %v9787 = vld [vmem:[#allocation15 + $0x1e8] sm:$0xff]
    %v9788 = vld [vmem:[#allocation15 + $0x1f0] sm:$0xff]
    %v9789 = vld [vmem:[#allocation15 + $0x1f8] sm:$0xff]
    %v9790 = vld [vmem:[#allocation15 + $0x200] sm:$0xff]
    %v9791 = vld [vmem:[#allocation15 + $0x208] sm:$0xff]
    %v9792 = vld [vmem:[#allocation15 + $0x210] sm:$0xff]
    %v9793 = vld [vmem:[#allocation15 + $0x218] sm:$0xff]
    %v9794 = vld [vmem:[#allocation15 + $0x220] sm:$0xff]
    %v9795 = vld [vmem:[#allocation15 + $0x228] sm:$0xff]
    %v9796 = vld [vmem:[#allocation15 + $0x230] sm:$0xff]
    %v9797 = vld [vmem:[#allocation15 + $0x238] sm:$0xff]
    %v9798 = vld [vmem:[#allocation15 + $0x240] sm:$0xff]
    %v9799 = vld [vmem:[#allocation15 + $0x248] sm:$0xff]
    %v9800 = vld [vmem:[#allocation15 + $0x250] sm:$0xff]
    %v9801 = vld [vmem:[#allocation15 + $0x258] sm:$0xff]
    %v9802 = vld [vmem:[#allocation15 + $0x260] sm:$0xff]
    %v9803 = vld [vmem:[#allocation15 + $0x268] sm:$0xff]
    %v9804 = vld [vmem:[#allocation15 + $0x270] sm:$0xff]
    %v9805 = vld [vmem:[#allocation15 + $0x278] sm:$0xff]
    %v9806 = vld [vmem:[#allocation15 + $0x280] sm:$0xff]
    %v9807 = vld [vmem:[#allocation15 + $0x288] sm:$0xff]
    %v9808 = vld [vmem:[#allocation15 + $0x290] sm:$0xff]
    %v9809 = vld [vmem:[#allocation15 + $0x298] sm:$0xff]
    %v9810 = vld [vmem:[#allocation15 + $0x2a0] sm:$0xff]
    %v9811 = vld [vmem:[#allocation15 + $0x2a8] sm:$0xff]
    %v9812 = vld [vmem:[#allocation15 + $0x2b0] sm:$0xff]
    %v9813 = vld [vmem:[#allocation15 + $0x2b8] sm:$0xff]
    %v9814 = vld [vmem:[#allocation15 + $0x2c0] sm:$0xff]
    %v9815 = vld [vmem:[#allocation15 + $0x2c8] sm:$0xff]
    %v9816 = vld [vmem:[#allocation15 + $0x2d0] sm:$0xff]
    %v9817 = vld [vmem:[#allocation15 + $0x2d8] sm:$0xff]
    %v9818 = vld [vmem:[#allocation15 + $0x2e0] sm:$0xff]
    %v9819 = vld [vmem:[#allocation15 + $0x2e8] sm:$0xff]
    %v9820 = vld [vmem:[#allocation15 + $0x2f0] sm:$0xff]
    %v9821 = vld [vmem:[#allocation15 + $0x2f8] sm:$0xff]
    %v9822 = vld [vmem:[#allocation15 + $0x300] sm:$0xff]
    %v9823 = vld [vmem:[#allocation15 + $0x308] sm:$0xff]
    %v9824 = vld [vmem:[#allocation15 + $0x310] sm:$0xff]
    %v9825 = vld [vmem:[#allocation15 + $0x318] sm:$0xff]
    %v9826 = vld [vmem:[#allocation15 + $0x320] sm:$0xff]
    %v9827 = vld [vmem:[#allocation15 + $0x328] sm:$0xff]
    %v9828 = vld [vmem:[#allocation15 + $0x330] sm:$0xff]
    %v9829 = vld [vmem:[#allocation15 + $0x338] sm:$0xff]
    %v9830 = vld [vmem:[#allocation15 + $0x340] sm:$0xff]
    %v9831 = vld [vmem:[#allocation15 + $0x348] sm:$0xff]
    %v9832 = vld [vmem:[#allocation15 + $0x350] sm:$0xff]
    %v9833 = vld [vmem:[#allocation15 + $0x358] sm:$0xff]
    %v9834 = vld [vmem:[#allocation15 + $0x360] sm:$0xff]
    %v9835 = vld [vmem:[#allocation15 + $0x368] sm:$0xff]
    %v9836 = vld [vmem:[#allocation15 + $0x370] sm:$0xff]
    %v9837 = vld [vmem:[#allocation15 + $0x378] sm:$0xff]
    %v9838 = vld [vmem:[#allocation15 + $0x380] sm:$0xff]
    %v9839 = vld [vmem:[#allocation15 + $0x388] sm:$0xff]
    %v9840 = vld [vmem:[#allocation15 + $0x390] sm:$0xff]
    %v9841 = vld [vmem:[#allocation15 + $0x398] sm:$0xff]
    %v9842 = vld [vmem:[#allocation15 + $0x3a0] sm:$0xff]
    %v9843 = vld [vmem:[#allocation15 + $0x3a8] sm:$0xff]
    %v9844 = vld [vmem:[#allocation15 + $0x3b0] sm:$0xff]
    %v9845 = vld [vmem:[#allocation15 + $0x3b8] sm:$0xff]
    %v9846 = vld [vmem:[#allocation15 + $0x3c0] sm:$0xff]
    %v9847 = vld [vmem:[#allocation15 + $0x3c8] sm:$0xff]
    %v9848 = vld [vmem:[#allocation15 + $0x3d0] sm:$0xff]
    %v9849 = vld [vmem:[#allocation15 + $0x3d8] sm:$0xff]
    %v9850 = vld [vmem:[#allocation15 + $0x3e0] sm:$0xff]
    %v9851 = vld [vmem:[#allocation15 + $0x3e8] sm:$0xff]
    %v9852 = vld [vmem:[#allocation15 + $0x3f0] sm:$0xff]
    %v9853 = vld [vmem:[#allocation15 + $0x3f8] sm:$0xff]
    %v9854 = vld [vmem:[#allocation15 + $0x400] sm:$0xff]
    %v9855 = vld [vmem:[#allocation15 + $0x408] sm:$0xff]
    %v9856 = vld [vmem:[#allocation15 + $0x410] sm:$0xff]
    %v9857 = vld [vmem:[#allocation15 + $0x418] sm:$0xff]
    %v9858 = vld [vmem:[#allocation15 + $0x420] sm:$0xff]
    %v9859 = vld [vmem:[#allocation15 + $0x428] sm:$0xff]
    %v9860 = vld [vmem:[#allocation15 + $0x430] sm:$0xff]
    %v9861 = vld [vmem:[#allocation15 + $0x438] sm:$0xff]
    %v9862 = vld [vmem:[#allocation15 + $0x440] sm:$0xff]
    %v9863 = vld [vmem:[#allocation15 + $0x448] sm:$0xff]
    %v9864 = vld [vmem:[#allocation15 + $0x450] sm:$0xff]
    %v9865 = vld [vmem:[#allocation15 + $0x458] sm:$0xff]
    %v9866 = vld [vmem:[#allocation15 + $0x460] sm:$0xff]
    %v9867 = vld [vmem:[#allocation15 + $0x468] sm:$0xff]
    %v9868 = vld [vmem:[#allocation15 + $0x470] sm:$0xff]
    %v9869 = vld [vmem:[#allocation15 + $0x478] sm:$0xff]
    %v9870 = vld [vmem:[#allocation15 + $0x480] sm:$0xff]
    %v9871 = vld [vmem:[#allocation15 + $0x488] sm:$0xff]
    %v9872 = vld [vmem:[#allocation15 + $0x490] sm:$0xff]
    %v9873 = vld [vmem:[#allocation15 + $0x498] sm:$0xff]
    %v9874 = vld [vmem:[#allocation15 + $0x4a0] sm:$0xff]
    %v9875 = vld [vmem:[#allocation15 + $0x4a8] sm:$0xff]
    %v9876 = vld [vmem:[#allocation15 + $0x4b0] sm:$0xff]
    %v9877 = vld [vmem:[#allocation15 + $0x4b8] sm:$0xff]
    %v9878 = vld [vmem:[#allocation15 + $0x4c0] sm:$0xff]
    %v9879 = vld [vmem:[#allocation15 + $0x4c8] sm:$0xff]
    %v9880 = vld [vmem:[#allocation15 + $0x4d0] sm:$0xff]
    %v9881 = vld [vmem:[#allocation15 + $0x4d8] sm:$0xff]
    %v9882 = vld [vmem:[#allocation15 + $0x4e0] sm:$0xff]
    %v9883 = vld [vmem:[#allocation15 + $0x4e8] sm:$0xff]
    %v9884 = vld [vmem:[#allocation15 + $0x4f0] sm:$0xff]
    %v9885 = vld [vmem:[#allocation15 + $0x4f8] sm:$0xff]
    %v9886 = vld [vmem:[#allocation15 + $0x500] sm:$0xff]
    %v9887 = vld [vmem:[#allocation15 + $0x508] sm:$0xff]
    %v9888 = vld [vmem:[#allocation15 + $0x510] sm:$0xff]
    %v9889 = vld [vmem:[#allocation15 + $0x518] sm:$0xff]
    %v9890 = vld [vmem:[#allocation15 + $0x520] sm:$0xff]
    %v9891 = vld [vmem:[#allocation15 + $0x528] sm:$0xff]
    %v9892 = vld [vmem:[#allocation15 + $0x530] sm:$0xff]
    %v9893 = vld [vmem:[#allocation15 + $0x538] sm:$0xff]
    %v9894 = vld [vmem:[#allocation15 + $0x540] sm:$0xff]
    %v9895 = vld [vmem:[#allocation15 + $0x548] sm:$0xff]
    %v9896 = vld [vmem:[#allocation15 + $0x550] sm:$0xff]
    %v9897 = vld [vmem:[#allocation15 + $0x558] sm:$0xff]
    %v9898 = vld [vmem:[#allocation15 + $0x560] sm:$0xff]
    %v9899 = vld [vmem:[#allocation15 + $0x568] sm:$0xff]
    %v9900 = vld [vmem:[#allocation15 + $0x570] sm:$0xff]
    %v9901 = vld [vmem:[#allocation15 + $0x578] sm:$0xff]
    %v9902 = vld [vmem:[#allocation15 + $0x580] sm:$0xff]
    %v9903 = vld [vmem:[#allocation15 + $0x588] sm:$0xff]
    %v9904 = vld [vmem:[#allocation15 + $0x590] sm:$0xff]
    %v9905 = vld [vmem:[#allocation15 + $0x598] sm:$0xff]
    %v9906 = vld [vmem:[#allocation15 + $0x5a0] sm:$0xff]
    %v9907 = vld [vmem:[#allocation15 + $0x5a8] sm:$0xff]
    %v9908 = vld [vmem:[#allocation15 + $0x5b0] sm:$0xff]
    %v9909 = vld [vmem:[#allocation15 + $0x5b8] sm:$0xff]
    %v9910 = vld [vmem:[#allocation15 + $0x5c0] sm:$0xff]
    %v9911 = vld [vmem:[#allocation15 + $0x5c8] sm:$0xff]
    %v9912 = vld [vmem:[#allocation15 + $0x5d0] sm:$0xff]
    %v9913 = vld [vmem:[#allocation15 + $0x5d8] sm:$0xff]
    %v9914 = vld [vmem:[#allocation15 + $0x5e0] sm:$0xff]
    %v9915 = vld [vmem:[#allocation15 + $0x5e8] sm:$0xff]
    %v9916 = vld [vmem:[#allocation15 + $0x5f0] sm:$0xff]
    %v9917 = vld [vmem:[#allocation15 + $0x5f8] sm:$0xff]
    %v9918 = vld [vmem:[#allocation15 + $0x600] sm:$0xff]
    %v9919 = vld [vmem:[#allocation15 + $0x608] sm:$0xff]
    %v9920 = vld [vmem:[#allocation15 + $0x610] sm:$0xff]
    %v9921 = vld [vmem:[#allocation15 + $0x618] sm:$0xff]
    %v9922 = vld [vmem:[#allocation15 + $0x620] sm:$0xff]
    %v9923 = vld [vmem:[#allocation15 + $0x628] sm:$0xff]
    %v9924 = vld [vmem:[#allocation15 + $0x630] sm:$0xff]
    %v9925 = vld [vmem:[#allocation15 + $0x638] sm:$0xff]
    %v9926 = vld [vmem:[#allocation15 + $0x640] sm:$0xff]
    %v9927 = vld [vmem:[#allocation15 + $0x648] sm:$0xff]
    %v9928 = vld [vmem:[#allocation15 + $0x650] sm:$0xff]
    %v9929 = vld [vmem:[#allocation15 + $0x658] sm:$0xff]
    %v9930 = vld [vmem:[#allocation15 + $0x660] sm:$0xff]
    %v9931 = vld [vmem:[#allocation15 + $0x668] sm:$0xff]
    %v9932 = vld [vmem:[#allocation15 + $0x670] sm:$0xff]
    %v9933 = vld [vmem:[#allocation15 + $0x678] sm:$0xff]
    %v9934 = vld [vmem:[#allocation15 + $0x680] sm:$0xff]
    %v9935 = vld [vmem:[#allocation15 + $0x688] sm:$0xff]
    %v9936 = vld [vmem:[#allocation15 + $0x690] sm:$0xff]
    %v9937 = vld [vmem:[#allocation15 + $0x698] sm:$0xff]
    %v9938 = vld [vmem:[#allocation15 + $0x6a0] sm:$0xff]
    %v9939 = vld [vmem:[#allocation15 + $0x6a8] sm:$0xff]
    %v9940 = vld [vmem:[#allocation15 + $0x6b0] sm:$0xff]
    %v9941 = vld [vmem:[#allocation15 + $0x6b8] sm:$0xff]
    %v9942 = vld [vmem:[#allocation15 + $0x6c0] sm:$0xff]
    %v9943 = vld [vmem:[#allocation15 + $0x6c8] sm:$0xff]
    %v9944 = vld [vmem:[#allocation15 + $0x6d0] sm:$0xff]
    %v9945 = vld [vmem:[#allocation15 + $0x6d8] sm:$0xff]
    %v9946 = vld [vmem:[#allocation15 + $0x6e0] sm:$0xff]
    %v9947 = vld [vmem:[#allocation15 + $0x6e8] sm:$0xff]
    %v9948 = vld [vmem:[#allocation15 + $0x6f0] sm:$0xff]
    %v9949 = vld [vmem:[#allocation15 + $0x6f8] sm:$0xff]
    %v9950 = vld [vmem:[#allocation15 + $0x700] sm:$0xff]
    %v9951 = vld [vmem:[#allocation15 + $0x708] sm:$0xff]
    %v9952 = vld [vmem:[#allocation15 + $0x710] sm:$0xff]
    %v9953 = vld [vmem:[#allocation15 + $0x718] sm:$0xff]
    %v9954 = vld [vmem:[#allocation15 + $0x720] sm:$0xff]
    %v9955 = vld [vmem:[#allocation15 + $0x728] sm:$0xff]
    %v9956 = vld [vmem:[#allocation15 + $0x730] sm:$0xff]
    %v9957 = vld [vmem:[#allocation15 + $0x738] sm:$0xff]
    %v9958 = vld [vmem:[#allocation15 + $0x740] sm:$0xff]
    %v9959 = vld [vmem:[#allocation15 + $0x748] sm:$0xff]
    %v9960 = vld [vmem:[#allocation15 + $0x750] sm:$0xff]
    %v9961 = vld [vmem:[#allocation15 + $0x758] sm:$0xff]
    %v9962 = vld [vmem:[#allocation15 + $0x760] sm:$0xff]
    %v9963 = vld [vmem:[#allocation15 + $0x768] sm:$0xff]
    %v9964 = vld [vmem:[#allocation15 + $0x770] sm:$0xff]
    %v9965 = vld [vmem:[#allocation15 + $0x778] sm:$0xff]
    %v9966 = vld [vmem:[#allocation15 + $0x780] sm:$0xff]
    %v9967 = vld [vmem:[#allocation15 + $0x788] sm:$0xff]
    %v9968 = vld [vmem:[#allocation15 + $0x790] sm:$0xff]
    %v9969 = vld [vmem:[#allocation15 + $0x798] sm:$0xff]
    %v9970 = vld [vmem:[#allocation15 + $0x7a0] sm:$0xff]
    %v9971 = vld [vmem:[#allocation15 + $0x7a8] sm:$0xff]
    %v9972 = vld [vmem:[#allocation15 + $0x7b0] sm:$0xff]
    %v9973 = vld [vmem:[#allocation15 + $0x7b8] sm:$0xff]
    %v9974 = vld [vmem:[#allocation15 + $0x7c0] sm:$0xff]
    %v9975 = vld [vmem:[#allocation15 + $0x7c8] sm:$0xff]
    %v9976 = vld [vmem:[#allocation15 + $0x7d0] sm:$0xff]
    %v9977 = vld [vmem:[#allocation15 + $0x7d8] sm:$0xff]
    %v9978 = vld [vmem:[#allocation15 + $0x7e0] sm:$0xff]
    %v9979 = vld [vmem:[#allocation15 + $0x7e8] sm:$0xff]
    %v9980 = vld [vmem:[#allocation15 + $0x7f0] sm:$0xff]
    %v9981 = vld [vmem:[#allocation15 + $0x7f8] sm:$0xff]
    %v10238 = vunpack.c.l.b16 %v9726
    %v10239 = vunpack.c.h.b16 %v9726
    %v10240 = vunpack.c.l.b16 %v9727
    %v10241 = vunpack.c.h.b16 %v9727
    %v10242 = vunpack.c.l.b16 %v9728
    %v10243 = vunpack.c.h.b16 %v9728
    %v10244 = vunpack.c.l.b16 %v9729
    %v10245 = vunpack.c.h.b16 %v9729
    %v10246 = vunpack.c.l.b16 %v9730
    %v10247 = vunpack.c.h.b16 %v9730
    %v10248 = vunpack.c.l.b16 %v9731
    %v10249 = vunpack.c.h.b16 %v9731
    %v10250 = vunpack.c.l.b16 %v9732
    %v10251 = vunpack.c.h.b16 %v9732
    %v10252 = vunpack.c.l.b16 %v9733
    %v10253 = vunpack.c.h.b16 %v9733
    %v10254 = vunpack.c.l.b16 %v9734
    %v10255 = vunpack.c.h.b16 %v9734
    %v10256 = vunpack.c.l.b16 %v9735
    %v10257 = vunpack.c.h.b16 %v9735
    %v10258 = vunpack.c.l.b16 %v9736
    %v10259 = vunpack.c.h.b16 %v9736
    %v10260 = vunpack.c.l.b16 %v9737
    %v10261 = vunpack.c.h.b16 %v9737
    %v10262 = vunpack.c.l.b16 %v9738
    %v10263 = vunpack.c.h.b16 %v9738
    %v10264 = vunpack.c.l.b16 %v9739
    %v10265 = vunpack.c.h.b16 %v9739
    %v10266 = vunpack.c.l.b16 %v9740
    %v10267 = vunpack.c.h.b16 %v9740
    %v10268 = vunpack.c.l.b16 %v9741
    %v10269 = vunpack.c.h.b16 %v9741
    %v10270 = vunpack.c.l.b16 %v9742
    %v10271 = vunpack.c.h.b16 %v9742
    %v10272 = vunpack.c.l.b16 %v9743
    %v10273 = vunpack.c.h.b16 %v9743
    %v10274 = vunpack.c.l.b16 %v9744
    %v10275 = vunpack.c.h.b16 %v9744
    %v10276 = vunpack.c.l.b16 %v9745
    %v10277 = vunpack.c.h.b16 %v9745
    %v10278 = vunpack.c.l.b16 %v9746
    %v10279 = vunpack.c.h.b16 %v9746
    %v10280 = vunpack.c.l.b16 %v9747
    %v10281 = vunpack.c.h.b16 %v9747
    %v10282 = vunpack.c.l.b16 %v9748
    %v10283 = vunpack.c.h.b16 %v9748
    %v10284 = vunpack.c.l.b16 %v9749
    %v10285 = vunpack.c.h.b16 %v9749
    %v10286 = vunpack.c.l.b16 %v9750
    %v10287 = vunpack.c.h.b16 %v9750
    %v10288 = vunpack.c.l.b16 %v9751
    %v10289 = vunpack.c.h.b16 %v9751
    %v10290 = vunpack.c.l.b16 %v9752
    %v10291 = vunpack.c.h.b16 %v9752
    %v10292 = vunpack.c.l.b16 %v9753
    %v10293 = vunpack.c.h.b16 %v9753
    %v10294 = vunpack.c.l.b16 %v9754
    %v10295 = vunpack.c.h.b16 %v9754
    %v10296 = vunpack.c.l.b16 %v9755
    %v10297 = vunpack.c.h.b16 %v9755
    %v10298 = vunpack.c.l.b16 %v9756
    %v10299 = vunpack.c.h.b16 %v9756
    %v10300 = vunpack.c.l.b16 %v9757
    %v10301 = vunpack.c.h.b16 %v9757
    %v10302 = vunpack.c.l.b16 %v9758
    %v10303 = vunpack.c.h.b16 %v9758
    %v10304 = vunpack.c.l.b16 %v9759
    %v10305 = vunpack.c.h.b16 %v9759
    %v10306 = vunpack.c.l.b16 %v9760
    %v10307 = vunpack.c.h.b16 %v9760
    %v10308 = vunpack.c.l.b16 %v9761
    %v10309 = vunpack.c.h.b16 %v9761
    %v10310 = vunpack.c.l.b16 %v9762
    %v10311 = vunpack.c.h.b16 %v9762
    %v10312 = vunpack.c.l.b16 %v9763
    %v10313 = vunpack.c.h.b16 %v9763
    %v10314 = vunpack.c.l.b16 %v9764
    %v10315 = vunpack.c.h.b16 %v9764
    %v10316 = vunpack.c.l.b16 %v9765
    %v10317 = vunpack.c.h.b16 %v9765
    %v10318 = vunpack.c.l.b16 %v9766
    %v10319 = vunpack.c.h.b16 %v9766
    %v10320 = vunpack.c.l.b16 %v9767
    %v10321 = vunpack.c.h.b16 %v9767
    %v10322 = vunpack.c.l.b16 %v9768
    %v10323 = vunpack.c.h.b16 %v9768
    %v10324 = vunpack.c.l.b16 %v9769
    %v10325 = vunpack.c.h.b16 %v9769
    %v10326 = vunpack.c.l.b16 %v9770
    %v10327 = vunpack.c.h.b16 %v9770
    %v10328 = vunpack.c.l.b16 %v9771
    %v10329 = vunpack.c.h.b16 %v9771
    %v10330 = vunpack.c.l.b16 %v9772
    %v10331 = vunpack.c.h.b16 %v9772
    %v10332 = vunpack.c.l.b16 %v9773
    %v10333 = vunpack.c.h.b16 %v9773
    %v10334 = vunpack.c.l.b16 %v9774
    %v10335 = vunpack.c.h.b16 %v9774
    %v10336 = vunpack.c.l.b16 %v9775
    %v10337 = vunpack.c.h.b16 %v9775
    %v10338 = vunpack.c.l.b16 %v9776
    %v10339 = vunpack.c.h.b16 %v9776
    %v10340 = vunpack.c.l.b16 %v9777
    %v10341 = vunpack.c.h.b16 %v9777
    %v10342 = vunpack.c.l.b16 %v9778
    %v10343 = vunpack.c.h.b16 %v9778
    %v10344 = vunpack.c.l.b16 %v9779
    %v10345 = vunpack.c.h.b16 %v9779
    %v10346 = vunpack.c.l.b16 %v9780
    %v10347 = vunpack.c.h.b16 %v9780
    %v10348 = vunpack.c.l.b16 %v9781
    %v10349 = vunpack.c.h.b16 %v9781
    %v10350 = vunpack.c.l.b16 %v9782
    %v10351 = vunpack.c.h.b16 %v9782
    %v10352 = vunpack.c.l.b16 %v9783
    %v10353 = vunpack.c.h.b16 %v9783
    %v10354 = vunpack.c.l.b16 %v9784
    %v10355 = vunpack.c.h.b16 %v9784
    %v10356 = vunpack.c.l.b16 %v9785
    %v10357 = vunpack.c.h.b16 %v9785
    %v10358 = vunpack.c.l.b16 %v9786
    %v10359 = vunpack.c.h.b16 %v9786
    %v10360 = vunpack.c.l.b16 %v9787
    %v10361 = vunpack.c.h.b16 %v9787
    %v10362 = vunpack.c.l.b16 %v9788
    %v10363 = vunpack.c.h.b16 %v9788
    %v10364 = vunpack.c.l.b16 %v9789
    %v10365 = vunpack.c.h.b16 %v9789
    %v10366 = vunpack.c.l.b16 %v9790
    %v10367 = vunpack.c.h.b16 %v9790
    %v10368 = vunpack.c.l.b16 %v9791
    %v10369 = vunpack.c.h.b16 %v9791
    %v10370 = vunpack.c.l.b16 %v9792
    %v10371 = vunpack.c.h.b16 %v9792
    %v10372 = vunpack.c.l.b16 %v9793
    %v10373 = vunpack.c.h.b16 %v9793
    %v10374 = vunpack.c.l.b16 %v9794
    %v10375 = vunpack.c.h.b16 %v9794
    %v10376 = vunpack.c.l.b16 %v9795
    %v10377 = vunpack.c.h.b16 %v9795
    %v10378 = vunpack.c.l.b16 %v9796
    %v10379 = vunpack.c.h.b16 %v9796
    %v10380 = vunpack.c.l.b16 %v9797
    %v10381 = vunpack.c.h.b16 %v9797
    %v10382 = vunpack.c.l.b16 %v9798
    %v10383 = vunpack.c.h.b16 %v9798
    %v10384 = vunpack.c.l.b16 %v9799
    %v10385 = vunpack.c.h.b16 %v9799
    %v10386 = vunpack.c.l.b16 %v9800
    %v10387 = vunpack.c.h.b16 %v9800
    %v10388 = vunpack.c.l.b16 %v9801
    %v10389 = vunpack.c.h.b16 %v9801
    %v10390 = vunpack.c.l.b16 %v9802
    %v10391 = vunpack.c.h.b16 %v9802
    %v10392 = vunpack.c.l.b16 %v9803
    %v10393 = vunpack.c.h.b16 %v9803
    %v10394 = vunpack.c.l.b16 %v9804
    %v10395 = vunpack.c.h.b16 %v9804
    %v10396 = vunpack.c.l.b16 %v9805
    %v10397 = vunpack.c.h.b16 %v9805
    %v10398 = vunpack.c.l.b16 %v9806
    %v10399 = vunpack.c.h.b16 %v9806
    %v10400 = vunpack.c.l.b16 %v9807
    %v10401 = vunpack.c.h.b16 %v9807
    %v10402 = vunpack.c.l.b16 %v9808
    %v10403 = vunpack.c.h.b16 %v9808
    %v10404 = vunpack.c.l.b16 %v9809
    %v10405 = vunpack.c.h.b16 %v9809
    %v10406 = vunpack.c.l.b16 %v9810
    %v10407 = vunpack.c.h.b16 %v9810
    %v10408 = vunpack.c.l.b16 %v9811
    %v10409 = vunpack.c.h.b16 %v9811
    %v10410 = vunpack.c.l.b16 %v9812
    %v10411 = vunpack.c.h.b16 %v9812
    %v10412 = vunpack.c.l.b16 %v9813
    %v10413 = vunpack.c.h.b16 %v9813
    %v10414 = vunpack.c.l.b16 %v9814
    %v10415 = vunpack.c.h.b16 %v9814
    %v10416 = vunpack.c.l.b16 %v9815
    %v10417 = vunpack.c.h.b16 %v9815
    %v10418 = vunpack.c.l.b16 %v9816
    %v10419 = vunpack.c.h.b16 %v9816
    %v10420 = vunpack.c.l.b16 %v9817
    %v10421 = vunpack.c.h.b16 %v9817
    %v10422 = vunpack.c.l.b16 %v9818
    %v10423 = vunpack.c.h.b16 %v9818
    %v10424 = vunpack.c.l.b16 %v9819
    %v10425 = vunpack.c.h.b16 %v9819
    %v10426 = vunpack.c.l.b16 %v9820
    %v10427 = vunpack.c.h.b16 %v9820
    %v10428 = vunpack.c.l.b16 %v9821
    %v10429 = vunpack.c.h.b16 %v9821
    %v10430 = vunpack.c.l.b16 %v9822
    %v10431 = vunpack.c.h.b16 %v9822
    %v10432 = vunpack.c.l.b16 %v9823
    %v10433 = vunpack.c.h.b16 %v9823
    %v10434 = vunpack.c.l.b16 %v9824
    %v10435 = vunpack.c.h.b16 %v9824
    %v10436 = vunpack.c.l.b16 %v9825
    %v10437 = vunpack.c.h.b16 %v9825
    %v10438 = vunpack.c.l.b16 %v9826
    %v10439 = vunpack.c.h.b16 %v9826
    %v10440 = vunpack.c.l.b16 %v9827
    %v10441 = vunpack.c.h.b16 %v9827
    %v10442 = vunpack.c.l.b16 %v9828
    %v10443 = vunpack.c.h.b16 %v9828
    %v10444 = vunpack.c.l.b16 %v9829
    %v10445 = vunpack.c.h.b16 %v9829
    %v10446 = vunpack.c.l.b16 %v9830
    %v10447 = vunpack.c.h.b16 %v9830
    %v10448 = vunpack.c.l.b16 %v9831
    %v10449 = vunpack.c.h.b16 %v9831
    %v10450 = vunpack.c.l.b16 %v9832
    %v10451 = vunpack.c.h.b16 %v9832
    %v10452 = vunpack.c.l.b16 %v9833
    %v10453 = vunpack.c.h.b16 %v9833
    %v10454 = vunpack.c.l.b16 %v9834
    %v10455 = vunpack.c.h.b16 %v9834
    %v10456 = vunpack.c.l.b16 %v9835
    %v10457 = vunpack.c.h.b16 %v9835
    %v10458 = vunpack.c.l.b16 %v9836
    %v10459 = vunpack.c.h.b16 %v9836
    %v10460 = vunpack.c.l.b16 %v9837
    %v10461 = vunpack.c.h.b16 %v9837
    %v10462 = vunpack.c.l.b16 %v9838
    %v10463 = vunpack.c.h.b16 %v9838
    %v10464 = vunpack.c.l.b16 %v9839
    %v10465 = vunpack.c.h.b16 %v9839
    %v10466 = vunpack.c.l.b16 %v9840
    %v10467 = vunpack.c.h.b16 %v9840
    %v10468 = vunpack.c.l.b16 %v9841
    %v10469 = vunpack.c.h.b16 %v9841
    %v10470 = vunpack.c.l.b16 %v9842
    %v10471 = vunpack.c.h.b16 %v9842
    %v10472 = vunpack.c.l.b16 %v9843
    %v10473 = vunpack.c.h.b16 %v9843
    %v10474 = vunpack.c.l.b16 %v9844
    %v10475 = vunpack.c.h.b16 %v9844
    %v10476 = vunpack.c.l.b16 %v9845
    %v10477 = vunpack.c.h.b16 %v9845
    %v10478 = vunpack.c.l.b16 %v9846
    %v10479 = vunpack.c.h.b16 %v9846
    %v10480 = vunpack.c.l.b16 %v9847
    %v10481 = vunpack.c.h.b16 %v9847
    %v10482 = vunpack.c.l.b16 %v9848
    %v10483 = vunpack.c.h.b16 %v9848
    %v10484 = vunpack.c.l.b16 %v9849
    %v10485 = vunpack.c.h.b16 %v9849
    %v10486 = vunpack.c.l.b16 %v9850
    %v10487 = vunpack.c.h.b16 %v9850
    %v10488 = vunpack.c.l.b16 %v9851
    %v10489 = vunpack.c.h.b16 %v9851
    %v10490 = vunpack.c.l.b16 %v9852
    %v10491 = vunpack.c.h.b16 %v9852
    %v10492 = vunpack.c.l.b16 %v9853
    %v10493 = vunpack.c.h.b16 %v9853
    %v10494 = vunpack.c.l.b16 %v9854
    %v10495 = vunpack.c.h.b16 %v9854
    %v10496 = vunpack.c.l.b16 %v9855
    %v10497 = vunpack.c.h.b16 %v9855
    %v10498 = vunpack.c.l.b16 %v9856
    %v10499 = vunpack.c.h.b16 %v9856
    %v10500 = vunpack.c.l.b16 %v9857
    %v10501 = vunpack.c.h.b16 %v9857
    %v10502 = vunpack.c.l.b16 %v9858
    %v10503 = vunpack.c.h.b16 %v9858
    %v10504 = vunpack.c.l.b16 %v9859
    %v10505 = vunpack.c.h.b16 %v9859
    %v10506 = vunpack.c.l.b16 %v9860
    %v10507 = vunpack.c.h.b16 %v9860
    %v10508 = vunpack.c.l.b16 %v9861
    %v10509 = vunpack.c.h.b16 %v9861
    %v10510 = vunpack.c.l.b16 %v9862
    %v10511 = vunpack.c.h.b16 %v9862
    %v10512 = vunpack.c.l.b16 %v9863
    %v10513 = vunpack.c.h.b16 %v9863
    %v10514 = vunpack.c.l.b16 %v9864
    %v10515 = vunpack.c.h.b16 %v9864
    %v10516 = vunpack.c.l.b16 %v9865
    %v10517 = vunpack.c.h.b16 %v9865
    %v10518 = vunpack.c.l.b16 %v9866
    %v10519 = vunpack.c.h.b16 %v9866
    %v10520 = vunpack.c.l.b16 %v9867
    %v10521 = vunpack.c.h.b16 %v9867
    %v10522 = vunpack.c.l.b16 %v9868
    %v10523 = vunpack.c.h.b16 %v9868
    %v10524 = vunpack.c.l.b16 %v9869
    %v10525 = vunpack.c.h.b16 %v9869
    %v10526 = vunpack.c.l.b16 %v9870
    %v10527 = vunpack.c.h.b16 %v9870
    %v10528 = vunpack.c.l.b16 %v9871
    %v10529 = vunpack.c.h.b16 %v9871
    %v10530 = vunpack.c.l.b16 %v9872
    %v10531 = vunpack.c.h.b16 %v9872
    %v10532 = vunpack.c.l.b16 %v9873
    %v10533 = vunpack.c.h.b16 %v9873
    %v10534 = vunpack.c.l.b16 %v9874
    %v10535 = vunpack.c.h.b16 %v9874
    %v10536 = vunpack.c.l.b16 %v9875
    %v10537 = vunpack.c.h.b16 %v9875
    %v10538 = vunpack.c.l.b16 %v9876
    %v10539 = vunpack.c.h.b16 %v9876
    %v10540 = vunpack.c.l.b16 %v9877
    %v10541 = vunpack.c.h.b16 %v9877
    %v10542 = vunpack.c.l.b16 %v9878
    %v10543 = vunpack.c.h.b16 %v9878
    %v10544 = vunpack.c.l.b16 %v9879
    %v10545 = vunpack.c.h.b16 %v9879
    %v10546 = vunpack.c.l.b16 %v9880
    %v10547 = vunpack.c.h.b16 %v9880
    %v10548 = vunpack.c.l.b16 %v9881
    %v10549 = vunpack.c.h.b16 %v9881
    %v10550 = vunpack.c.l.b16 %v9882
    %v10551 = vunpack.c.h.b16 %v9882
    %v10552 = vunpack.c.l.b16 %v9883
    %v10553 = vunpack.c.h.b16 %v9883
    %v10554 = vunpack.c.l.b16 %v9884
    %v10555 = vunpack.c.h.b16 %v9884
    %v10556 = vunpack.c.l.b16 %v9885
    %v10557 = vunpack.c.h.b16 %v9885
    %v10558 = vunpack.c.l.b16 %v9886
    %v10559 = vunpack.c.h.b16 %v9886
    %v10560 = vunpack.c.l.b16 %v9887
    %v10561 = vunpack.c.h.b16 %v9887
    %v10562 = vunpack.c.l.b16 %v9888
    %v10563 = vunpack.c.h.b16 %v9888
    %v10564 = vunpack.c.l.b16 %v9889
    %v10565 = vunpack.c.h.b16 %v9889
    %v10566 = vunpack.c.l.b16 %v9890
    %v10567 = vunpack.c.h.b16 %v9890
    %v10568 = vunpack.c.l.b16 %v9891
    %v10569 = vunpack.c.h.b16 %v9891
    %v10570 = vunpack.c.l.b16 %v9892
    %v10571 = vunpack.c.h.b16 %v9892
    %v10572 = vunpack.c.l.b16 %v9893
    %v10573 = vunpack.c.h.b16 %v9893
    %v10574 = vunpack.c.l.b16 %v9894
    %v10575 = vunpack.c.h.b16 %v9894
    %v10576 = vunpack.c.l.b16 %v9895
    %v10577 = vunpack.c.h.b16 %v9895
    %v10578 = vunpack.c.l.b16 %v9896
    %v10579 = vunpack.c.h.b16 %v9896
    %v10580 = vunpack.c.l.b16 %v9897
    %v10581 = vunpack.c.h.b16 %v9897
    %v10582 = vunpack.c.l.b16 %v9898
    %v10583 = vunpack.c.h.b16 %v9898
    %v10584 = vunpack.c.l.b16 %v9899
    %v10585 = vunpack.c.h.b16 %v9899
    %v10586 = vunpack.c.l.b16 %v9900
    %v10587 = vunpack.c.h.b16 %v9900
    %v10588 = vunpack.c.l.b16 %v9901
    %v10589 = vunpack.c.h.b16 %v9901
    %v10590 = vunpack.c.l.b16 %v9902
    %v10591 = vunpack.c.h.b16 %v9902
    %v10592 = vunpack.c.l.b16 %v9903
    %v10593 = vunpack.c.h.b16 %v9903
    %v10594 = vunpack.c.l.b16 %v9904
    %v10595 = vunpack.c.h.b16 %v9904
    %v10596 = vunpack.c.l.b16 %v9905
    %v10597 = vunpack.c.h.b16 %v9905
    %v10598 = vunpack.c.l.b16 %v9906
    %v10599 = vunpack.c.h.b16 %v9906
    %v10600 = vunpack.c.l.b16 %v9907
    %v10601 = vunpack.c.h.b16 %v9907
    %v10602 = vunpack.c.l.b16 %v9908
    %v10603 = vunpack.c.h.b16 %v9908
    %v10604 = vunpack.c.l.b16 %v9909
    %v10605 = vunpack.c.h.b16 %v9909
    %v10606 = vunpack.c.l.b16 %v9910
    %v10607 = vunpack.c.h.b16 %v9910
    %v10608 = vunpack.c.l.b16 %v9911
    %v10609 = vunpack.c.h.b16 %v9911
    %v10610 = vunpack.c.l.b16 %v9912
    %v10611 = vunpack.c.h.b16 %v9912
    %v10612 = vunpack.c.l.b16 %v9913
    %v10613 = vunpack.c.h.b16 %v9913
    %v10614 = vunpack.c.l.b16 %v9914
    %v10615 = vunpack.c.h.b16 %v9914
    %v10616 = vunpack.c.l.b16 %v9915
    %v10617 = vunpack.c.h.b16 %v9915
    %v10618 = vunpack.c.l.b16 %v9916
    %v10619 = vunpack.c.h.b16 %v9916
    %v10620 = vunpack.c.l.b16 %v9917
    %v10621 = vunpack.c.h.b16 %v9917
    %v10622 = vunpack.c.l.b16 %v9918
    %v10623 = vunpack.c.h.b16 %v9918
    %v10624 = vunpack.c.l.b16 %v9919
    %v10625 = vunpack.c.h.b16 %v9919
    %v10626 = vunpack.c.l.b16 %v9920
    %v10627 = vunpack.c.h.b16 %v9920
    %v10628 = vunpack.c.l.b16 %v9921
    %v10629 = vunpack.c.h.b16 %v9921
    %v10630 = vunpack.c.l.b16 %v9922
    %v10631 = vunpack.c.h.b16 %v9922
    %v10632 = vunpack.c.l.b16 %v9923
    %v10633 = vunpack.c.h.b16 %v9923
    %v10634 = vunpack.c.l.b16 %v9924
    %v10635 = vunpack.c.h.b16 %v9924
    %v10636 = vunpack.c.l.b16 %v9925
    %v10637 = vunpack.c.h.b16 %v9925
    %v10638 = vunpack.c.l.b16 %v9926
    %v10639 = vunpack.c.h.b16 %v9926
    %v10640 = vunpack.c.l.b16 %v9927
    %v10641 = vunpack.c.h.b16 %v9927
    %v10642 = vunpack.c.l.b16 %v9928
    %v10643 = vunpack.c.h.b16 %v9928
    %v10644 = vunpack.c.l.b16 %v9929
    %v10645 = vunpack.c.h.b16 %v9929
    %v10646 = vunpack.c.l.b16 %v9930
    %v10647 = vunpack.c.h.b16 %v9930
    %v10648 = vunpack.c.l.b16 %v9931
    %v10649 = vunpack.c.h.b16 %v9931
    %v10650 = vunpack.c.l.b16 %v9932
    %v10651 = vunpack.c.h.b16 %v9932
    %v10652 = vunpack.c.l.b16 %v9933
    %v10653 = vunpack.c.h.b16 %v9933
    %v10654 = vunpack.c.l.b16 %v9934
    %v10655 = vunpack.c.h.b16 %v9934
    %v10656 = vunpack.c.l.b16 %v9935
    %v10657 = vunpack.c.h.b16 %v9935
    %v10658 = vunpack.c.l.b16 %v9936
    %v10659 = vunpack.c.h.b16 %v9936
    %v10660 = vunpack.c.l.b16 %v9937
    %v10661 = vunpack.c.h.b16 %v9937
    %v10662 = vunpack.c.l.b16 %v9938
    %v10663 = vunpack.c.h.b16 %v9938
    %v10664 = vunpack.c.l.b16 %v9939
    %v10665 = vunpack.c.h.b16 %v9939
    %v10666 = vunpack.c.l.b16 %v9940
    %v10667 = vunpack.c.h.b16 %v9940
    %v10668 = vunpack.c.l.b16 %v9941
    %v10669 = vunpack.c.h.b16 %v9941
    %v10670 = vunpack.c.l.b16 %v9942
    %v10671 = vunpack.c.h.b16 %v9942
    %v10672 = vunpack.c.l.b16 %v9943
    %v10673 = vunpack.c.h.b16 %v9943
    %v10674 = vunpack.c.l.b16 %v9944
    %v10675 = vunpack.c.h.b16 %v9944
    %v10676 = vunpack.c.l.b16 %v9945
    %v10677 = vunpack.c.h.b16 %v9945
    %v10678 = vunpack.c.l.b16 %v9946
    %v10679 = vunpack.c.h.b16 %v9946
    %v10680 = vunpack.c.l.b16 %v9947
    %v10681 = vunpack.c.h.b16 %v9947
    %v10682 = vunpack.c.l.b16 %v9948
    %v10683 = vunpack.c.h.b16 %v9948
    %v10684 = vunpack.c.l.b16 %v9949
    %v10685 = vunpack.c.h.b16 %v9949
    %v10686 = vunpack.c.l.b16 %v9950
    %v10687 = vunpack.c.h.b16 %v9950
    %v10688 = vunpack.c.l.b16 %v9951
    %v10689 = vunpack.c.h.b16 %v9951
    %v10690 = vunpack.c.l.b16 %v9952
    %v10691 = vunpack.c.h.b16 %v9952
    %v10692 = vunpack.c.l.b16 %v9953
    %v10693 = vunpack.c.h.b16 %v9953
    %v10694 = vunpack.c.l.b16 %v9954
    %v10695 = vunpack.c.h.b16 %v9954
    %v10696 = vunpack.c.l.b16 %v9955
    %v10697 = vunpack.c.h.b16 %v9955
    %v10698 = vunpack.c.l.b16 %v9956
    %v10699 = vunpack.c.h.b16 %v9956
    %v10700 = vunpack.c.l.b16 %v9957
    %v10701 = vunpack.c.h.b16 %v9957
    %v10702 = vunpack.c.l.b16 %v9958
    %v10703 = vunpack.c.h.b16 %v9958
    %v10704 = vunpack.c.l.b16 %v9959
    %v10705 = vunpack.c.h.b16 %v9959
    %v10706 = vunpack.c.l.b16 %v9960
    %v10707 = vunpack.c.h.b16 %v9960
    %v10708 = vunpack.c.l.b16 %v9961
    %v10709 = vunpack.c.h.b16 %v9961
    %v10710 = vunpack.c.l.b16 %v9962
    %v10711 = vunpack.c.h.b16 %v9962
    %v10712 = vunpack.c.l.b16 %v9963
    %v10713 = vunpack.c.h.b16 %v9963
    %v10714 = vunpack.c.l.b16 %v9964
    %v10715 = vunpack.c.h.b16 %v9964
    %v10716 = vunpack.c.l.b16 %v9965
    %v10717 = vunpack.c.h.b16 %v9965
    %v10718 = vunpack.c.l.b16 %v9966
    %v10719 = vunpack.c.h.b16 %v9966
    %v10720 = vunpack.c.l.b16 %v9967
    %v10721 = vunpack.c.h.b16 %v9967
    %v10722 = vunpack.c.l.b16 %v9968
    %v10723 = vunpack.c.h.b16 %v9968
    %v10724 = vunpack.c.l.b16 %v9969
    %v10725 = vunpack.c.h.b16 %v9969
    %v10726 = vunpack.c.l.b16 %v9970
    %v10727 = vunpack.c.h.b16 %v9970
    %v10728 = vunpack.c.l.b16 %v9971
    %v10729 = vunpack.c.h.b16 %v9971
    %v10730 = vunpack.c.l.b16 %v9972
    %v10731 = vunpack.c.h.b16 %v9972
    %v10732 = vunpack.c.l.b16 %v9973
    %v10733 = vunpack.c.h.b16 %v9973
    %v10734 = vunpack.c.l.b16 %v9974
    %v10735 = vunpack.c.h.b16 %v9974
    %v10736 = vunpack.c.l.b16 %v9975
    %v10737 = vunpack.c.h.b16 %v9975
    %v10738 = vunpack.c.l.b16 %v9976
    %v10739 = vunpack.c.h.b16 %v9976
    %v10740 = vunpack.c.l.b16 %v9977
    %v10741 = vunpack.c.h.b16 %v9977
    %v10742 = vunpack.c.l.b16 %v9978
    %v10743 = vunpack.c.h.b16 %v9978
    %v10744 = vunpack.c.l.b16 %v9979
    %v10745 = vunpack.c.h.b16 %v9979
    %v10746 = vunpack.c.l.b16 %v9980
    %v10747 = vunpack.c.h.b16 %v9980
    %v10748 = vunpack.c.l.b16 %v9981
    %v10749 = vunpack.c.h.b16 %v9981
    %v10750 = vpack.c.b16 %v10246, %v10238
    %v10751 = vpack.c.b16 %v10247, %v10239
    %v10752 = vpack.c.b16 %v10248, %v10240
    %v10753 = vpack.c.b16 %v10249, %v10241
    %v10754 = vpack.c.b16 %v10250, %v10242
    %v10755 = vpack.c.b16 %v10251, %v10243
    %v10756 = vpack.c.b16 %v10252, %v10244
    %v10757 = vpack.c.b16 %v10253, %v10245
    %v10758 = vpack.c.b16 %v10262, %v10254
    %v10759 = vpack.c.b16 %v10263, %v10255
    %v10760 = vpack.c.b16 %v10264, %v10256
    %v10761 = vpack.c.b16 %v10265, %v10257
    %v10762 = vpack.c.b16 %v10266, %v10258
    %v10763 = vpack.c.b16 %v10267, %v10259
    %v10764 = vpack.c.b16 %v10268, %v10260
    %v10765 = vpack.c.b16 %v10269, %v10261
    %v10766 = vpack.c.b16 %v10278, %v10270
    %v10767 = vpack.c.b16 %v10279, %v10271
    %v10768 = vpack.c.b16 %v10280, %v10272
    %v10769 = vpack.c.b16 %v10281, %v10273
    %v10770 = vpack.c.b16 %v10282, %v10274
    %v10771 = vpack.c.b16 %v10283, %v10275
    %v10772 = vpack.c.b16 %v10284, %v10276
    %v10773 = vpack.c.b16 %v10285, %v10277
    %v10774 = vpack.c.b16 %v10294, %v10286
    %v10775 = vpack.c.b16 %v10295, %v10287
    %v10776 = vpack.c.b16 %v10296, %v10288
    %v10777 = vpack.c.b16 %v10297, %v10289
    %v10778 = vpack.c.b16 %v10298, %v10290
    %v10779 = vpack.c.b16 %v10299, %v10291
    %v10780 = vpack.c.b16 %v10300, %v10292
    %v10781 = vpack.c.b16 %v10301, %v10293
    %v10782 = vpack.c.b16 %v10310, %v10302
    %v10783 = vpack.c.b16 %v10311, %v10303
    %v10784 = vpack.c.b16 %v10312, %v10304
    %v10785 = vpack.c.b16 %v10313, %v10305
    %v10786 = vpack.c.b16 %v10314, %v10306
    %v10787 = vpack.c.b16 %v10315, %v10307
    %v10788 = vpack.c.b16 %v10316, %v10308
    %v10789 = vpack.c.b16 %v10317, %v10309
    %v10790 = vpack.c.b16 %v10326, %v10318
    %v10791 = vpack.c.b16 %v10327, %v10319
    %v10792 = vpack.c.b16 %v10328, %v10320
    %v10793 = vpack.c.b16 %v10329, %v10321
    %v10794 = vpack.c.b16 %v10330, %v10322
    %v10795 = vpack.c.b16 %v10331, %v10323
    %v10796 = vpack.c.b16 %v10332, %v10324
    %v10797 = vpack.c.b16 %v10333, %v10325
    %v10798 = vpack.c.b16 %v10342, %v10334
    %v10799 = vpack.c.b16 %v10343, %v10335
    %v10800 = vpack.c.b16 %v10344, %v10336
    %v10801 = vpack.c.b16 %v10345, %v10337
    %v10802 = vpack.c.b16 %v10346, %v10338
    %v10803 = vpack.c.b16 %v10347, %v10339
    %v10804 = vpack.c.b16 %v10348, %v10340
    %v10805 = vpack.c.b16 %v10349, %v10341
    %v10806 = vpack.c.b16 %v10358, %v10350
    %v10807 = vpack.c.b16 %v10359, %v10351
    %v10808 = vpack.c.b16 %v10360, %v10352
    %v10809 = vpack.c.b16 %v10361, %v10353
    %v10810 = vpack.c.b16 %v10362, %v10354
    %v10811 = vpack.c.b16 %v10363, %v10355
    %v10812 = vpack.c.b16 %v10364, %v10356
    %v10813 = vpack.c.b16 %v10365, %v10357
    %v10814 = vpack.c.b16 %v10374, %v10366
    %v10815 = vpack.c.b16 %v10375, %v10367
    %v10816 = vpack.c.b16 %v10376, %v10368
    %v10817 = vpack.c.b16 %v10377, %v10369
    %v10818 = vpack.c.b16 %v10378, %v10370
    %v10819 = vpack.c.b16 %v10379, %v10371
    %v10820 = vpack.c.b16 %v10380, %v10372
    %v10821 = vpack.c.b16 %v10381, %v10373
    %v10822 = vpack.c.b16 %v10390, %v10382
    %v10823 = vpack.c.b16 %v10391, %v10383
    %v10824 = vpack.c.b16 %v10392, %v10384
    %v10825 = vpack.c.b16 %v10393, %v10385
    %v10826 = vpack.c.b16 %v10394, %v10386
    %v10827 = vpack.c.b16 %v10395, %v10387
    %v10828 = vpack.c.b16 %v10396, %v10388
    %v10829 = vpack.c.b16 %v10397, %v10389
    %v10830 = vpack.c.b16 %v10406, %v10398
    %v10831 = vpack.c.b16 %v10407, %v10399
    %v10832 = vpack.c.b16 %v10408, %v10400
    %v10833 = vpack.c.b16 %v10409, %v10401
    %v10834 = vpack.c.b16 %v10410, %v10402
    %v10835 = vpack.c.b16 %v10411, %v10403
    %v10836 = vpack.c.b16 %v10412, %v10404
    %v10837 = vpack.c.b16 %v10413, %v10405
    %v10838 = vpack.c.b16 %v10422, %v10414
    %v10839 = vpack.c.b16 %v10423, %v10415
    %v10840 = vpack.c.b16 %v10424, %v10416
    %v10841 = vpack.c.b16 %v10425, %v10417
    %v10842 = vpack.c.b16 %v10426, %v10418
    %v10843 = vpack.c.b16 %v10427, %v10419
    %v10844 = vpack.c.b16 %v10428, %v10420
    %v10845 = vpack.c.b16 %v10429, %v10421
    %v10846 = vpack.c.b16 %v10438, %v10430
    %v10847 = vpack.c.b16 %v10439, %v10431
    %v10848 = vpack.c.b16 %v10440, %v10432
    %v10849 = vpack.c.b16 %v10441, %v10433
    %v10850 = vpack.c.b16 %v10442, %v10434
    %v10851 = vpack.c.b16 %v10443, %v10435
    %v10852 = vpack.c.b16 %v10444, %v10436
    %v10853 = vpack.c.b16 %v10445, %v10437
    %v10854 = vpack.c.b16 %v10454, %v10446
    %v10855 = vpack.c.b16 %v10455, %v10447
    %v10856 = vpack.c.b16 %v10456, %v10448
    %v10857 = vpack.c.b16 %v10457, %v10449
    %v10858 = vpack.c.b16 %v10458, %v10450
    %v10859 = vpack.c.b16 %v10459, %v10451
    %v10860 = vpack.c.b16 %v10460, %v10452
    %v10861 = vpack.c.b16 %v10461, %v10453
    %v10862 = vpack.c.b16 %v10470, %v10462
    %v10863 = vpack.c.b16 %v10471, %v10463
    %v10864 = vpack.c.b16 %v10472, %v10464
    %v10865 = vpack.c.b16 %v10473, %v10465
    %v10866 = vpack.c.b16 %v10474, %v10466
    %v10867 = vpack.c.b16 %v10475, %v10467
    %v10868 = vpack.c.b16 %v10476, %v10468
    %v10869 = vpack.c.b16 %v10477, %v10469
    %v10870 = vpack.c.b16 %v10486, %v10478
    %v10871 = vpack.c.b16 %v10487, %v10479
    %v10872 = vpack.c.b16 %v10488, %v10480
    %v10873 = vpack.c.b16 %v10489, %v10481
    %v10874 = vpack.c.b16 %v10490, %v10482
    %v10875 = vpack.c.b16 %v10491, %v10483
    %v10876 = vpack.c.b16 %v10492, %v10484
    %v10877 = vpack.c.b16 %v10493, %v10485
    %v10878 = vpack.c.b16 %v10502, %v10494
    %v10879 = vpack.c.b16 %v10503, %v10495
    %v10880 = vpack.c.b16 %v10504, %v10496
    %v10881 = vpack.c.b16 %v10505, %v10497
    %v10882 = vpack.c.b16 %v10506, %v10498
    %v10883 = vpack.c.b16 %v10507, %v10499
    %v10884 = vpack.c.b16 %v10508, %v10500
    %v10885 = vpack.c.b16 %v10509, %v10501
    %v10886 = vpack.c.b16 %v10518, %v10510
    %v10887 = vpack.c.b16 %v10519, %v10511
    %v10888 = vpack.c.b16 %v10520, %v10512
    %v10889 = vpack.c.b16 %v10521, %v10513
    %v10890 = vpack.c.b16 %v10522, %v10514
    %v10891 = vpack.c.b16 %v10523, %v10515
    %v10892 = vpack.c.b16 %v10524, %v10516
    %v10893 = vpack.c.b16 %v10525, %v10517
    %v10894 = vpack.c.b16 %v10534, %v10526
    %v10895 = vpack.c.b16 %v10535, %v10527
    %v10896 = vpack.c.b16 %v10536, %v10528
    %v10897 = vpack.c.b16 %v10537, %v10529
    %v10898 = vpack.c.b16 %v10538, %v10530
    %v10899 = vpack.c.b16 %v10539, %v10531
    %v10900 = vpack.c.b16 %v10540, %v10532
    %v10901 = vpack.c.b16 %v10541, %v10533
    %v10902 = vpack.c.b16 %v10550, %v10542
    %v10903 = vpack.c.b16 %v10551, %v10543
    %v10904 = vpack.c.b16 %v10552, %v10544
    %v10905 = vpack.c.b16 %v10553, %v10545
    %v10906 = vpack.c.b16 %v10554, %v10546
    %v10907 = vpack.c.b16 %v10555, %v10547
    %v10908 = vpack.c.b16 %v10556, %v10548
    %v10909 = vpack.c.b16 %v10557, %v10549
    %v10910 = vpack.c.b16 %v10566, %v10558
    %v10911 = vpack.c.b16 %v10567, %v10559
    %v10912 = vpack.c.b16 %v10568, %v10560
    %v10913 = vpack.c.b16 %v10569, %v10561
    %v10914 = vpack.c.b16 %v10570, %v10562
    %v10915 = vpack.c.b16 %v10571, %v10563
    %v10916 = vpack.c.b16 %v10572, %v10564
    %v10917 = vpack.c.b16 %v10573, %v10565
    %v10918 = vpack.c.b16 %v10582, %v10574
    %v10919 = vpack.c.b16 %v10583, %v10575
    %v10920 = vpack.c.b16 %v10584, %v10576
    %v10921 = vpack.c.b16 %v10585, %v10577
    %v10922 = vpack.c.b16 %v10586, %v10578
    %v10923 = vpack.c.b16 %v10587, %v10579
    %v10924 = vpack.c.b16 %v10588, %v10580
    %v10925 = vpack.c.b16 %v10589, %v10581
    %v10926 = vpack.c.b16 %v10598, %v10590
    %v10927 = vpack.c.b16 %v10599, %v10591
    %v10928 = vpack.c.b16 %v10600, %v10592
    %v10929 = vpack.c.b16 %v10601, %v10593
    %v10930 = vpack.c.b16 %v10602, %v10594
    %v10931 = vpack.c.b16 %v10603, %v10595
    %v10932 = vpack.c.b16 %v10604, %v10596
    %v10933 = vpack.c.b16 %v10605, %v10597
    %v10934 = vpack.c.b16 %v10614, %v10606
    %v10935 = vpack.c.b16 %v10615, %v10607
    %v10936 = vpack.c.b16 %v10616, %v10608
    %v10937 = vpack.c.b16 %v10617, %v10609
    %v10938 = vpack.c.b16 %v10618, %v10610
    %v10939 = vpack.c.b16 %v10619, %v10611
    %v10940 = vpack.c.b16 %v10620, %v10612
    %v10941 = vpack.c.b16 %v10621, %v10613
    %v10942 = vpack.c.b16 %v10630, %v10622
    %v10943 = vpack.c.b16 %v10631, %v10623
    %v10944 = vpack.c.b16 %v10632, %v10624
    %v10945 = vpack.c.b16 %v10633, %v10625
    %v10946 = vpack.c.b16 %v10634, %v10626
    %v10947 = vpack.c.b16 %v10635, %v10627
    %v10948 = vpack.c.b16 %v10636, %v10628
    %v10949 = vpack.c.b16 %v10637, %v10629
    %v10950 = vpack.c.b16 %v10646, %v10638
    %v10951 = vpack.c.b16 %v10647, %v10639
    %v10952 = vpack.c.b16 %v10648, %v10640
    %v10953 = vpack.c.b16 %v10649, %v10641
    %v10954 = vpack.c.b16 %v10650, %v10642
    %v10955 = vpack.c.b16 %v10651, %v10643
    %v10956 = vpack.c.b16 %v10652, %v10644
    %v10957 = vpack.c.b16 %v10653, %v10645
    %v10958 = vpack.c.b16 %v10662, %v10654
    %v10959 = vpack.c.b16 %v10663, %v10655
    %v10960 = vpack.c.b16 %v10664, %v10656
    %v10961 = vpack.c.b16 %v10665, %v10657
    %v10962 = vpack.c.b16 %v10666, %v10658
    %v10963 = vpack.c.b16 %v10667, %v10659
    %v10964 = vpack.c.b16 %v10668, %v10660
    %v10965 = vpack.c.b16 %v10669, %v10661
    %v10966 = vpack.c.b16 %v10678, %v10670
    %v10967 = vpack.c.b16 %v10679, %v10671
    %v10968 = vpack.c.b16 %v10680, %v10672
    %v10969 = vpack.c.b16 %v10681, %v10673
    %v10970 = vpack.c.b16 %v10682, %v10674
    %v10971 = vpack.c.b16 %v10683, %v10675
    %v10972 = vpack.c.b16 %v10684, %v10676
    %v10973 = vpack.c.b16 %v10685, %v10677
    %v10974 = vpack.c.b16 %v10694, %v10686
    %v10975 = vpack.c.b16 %v10695, %v10687
    %v10976 = vpack.c.b16 %v10696, %v10688
    %v10977 = vpack.c.b16 %v10697, %v10689
    %v10978 = vpack.c.b16 %v10698, %v10690
    %v10979 = vpack.c.b16 %v10699, %v10691
    %v10980 = vpack.c.b16 %v10700, %v10692
    %v10981 = vpack.c.b16 %v10701, %v10693
    %v10982 = vpack.c.b16 %v10710, %v10702
    %v10983 = vpack.c.b16 %v10711, %v10703
    %v10984 = vpack.c.b16 %v10712, %v10704
    %v10985 = vpack.c.b16 %v10713, %v10705
    %v10986 = vpack.c.b16 %v10714, %v10706
    %v10987 = vpack.c.b16 %v10715, %v10707
    %v10988 = vpack.c.b16 %v10716, %v10708
    %v10989 = vpack.c.b16 %v10717, %v10709
    %v10990 = vpack.c.b16 %v10726, %v10718
    %v10991 = vpack.c.b16 %v10727, %v10719
    %v10992 = vpack.c.b16 %v10728, %v10720
    %v10993 = vpack.c.b16 %v10729, %v10721
    %v10994 = vpack.c.b16 %v10730, %v10722
    %v10995 = vpack.c.b16 %v10731, %v10723
    %v10996 = vpack.c.b16 %v10732, %v10724
    %v10997 = vpack.c.b16 %v10733, %v10725
    %v10998 = vpack.c.b16 %v10742, %v10734
    %v10999 = vpack.c.b16 %v10743, %v10735
    %v11000 = vpack.c.b16 %v10744, %v10736
    %v11001 = vpack.c.b16 %v10745, %v10737
    %v11002 = vpack.c.b16 %v10746, %v10738
    %v11003 = vpack.c.b16 %v10747, %v10739
    %v11004 = vpack.c.b16 %v10748, %v10740
    %v11005 = vpack.c.b16 %v10749, %v10741
    %11262 = vmatprep.subr.bf16.mxu0 %v10807
    %11263 = vmatpush1.bf16.msra.mxu0 %v10806
    %11264 = vmatprep.subr.bf16.mxu0 %v10799
    %11265 = vmatpush1.bf16.msra.mxu0 %v10798
    %11266 = vmatprep.subr.bf16.mxu0 %v10791
    %11267 = vmatpush1.bf16.msra.mxu0 %v10790
    %11268 = vmatprep.subr.bf16.mxu0 %v10783
    %11269 = vmatpush1.bf16.msra.mxu0 %v10782
    %11270 = vmatprep.subr.bf16.mxu0 %v10775
    %11271 = vmatpush1.bf16.msra.mxu0 %v10774
    %11272 = vmatprep.subr.bf16.mxu0 %v10767
    %11273 = vmatpush1.bf16.msra.mxu0 %v10766
    %11274 = vmatprep.subr.bf16.mxu0 %v10759
    %11275 = vmatpush1.bf16.msra.mxu0 %v10758
    %11276 = vmatprep.subr.bf16.mxu0 %v10751
    %11277 = vmatpush1.bf16.msra.mxu0 %v10750
    %11278 = vmatprep.subr.bf16.mxu0 %v10871
    %11279 = vmatpush2.bf16.msra.mxu0 %v10870
    %11280 = vmatprep.subr.bf16.mxu0 %v10863
    %11281 = vmatpush2.bf16.msra.mxu0 %v10862
    %11282 = vmatprep.subr.bf16.mxu0 %v10855
    %11283 = vmatpush2.bf16.msra.mxu0 %v10854
    %11284 = vmatprep.subr.bf16.mxu0 %v10847
    %11285 = vmatpush2.bf16.msra.mxu0 %v10846
    %11286 = vmatprep.subr.bf16.mxu0 %v10839
    %11287 = vmatpush2.bf16.msra.mxu0 %v10838
    %11288 = vmatprep.subr.bf16.mxu0 %v10831
    %11289 = vmatpush2.bf16.msra.mxu0 %v10830
    %11290 = vmatprep.subr.bf16.mxu0 %v10823
    %11291 = vmatpush2.bf16.msra.mxu0 %v10822
    %11292 = vmatprep.subr.bf16.mxu0 %v10815
    %11293 = vmatpush2.bf16.msra.mxu0 %v10814
    %11294 = vmatprep.mubr.bf16.mxu0 %v9695
    %11295 = vmatmul.mubr.bf16.gmra.mxu0 %v9694
    %v11296 = vpop.f32.mrf.mxu0
    %v11297 = vadd.f32 0.0, %v11296
    %v11298 = vpop.f32.mrf.mxu0
    %v11299 = vadd.f32 0.0, %v11298
    %v11300 = vpop.f32.mrf.mxu0
    %v11301 = vadd.f32 0.0, %v11300
    %v11302 = vpop.f32.mrf.mxu0
    %v11303 = vadd.f32 0.0, %v11302
    %11304 = vmatprep.mubr.bf16.mxu0 %v9699
    %11305 = vmatmul.mubr.bf16.gmra.mxu0 %v9698
    %v11306 = vpop.f32.mrf.mxu0
    %v11307 = vadd.f32 0.0, %v11306
    %v11308 = vpop.f32.mrf.mxu0
    %v11309 = vadd.f32 0.0, %v11308
    %v11310 = vpop.f32.mrf.mxu0
    %v11311 = vadd.f32 0.0, %v11310
    %v11312 = vpop.f32.mrf.mxu0
    %v11313 = vadd.f32 0.0, %v11312
    %11314 = vmatprep.mubr.bf16.mxu0 %v9703
    %11315 = vmatmul.mubr.bf16.gmra.mxu0 %v9702
    %v11316 = vpop.f32.mrf.mxu0
    %v11317 = vadd.f32 0.0, %v11316
    %v11318 = vpop.f32.mrf.mxu0
    %v11319 = vadd.f32 0.0, %v11318
    %v11320 = vpop.f32.mrf.mxu0
    %v11321 = vadd.f32 0.0, %v11320
    %v11322 = vpop.f32.mrf.mxu0
    %v11323 = vadd.f32 0.0, %v11322
    %11324 = vmatprep.mubr.bf16.mxu0 %v9707
    %11325 = vmatmul.mubr.bf16.gmra.mxu0 %v9706
    %v11326 = vpop.f32.mrf.mxu0
    %v11327 = vadd.f32 0.0, %v11326
    %v11328 = vpop.f32.mrf.mxu0
    %v11329 = vadd.f32 0.0, %v11328
    %v11330 = vpop.f32.mrf.mxu0
    %v11331 = vadd.f32 0.0, %v11330
    %v11332 = vpop.f32.mrf.mxu0
    %v11333 = vadd.f32 0.0, %v11332
    %11334 = vmatprep.mubr.bf16.mxu0 %v9711
    %11335 = vmatmul.mubr.bf16.gmra.mxu0 %v9710
    %v11336 = vpop.f32.mrf.mxu0
    %v11337 = vadd.f32 0.0, %v11336
    %v11338 = vpop.f32.mrf.mxu0
    %v11339 = vadd.f32 0.0, %v11338
    %v11340 = vpop.f32.mrf.mxu0
    %v11341 = vadd.f32 0.0, %v11340
    %v11342 = vpop.f32.mrf.mxu0
    %v11343 = vadd.f32 0.0, %v11342
    %11344 = vmatprep.mubr.bf16.mxu0 %v9715
    %11345 = vmatmul.mubr.bf16.gmra.mxu0 %v9714
    %v11346 = vpop.f32.mrf.mxu0
    %v11347 = vadd.f32 0.0, %v11346
    %v11348 = vpop.f32.mrf.mxu0
    %v11349 = vadd.f32 0.0, %v11348
    %v11350 = vpop.f32.mrf.mxu0
    %v11351 = vadd.f32 0.0, %v11350
    %v11352 = vpop.f32.mrf.mxu0
    %v11353 = vadd.f32 0.0, %v11352
    %11354 = vmatprep.mubr.bf16.mxu0 %v9719
    %11355 = vmatmul.mubr.bf16.gmra.mxu0 %v9718
    %v11356 = vpop.f32.mrf.mxu0
    %v11357 = vadd.f32 0.0, %v11356
    %v11358 = vpop.f32.mrf.mxu0
    %v11359 = vadd.f32 0.0, %v11358
    %v11360 = vpop.f32.mrf.mxu0
    %v11361 = vadd.f32 0.0, %v11360
    %v11362 = vpop.f32.mrf.mxu0
    %v11363 = vadd.f32 0.0, %v11362
    %11364 = vmatprep.mubr.bf16.mxu0 %v9723
    %11365 = vmatmul.mubr.bf16.gmra.mxu0 %v9722
    %v11366 = vpop.f32.mrf.mxu0
    %v11367 = vadd.f32 0.0, %v11366
    %v11368 = vpop.f32.mrf.mxu0
    %v11369 = vadd.f32 0.0, %v11368
    %v11370 = vpop.f32.mrf.mxu0
    %v11371 = vadd.f32 0.0, %v11370
    %v11372 = vpop.f32.mrf.mxu0
    %v11373 = vadd.f32 0.0, %v11372
    %11374 = vdwg.mxu0
    %11375 = vmatprep.subr.bf16.mxu0 %v10935
    %11376 = vmatpush1.bf16.msra.mxu0 %v10934
    %11377 = vmatprep.subr.bf16.mxu0 %v10927
    %11378 = vmatpush1.bf16.msra.mxu0 %v10926
    %11379 = vmatprep.subr.bf16.mxu0 %v10919
    %11380 = vmatpush1.bf16.msra.mxu0 %v10918
    %11381 = vmatprep.subr.bf16.mxu0 %v10911
    %11382 = vmatpush1.bf16.msra.mxu0 %v10910
    %11383 = vmatprep.subr.bf16.mxu0 %v10903
    %11384 = vmatpush1.bf16.msra.mxu0 %v10902
    %11385 = vmatprep.subr.bf16.mxu0 %v10895
    %11386 = vmatpush1.bf16.msra.mxu0 %v10894
    %11387 = vmatprep.subr.bf16.mxu0 %v10887
    %11388 = vmatpush1.bf16.msra.mxu0 %v10886
    %11389 = vmatprep.subr.bf16.mxu0 %v10879
    %11390 = vmatpush1.bf16.msra.mxu0 %v10878
    %11391 = vmatprep.subr.bf16.mxu0 %v10999
    %11392 = vmatpush2.bf16.msra.mxu0 %v10998
    %11393 = vmatprep.subr.bf16.mxu0 %v10991
    %11394 = vmatpush2.bf16.msra.mxu0 %v10990
    %11395 = vmatprep.subr.bf16.mxu0 %v10983
    %11396 = vmatpush2.bf16.msra.mxu0 %v10982
    %11397 = vmatprep.subr.bf16.mxu0 %v10975
    %11398 = vmatpush2.bf16.msra.mxu0 %v10974
    %11399 = vmatprep.subr.bf16.mxu0 %v10967
    %11400 = vmatpush2.bf16.msra.mxu0 %v10966
    %11401 = vmatprep.subr.bf16.mxu0 %v10959
    %11402 = vmatpush2.bf16.msra.mxu0 %v10958
    %11403 = vmatprep.subr.bf16.mxu0 %v10951
    %11404 = vmatpush2.bf16.msra.mxu0 %v10950
    %11405 = vmatprep.subr.bf16.mxu0 %v10943
    %11406 = vmatpush2.bf16.msra.mxu0 %v10942
    %11407 = vmatprep.mubr.bf16.mxu0 %v9697
    %11408 = vmatmul.mubr.bf16.gmra.mxu0 %v9696
    %v11409 = vpop.f32.mrf.mxu0
    %v11410 = vadd.f32 %v11297, %v11409
    %v11411 = vpop.f32.mrf.mxu0
    %v11412 = vadd.f32 %v11299, %v11411
    %v11413 = vpop.f32.mrf.mxu0
    %v11414 = vadd.f32 %v11301, %v11413
    %v11415 = vpop.f32.mrf.mxu0
    %v11416 = vadd.f32 %v11303, %v11415
    %11417 = vmatprep.mubr.bf16.mxu0 %v9701
    %11418 = vmatmul.mubr.bf16.gmra.mxu0 %v9700
    %v11419 = vpop.f32.mrf.mxu0
    %v11420 = vadd.f32 %v11307, %v11419
    %v11421 = vpop.f32.mrf.mxu0
    %v11422 = vadd.f32 %v11309, %v11421
    %v11423 = vpop.f32.mrf.mxu0
    %v11424 = vadd.f32 %v11311, %v11423
    %v11425 = vpop.f32.mrf.mxu0
    %v11426 = vadd.f32 %v11313, %v11425
    %11427 = vmatprep.mubr.bf16.mxu0 %v9705
    %11428 = vmatmul.mubr.bf16.gmra.mxu0 %v9704
    %v11429 = vpop.f32.mrf.mxu0
    %v11430 = vadd.f32 %v11317, %v11429
    %v11431 = vpop.f32.mrf.mxu0
    %v11432 = vadd.f32 %v11319, %v11431
    %v11433 = vpop.f32.mrf.mxu0
    %v11434 = vadd.f32 %v11321, %v11433
    %v11435 = vpop.f32.mrf.mxu0
    %v11436 = vadd.f32 %v11323, %v11435
    %11437 = vmatprep.mubr.bf16.mxu0 %v9709
    %11438 = vmatmul.mubr.bf16.gmra.mxu0 %v9708
    %v11439 = vpop.f32.mrf.mxu0
    %v11440 = vadd.f32 %v11327, %v11439
    %v11441 = vpop.f32.mrf.mxu0
    %v11442 = vadd.f32 %v11329, %v11441
    %v11443 = vpop.f32.mrf.mxu0
    %v11444 = vadd.f32 %v11331, %v11443
    %v11445 = vpop.f32.mrf.mxu0
    %v11446 = vadd.f32 %v11333, %v11445
    %11447 = vmatprep.mubr.bf16.mxu0 %v9713
    %11448 = vmatmul.mubr.bf16.gmra.mxu0 %v9712
    %v11449 = vpop.f32.mrf.mxu0
    %v11450 = vadd.f32 %v11337, %v11449
    %v11451 = vpop.f32.mrf.mxu0
    %v11452 = vadd.f32 %v11339, %v11451
    %v11453 = vpop.f32.mrf.mxu0
    %v11454 = vadd.f32 %v11341, %v11453
    %v11455 = vpop.f32.mrf.mxu0
    %v11456 = vadd.f32 %v11343, %v11455
    %11457 = vmatprep.mubr.bf16.mxu0 %v9717
    %11458 = vmatmul.mubr.bf16.gmra.mxu0 %v9716
    %v11459 = vpop.f32.mrf.mxu0
    %v11460 = vadd.f32 %v11347, %v11459
    %v11461 = vpop.f32.mrf.mxu0
    %v11462 = vadd.f32 %v11349, %v11461
    %v11463 = vpop.f32.mrf.mxu0
    %v11464 = vadd.f32 %v11351, %v11463
    %v11465 = vpop.f32.mrf.mxu0
    %v11466 = vadd.f32 %v11353, %v11465
    %11467 = vmatprep.mubr.bf16.mxu0 %v9721
    %11468 = vmatmul.mubr.bf16.gmra.mxu0 %v9720
    %v11469 = vpop.f32.mrf.mxu0
    %v11470 = vadd.f32 %v11357, %v11469
    %v11471 = vpop.f32.mrf.mxu0
    %v11472 = vadd.f32 %v11359, %v11471
    %v11473 = vpop.f32.mrf.mxu0
    %v11474 = vadd.f32 %v11361, %v11473
    %v11475 = vpop.f32.mrf.mxu0
    %v11476 = vadd.f32 %v11363, %v11475
    %11477 = vmatprep.mubr.bf16.mxu0 %v9725
    %11478 = vmatmul.mubr.bf16.gmra.mxu0 %v9724
    %v11479 = vpop.f32.mrf.mxu0
    %v11480 = vadd.f32 %v11367, %v11479
    %v11481 = vpop.f32.mrf.mxu0
    %v11482 = vadd.f32 %v11369, %v11481
    %v11483 = vpop.f32.mrf.mxu0
    %v11484 = vadd.f32 %v11371, %v11483
    %v11485 = vpop.f32.mrf.mxu0
    %v11486 = vadd.f32 %v11373, %v11485
    %11487 = vdwg.mxu0
    %11488 = vmatprep.subr.bf16.mxu0 %v10809
    %11489 = vmatpush1.bf16.msra.mxu0 %v10808
    %11490 = vmatprep.subr.bf16.mxu0 %v10801
    %11491 = vmatpush1.bf16.msra.mxu0 %v10800
    %11492 = vmatprep.subr.bf16.mxu0 %v10793
    %11493 = vmatpush1.bf16.msra.mxu0 %v10792
    %11494 = vmatprep.subr.bf16.mxu0 %v10785
    %11495 = vmatpush1.bf16.msra.mxu0 %v10784
    %11496 = vmatprep.subr.bf16.mxu0 %v10777
    %11497 = vmatpush1.bf16.msra.mxu0 %v10776
    %11498 = vmatprep.subr.bf16.mxu0 %v10769
    %11499 = vmatpush1.bf16.msra.mxu0 %v10768
    %11500 = vmatprep.subr.bf16.mxu0 %v10761
    %11501 = vmatpush1.bf16.msra.mxu0 %v10760
    %11502 = vmatprep.subr.bf16.mxu0 %v10753
    %11503 = vmatpush1.bf16.msra.mxu0 %v10752
    %11504 = vmatprep.subr.bf16.mxu0 %v10873
    %11505 = vmatpush2.bf16.msra.mxu0 %v10872
    %11506 = vmatprep.subr.bf16.mxu0 %v10865
    %11507 = vmatpush2.bf16.msra.mxu0 %v10864
    %11508 = vmatprep.subr.bf16.mxu0 %v10857
    %11509 = vmatpush2.bf16.msra.mxu0 %v10856
    %11510 = vmatprep.subr.bf16.mxu0 %v10849
    %11511 = vmatpush2.bf16.msra.mxu0 %v10848
    %11512 = vmatprep.subr.bf16.mxu0 %v10841
    %11513 = vmatpush2.bf16.msra.mxu0 %v10840
    %11514 = vmatprep.subr.bf16.mxu0 %v10833
    %11515 = vmatpush2.bf16.msra.mxu0 %v10832
    %11516 = vmatprep.subr.bf16.mxu0 %v10825
    %11517 = vmatpush2.bf16.msra.mxu0 %v10824
    %11518 = vmatprep.subr.bf16.mxu0 %v10817
    %11519 = vmatpush2.bf16.msra.mxu0 %v10816
    %11520 = vmatprep.mubr.bf16.mxu0 %v9695
    %11521 = vmatmul.mubr.bf16.gmra.mxu0 %v9694
    %v11522 = vpop.f32.mrf.mxu0
    %v11523 = vadd.f32 0.0, %v11522
    %v11524 = vpop.f32.mrf.mxu0
    %v11525 = vadd.f32 0.0, %v11524
    %v11526 = vpop.f32.mrf.mxu0
    %v11527 = vadd.f32 0.0, %v11526
    %v11528 = vpop.f32.mrf.mxu0
    %v11529 = vadd.f32 0.0, %v11528
    %11530 = vmatprep.mubr.bf16.mxu0 %v9699
    %11531 = vmatmul.mubr.bf16.gmra.mxu0 %v9698
    %v11532 = vpop.f32.mrf.mxu0
    %v11533 = vadd.f32 0.0, %v11532
    %v11534 = vpop.f32.mrf.mxu0
    %v11535 = vadd.f32 0.0, %v11534
    %v11536 = vpop.f32.mrf.mxu0
    %v11537 = vadd.f32 0.0, %v11536
    %v11538 = vpop.f32.mrf.mxu0
    %v11539 = vadd.f32 0.0, %v11538
    %11540 = vmatprep.mubr.bf16.mxu0 %v9703
    %11541 = vmatmul.mubr.bf16.gmra.mxu0 %v9702
    %v11542 = vpop.f32.mrf.mxu0
    %v11543 = vadd.f32 0.0, %v11542
    %v11544 = vpop.f32.mrf.mxu0
    %v11545 = vadd.f32 0.0, %v11544
    %v11546 = vpop.f32.mrf.mxu0
    %v11547 = vadd.f32 0.0, %v11546
    %v11548 = vpop.f32.mrf.mxu0
    %v11549 = vadd.f32 0.0, %v11548
    %11550 = vmatprep.mubr.bf16.mxu0 %v9707
    %11551 = vmatmul.mubr.bf16.gmra.mxu0 %v9706
    %v11552 = vpop.f32.mrf.mxu0
    %v11553 = vadd.f32 0.0, %v11552
    %v11554 = vpop.f32.mrf.mxu0
    %v11555 = vadd.f32 0.0, %v11554
    %v11556 = vpop.f32.mrf.mxu0
    %v11557 = vadd.f32 0.0, %v11556
    %v11558 = vpop.f32.mrf.mxu0
    %v11559 = vadd.f32 0.0, %v11558
    %11560 = vmatprep.mubr.bf16.mxu0 %v9711
    %11561 = vmatmul.mubr.bf16.gmra.mxu0 %v9710
    %v11562 = vpop.f32.mrf.mxu0
    %v11563 = vadd.f32 0.0, %v11562
    %v11564 = vpop.f32.mrf.mxu0
    %v11565 = vadd.f32 0.0, %v11564
    %v11566 = vpop.f32.mrf.mxu0
    %v11567 = vadd.f32 0.0, %v11566
    %v11568 = vpop.f32.mrf.mxu0
    %v11569 = vadd.f32 0.0, %v11568
    %11570 = vmatprep.mubr.bf16.mxu0 %v9715
    %11571 = vmatmul.mubr.bf16.gmra.mxu0 %v9714
    %v11572 = vpop.f32.mrf.mxu0
    %v11573 = vadd.f32 0.0, %v11572
    %v11574 = vpop.f32.mrf.mxu0
    %v11575 = vadd.f32 0.0, %v11574
    %v11576 = vpop.f32.mrf.mxu0
    %v11577 = vadd.f32 0.0, %v11576
    %v11578 = vpop.f32.mrf.mxu0
    %v11579 = vadd.f32 0.0, %v11578
    %11580 = vmatprep.mubr.bf16.mxu0 %v9719
    %11581 = vmatmul.mubr.bf16.gmra.mxu0 %v9718
    %v11582 = vpop.f32.mrf.mxu0
    %v11583 = vadd.f32 0.0, %v11582
    %v11584 = vpop.f32.mrf.mxu0
    %v11585 = vadd.f32 0.0, %v11584
    %v11586 = vpop.f32.mrf.mxu0
    %v11587 = vadd.f32 0.0, %v11586
    %v11588 = vpop.f32.mrf.mxu0
    %v11589 = vadd.f32 0.0, %v11588
    %11590 = vmatprep.mubr.bf16.mxu0 %v9723
    %11591 = vmatmul.mubr.bf16.gmra.mxu0 %v9722
    %v11592 = vpop.f32.mrf.mxu0
    %v11593 = vadd.f32 0.0, %v11592
    %v11594 = vpop.f32.mrf.mxu0
    %v11595 = vadd.f32 0.0, %v11594
    %v11596 = vpop.f32.mrf.mxu0
    %v11597 = vadd.f32 0.0, %v11596
    %v11598 = vpop.f32.mrf.mxu0
    %v11599 = vadd.f32 0.0, %v11598
    %11600 = vdwg.mxu0
    %11601 = vmatprep.subr.bf16.mxu0 %v10937
    %11602 = vmatpush1.bf16.msra.mxu0 %v10936
    %11603 = vmatprep.subr.bf16.mxu0 %v10929
    %11604 = vmatpush1.bf16.msra.mxu0 %v10928
    %11605 = vmatprep.subr.bf16.mxu0 %v10921
    %11606 = vmatpush1.bf16.msra.mxu0 %v10920
    %11607 = vmatprep.subr.bf16.mxu0 %v10913
    %11608 = vmatpush1.bf16.msra.mxu0 %v10912
    %11609 = vmatprep.subr.bf16.mxu0 %v10905
    %11610 = vmatpush1.bf16.msra.mxu0 %v10904
    %11611 = vmatprep.subr.bf16.mxu0 %v10897
    %11612 = vmatpush1.bf16.msra.mxu0 %v10896
    %11613 = vmatprep.subr.bf16.mxu0 %v10889
    %11614 = vmatpush1.bf16.msra.mxu0 %v10888
    %11615 = vmatprep.subr.bf16.mxu0 %v10881
    %11616 = vmatpush1.bf16.msra.mxu0 %v10880
    %11617 = vmatprep.subr.bf16.mxu0 %v11001
    %11618 = vmatpush2.bf16.msra.mxu0 %v11000
    %11619 = vmatprep.subr.bf16.mxu0 %v10993
    %11620 = vmatpush2.bf16.msra.mxu0 %v10992
    %11621 = vmatprep.subr.bf16.mxu0 %v10985
    %11622 = vmatpush2.bf16.msra.mxu0 %v10984
    %11623 = vmatprep.subr.bf16.mxu0 %v10977
    %11624 = vmatpush2.bf16.msra.mxu0 %v10976
    %11625 = vmatprep.subr.bf16.mxu0 %v10969
    %11626 = vmatpush2.bf16.msra.mxu0 %v10968
    %11627 = vmatprep.subr.bf16.mxu0 %v10961
    %11628 = vmatpush2.bf16.msra.mxu0 %v10960
    %11629 = vmatprep.subr.bf16.mxu0 %v10953
    %11630 = vmatpush2.bf16.msra.mxu0 %v10952
    %11631 = vmatprep.subr.bf16.mxu0 %v10945
    %11632 = vmatpush2.bf16.msra.mxu0 %v10944
    %11633 = vmatprep.mubr.bf16.mxu0 %v9697
    %11634 = vmatmul.mubr.bf16.gmra.mxu0 %v9696
    %v11635 = vpop.f32.mrf.mxu0
    %v11636 = vadd.f32 %v11523, %v11635
    %v11637 = vpop.f32.mrf.mxu0
    %v11638 = vadd.f32 %v11525, %v11637
    %v11639 = vpop.f32.mrf.mxu0
    %v11640 = vadd.f32 %v11527, %v11639
    %v11641 = vpop.f32.mrf.mxu0
    %v11642 = vadd.f32 %v11529, %v11641
    %11643 = vmatprep.mubr.bf16.mxu0 %v9701
    %11644 = vmatmul.mubr.bf16.gmra.mxu0 %v9700
    %v11645 = vpop.f32.mrf.mxu0
    %v11646 = vadd.f32 %v11533, %v11645
    %v11647 = vpop.f32.mrf.mxu0
    %v11648 = vadd.f32 %v11535, %v11647
    %v11649 = vpop.f32.mrf.mxu0
    %v11650 = vadd.f32 %v11537, %v11649
    %v11651 = vpop.f32.mrf.mxu0
    %v11652 = vadd.f32 %v11539, %v11651
    %11653 = vmatprep.mubr.bf16.mxu0 %v9705
    %11654 = vmatmul.mubr.bf16.gmra.mxu0 %v9704
    %v11655 = vpop.f32.mrf.mxu0
    %v11656 = vadd.f32 %v11543, %v11655
    %v11657 = vpop.f32.mrf.mxu0
    %v11658 = vadd.f32 %v11545, %v11657
    %v11659 = vpop.f32.mrf.mxu0
    %v11660 = vadd.f32 %v11547, %v11659
    %v11661 = vpop.f32.mrf.mxu0
    %v11662 = vadd.f32 %v11549, %v11661
    %11663 = vmatprep.mubr.bf16.mxu0 %v9709
    %11664 = vmatmul.mubr.bf16.gmra.mxu0 %v9708
    %v11665 = vpop.f32.mrf.mxu0
    %v11666 = vadd.f32 %v11553, %v11665
    %v11667 = vpop.f32.mrf.mxu0
    %v11668 = vadd.f32 %v11555, %v11667
    %v11669 = vpop.f32.mrf.mxu0
    %v11670 = vadd.f32 %v11557, %v11669
    %v11671 = vpop.f32.mrf.mxu0
    %v11672 = vadd.f32 %v11559, %v11671
    %11673 = vmatprep.mubr.bf16.mxu0 %v9713
    %11674 = vmatmul.mubr.bf16.gmra.mxu0 %v9712
    %v11675 = vpop.f32.mrf.mxu0
    %v11676 = vadd.f32 %v11563, %v11675
    %v11677 = vpop.f32.mrf.mxu0
    %v11678 = vadd.f32 %v11565, %v11677
    %v11679 = vpop.f32.mrf.mxu0
    %v11680 = vadd.f32 %v11567, %v11679
    %v11681 = vpop.f32.mrf.mxu0
    %v11682 = vadd.f32 %v11569, %v11681
    %11683 = vmatprep.mubr.bf16.mxu0 %v9717
    %11684 = vmatmul.mubr.bf16.gmra.mxu0 %v9716
    %v11685 = vpop.f32.mrf.mxu0
    %v11686 = vadd.f32 %v11573, %v11685
    %v11687 = vpop.f32.mrf.mxu0
    %v11688 = vadd.f32 %v11575, %v11687
    %v11689 = vpop.f32.mrf.mxu0
    %v11690 = vadd.f32 %v11577, %v11689
    %v11691 = vpop.f32.mrf.mxu0
    %v11692 = vadd.f32 %v11579, %v11691
    %11693 = vmatprep.mubr.bf16.mxu0 %v9721
    %11694 = vmatmul.mubr.bf16.gmra.mxu0 %v9720
    %v11695 = vpop.f32.mrf.mxu0
    %v11696 = vadd.f32 %v11583, %v11695
    %v11697 = vpop.f32.mrf.mxu0
    %v11698 = vadd.f32 %v11585, %v11697
    %v11699 = vpop.f32.mrf.mxu0
    %v11700 = vadd.f32 %v11587, %v11699
    %v11701 = vpop.f32.mrf.mxu0
    %v11702 = vadd.f32 %v11589, %v11701
    %11703 = vmatprep.mubr.bf16.mxu0 %v9725
    %11704 = vmatmul.mubr.bf16.gmra.mxu0 %v9724
    %v11705 = vpop.f32.mrf.mxu0
    %v11706 = vadd.f32 %v11593, %v11705
    %v11707 = vpop.f32.mrf.mxu0
    %v11708 = vadd.f32 %v11595, %v11707
    %v11709 = vpop.f32.mrf.mxu0
    %v11710 = vadd.f32 %v11597, %v11709
    %v11711 = vpop.f32.mrf.mxu0
    %v11712 = vadd.f32 %v11599, %v11711
    %11713 = vdwg.mxu0
    %11714 = vmatprep.subr.bf16.mxu0 %v10811
    %11715 = vmatpush1.bf16.msra.mxu0 %v10810
    %11716 = vmatprep.subr.bf16.mxu0 %v10803
    %11717 = vmatpush1.bf16.msra.mxu0 %v10802
    %11718 = vmatprep.subr.bf16.mxu0 %v10795
    %11719 = vmatpush1.bf16.msra.mxu0 %v10794
    %11720 = vmatprep.subr.bf16.mxu0 %v10787
    %11721 = vmatpush1.bf16.msra.mxu0 %v10786
    %11722 = vmatprep.subr.bf16.mxu0 %v10779
    %11723 = vmatpush1.bf16.msra.mxu0 %v10778
    %11724 = vmatprep.subr.bf16.mxu0 %v10771
    %11725 = vmatpush1.bf16.msra.mxu0 %v10770
    %11726 = vmatprep.subr.bf16.mxu0 %v10763
    %11727 = vmatpush1.bf16.msra.mxu0 %v10762
    %11728 = vmatprep.subr.bf16.mxu0 %v10755
    %11729 = vmatpush1.bf16.msra.mxu0 %v10754
    %11730 = vmatprep.subr.bf16.mxu0 %v10875
    %11731 = vmatpush2.bf16.msra.mxu0 %v10874
    %11732 = vmatprep.subr.bf16.mxu0 %v10867
    %11733 = vmatpush2.bf16.msra.mxu0 %v10866
    %11734 = vmatprep.subr.bf16.mxu0 %v10859
    %11735 = vmatpush2.bf16.msra.mxu0 %v10858
    %11736 = vmatprep.subr.bf16.mxu0 %v10851
    %11737 = vmatpush2.bf16.msra.mxu0 %v10850
    %11738 = vmatprep.subr.bf16.mxu0 %v10843
    %11739 = vmatpush2.bf16.msra.mxu0 %v10842
    %11740 = vmatprep.subr.bf16.mxu0 %v10835
    %11741 = vmatpush2.bf16.msra.mxu0 %v10834
    %11742 = vmatprep.subr.bf16.mxu0 %v10827
    %11743 = vmatpush2.bf16.msra.mxu0 %v10826
    %11744 = vmatprep.subr.bf16.mxu0 %v10819
    %11745 = vmatpush2.bf16.msra.mxu0 %v10818
    %11746 = vmatprep.mubr.bf16.mxu0 %v9695
    %11747 = vmatmul.mubr.bf16.gmra.mxu0 %v9694
    %v11748 = vpop.f32.mrf.mxu0
    %v11749 = vadd.f32 0.0, %v11748
    %v11750 = vpop.f32.mrf.mxu0
    %v11751 = vadd.f32 0.0, %v11750
    %v11752 = vpop.f32.mrf.mxu0
    %v11753 = vadd.f32 0.0, %v11752
    %v11754 = vpop.f32.mrf.mxu0
    %v11755 = vadd.f32 0.0, %v11754
    %11756 = vmatprep.mubr.bf16.mxu0 %v9699
    %11757 = vmatmul.mubr.bf16.gmra.mxu0 %v9698
    %v11758 = vpop.f32.mrf.mxu0
    %v11759 = vadd.f32 0.0, %v11758
    %v11760 = vpop.f32.mrf.mxu0
    %v11761 = vadd.f32 0.0, %v11760
    %v11762 = vpop.f32.mrf.mxu0
    %v11763 = vadd.f32 0.0, %v11762
    %v11764 = vpop.f32.mrf.mxu0
    %v11765 = vadd.f32 0.0, %v11764
    %11766 = vmatprep.mubr.bf16.mxu0 %v9703
    %11767 = vmatmul.mubr.bf16.gmra.mxu0 %v9702
    %v11768 = vpop.f32.mrf.mxu0
    %v11769 = vadd.f32 0.0, %v11768
    %v11770 = vpop.f32.mrf.mxu0
    %v11771 = vadd.f32 0.0, %v11770
    %v11772 = vpop.f32.mrf.mxu0
    %v11773 = vadd.f32 0.0, %v11772
    %v11774 = vpop.f32.mrf.mxu0
    %v11775 = vadd.f32 0.0, %v11774
    %11776 = vmatprep.mubr.bf16.mxu0 %v9707
    %11777 = vmatmul.mubr.bf16.gmra.mxu0 %v9706
    %v11778 = vpop.f32.mrf.mxu0
    %v11779 = vadd.f32 0.0, %v11778
    %v11780 = vpop.f32.mrf.mxu0
    %v11781 = vadd.f32 0.0, %v11780
    %v11782 = vpop.f32.mrf.mxu0
    %v11783 = vadd.f32 0.0, %v11782
    %v11784 = vpop.f32.mrf.mxu0
    %v11785 = vadd.f32 0.0, %v11784
    %11786 = vmatprep.mubr.bf16.mxu0 %v9711
    %11787 = vmatmul.mubr.bf16.gmra.mxu0 %v9710
    %v11788 = vpop.f32.mrf.mxu0
    %v11789 = vadd.f32 0.0, %v11788
    %v11790 = vpop.f32.mrf.mxu0
    %v11791 = vadd.f32 0.0, %v11790
    %v11792 = vpop.f32.mrf.mxu0
    %v11793 = vadd.f32 0.0, %v11792
    %v11794 = vpop.f32.mrf.mxu0
    %v11795 = vadd.f32 0.0, %v11794
    %11796 = vmatprep.mubr.bf16.mxu0 %v9715
    %11797 = vmatmul.mubr.bf16.gmra.mxu0 %v9714
    %v11798 = vpop.f32.mrf.mxu0
    %v11799 = vadd.f32 0.0, %v11798
    %v11800 = vpop.f32.mrf.mxu0
    %v11801 = vadd.f32 0.0, %v11800
    %v11802 = vpop.f32.mrf.mxu0
    %v11803 = vadd.f32 0.0, %v11802
    %v11804 = vpop.f32.mrf.mxu0
    %v11805 = vadd.f32 0.0, %v11804
    %11806 = vmatprep.mubr.bf16.mxu0 %v9719
    %11807 = vmatmul.mubr.bf16.gmra.mxu0 %v9718
    %v11808 = vpop.f32.mrf.mxu0
    %v11809 = vadd.f32 0.0, %v11808
    %v11810 = vpop.f32.mrf.mxu0
    %v11811 = vadd.f32 0.0, %v11810
    %v11812 = vpop.f32.mrf.mxu0
    %v11813 = vadd.f32 0.0, %v11812
    %v11814 = vpop.f32.mrf.mxu0
    %v11815 = vadd.f32 0.0, %v11814
    %11816 = vmatprep.mubr.bf16.mxu0 %v9723
    %11817 = vmatmul.mubr.bf16.gmra.mxu0 %v9722
    %v11818 = vpop.f32.mrf.mxu0
    %v11819 = vadd.f32 0.0, %v11818
    %v11820 = vpop.f32.mrf.mxu0
    %v11821 = vadd.f32 0.0, %v11820
    %v11822 = vpop.f32.mrf.mxu0
    %v11823 = vadd.f32 0.0, %v11822
    %v11824 = vpop.f32.mrf.mxu0
    %v11825 = vadd.f32 0.0, %v11824
    %11826 = vdwg.mxu0
    %11827 = vmatprep.subr.bf16.mxu0 %v10939
    %11828 = vmatpush1.bf16.msra.mxu0 %v10938
    %11829 = vmatprep.subr.bf16.mxu0 %v10931
    %11830 = vmatpush1.bf16.msra.mxu0 %v10930
    %11831 = vmatprep.subr.bf16.mxu0 %v10923
    %11832 = vmatpush1.bf16.msra.mxu0 %v10922
    %11833 = vmatprep.subr.bf16.mxu0 %v10915
    %11834 = vmatpush1.bf16.msra.mxu0 %v10914
    %11835 = vmatprep.subr.bf16.mxu0 %v10907
    %11836 = vmatpush1.bf16.msra.mxu0 %v10906
    %11837 = vmatprep.subr.bf16.mxu0 %v10899
    %11838 = vmatpush1.bf16.msra.mxu0 %v10898
    %11839 = vmatprep.subr.bf16.mxu0 %v10891
    %11840 = vmatpush1.bf16.msra.mxu0 %v10890
    %11841 = vmatprep.subr.bf16.mxu0 %v10883
    %11842 = vmatpush1.bf16.msra.mxu0 %v10882
    %11843 = vmatprep.subr.bf16.mxu0 %v11003
    %11844 = vmatpush2.bf16.msra.mxu0 %v11002
    %11845 = vmatprep.subr.bf16.mxu0 %v10995
    %11846 = vmatpush2.bf16.msra.mxu0 %v10994
    %11847 = vmatprep.subr.bf16.mxu0 %v10987
    %11848 = vmatpush2.bf16.msra.mxu0 %v10986
    %11849 = vmatprep.subr.bf16.mxu0 %v10979
    %11850 = vmatpush2.bf16.msra.mxu0 %v10978
    %11851 = vmatprep.subr.bf16.mxu0 %v10971
    %11852 = vmatpush2.bf16.msra.mxu0 %v10970
    %11853 = vmatprep.subr.bf16.mxu0 %v10963
    %11854 = vmatpush2.bf16.msra.mxu0 %v10962
    %11855 = vmatprep.subr.bf16.mxu0 %v10955
    %11856 = vmatpush2.bf16.msra.mxu0 %v10954
    %11857 = vmatprep.subr.bf16.mxu0 %v10947
    %11858 = vmatpush2.bf16.msra.mxu0 %v10946
    %11859 = vmatprep.mubr.bf16.mxu0 %v9697
    %11860 = vmatmul.mubr.bf16.gmra.mxu0 %v9696
    %v11861 = vpop.f32.mrf.mxu0
    %v11862 = vadd.f32 %v11749, %v11861
    %v11863 = vpop.f32.mrf.mxu0
    %v11864 = vadd.f32 %v11751, %v11863
    %v11865 = vpop.f32.mrf.mxu0
    %v11866 = vadd.f32 %v11753, %v11865
    %v11867 = vpop.f32.mrf.mxu0
    %v11868 = vadd.f32 %v11755, %v11867
    %11869 = vmatprep.mubr.bf16.mxu0 %v9701
    %11870 = vmatmul.mubr.bf16.gmra.mxu0 %v9700
    %v11871 = vpop.f32.mrf.mxu0
    %v11872 = vadd.f32 %v11759, %v11871
    %v11873 = vpop.f32.mrf.mxu0
    %v11874 = vadd.f32 %v11761, %v11873
    %v11875 = vpop.f32.mrf.mxu0
    %v11876 = vadd.f32 %v11763, %v11875
    %v11877 = vpop.f32.mrf.mxu0
    %v11878 = vadd.f32 %v11765, %v11877
    %11879 = vmatprep.mubr.bf16.mxu0 %v9705
    %11880 = vmatmul.mubr.bf16.gmra.mxu0 %v9704
    %v11881 = vpop.f32.mrf.mxu0
    %v11882 = vadd.f32 %v11769, %v11881
    %v11883 = vpop.f32.mrf.mxu0
    %v11884 = vadd.f32 %v11771, %v11883
    %v11885 = vpop.f32.mrf.mxu0
    %v11886 = vadd.f32 %v11773, %v11885
    %v11887 = vpop.f32.mrf.mxu0
    %v11888 = vadd.f32 %v11775, %v11887
    %11889 = vmatprep.mubr.bf16.mxu0 %v9709
    %11890 = vmatmul.mubr.bf16.gmra.mxu0 %v9708
    %v11891 = vpop.f32.mrf.mxu0
    %v11892 = vadd.f32 %v11779, %v11891
    %v11893 = vpop.f32.mrf.mxu0
    %v11894 = vadd.f32 %v11781, %v11893
    %v11895 = vpop.f32.mrf.mxu0
    %v11896 = vadd.f32 %v11783, %v11895
    %v11897 = vpop.f32.mrf.mxu0
    %v11898 = vadd.f32 %v11785, %v11897
    %11899 = vmatprep.mubr.bf16.mxu0 %v9713
    %11900 = vmatmul.mubr.bf16.gmra.mxu0 %v9712
    %v11901 = vpop.f32.mrf.mxu0
    %v11902 = vadd.f32 %v11789, %v11901
    %v11903 = vpop.f32.mrf.mxu0
    %v11904 = vadd.f32 %v11791, %v11903
    %v11905 = vpop.f32.mrf.mxu0
    %v11906 = vadd.f32 %v11793, %v11905
    %v11907 = vpop.f32.mrf.mxu0
    %v11908 = vadd.f32 %v11795, %v11907
    %11909 = vmatprep.mubr.bf16.mxu0 %v9717
    %11910 = vmatmul.mubr.bf16.gmra.mxu0 %v9716
    %v11911 = vpop.f32.mrf.mxu0
    %v11912 = vadd.f32 %v11799, %v11911
    %v11913 = vpop.f32.mrf.mxu0
    %v11914 = vadd.f32 %v11801, %v11913
    %v11915 = vpop.f32.mrf.mxu0
    %v11916 = vadd.f32 %v11803, %v11915
    %v11917 = vpop.f32.mrf.mxu0
    %v11918 = vadd.f32 %v11805, %v11917
    %11919 = vmatprep.mubr.bf16.mxu0 %v9721
    %11920 = vmatmul.mubr.bf16.gmra.mxu0 %v9720
    %v11921 = vpop.f32.mrf.mxu0
    %v11922 = vadd.f32 %v11809, %v11921
    %v11923 = vpop.f32.mrf.mxu0
    %v11924 = vadd.f32 %v11811, %v11923
    %v11925 = vpop.f32.mrf.mxu0
    %v11926 = vadd.f32 %v11813, %v11925
    %v11927 = vpop.f32.mrf.mxu0
    %v11928 = vadd.f32 %v11815, %v11927
    %11929 = vmatprep.mubr.bf16.mxu0 %v9725
    %11930 = vmatmul.mubr.bf16.gmra.mxu0 %v9724
    %v11931 = vpop.f32.mrf.mxu0
    %v11932 = vadd.f32 %v11819, %v11931
    %v11933 = vpop.f32.mrf.mxu0
    %v11934 = vadd.f32 %v11821, %v11933
    %v11935 = vpop.f32.mrf.mxu0
    %v11936 = vadd.f32 %v11823, %v11935
    %v11937 = vpop.f32.mrf.mxu0
    %v11938 = vadd.f32 %v11825, %v11937
    %11939 = vdwg.mxu0
    %11940 = vmatprep.subr.bf16.mxu0 %v10813
    %11941 = vmatpush1.bf16.msra.mxu0 %v10812
    %11942 = vmatprep.subr.bf16.mxu0 %v10805
    %11943 = vmatpush1.bf16.msra.mxu0 %v10804
    %11944 = vmatprep.subr.bf16.mxu0 %v10797
    %11945 = vmatpush1.bf16.msra.mxu0 %v10796
    %11946 = vmatprep.subr.bf16.mxu0 %v10789
    %11947 = vmatpush1.bf16.msra.mxu0 %v10788
    %11948 = vmatprep.subr.bf16.mxu0 %v10781
    %11949 = vmatpush1.bf16.msra.mxu0 %v10780
    %11950 = vmatprep.subr.bf16.mxu0 %v10773
    %11951 = vmatpush1.bf16.msra.mxu0 %v10772
    %11952 = vmatprep.subr.bf16.mxu0 %v10765
    %11953 = vmatpush1.bf16.msra.mxu0 %v10764
    %11954 = vmatprep.subr.bf16.mxu0 %v10757
    %11955 = vmatpush1.bf16.msra.mxu0 %v10756
    %11956 = vmatprep.subr.bf16.mxu0 %v10877
    %11957 = vmatpush2.bf16.msra.mxu0 %v10876
    %11958 = vmatprep.subr.bf16.mxu0 %v10869
    %11959 = vmatpush2.bf16.msra.mxu0 %v10868
    %11960 = vmatprep.subr.bf16.mxu0 %v10861
    %11961 = vmatpush2.bf16.msra.mxu0 %v10860
    %11962 = vmatprep.subr.bf16.mxu0 %v10853
    %11963 = vmatpush2.bf16.msra.mxu0 %v10852
    %11964 = vmatprep.subr.bf16.mxu0 %v10845
    %11965 = vmatpush2.bf16.msra.mxu0 %v10844
    %11966 = vmatprep.subr.bf16.mxu0 %v10837
    %11967 = vmatpush2.bf16.msra.mxu0 %v10836
    %11968 = vmatprep.subr.bf16.mxu0 %v10829
    %11969 = vmatpush2.bf16.msra.mxu0 %v10828
    %11970 = vmatprep.subr.bf16.mxu0 %v10821
    %11971 = vmatpush2.bf16.msra.mxu0 %v10820
    %11972 = vmatprep.mubr.bf16.mxu0 %v9695
    %11973 = vmatmul.mubr.bf16.gmra.mxu0 %v9694
    %v11974 = vpop.f32.mrf.mxu0
    %v11975 = vadd.f32 0.0, %v11974
    %v11976 = vpop.f32.mrf.mxu0
    %v11977 = vadd.f32 0.0, %v11976
    %v11978 = vpop.f32.mrf.mxu0
    %v11979 = vadd.f32 0.0, %v11978
    %v11980 = vpop.f32.mrf.mxu0
    %v11981 = vadd.f32 0.0, %v11980
    %11982 = vmatprep.mubr.bf16.mxu0 %v9699
    %11983 = vmatmul.mubr.bf16.gmra.mxu0 %v9698
    %v11984 = vpop.f32.mrf.mxu0
    %v11985 = vadd.f32 0.0, %v11984
    %v11986 = vpop.f32.mrf.mxu0
    %v11987 = vadd.f32 0.0, %v11986
    %v11988 = vpop.f32.mrf.mxu0
    %v11989 = vadd.f32 0.0, %v11988
    %v11990 = vpop.f32.mrf.mxu0
    %v11991 = vadd.f32 0.0, %v11990
    %11992 = vmatprep.mubr.bf16.mxu0 %v9703
    %11993 = vmatmul.mubr.bf16.gmra.mxu0 %v9702
    %v11994 = vpop.f32.mrf.mxu0
    %v11995 = vadd.f32 0.0, %v11994
    %v11996 = vpop.f32.mrf.mxu0
    %v11997 = vadd.f32 0.0, %v11996
    %v11998 = vpop.f32.mrf.mxu0
    %v11999 = vadd.f32 0.0, %v11998
    %v12000 = vpop.f32.mrf.mxu0
    %v12001 = vadd.f32 0.0, %v12000
    %12002 = vmatprep.mubr.bf16.mxu0 %v9707
    %12003 = vmatmul.mubr.bf16.gmra.mxu0 %v9706
    %v12004 = vpop.f32.mrf.mxu0
    %v12005 = vadd.f32 0.0, %v12004
    %v12006 = vpop.f32.mrf.mxu0
    %v12007 = vadd.f32 0.0, %v12006
    %v12008 = vpop.f32.mrf.mxu0
    %v12009 = vadd.f32 0.0, %v12008
    %v12010 = vpop.f32.mrf.mxu0
    %v12011 = vadd.f32 0.0, %v12010
    %12012 = vmatprep.mubr.bf16.mxu0 %v9711
    %12013 = vmatmul.mubr.bf16.gmra.mxu0 %v9710
    %v12014 = vpop.f32.mrf.mxu0
    %v12015 = vadd.f32 0.0, %v12014
    %v12016 = vpop.f32.mrf.mxu0
    %v12017 = vadd.f32 0.0, %v12016
    %v12018 = vpop.f32.mrf.mxu0
    %v12019 = vadd.f32 0.0, %v12018
    %v12020 = vpop.f32.mrf.mxu0
    %v12021 = vadd.f32 0.0, %v12020
    %12022 = vmatprep.mubr.bf16.mxu0 %v9715
    %12023 = vmatmul.mubr.bf16.gmra.mxu0 %v9714
    %v12024 = vpop.f32.mrf.mxu0
    %v12025 = vadd.f32 0.0, %v12024
    %v12026 = vpop.f32.mrf.mxu0
    %v12027 = vadd.f32 0.0, %v12026
    %v12028 = vpop.f32.mrf.mxu0
    %v12029 = vadd.f32 0.0, %v12028
    %v12030 = vpop.f32.mrf.mxu0
    %v12031 = vadd.f32 0.0, %v12030
    %12032 = vmatprep.mubr.bf16.mxu0 %v9719
    %12033 = vmatmul.mubr.bf16.gmra.mxu0 %v9718
    %v12034 = vpop.f32.mrf.mxu0
    %v12035 = vadd.f32 0.0, %v12034
    %v12036 = vpop.f32.mrf.mxu0
    %v12037 = vadd.f32 0.0, %v12036
    %v12038 = vpop.f32.mrf.mxu0
    %v12039 = vadd.f32 0.0, %v12038
    %v12040 = vpop.f32.mrf.mxu0
    %v12041 = vadd.f32 0.0, %v12040
    %12042 = vmatprep.mubr.bf16.mxu0 %v9723
    %12043 = vmatmul.mubr.bf16.gmra.mxu0 %v9722
    %v12044 = vpop.f32.mrf.mxu0
    %v12045 = vadd.f32 0.0, %v12044
    %v12046 = vpop.f32.mrf.mxu0
    %v12047 = vadd.f32 0.0, %v12046
    %v12048 = vpop.f32.mrf.mxu0
    %v12049 = vadd.f32 0.0, %v12048
    %v12050 = vpop.f32.mrf.mxu0
    %v12051 = vadd.f32 0.0, %v12050
    %12052 = vdwg.mxu0
    %12053 = vmatprep.subr.bf16.mxu0 %v10941
    %12054 = vmatpush1.bf16.msra.mxu0 %v10940
    %12055 = vmatprep.subr.bf16.mxu0 %v10933
    %12056 = vmatpush1.bf16.msra.mxu0 %v10932
    %12057 = vmatprep.subr.bf16.mxu0 %v10925
    %12058 = vmatpush1.bf16.msra.mxu0 %v10924
    %12059 = vmatprep.subr.bf16.mxu0 %v10917
    %12060 = vmatpush1.bf16.msra.mxu0 %v10916
    %12061 = vmatprep.subr.bf16.mxu0 %v10909
    %12062 = vmatpush1.bf16.msra.mxu0 %v10908
    %12063 = vmatprep.subr.bf16.mxu0 %v10901
    %12064 = vmatpush1.bf16.msra.mxu0 %v10900
    %12065 = vmatprep.subr.bf16.mxu0 %v10893
    %12066 = vmatpush1.bf16.msra.mxu0 %v10892
    %12067 = vmatprep.subr.bf16.mxu0 %v10885
    %12068 = vmatpush1.bf16.msra.mxu0 %v10884
    %12069 = vmatprep.subr.bf16.mxu0 %v11005
    %12070 = vmatpush2.bf16.msra.mxu0 %v11004
    %12071 = vmatprep.subr.bf16.mxu0 %v10997
    %12072 = vmatpush2.bf16.msra.mxu0 %v10996
    %12073 = vmatprep.subr.bf16.mxu0 %v10989
    %12074 = vmatpush2.bf16.msra.mxu0 %v10988
    %12075 = vmatprep.subr.bf16.mxu0 %v10981
    %12076 = vmatpush2.bf16.msra.mxu0 %v10980
    %12077 = vmatprep.subr.bf16.mxu0 %v10973
    %12078 = vmatpush2.bf16.msra.mxu0 %v10972
    %12079 = vmatprep.subr.bf16.mxu0 %v10965
    %12080 = vmatpush2.bf16.msra.mxu0 %v10964
    %12081 = vmatprep.subr.bf16.mxu0 %v10957
    %12082 = vmatpush2.bf16.msra.mxu0 %v10956
    %12083 = vmatprep.subr.bf16.mxu0 %v10949
    %12084 = vmatpush2.bf16.msra.mxu0 %v10948
    %12085 = vmatprep.mubr.bf16.mxu0 %v9697
    %12086 = vmatmul.mubr.bf16.gmra.mxu0 %v9696
    %v12087 = vpop.f32.mrf.mxu0
    %v12088 = vadd.f32 %v11975, %v12087
    %v12089 = vpop.f32.mrf.mxu0
    %v12090 = vadd.f32 %v11977, %v12089
    %v12091 = vpop.f32.mrf.mxu0
    %v12092 = vadd.f32 %v11979, %v12091
    %v12093 = vpop.f32.mrf.mxu0
    %v12094 = vadd.f32 %v11981, %v12093
    %12095 = vmatprep.mubr.bf16.mxu0 %v9701
    %12096 = vmatmul.mubr.bf16.gmra.mxu0 %v9700
    %v12097 = vpop.f32.mrf.mxu0
    %v12098 = vadd.f32 %v11985, %v12097
    %v12099 = vpop.f32.mrf.mxu0
    %v12100 = vadd.f32 %v11987, %v12099
    %v12101 = vpop.f32.mrf.mxu0
    %v12102 = vadd.f32 %v11989, %v12101
    %v12103 = vpop.f32.mrf.mxu0
    %v12104 = vadd.f32 %v11991, %v12103
    %12105 = vmatprep.mubr.bf16.mxu0 %v9705
    %12106 = vmatmul.mubr.bf16.gmra.mxu0 %v9704
    %v12107 = vpop.f32.mrf.mxu0
    %v12108 = vadd.f32 %v11995, %v12107
    %v12109 = vpop.f32.mrf.mxu0
    %v12110 = vadd.f32 %v11997, %v12109
    %v12111 = vpop.f32.mrf.mxu0
    %v12112 = vadd.f32 %v11999, %v12111
    %v12113 = vpop.f32.mrf.mxu0
    %v12114 = vadd.f32 %v12001, %v12113
    %12115 = vmatprep.mubr.bf16.mxu0 %v9709
    %12116 = vmatmul.mubr.bf16.gmra.mxu0 %v9708
    %v12117 = vpop.f32.mrf.mxu0
    %v12118 = vadd.f32 %v12005, %v12117
    %v12119 = vpop.f32.mrf.mxu0
    %v12120 = vadd.f32 %v12007, %v12119
    %v12121 = vpop.f32.mrf.mxu0
    %v12122 = vadd.f32 %v12009, %v12121
    %v12123 = vpop.f32.mrf.mxu0
    %v12124 = vadd.f32 %v12011, %v12123
    %12125 = vmatprep.mubr.bf16.mxu0 %v9713
    %12126 = vmatmul.mubr.bf16.gmra.mxu0 %v9712
    %v12127 = vpop.f32.mrf.mxu0
    %v12128 = vadd.f32 %v12015, %v12127
    %v12129 = vpop.f32.mrf.mxu0
    %v12130 = vadd.f32 %v12017, %v12129
    %v12131 = vpop.f32.mrf.mxu0
    %v12132 = vadd.f32 %v12019, %v12131
    %v12133 = vpop.f32.mrf.mxu0
    %v12134 = vadd.f32 %v12021, %v12133
    %12135 = vmatprep.mubr.bf16.mxu0 %v9717
    %12136 = vmatmul.mubr.bf16.gmra.mxu0 %v9716
    %v12137 = vpop.f32.mrf.mxu0
    %v12138 = vadd.f32 %v12025, %v12137
    %v12139 = vpop.f32.mrf.mxu0
    %v12140 = vadd.f32 %v12027, %v12139
    %v12141 = vpop.f32.mrf.mxu0
    %v12142 = vadd.f32 %v12029, %v12141
    %v12143 = vpop.f32.mrf.mxu0
    %v12144 = vadd.f32 %v12031, %v12143
    %12145 = vmatprep.mubr.bf16.mxu0 %v9721
    %12146 = vmatmul.mubr.bf16.gmra.mxu0 %v9720
    %v12147 = vpop.f32.mrf.mxu0
    %v12148 = vadd.f32 %v12035, %v12147
    %v12149 = vpop.f32.mrf.mxu0
    %v12150 = vadd.f32 %v12037, %v12149
    %v12151 = vpop.f32.mrf.mxu0
    %v12152 = vadd.f32 %v12039, %v12151
    %v12153 = vpop.f32.mrf.mxu0
    %v12154 = vadd.f32 %v12041, %v12153
    %12155 = vmatprep.mubr.bf16.mxu0 %v9725
    %12156 = vmatmul.mubr.bf16.gmra.mxu0 %v9724
    %v12157 = vpop.f32.mrf.mxu0
    %v12158 = vadd.f32 %v12045, %v12157
    %v12159 = vpop.f32.mrf.mxu0
    %v12160 = vadd.f32 %v12047, %v12159
    %v12161 = vpop.f32.mrf.mxu0
    %v12162 = vadd.f32 %v12049, %v12161
    %v12163 = vpop.f32.mrf.mxu0
    %v12164 = vadd.f32 %v12051, %v12163
    %12165 = vdwg.mxu0
    %v12166 = vrot.slane %v4598, 4
    %v12167 = vadd.f32 %v4598, %v12166
    %v12168 = vrot.slane %v12167, 2
    %v12169 = vadd.f32 %v12167, %v12168
    %v12170 = vrot.slane %v12169, 1
    %v12171 = vadd.f32 %v12169, %v12170
    %v12172 = vrot.slane %v4600, 4
    %v12173 = vadd.f32 %v4600, %v12172
    %v12174 = vrot.slane %v12173, 2
    %v12175 = vadd.f32 %v12173, %v12174
    %v12176 = vrot.slane %v12175, 1
    %v12177 = vadd.f32 %v12175, %v12176
    %v12178 = vrot.slane %v4680, 4
    %v12179 = vadd.f32 %v4680, %v12178
    %v12180 = vrot.slane %v12179, 2
    %v12181 = vadd.f32 %v12179, %v12180
    %v12182 = vrot.slane %v12181, 1
    %v12183 = vadd.f32 %v12181, %v12182
    %v12184 = vrot.slane %v4682, 4
    %v12185 = vadd.f32 %v4682, %v12184
    %v12186 = vrot.slane %v12185, 2
    %v12187 = vadd.f32 %v12185, %v12186
    %v12188 = vrot.slane %v12187, 1
    %v12189 = vadd.f32 %v12187, %v12188
    %v12190 = vrot.slane %v4762, 4
    %v12191 = vadd.f32 %v4762, %v12190
    %v12192 = vrot.slane %v12191, 2
    %v12193 = vadd.f32 %v12191, %v12192
    %v12194 = vrot.slane %v12193, 1
    %v12195 = vadd.f32 %v12193, %v12194
    %v12196 = vrot.slane %v4764, 4
    %v12197 = vadd.f32 %v4764, %v12196
    %v12198 = vrot.slane %v12197, 2
    %v12199 = vadd.f32 %v12197, %v12198
    %v12200 = vrot.slane %v12199, 1
    %v12201 = vadd.f32 %v12199, %v12200
    %v12202 = vrot.slane %v4844, 4
    %v12203 = vadd.f32 %v4844, %v12202
    %v12204 = vrot.slane %v12203, 2
    %v12205 = vadd.f32 %v12203, %v12204
    %v12206 = vrot.slane %v12205, 1
    %v12207 = vadd.f32 %v12205, %v12206
    %v12208 = vrot.slane %v4846, 4
    %v12209 = vadd.f32 %v4846, %v12208
    %v12210 = vrot.slane %v12209, 2
    %v12211 = vadd.f32 %v12209, %v12210
    %v12212 = vrot.slane %v12211, 1
    %v12213 = vadd.f32 %v12211, %v12212
    %v12214 = vrcp.pop 8.0
    %v12215 = vmul.f32 %v12171, %v12214
    %v12216 = vmul.f32 %v12177, %v12214
    %v12217 = vmul.f32 %v12183, %v12214
    %v12218 = vmul.f32 %v12189, %v12214
    %v12219 = vmul.f32 %v12195, %v12214
    %v12220 = vmul.f32 %v12201, %v12214
    %v12221 = vmul.f32 %v12207, %v12214
    %v12222 = vmul.f32 %v12213, %v12214
    %v12223 = vsub.f32 %v4598, %v12215
    %v12224 = vsub.f32 %v4600, %v12216
    %v12225 = vsub.f32 %v4680, %v12217
    %v12226 = vsub.f32 %v4682, %v12218
    %v12227 = vsub.f32 %v4762, %v12219
    %v12228 = vsub.f32 %v4764, %v12220
    %v12229 = vsub.f32 %v4844, %v12221
    %v12230 = vsub.f32 %v4846, %v12222
    %v12231 = vmul.f32 %v12223, %v12223
    %v12232 = vmul.f32 %v12224, %v12224
    %v12233 = vmul.f32 %v12225, %v12225
    %v12234 = vmul.f32 %v12226, %v12226
    %v12235 = vmul.f32 %v12227, %v12227
    %v12236 = vmul.f32 %v12228, %v12228
    %v12237 = vmul.f32 %v12229, %v12229
    %v12238 = vmul.f32 %v12230, %v12230
    %v12239 = vrot.slane %v12231, 4
    %v12240 = vadd.f32 %v12231, %v12239
    %v12241 = vrot.slane %v12240, 2
    %v12242 = vadd.f32 %v12240, %v12241
    %v12243 = vrot.slane %v12242, 1
    %v12244 = vadd.f32 %v12242, %v12243
    %v12245 = vrot.slane %v12232, 4
    %v12246 = vadd.f32 %v12232, %v12245
    %v12247 = vrot.slane %v12246, 2
    %v12248 = vadd.f32 %v12246, %v12247
    %v12249 = vrot.slane %v12248, 1
    %v12250 = vadd.f32 %v12248, %v12249
    %v12251 = vrot.slane %v12233, 4
    %v12252 = vadd.f32 %v12233, %v12251
    %v12253 = vrot.slane %v12252, 2
    %v12254 = vadd.f32 %v12252, %v12253
    %v12255 = vrot.slane %v12254, 1
    %v12256 = vadd.f32 %v12254, %v12255
    %v12257 = vrot.slane %v12234, 4
    %v12258 = vadd.f32 %v12234, %v12257
    %v12259 = vrot.slane %v12258, 2
    %v12260 = vadd.f32 %v12258, %v12259
    %v12261 = vrot.slane %v12260, 1
    %v12262 = vadd.f32 %v12260, %v12261
    %v12263 = vrot.slane %v12235, 4
    %v12264 = vadd.f32 %v12235, %v12263
    %v12265 = vrot.slane %v12264, 2
    %v12266 = vadd.f32 %v12264, %v12265
    %v12267 = vrot.slane %v12266, 1
    %v12268 = vadd.f32 %v12266, %v12267
    %v12269 = vrot.slane %v12236, 4
    %v12270 = vadd.f32 %v12236, %v12269
    %v12271 = vrot.slane %v12270, 2
    %v12272 = vadd.f32 %v12270, %v12271
    %v12273 = vrot.slane %v12272, 1
    %v12274 = vadd.f32 %v12272, %v12273
    %v12275 = vrot.slane %v12237, 4
    %v12276 = vadd.f32 %v12237, %v12275
    %v12277 = vrot.slane %v12276, 2
    %v12278 = vadd.f32 %v12276, %v12277
    %v12279 = vrot.slane %v12278, 1
    %v12280 = vadd.f32 %v12278, %v12279
    %v12281 = vrot.slane %v12238, 4
    %v12282 = vadd.f32 %v12238, %v12281
    %v12283 = vrot.slane %v12282, 2
    %v12284 = vadd.f32 %v12282, %v12283
    %v12285 = vrot.slane %v12284, 1
    %v12286 = vadd.f32 %v12284, %v12285
    %v12287 = vmul.f32 %v12244, 0.14285715
    %v12288 = vmul.f32 %v12250, 0.14285715
    %v12289 = vmul.f32 %v12256, 0.14285715
    %v12290 = vmul.f32 %v12262, 0.14285715
    %v12291 = vmul.f32 %v12268, 0.14285715
    %v12292 = vmul.f32 %v12274, 0.14285715
    %v12293 = vmul.f32 %v12280, 0.14285715
    %v12294 = vmul.f32 %v12286, 0.14285715
    %v12295 = vrsqrt.pop %v12287
    %v12296 = vrsqrt.pop %v12288
    %v12297 = vrsqrt.pop %v12289
    %v12298 = vrsqrt.pop %v12290
    %v12299 = vrsqrt.pop %v12291
    %v12300 = vrsqrt.pop %v12292
    %v12301 = vrsqrt.pop %v12293
    %v12302 = vrsqrt.pop %v12294
    %v12303 = vmul.f32 %v12223, %v12295
    %v12304 = vmul.f32 %v12224, %v12296
    %v12305 = vmul.f32 %v12225, %v12297
    %v12306 = vmul.f32 %v12226, %v12298
    %v12307 = vmul.f32 %v12227, %v12299
    %v12308 = vmul.f32 %v12228, %v12300
    %v12309 = vmul.f32 %v12229, %v12301
    %v12310 = vmul.f32 %v12230, %v12302
    %v12311 = vadd.f32 %v11410, %v11414
    %v12312 = vadd.f32 %v12311, %v11420
    %v12313 = vadd.f32 %v12312, %v11424
    %v12314 = vadd.f32 %v12313, %v11430
    %v12315 = vadd.f32 %v12314, %v11434
    %v12316 = vadd.f32 %v12315, %v11440
    %v12317 = vadd.f32 %v12316, %v11444
    %v12318 = vadd.f32 %v12317, %v11450
    %v12319 = vadd.f32 %v12318, %v11454
    %v12320 = vadd.f32 %v12319, %v11460
    %v12321 = vadd.f32 %v12320, %v11464
    %v12322 = vadd.f32 %v12321, %v11470
    %v12323 = vadd.f32 %v12322, %v11474
    %v12324 = vadd.f32 %v12323, %v11480
    %v12325 = vadd.f32 %v12324, %v11484
    %v12326 = vrot.slane %v12325, 4
    %v12327 = vadd.f32 %v12325, %v12326
    %v12328 = vrot.slane %v12327, 2
    %v12329 = vadd.f32 %v12327, %v12328
    %v12330 = vrot.slane %v12329, 1
    %v12331 = vadd.f32 %v12329, %v12330
    %v12332 = vadd.f32 %v11412, %v11416
    %v12333 = vadd.f32 %v12332, %v11422
    %v12334 = vadd.f32 %v12333, %v11426
    %v12335 = vadd.f32 %v12334, %v11432
    %v12336 = vadd.f32 %v12335, %v11436
    %v12337 = vadd.f32 %v12336, %v11442
    %v12338 = vadd.f32 %v12337, %v11446
    %v12339 = vadd.f32 %v12338, %v11452
    %v12340 = vadd.f32 %v12339, %v11456
    %v12341 = vadd.f32 %v12340, %v11462
    %v12342 = vadd.f32 %v12341, %v11466
    %v12343 = vadd.f32 %v12342, %v11472
    %v12344 = vadd.f32 %v12343, %v11476
    %v12345 = vadd.f32 %v12344, %v11482
    %v12346 = vadd.f32 %v12345, %v11486
    %v12347 = vrot.slane %v12346, 4
    %v12348 = vadd.f32 %v12346, %v12347
    %v12349 = vrot.slane %v12348, 2
    %v12350 = vadd.f32 %v12348, %v12349
    %v12351 = vrot.slane %v12350, 1
    %v12352 = vadd.f32 %v12350, %v12351
    %v12353 = vadd.f32 %v11636, %v11640
    %v12354 = vadd.f32 %v12353, %v11646
    %v12355 = vadd.f32 %v12354, %v11650
    %v12356 = vadd.f32 %v12355, %v11656
    %v12357 = vadd.f32 %v12356, %v11660
    %v12358 = vadd.f32 %v12357, %v11666
    %v12359 = vadd.f32 %v12358, %v11670
    %v12360 = vadd.f32 %v12359, %v11676
    %v12361 = vadd.f32 %v12360, %v11680
    %v12362 = vadd.f32 %v12361, %v11686
    %v12363 = vadd.f32 %v12362, %v11690
    %v12364 = vadd.f32 %v12363, %v11696
    %v12365 = vadd.f32 %v12364, %v11700
    %v12366 = vadd.f32 %v12365, %v11706
    %v12367 = vadd.f32 %v12366, %v11710
    %v12368 = vrot.slane %v12367, 4
    %v12369 = vadd.f32 %v12367, %v12368
    %v12370 = vrot.slane %v12369, 2
    %v12371 = vadd.f32 %v12369, %v12370
    %v12372 = vrot.slane %v12371, 1
    %v12373 = vadd.f32 %v12371, %v12372
    %v12374 = vadd.f32 %v11638, %v11642
    %v12375 = vadd.f32 %v12374, %v11648
    %v12376 = vadd.f32 %v12375, %v11652
    %v12377 = vadd.f32 %v12376, %v11658
    %v12378 = vadd.f32 %v12377, %v11662
    %v12379 = vadd.f32 %v12378, %v11668
    %v12380 = vadd.f32 %v12379, %v11672
    %v12381 = vadd.f32 %v12380, %v11678
    %v12382 = vadd.f32 %v12381, %v11682
    %v12383 = vadd.f32 %v12382, %v11688
    %v12384 = vadd.f32 %v12383, %v11692
    %v12385 = vadd.f32 %v12384, %v11698
    %v12386 = vadd.f32 %v12385, %v11702
    %v12387 = vadd.f32 %v12386, %v11708
    %v12388 = vadd.f32 %v12387, %v11712
    %v12389 = vrot.slane %v12388, 4
    %v12390 = vadd.f32 %v12388, %v12389
    %v12391 = vrot.slane %v12390, 2
    %v12392 = vadd.f32 %v12390, %v12391
    %v12393 = vrot.slane %v12392, 1
    %v12394 = vadd.f32 %v12392, %v12393
    %v12395 = vadd.f32 %v11862, %v11866
    %v12396 = vadd.f32 %v12395, %v11872
    %v12397 = vadd.f32 %v12396, %v11876
    %v12398 = vadd.f32 %v12397, %v11882
    %v12399 = vadd.f32 %v12398, %v11886
    %v12400 = vadd.f32 %v12399, %v11892
    %v12401 = vadd.f32 %v12400, %v11896
    %v12402 = vadd.f32 %v12401, %v11902
    %v12403 = vadd.f32 %v12402, %v11906
    %v12404 = vadd.f32 %v12403, %v11912
    %v12405 = vadd.f32 %v12404, %v11916
    %v12406 = vadd.f32 %v12405, %v11922
    %v12407 = vadd.f32 %v12406, %v11926
    %v12408 = vadd.f32 %v12407, %v11932
    %v12409 = vadd.f32 %v12408, %v11936
    %v12410 = vrot.slane %v12409, 4
    %v12411 = vadd.f32 %v12409, %v12410
    %v12412 = vrot.slane %v12411, 2
    %v12413 = vadd.f32 %v12411, %v12412
    %v12414 = vrot.slane %v12413, 1
    %v12415 = vadd.f32 %v12413, %v12414
    %v12416 = vadd.f32 %v11864, %v11868
    %v12417 = vadd.f32 %v12416, %v11874
    %v12418 = vadd.f32 %v12417, %v11878
    %v12419 = vadd.f32 %v12418, %v11884
    %v12420 = vadd.f32 %v12419, %v11888
    %v12421 = vadd.f32 %v12420, %v11894
    %v12422 = vadd.f32 %v12421, %v11898
    %v12423 = vadd.f32 %v12422, %v11904
    %v12424 = vadd.f32 %v12423, %v11908
    %v12425 = vadd.f32 %v12424, %v11914
    %v12426 = vadd.f32 %v12425, %v11918
    %v12427 = vadd.f32 %v12426, %v11924
    %v12428 = vadd.f32 %v12427, %v11928
    %v12429 = vadd.f32 %v12428, %v11934
    %v12430 = vadd.f32 %v12429, %v11938
    %v12431 = vrot.slane %v12430, 4
    %v12432 = vadd.f32 %v12430, %v12431
    %v12433 = vrot.slane %v12432, 2
    %v12434 = vadd.f32 %v12432, %v12433
    %v12435 = vrot.slane %v12434, 1
    %v12436 = vadd.f32 %v12434, %v12435
    %v12437 = vadd.f32 %v12088, %v12092
    %v12438 = vadd.f32 %v12437, %v12098
    %v12439 = vadd.f32 %v12438, %v12102
    %v12440 = vadd.f32 %v12439, %v12108
    %v12441 = vadd.f32 %v12440, %v12112
    %v12442 = vadd.f32 %v12441, %v12118
    %v12443 = vadd.f32 %v12442, %v12122
    %v12444 = vadd.f32 %v12443, %v12128
    %v12445 = vadd.f32 %v12444, %v12132
    %v12446 = vadd.f32 %v12445, %v12138
    %v12447 = vadd.f32 %v12446, %v12142
    %v12448 = vadd.f32 %v12447, %v12148
    %v12449 = vadd.f32 %v12448, %v12152
    %v12450 = vadd.f32 %v12449, %v12158
    %v12451 = vadd.f32 %v12450, %v12162
    %v12452 = vrot.slane %v12451, 4
    %v12453 = vadd.f32 %v12451, %v12452
    %v12454 = vrot.slane %v12453, 2
    %v12455 = vadd.f32 %v12453, %v12454
    %v12456 = vrot.slane %v12455, 1
    %v12457 = vadd.f32 %v12455, %v12456
    %v12458 = vadd.f32 %v12090, %v12094
    %v12459 = vadd.f32 %v12458, %v12100
    %v12460 = vadd.f32 %v12459, %v12104
    %v12461 = vadd.f32 %v12460, %v12110
    %v12462 = vadd.f32 %v12461, %v12114
    %v12463 = vadd.f32 %v12462, %v12120
    %v12464 = vadd.f32 %v12463, %v12124
    %v12465 = vadd.f32 %v12464, %v12130
    %v12466 = vadd.f32 %v12465, %v12134
    %v12467 = vadd.f32 %v12466, %v12140
    %v12468 = vadd.f32 %v12467, %v12144
    %v12469 = vadd.f32 %v12468, %v12150
    %v12470 = vadd.f32 %v12469, %v12154
    %v12471 = vadd.f32 %v12470, %v12160
    %v12472 = vadd.f32 %v12471, %v12164
    %v12473 = vrot.slane %v12472, 4
    %v12474 = vadd.f32 %v12472, %v12473
    %v12475 = vrot.slane %v12474, 2
    %v12476 = vadd.f32 %v12474, %v12475
    %v12477 = vrot.slane %v12476, 1
    %v12478 = vadd.f32 %v12476, %v12477
    %v12479 = vrcp.pop 128.0
    %v12480 = vmul.f32 %v12331, %v12479
    %v12481 = vmul.f32 %v12352, %v12479
    %v12482 = vmul.f32 %v12373, %v12479
    %v12483 = vmul.f32 %v12394, %v12479
    %v12484 = vmul.f32 %v12415, %v12479
    %v12485 = vmul.f32 %v12436, %v12479
    %v12486 = vmul.f32 %v12457, %v12479
    %v12487 = vmul.f32 %v12478, %v12479
    %v12488 = vsub.f32 %v11410, %v12480
    %v12489 = vsub.f32 %v11412, %v12481
    %v12490 = vsub.f32 %v11636, %v12482
    %v12491 = vsub.f32 %v11638, %v12483
    %v12492 = vsub.f32 %v11862, %v12484
    %v12493 = vsub.f32 %v11864, %v12485
    %v12494 = vsub.f32 %v12088, %v12486
    %v12495 = vsub.f32 %v12090, %v12487
    %v12496 = vsub.f32 %v11414, %v12480
    %v12497 = vsub.f32 %v11416, %v12481
    %v12498 = vsub.f32 %v11640, %v12482
    %v12499 = vsub.f32 %v11642, %v12483
    %v12500 = vsub.f32 %v11866, %v12484
    %v12501 = vsub.f32 %v11868, %v12485
    %v12502 = vsub.f32 %v12092, %v12486
    %v12503 = vsub.f32 %v12094, %v12487
    %v12504 = vsub.f32 %v11420, %v12480
    %v12505 = vsub.f32 %v11422, %v12481
    %v12506 = vsub.f32 %v11646, %v12482
    %v12507 = vsub.f32 %v11648, %v12483
    %v12508 = vsub.f32 %v11872, %v12484
    %v12509 = vsub.f32 %v11874, %v12485
    %v12510 = vsub.f32 %v12098, %v12486
    %v12511 = vsub.f32 %v12100, %v12487
    %v12512 = vsub.f32 %v11424, %v12480
    %v12513 = vsub.f32 %v11426, %v12481
    %v12514 = vsub.f32 %v11650, %v12482
    %v12515 = vsub.f32 %v11652, %v12483
    %v12516 = vsub.f32 %v11876, %v12484
    %v12517 = vsub.f32 %v11878, %v12485
    %v12518 = vsub.f32 %v12102, %v12486
    %v12519 = vsub.f32 %v12104, %v12487
    %v12520 = vsub.f32 %v11430, %v12480
    %v12521 = vsub.f32 %v11432, %v12481
    %v12522 = vsub.f32 %v11656, %v12482
    %v12523 = vsub.f32 %v11658, %v12483
    %v12524 = vsub.f32 %v11882, %v12484
    %v12525 = vsub.f32 %v11884, %v12485
    %v12526 = vsub.f32 %v12108, %v12486
    %v12527 = vsub.f32 %v12110, %v12487
    %v12528 = vsub.f32 %v11434, %v12480
    %v12529 = vsub.f32 %v11436, %v12481
    %v12530 = vsub.f32 %v11660, %v12482
    %v12531 = vsub.f32 %v11662, %v12483
    %v12532 = vsub.f32 %v11886, %v12484
    %v12533 = vsub.f32 %v11888, %v12485
    %v12534 = vsub.f32 %v12112, %v12486
    %v12535 = vsub.f32 %v12114, %v12487
    %v12536 = vsub.f32 %v11440, %v12480
    %v12537 = vsub.f32 %v11442, %v12481
    %v12538 = vsub.f32 %v11666, %v12482
    %v12539 = vsub.f32 %v11668, %v12483
    %v12540 = vsub.f32 %v11892, %v12484
    %v12541 = vsub.f32 %v11894, %v12485
    %v12542 = vsub.f32 %v12118, %v12486
    %v12543 = vsub.f32 %v12120, %v12487
    %v12544 = vsub.f32 %v11444, %v12480
    %v12545 = vsub.f32 %v11446, %v12481
    %v12546 = vsub.f32 %v11670, %v12482
    %v12547 = vsub.f32 %v11672, %v12483
    %v12548 = vsub.f32 %v11896, %v12484
    %v12549 = vsub.f32 %v11898, %v12485
    %v12550 = vsub.f32 %v12122, %v12486
    %v12551 = vsub.f32 %v12124, %v12487
    %v12552 = vsub.f32 %v11450, %v12480
    %v12553 = vsub.f32 %v11452, %v12481
    %v12554 = vsub.f32 %v11676, %v12482
    %v12555 = vsub.f32 %v11678, %v12483
    %v12556 = vsub.f32 %v11902, %v12484
    %v12557 = vsub.f32 %v11904, %v12485
    %v12558 = vsub.f32 %v12128, %v12486
    %v12559 = vsub.f32 %v12130, %v12487
    %v12560 = vsub.f32 %v11454, %v12480
    %v12561 = vsub.f32 %v11456, %v12481
    %v12562 = vsub.f32 %v11680, %v12482
    %v12563 = vsub.f32 %v11682, %v12483
    %v12564 = vsub.f32 %v11906, %v12484
    %v12565 = vsub.f32 %v11908, %v12485
    %v12566 = vsub.f32 %v12132, %v12486
    %v12567 = vsub.f32 %v12134, %v12487
    %v12568 = vsub.f32 %v11460, %v12480
    %v12569 = vsub.f32 %v11462, %v12481
    %v12570 = vsub.f32 %v11686, %v12482
    %v12571 = vsub.f32 %v11688, %v12483
    %v12572 = vsub.f32 %v11912, %v12484
    %v12573 = vsub.f32 %v11914, %v12485
    %v12574 = vsub.f32 %v12138, %v12486
    %v12575 = vsub.f32 %v12140, %v12487
    %v12576 = vsub.f32 %v11464, %v12480
    %v12577 = vsub.f32 %v11466, %v12481
    %v12578 = vsub.f32 %v11690, %v12482
    %v12579 = vsub.f32 %v11692, %v12483
    %v12580 = vsub.f32 %v11916, %v12484
    %v12581 = vsub.f32 %v11918, %v12485
    %v12582 = vsub.f32 %v12142, %v12486
    %v12583 = vsub.f32 %v12144, %v12487
    %v12584 = vsub.f32 %v11470, %v12480
    %v12585 = vsub.f32 %v11472, %v12481
    %v12586 = vsub.f32 %v11696, %v12482
    %v12587 = vsub.f32 %v11698, %v12483
    %v12588 = vsub.f32 %v11922, %v12484
    %v12589 = vsub.f32 %v11924, %v12485
    %v12590 = vsub.f32 %v12148, %v12486
    %v12591 = vsub.f32 %v12150, %v12487
    %v12592 = vsub.f32 %v11474, %v12480
    %v12593 = vsub.f32 %v11476, %v12481
    %v12594 = vsub.f32 %v11700, %v12482
    %v12595 = vsub.f32 %v11702, %v12483
    %v12596 = vsub.f32 %v11926, %v12484
    %v12597 = vsub.f32 %v11928, %v12485
    %v12598 = vsub.f32 %v12152, %v12486
    %v12599 = vsub.f32 %v12154, %v12487
    %v12600 = vsub.f32 %v11480, %v12480
    %v12601 = vsub.f32 %v11482, %v12481
    %v12602 = vsub.f32 %v11706, %v12482
    %v12603 = vsub.f32 %v11708, %v12483
    %v12604 = vsub.f32 %v11932, %v12484
    %v12605 = vsub.f32 %v11934, %v12485
    %v12606 = vsub.f32 %v12158, %v12486
    %v12607 = vsub.f32 %v12160, %v12487
    %v12608 = vsub.f32 %v11484, %v12480
    %v12609 = vsub.f32 %v11486, %v12481
    %v12610 = vsub.f32 %v11710, %v12482
    %v12611 = vsub.f32 %v11712, %v12483
    %v12612 = vsub.f32 %v11936, %v12484
    %v12613 = vsub.f32 %v11938, %v12485
    %v12614 = vsub.f32 %v12162, %v12486
    %v12615 = vsub.f32 %v12164, %v12487
    %v12616 = vmul.f32 %v12488, %v12488
    %v12617 = vmul.f32 %v12489, %v12489
    %v12618 = vmul.f32 %v12490, %v12490
    %v12619 = vmul.f32 %v12491, %v12491
    %v12620 = vmul.f32 %v12492, %v12492
    %v12621 = vmul.f32 %v12493, %v12493
    %v12622 = vmul.f32 %v12494, %v12494
    %v12623 = vmul.f32 %v12495, %v12495
    %v12624 = vmul.f32 %v12496, %v12496
    %v12625 = vmul.f32 %v12497, %v12497
    %v12626 = vmul.f32 %v12498, %v12498
    %v12627 = vmul.f32 %v12499, %v12499
    %v12628 = vmul.f32 %v12500, %v12500
    %v12629 = vmul.f32 %v12501, %v12501
    %v12630 = vmul.f32 %v12502, %v12502
    %v12631 = vmul.f32 %v12503, %v12503
    %v12632 = vmul.f32 %v12504, %v12504
    %v12633 = vmul.f32 %v12505, %v12505
    %v12634 = vmul.f32 %v12506, %v12506
    %v12635 = vmul.f32 %v12507, %v12507
    %v12636 = vmul.f32 %v12508, %v12508
    %v12637 = vmul.f32 %v12509, %v12509
    %v12638 = vmul.f32 %v12510, %v12510
    %v12639 = vmul.f32 %v12511, %v12511
    %v12640 = vmul.f32 %v12512, %v12512
    %v12641 = vmul.f32 %v12513, %v12513
    %v12642 = vmul.f32 %v12514, %v12514
    %v12643 = vmul.f32 %v12515, %v12515
    %v12644 = vmul.f32 %v12516, %v12516
    %v12645 = vmul.f32 %v12517, %v12517
    %v12646 = vmul.f32 %v12518, %v12518
    %v12647 = vmul.f32 %v12519, %v12519
    %v12648 = vmul.f32 %v12520, %v12520
    %v12649 = vmul.f32 %v12521, %v12521
    %v12650 = vmul.f32 %v12522, %v12522
    %v12651 = vmul.f32 %v12523, %v12523
    %v12652 = vmul.f32 %v12524, %v12524
    %v12653 = vmul.f32 %v12525, %v12525
    %v12654 = vmul.f32 %v12526, %v12526
    %v12655 = vmul.f32 %v12527, %v12527
    %v12656 = vmul.f32 %v12528, %v12528
    %v12657 = vmul.f32 %v12529, %v12529
    %v12658 = vmul.f32 %v12530, %v12530
    %v12659 = vmul.f32 %v12531, %v12531
    %v12660 = vmul.f32 %v12532, %v12532
    %v12661 = vmul.f32 %v12533, %v12533
    %v12662 = vmul.f32 %v12534, %v12534
    %v12663 = vmul.f32 %v12535, %v12535
    %v12664 = vmul.f32 %v12536, %v12536
    %v12665 = vmul.f32 %v12537, %v12537
    %v12666 = vmul.f32 %v12538, %v12538
    %v12667 = vmul.f32 %v12539, %v12539
    %v12668 = vmul.f32 %v12540, %v12540
    %v12669 = vmul.f32 %v12541, %v12541
    %v12670 = vmul.f32 %v12542, %v12542
    %v12671 = vmul.f32 %v12543, %v12543
    %v12672 = vmul.f32 %v12544, %v12544
    %v12673 = vmul.f32 %v12545, %v12545
    %v12674 = vmul.f32 %v12546, %v12546
    %v12675 = vmul.f32 %v12547, %v12547
    %v12676 = vmul.f32 %v12548, %v12548
    %v12677 = vmul.f32 %v12549, %v12549
    %v12678 = vmul.f32 %v12550, %v12550
    %v12679 = vmul.f32 %v12551, %v12551
    %v12680 = vmul.f32 %v12552, %v12552
    %v12681 = vmul.f32 %v12553, %v12553
    %v12682 = vmul.f32 %v12554, %v12554
    %v12683 = vmul.f32 %v12555, %v12555
    %v12684 = vmul.f32 %v12556, %v12556
    %v12685 = vmul.f32 %v12557, %v12557
    %v12686 = vmul.f32 %v12558, %v12558
    %v12687 = vmul.f32 %v12559, %v12559
    %v12688 = vmul.f32 %v12560, %v12560
    %v12689 = vmul.f32 %v12561, %v12561
    %v12690 = vmul.f32 %v12562, %v12562
    %v12691 = vmul.f32 %v12563, %v12563
    %v12692 = vmul.f32 %v12564, %v12564
    %v12693 = vmul.f32 %v12565, %v12565
    %v12694 = vmul.f32 %v12566, %v12566
    %v12695 = vmul.f32 %v12567, %v12567
    %v12696 = vmul.f32 %v12568, %v12568
    %v12697 = vmul.f32 %v12569, %v12569
    %v12698 = vmul.f32 %v12570, %v12570
    %v12699 = vmul.f32 %v12571, %v12571
    %v12700 = vmul.f32 %v12572, %v12572
    %v12701 = vmul.f32 %v12573, %v12573
    %v12702 = vmul.f32 %v12574, %v12574
    %v12703 = vmul.f32 %v12575, %v12575
    %v12704 = vmul.f32 %v12576, %v12576
    %v12705 = vmul.f32 %v12577, %v12577
    %v12706 = vmul.f32 %v12578, %v12578
    %v12707 = vmul.f32 %v12579, %v12579
    %v12708 = vmul.f32 %v12580, %v12580
    %v12709 = vmul.f32 %v12581, %v12581
    %v12710 = vmul.f32 %v12582, %v12582
    %v12711 = vmul.f32 %v12583, %v12583
    %v12712 = vmul.f32 %v12584, %v12584
    %v12713 = vmul.f32 %v12585, %v12585
    %v12714 = vmul.f32 %v12586, %v12586
    %v12715 = vmul.f32 %v12587, %v12587
    %v12716 = vmul.f32 %v12588, %v12588
    %v12717 = vmul.f32 %v12589, %v12589
    %v12718 = vmul.f32 %v12590, %v12590
    %v12719 = vmul.f32 %v12591, %v12591
    %v12720 = vmul.f32 %v12592, %v12592
    %v12721 = vmul.f32 %v12593, %v12593
    %v12722 = vmul.f32 %v12594, %v12594
    %v12723 = vmul.f32 %v12595, %v12595
    %v12724 = vmul.f32 %v12596, %v12596
    %v12725 = vmul.f32 %v12597, %v12597
    %v12726 = vmul.f32 %v12598, %v12598
    %v12727 = vmul.f32 %v12599, %v12599
    %v12728 = vmul.f32 %v12600, %v12600
    %v12729 = vmul.f32 %v12601, %v12601
    %v12730 = vmul.f32 %v12602, %v12602
    %v12731 = vmul.f32 %v12603, %v12603
    %v12732 = vmul.f32 %v12604, %v12604
    %v12733 = vmul.f32 %v12605, %v12605
    %v12734 = vmul.f32 %v12606, %v12606
    %v12735 = vmul.f32 %v12607, %v12607
    %v12736 = vmul.f32 %v12608, %v12608
    %v12737 = vmul.f32 %v12609, %v12609
    %v12738 = vmul.f32 %v12610, %v12610
    %v12739 = vmul.f32 %v12611, %v12611
    %v12740 = vmul.f32 %v12612, %v12612
    %v12741 = vmul.f32 %v12613, %v12613
    %v12742 = vmul.f32 %v12614, %v12614
    %v12743 = vmul.f32 %v12615, %v12615
    %v12744 = vadd.f32 %v12616, %v12624
    %v12745 = vadd.f32 %v12744, %v12632
    %v12746 = vadd.f32 %v12745, %v12640
    %v12747 = vadd.f32 %v12746, %v12648
    %v12748 = vadd.f32 %v12747, %v12656
    %v12749 = vadd.f32 %v12748, %v12664
    %v12750 = vadd.f32 %v12749, %v12672
    %v12751 = vadd.f32 %v12750, %v12680
    %v12752 = vadd.f32 %v12751, %v12688
    %v12753 = vadd.f32 %v12752, %v12696
    %v12754 = vadd.f32 %v12753, %v12704
    %v12755 = vadd.f32 %v12754, %v12712
    %v12756 = vadd.f32 %v12755, %v12720
    %v12757 = vadd.f32 %v12756, %v12728
    %v12758 = vadd.f32 %v12757, %v12736
    %v12759 = vrot.slane %v12758, 4
    %v12760 = vadd.f32 %v12758, %v12759
    %v12761 = vrot.slane %v12760, 2
    %v12762 = vadd.f32 %v12760, %v12761
    %v12763 = vrot.slane %v12762, 1
    %v12764 = vadd.f32 %v12762, %v12763
    %v12765 = vadd.f32 %v12617, %v12625
    %v12766 = vadd.f32 %v12765, %v12633
    %v12767 = vadd.f32 %v12766, %v12641
    %v12768 = vadd.f32 %v12767, %v12649
    %v12769 = vadd.f32 %v12768, %v12657
    %v12770 = vadd.f32 %v12769, %v12665
    %v12771 = vadd.f32 %v12770, %v12673
    %v12772 = vadd.f32 %v12771, %v12681
    %v12773 = vadd.f32 %v12772, %v12689
    %v12774 = vadd.f32 %v12773, %v12697
    %v12775 = vadd.f32 %v12774, %v12705
    %v12776 = vadd.f32 %v12775, %v12713
    %v12777 = vadd.f32 %v12776, %v12721
    %v12778 = vadd.f32 %v12777, %v12729
    %v12779 = vadd.f32 %v12778, %v12737
    %v12780 = vrot.slane %v12779, 4
    %v12781 = vadd.f32 %v12779, %v12780
    %v12782 = vrot.slane %v12781, 2
    %v12783 = vadd.f32 %v12781, %v12782
    %v12784 = vrot.slane %v12783, 1
    %v12785 = vadd.f32 %v12783, %v12784
    %v12786 = vadd.f32 %v12618, %v12626
    %v12787 = vadd.f32 %v12786, %v12634
    %v12788 = vadd.f32 %v12787, %v12642
    %v12789 = vadd.f32 %v12788, %v12650
    %v12790 = vadd.f32 %v12789, %v12658
    %v12791 = vadd.f32 %v12790, %v12666
    %v12792 = vadd.f32 %v12791, %v12674
    %v12793 = vadd.f32 %v12792, %v12682
    %v12794 = vadd.f32 %v12793, %v12690
    %v12795 = vadd.f32 %v12794, %v12698
    %v12796 = vadd.f32 %v12795, %v12706
    %v12797 = vadd.f32 %v12796, %v12714
    %v12798 = vadd.f32 %v12797, %v12722
    %v12799 = vadd.f32 %v12798, %v12730
    %v12800 = vadd.f32 %v12799, %v12738
    %v12801 = vrot.slane %v12800, 4
    %v12802 = vadd.f32 %v12800, %v12801
    %v12803 = vrot.slane %v12802, 2
    %v12804 = vadd.f32 %v12802, %v12803
    %v12805 = vrot.slane %v12804, 1
    %v12806 = vadd.f32 %v12804, %v12805
    %v12807 = vadd.f32 %v12619, %v12627
    %v12808 = vadd.f32 %v12807, %v12635
    %v12809 = vadd.f32 %v12808, %v12643
    %v12810 = vadd.f32 %v12809, %v12651
    %v12811 = vadd.f32 %v12810, %v12659
    %v12812 = vadd.f32 %v12811, %v12667
    %v12813 = vadd.f32 %v12812, %v12675
    %v12814 = vadd.f32 %v12813, %v12683
    %v12815 = vadd.f32 %v12814, %v12691
    %v12816 = vadd.f32 %v12815, %v12699
    %v12817 = vadd.f32 %v12816, %v12707
    %v12818 = vadd.f32 %v12817, %v12715
    %v12819 = vadd.f32 %v12818, %v12723
    %v12820 = vadd.f32 %v12819, %v12731
    %v12821 = vadd.f32 %v12820, %v12739
    %v12822 = vrot.slane %v12821, 4
    %v12823 = vadd.f32 %v12821, %v12822
    %v12824 = vrot.slane %v12823, 2
    %v12825 = vadd.f32 %v12823, %v12824
    %v12826 = vrot.slane %v12825, 1
    %v12827 = vadd.f32 %v12825, %v12826
    %v12828 = vadd.f32 %v12620, %v12628
    %v12829 = vadd.f32 %v12828, %v12636
    %v12830 = vadd.f32 %v12829, %v12644
    %v12831 = vadd.f32 %v12830, %v12652
    %v12832 = vadd.f32 %v12831, %v12660
    %v12833 = vadd.f32 %v12832, %v12668
    %v12834 = vadd.f32 %v12833, %v12676
    %v12835 = vadd.f32 %v12834, %v12684
    %v12836 = vadd.f32 %v12835, %v12692
    %v12837 = vadd.f32 %v12836, %v12700
    %v12838 = vadd.f32 %v12837, %v12708
    %v12839 = vadd.f32 %v12838, %v12716
    %v12840 = vadd.f32 %v12839, %v12724
    %v12841 = vadd.f32 %v12840, %v12732
    %v12842 = vadd.f32 %v12841, %v12740
    %v12843 = vrot.slane %v12842, 4
    %v12844 = vadd.f32 %v12842, %v12843
    %v12845 = vrot.slane %v12844, 2
    %v12846 = vadd.f32 %v12844, %v12845
    %v12847 = vrot.slane %v12846, 1
    %v12848 = vadd.f32 %v12846, %v12847
    %v12849 = vadd.f32 %v12621, %v12629
    %v12850 = vadd.f32 %v12849, %v12637
    %v12851 = vadd.f32 %v12850, %v12645
    %v12852 = vadd.f32 %v12851, %v12653
    %v12853 = vadd.f32 %v12852, %v12661
    %v12854 = vadd.f32 %v12853, %v12669
    %v12855 = vadd.f32 %v12854, %v12677
    %v12856 = vadd.f32 %v12855, %v12685
    %v12857 = vadd.f32 %v12856, %v12693
    %v12858 = vadd.f32 %v12857, %v12701
    %v12859 = vadd.f32 %v12858, %v12709
    %v12860 = vadd.f32 %v12859, %v12717
    %v12861 = vadd.f32 %v12860, %v12725
    %v12862 = vadd.f32 %v12861, %v12733
    %v12863 = vadd.f32 %v12862, %v12741
    %v12864 = vrot.slane %v12863, 4
    %v12865 = vadd.f32 %v12863, %v12864
    %v12866 = vrot.slane %v12865, 2
    %v12867 = vadd.f32 %v12865, %v12866
    %v12868 = vrot.slane %v12867, 1
    %v12869 = vadd.f32 %v12867, %v12868
    %v12870 = vadd.f32 %v12622, %v12630
    %v12871 = vadd.f32 %v12870, %v12638
    %v12872 = vadd.f32 %v12871, %v12646
    %v12873 = vadd.f32 %v12872, %v12654
    %v12874 = vadd.f32 %v12873, %v12662
    %v12875 = vadd.f32 %v12874, %v12670
    %v12876 = vadd.f32 %v12875, %v12678
    %v12877 = vadd.f32 %v12876, %v12686
    %v12878 = vadd.f32 %v12877, %v12694
    %v12879 = vadd.f32 %v12878, %v12702
    %v12880 = vadd.f32 %v12879, %v12710
    %v12881 = vadd.f32 %v12880, %v12718
    %v12882 = vadd.f32 %v12881, %v12726
    %v12883 = vadd.f32 %v12882, %v12734
    %v12884 = vadd.f32 %v12883, %v12742
    %v12885 = vrot.slane %v12884, 4
    %v12886 = vadd.f32 %v12884, %v12885
    %v12887 = vrot.slane %v12886, 2
    %v12888 = vadd.f32 %v12886, %v12887
    %v12889 = vrot.slane %v12888, 1
    %v12890 = vadd.f32 %v12888, %v12889
    %v12891 = vadd.f32 %v12623, %v12631
    %v12892 = vadd.f32 %v12891, %v12639
    %v12893 = vadd.f32 %v12892, %v12647
    %v12894 = vadd.f32 %v12893, %v12655
    %v12895 = vadd.f32 %v12894, %v12663
    %v12896 = vadd.f32 %v12895, %v12671
    %v12897 = vadd.f32 %v12896, %v12679
    %v12898 = vadd.f32 %v12897, %v12687
    %v12899 = vadd.f32 %v12898, %v12695
    %v12900 = vadd.f32 %v12899, %v12703
    %v12901 = vadd.f32 %v12900, %v12711
    %v12902 = vadd.f32 %v12901, %v12719
    %v12903 = vadd.f32 %v12902, %v12727
    %v12904 = vadd.f32 %v12903, %v12735
    %v12905 = vadd.f32 %v12904, %v12743
    %v12906 = vrot.slane %v12905, 4
    %v12907 = vadd.f32 %v12905, %v12906
    %v12908 = vrot.slane %v12907, 2
    %v12909 = vadd.f32 %v12907, %v12908
    %v12910 = vrot.slane %v12909, 1
    %v12911 = vadd.f32 %v12909, %v12910
    %v12912 = vmul.f32 %v12764, 0.007874016
    %v12913 = vmul.f32 %v12785, 0.007874016
    %v12914 = vmul.f32 %v12806, 0.007874016
    %v12915 = vmul.f32 %v12827, 0.007874016
    %v12916 = vmul.f32 %v12848, 0.007874016
    %v12917 = vmul.f32 %v12869, 0.007874016
    %v12918 = vmul.f32 %v12890, 0.007874016
    %v12919 = vmul.f32 %v12911, 0.007874016
    %v12920 = vrsqrt.pop %v12912
    %v12921 = vrsqrt.pop %v12913
    %v12922 = vrsqrt.pop %v12914
    %v12923 = vrsqrt.pop %v12915
    %v12924 = vrsqrt.pop %v12916
    %v12925 = vrsqrt.pop %v12917
    %v12926 = vrsqrt.pop %v12918
    %v12927 = vrsqrt.pop %v12919
    %v12928 = vmul.f32 %v12488, %v12920
    %v12929 = vmul.f32 %v12489, %v12921
    %v12930 = vmul.f32 %v12490, %v12922
    %v12931 = vmul.f32 %v12491, %v12923
    %v12932 = vmul.f32 %v12492, %v12924
    %v12933 = vmul.f32 %v12493, %v12925
    %v12934 = vmul.f32 %v12494, %v12926
    %v12935 = vmul.f32 %v12495, %v12927
    %v12936 = vmul.f32 %v12496, %v12920
    %v12937 = vmul.f32 %v12497, %v12921
    %v12938 = vmul.f32 %v12498, %v12922
    %v12939 = vmul.f32 %v12499, %v12923
    %v12940 = vmul.f32 %v12500, %v12924
    %v12941 = vmul.f32 %v12501, %v12925
    %v12942 = vmul.f32 %v12502, %v12926
    %v12943 = vmul.f32 %v12503, %v12927
    %v12944 = vmul.f32 %v12504, %v12920
    %v12945 = vmul.f32 %v12505, %v12921
    %v12946 = vmul.f32 %v12506, %v12922
    %v12947 = vmul.f32 %v12507, %v12923
    %v12948 = vmul.f32 %v12508, %v12924
    %v12949 = vmul.f32 %v12509, %v12925
    %v12950 = vmul.f32 %v12510, %v12926
    %v12951 = vmul.f32 %v12511, %v12927
    %v12952 = vmul.f32 %v12512, %v12920
    %v12953 = vmul.f32 %v12513, %v12921
    %v12954 = vmul.f32 %v12514, %v12922
    %v12955 = vmul.f32 %v12515, %v12923
    %v12956 = vmul.f32 %v12516, %v12924
    %v12957 = vmul.f32 %v12517, %v12925
    %v12958 = vmul.f32 %v12518, %v12926
    %v12959 = vmul.f32 %v12519, %v12927
    %v12960 = vmul.f32 %v12520, %v12920
    %v12961 = vmul.f32 %v12521, %v12921
    %v12962 = vmul.f32 %v12522, %v12922
    %v12963 = vmul.f32 %v12523, %v12923
    %v12964 = vmul.f32 %v12524, %v12924
    %v12965 = vmul.f32 %v12525, %v12925
    %v12966 = vmul.f32 %v12526, %v12926
    %v12967 = vmul.f32 %v12527, %v12927
    %v12968 = vmul.f32 %v12528, %v12920
    %v12969 = vmul.f32 %v12529, %v12921
    %v12970 = vmul.f32 %v12530, %v12922
    %v12971 = vmul.f32 %v12531, %v12923
    %v12972 = vmul.f32 %v12532, %v12924
    %v12973 = vmul.f32 %v12533, %v12925
    %v12974 = vmul.f32 %v12534, %v12926
    %v12975 = vmul.f32 %v12535, %v12927
    %v12976 = vmul.f32 %v12536, %v12920
    %v12977 = vmul.f32 %v12537, %v12921
    %v12978 = vmul.f32 %v12538, %v12922
    %v12979 = vmul.f32 %v12539, %v12923
    %v12980 = vmul.f32 %v12540, %v12924
    %v12981 = vmul.f32 %v12541, %v12925
    %v12982 = vmul.f32 %v12542, %v12926
    %v12983 = vmul.f32 %v12543, %v12927
    %v12984 = vmul.f32 %v12544, %v12920
    %v12985 = vmul.f32 %v12545, %v12921
    %v12986 = vmul.f32 %v12546, %v12922
    %v12987 = vmul.f32 %v12547, %v12923
    %v12988 = vmul.f32 %v12548, %v12924
    %v12989 = vmul.f32 %v12549, %v12925
    %v12990 = vmul.f32 %v12550, %v12926
    %v12991 = vmul.f32 %v12551, %v12927
    %v12992 = vmul.f32 %v12552, %v12920
    %v12993 = vmul.f32 %v12553, %v12921
    %v12994 = vmul.f32 %v12554, %v12922
    %v12995 = vmul.f32 %v12555, %v12923
    %v12996 = vmul.f32 %v12556, %v12924
    %v12997 = vmul.f32 %v12557, %v12925
    %v12998 = vmul.f32 %v12558, %v12926
    %v12999 = vmul.f32 %v12559, %v12927
    %v13000 = vmul.f32 %v12560, %v12920
    %v13001 = vmul.f32 %v12561, %v12921
    %v13002 = vmul.f32 %v12562, %v12922
    %v13003 = vmul.f32 %v12563, %v12923
    %v13004 = vmul.f32 %v12564, %v12924
    %v13005 = vmul.f32 %v12565, %v12925
    %v13006 = vmul.f32 %v12566, %v12926
    %v13007 = vmul.f32 %v12567, %v12927
    %v13008 = vmul.f32 %v12568, %v12920
    %v13009 = vmul.f32 %v12569, %v12921
    %v13010 = vmul.f32 %v12570, %v12922
    %v13011 = vmul.f32 %v12571, %v12923
    %v13012 = vmul.f32 %v12572, %v12924
    %v13013 = vmul.f32 %v12573, %v12925
    %v13014 = vmul.f32 %v12574, %v12926
    %v13015 = vmul.f32 %v12575, %v12927
    %v13016 = vmul.f32 %v12576, %v12920
    %v13017 = vmul.f32 %v12577, %v12921
    %v13018 = vmul.f32 %v12578, %v12922
    %v13019 = vmul.f32 %v12579, %v12923
    %v13020 = vmul.f32 %v12580, %v12924
    %v13021 = vmul.f32 %v12581, %v12925
    %v13022 = vmul.f32 %v12582, %v12926
    %v13023 = vmul.f32 %v12583, %v12927
    %v13024 = vmul.f32 %v12584, %v12920
    %v13025 = vmul.f32 %v12585, %v12921
    %v13026 = vmul.f32 %v12586, %v12922
    %v13027 = vmul.f32 %v12587, %v12923
    %v13028 = vmul.f32 %v12588, %v12924
    %v13029 = vmul.f32 %v12589, %v12925
    %v13030 = vmul.f32 %v12590, %v12926
    %v13031 = vmul.f32 %v12591, %v12927
    %v13032 = vmul.f32 %v12592, %v12920
    %v13033 = vmul.f32 %v12593, %v12921
    %v13034 = vmul.f32 %v12594, %v12922
    %v13035 = vmul.f32 %v12595, %v12923
    %v13036 = vmul.f32 %v12596, %v12924
    %v13037 = vmul.f32 %v12597, %v12925
    %v13038 = vmul.f32 %v12598, %v12926
    %v13039 = vmul.f32 %v12599, %v12927
    %v13040 = vmul.f32 %v12600, %v12920
    %v13041 = vmul.f32 %v12601, %v12921
    %v13042 = vmul.f32 %v12602, %v12922
    %v13043 = vmul.f32 %v12603, %v12923
    %v13044 = vmul.f32 %v12604, %v12924
    %v13045 = vmul.f32 %v12605, %v12925
    %v13046 = vmul.f32 %v12606, %v12926
    %v13047 = vmul.f32 %v12607, %v12927
    %v13048 = vmul.f32 %v12608, %v12920
    %v13049 = vmul.f32 %v12609, %v12921
    %v13050 = vmul.f32 %v12610, %v12922
    %v13051 = vmul.f32 %v12611, %v12923
    %v13052 = vmul.f32 %v12612, %v12924
    %v13053 = vmul.f32 %v12613, %v12925
    %v13054 = vmul.f32 %v12614, %v12926
    %v13055 = vmul.f32 %v12615, %v12927
    %s13056 = sld [smem:[#allocation2]]
    %v13057 = vstv %s13056
    %v13058 = vmul.f32 %v13057, 1.442695
    %v13059 = vpow.pop %v13058
    %s13060 = vtos %v13059
    %v13061 = vmul.f32 %v12303, %v12303
    %v13062 = vmul.f32 %v12304, %v12304
    %v13063 = vmul.f32 %v12305, %v12305
    %v13064 = vmul.f32 %v12306, %v12306
    %v13065 = vmul.f32 %v12307, %v12307
    %v13066 = vmul.f32 %v12308, %v12308
    %v13067 = vmul.f32 %v12309, %v12309
    %v13068 = vmul.f32 %v12310, %v12310
    %v13069 = vadd.f32 %v13061, %v13062
    %v13070 = vadd.f32 %v13069, %v13063
    %v13071 = vadd.f32 %v13070, %v13064
    %v13072 = vadd.f32 %v13071, %v13065
    %v13073 = vadd.f32 %v13072, %v13066
    %v13074 = vadd.f32 %v13073, %v13067
    %v13075 = vadd.f32 %v13074, %v13068
    %13076 = vadd.xlane.f32.xlu0 %v13075
    %v13077 = vpop.xlane.xlu0 %13076
    %v13078 = vrsqrt.pop %v13077
    %v13079 = vstv %s13060
    %v13080 = vmul.f32 %v13079, %v13078
    %v13081 = vmul.f32 %v12303, %v13080
    %v13082 = vmul.f32 %v12304, %v13080
    %v13083 = vmul.f32 %v12305, %v13080
    %v13084 = vmul.f32 %v12306, %v13080
    %v13085 = vmul.f32 %v12307, %v13080
    %v13086 = vmul.f32 %v12308, %v13080
    %v13087 = vmul.f32 %v12309, %v13080
    %v13088 = vmul.f32 %v12310, %v13080
    %v13089 = vmul.f32 %v12928, %v12928
    %v13090 = vmul.f32 %v12929, %v12929
    %v13091 = vmul.f32 %v12930, %v12930
    %v13092 = vmul.f32 %v12931, %v12931
    %v13093 = vmul.f32 %v12932, %v12932
    %v13094 = vmul.f32 %v12933, %v12933
    %v13095 = vmul.f32 %v12934, %v12934
    %v13096 = vmul.f32 %v12935, %v12935
    %v13097 = vmul.f32 %v12936, %v12936
    %v13098 = vmul.f32 %v12937, %v12937
    %v13099 = vmul.f32 %v12938, %v12938
    %v13100 = vmul.f32 %v12939, %v12939
    %v13101 = vmul.f32 %v12940, %v12940
    %v13102 = vmul.f32 %v12941, %v12941
    %v13103 = vmul.f32 %v12942, %v12942
    %v13104 = vmul.f32 %v12943, %v12943
    %v13105 = vmul.f32 %v12944, %v12944
    %v13106 = vmul.f32 %v12945, %v12945
    %v13107 = vmul.f32 %v12946, %v12946
    %v13108 = vmul.f32 %v12947, %v12947
    %v13109 = vmul.f32 %v12948, %v12948
    %v13110 = vmul.f32 %v12949, %v12949
    %v13111 = vmul.f32 %v12950, %v12950
    %v13112 = vmul.f32 %v12951, %v12951
    %v13113 = vmul.f32 %v12952, %v12952
    %v13114 = vmul.f32 %v12953, %v12953
    %v13115 = vmul.f32 %v12954, %v12954
    %v13116 = vmul.f32 %v12955, %v12955
    %v13117 = vmul.f32 %v12956, %v12956
    %v13118 = vmul.f32 %v12957, %v12957
    %v13119 = vmul.f32 %v12958, %v12958
    %v13120 = vmul.f32 %v12959, %v12959
    %v13121 = vmul.f32 %v12960, %v12960
    %v13122 = vmul.f32 %v12961, %v12961
    %v13123 = vmul.f32 %v12962, %v12962
    %v13124 = vmul.f32 %v12963, %v12963
    %v13125 = vmul.f32 %v12964, %v12964
    %v13126 = vmul.f32 %v12965, %v12965
    %v13127 = vmul.f32 %v12966, %v12966
    %v13128 = vmul.f32 %v12967, %v12967
    %v13129 = vmul.f32 %v12968, %v12968
    %v13130 = vmul.f32 %v12969, %v12969
    %v13131 = vmul.f32 %v12970, %v12970
    %v13132 = vmul.f32 %v12971, %v12971
    %v13133 = vmul.f32 %v12972, %v12972
    %v13134 = vmul.f32 %v12973, %v12973
    %v13135 = vmul.f32 %v12974, %v12974
    %v13136 = vmul.f32 %v12975, %v12975
    %v13137 = vmul.f32 %v12976, %v12976
    %v13138 = vmul.f32 %v12977, %v12977
    %v13139 = vmul.f32 %v12978, %v12978
    %v13140 = vmul.f32 %v12979, %v12979
    %v13141 = vmul.f32 %v12980, %v12980
    %v13142 = vmul.f32 %v12981, %v12981
    %v13143 = vmul.f32 %v12982, %v12982
    %v13144 = vmul.f32 %v12983, %v12983
    %v13145 = vmul.f32 %v12984, %v12984
    %v13146 = vmul.f32 %v12985, %v12985
    %v13147 = vmul.f32 %v12986, %v12986
    %v13148 = vmul.f32 %v12987, %v12987
    %v13149 = vmul.f32 %v12988, %v12988
    %v13150 = vmul.f32 %v12989, %v12989
    %v13151 = vmul.f32 %v12990, %v12990
    %v13152 = vmul.f32 %v12991, %v12991
    %v13153 = vmul.f32 %v12992, %v12992
    %v13154 = vmul.f32 %v12993, %v12993
    %v13155 = vmul.f32 %v12994, %v12994
    %v13156 = vmul.f32 %v12995, %v12995
    %v13157 = vmul.f32 %v12996, %v12996
    %v13158 = vmul.f32 %v12997, %v12997
    %v13159 = vmul.f32 %v12998, %v12998
    %v13160 = vmul.f32 %v12999, %v12999
    %v13161 = vmul.f32 %v13000, %v13000
    %v13162 = vmul.f32 %v13001, %v13001
    %v13163 = vmul.f32 %v13002, %v13002
    %v13164 = vmul.f32 %v13003, %v13003
    %v13165 = vmul.f32 %v13004, %v13004
    %v13166 = vmul.f32 %v13005, %v13005
    %v13167 = vmul.f32 %v13006, %v13006
    %v13168 = vmul.f32 %v13007, %v13007
    %v13169 = vmul.f32 %v13008, %v13008
    %v13170 = vmul.f32 %v13009, %v13009
    %v13171 = vmul.f32 %v13010, %v13010
    %v13172 = vmul.f32 %v13011, %v13011
    %v13173 = vmul.f32 %v13012, %v13012
    %v13174 = vmul.f32 %v13013, %v13013
    %v13175 = vmul.f32 %v13014, %v13014
    %v13176 = vmul.f32 %v13015, %v13015
    %v13177 = vmul.f32 %v13016, %v13016
    %v13178 = vmul.f32 %v13017, %v13017
    %v13179 = vmul.f32 %v13018, %v13018
    %v13180 = vmul.f32 %v13019, %v13019
    %v13181 = vmul.f32 %v13020, %v13020
    %v13182 = vmul.f32 %v13021, %v13021
    %v13183 = vmul.f32 %v13022, %v13022
    %v13184 = vmul.f32 %v13023, %v13023
    %v13185 = vmul.f32 %v13024, %v13024
    %v13186 = vmul.f32 %v13025, %v13025
    %v13187 = vmul.f32 %v13026, %v13026
    %v13188 = vmul.f32 %v13027, %v13027
    %v13189 = vmul.f32 %v13028, %v13028
    %v13190 = vmul.f32 %v13029, %v13029
    %v13191 = vmul.f32 %v13030, %v13030
    %v13192 = vmul.f32 %v13031, %v13031
    %v13193 = vmul.f32 %v13032, %v13032
    %v13194 = vmul.f32 %v13033, %v13033
    %v13195 = vmul.f32 %v13034, %v13034
    %v13196 = vmul.f32 %v13035, %v13035
    %v13197 = vmul.f32 %v13036, %v13036
    %v13198 = vmul.f32 %v13037, %v13037
    %v13199 = vmul.f32 %v13038, %v13038
    %v13200 = vmul.f32 %v13039, %v13039
    %v13201 = vmul.f32 %v13040, %v13040
    %v13202 = vmul.f32 %v13041, %v13041
    %v13203 = vmul.f32 %v13042, %v13042
    %v13204 = vmul.f32 %v13043, %v13043
    %v13205 = vmul.f32 %v13044, %v13044
    %v13206 = vmul.f32 %v13045, %v13045
    %v13207 = vmul.f32 %v13046, %v13046
    %v13208 = vmul.f32 %v13047, %v13047
    %v13209 = vmul.f32 %v13048, %v13048
    %v13210 = vmul.f32 %v13049, %v13049
    %v13211 = vmul.f32 %v13050, %v13050
    %v13212 = vmul.f32 %v13051, %v13051
    %v13213 = vmul.f32 %v13052, %v13052
    %v13214 = vmul.f32 %v13053, %v13053
    %v13215 = vmul.f32 %v13054, %v13054
    %v13216 = vmul.f32 %v13055, %v13055
    %v13217 = vadd.f32 %v13089, %v13090
    %v13218 = vadd.f32 %v13217, %v13091
    %v13219 = vadd.f32 %v13218, %v13092
    %v13220 = vadd.f32 %v13219, %v13093
    %v13221 = vadd.f32 %v13220, %v13094
    %v13222 = vadd.f32 %v13221, %v13095
    %v13223 = vadd.f32 %v13222, %v13096
    %13224 = vadd.xlane.f32.xlu0 %v13223
    %v13225 = vpop.xlane.xlu0 %13224
    %v13226 = vadd.f32 %v13097, %v13098
    %v13227 = vadd.f32 %v13226, %v13099
    %v13228 = vadd.f32 %v13227, %v13100
    %v13229 = vadd.f32 %v13228, %v13101
    %v13230 = vadd.f32 %v13229, %v13102
    %v13231 = vadd.f32 %v13230, %v13103
    %v13232 = vadd.f32 %v13231, %v13104
    %13233 = vadd.xlane.f32.xlu0 %v13232
    %v13234 = vpop.xlane.xlu0 %13233
    %v13235 = vadd.f32 %v13105, %v13106
    %v13236 = vadd.f32 %v13235, %v13107
    %v13237 = vadd.f32 %v13236, %v13108
    %v13238 = vadd.f32 %v13237, %v13109
    %v13239 = vadd.f32 %v13238, %v13110
    %v13240 = vadd.f32 %v13239, %v13111
    %v13241 = vadd.f32 %v13240, %v13112
    %13242 = vadd.xlane.f32.xlu0 %v13241
    %v13243 = vpop.xlane.xlu0 %13242
    %v13244 = vadd.f32 %v13113, %v13114
    %v13245 = vadd.f32 %v13244, %v13115
    %v13246 = vadd.f32 %v13245, %v13116
    %v13247 = vadd.f32 %v13246, %v13117
    %v13248 = vadd.f32 %v13247, %v13118
    %v13249 = vadd.f32 %v13248, %v13119
    %v13250 = vadd.f32 %v13249, %v13120
    %13251 = vadd.xlane.f32.xlu0 %v13250
    %v13252 = vpop.xlane.xlu0 %13251
    %v13253 = vadd.f32 %v13121, %v13122
    %v13254 = vadd.f32 %v13253, %v13123
    %v13255 = vadd.f32 %v13254, %v13124
    %v13256 = vadd.f32 %v13255, %v13125
    %v13257 = vadd.f32 %v13256, %v13126
    %v13258 = vadd.f32 %v13257, %v13127
    %v13259 = vadd.f32 %v13258, %v13128
    %13260 = vadd.xlane.f32.xlu0 %v13259
    %v13261 = vpop.xlane.xlu0 %13260
    %v13262 = vadd.f32 %v13129, %v13130
    %v13263 = vadd.f32 %v13262, %v13131
    %v13264 = vadd.f32 %v13263, %v13132
    %v13265 = vadd.f32 %v13264, %v13133
    %v13266 = vadd.f32 %v13265, %v13134
    %v13267 = vadd.f32 %v13266, %v13135
    %v13268 = vadd.f32 %v13267, %v13136
    %13269 = vadd.xlane.f32.xlu0 %v13268
    %v13270 = vpop.xlane.xlu0 %13269
    %v13271 = vadd.f32 %v13137, %v13138
    %v13272 = vadd.f32 %v13271, %v13139
    %v13273 = vadd.f32 %v13272, %v13140
    %v13274 = vadd.f32 %v13273, %v13141
    %v13275 = vadd.f32 %v13274, %v13142
    %v13276 = vadd.f32 %v13275, %v13143
    %v13277 = vadd.f32 %v13276, %v13144
    %13278 = vadd.xlane.f32.xlu0 %v13277
    %v13279 = vpop.xlane.xlu0 %13278
    %v13280 = vadd.f32 %v13145, %v13146
    %v13281 = vadd.f32 %v13280, %v13147
    %v13282 = vadd.f32 %v13281, %v13148
    %v13283 = vadd.f32 %v13282, %v13149
    %v13284 = vadd.f32 %v13283, %v13150
    %v13285 = vadd.f32 %v13284, %v13151
    %v13286 = vadd.f32 %v13285, %v13152
    %13287 = vadd.xlane.f32.xlu0 %v13286
    %v13288 = vpop.xlane.xlu0 %13287
    %v13289 = vadd.f32 %v13153, %v13154
    %v13290 = vadd.f32 %v13289, %v13155
    %v13291 = vadd.f32 %v13290, %v13156
    %v13292 = vadd.f32 %v13291, %v13157
    %v13293 = vadd.f32 %v13292, %v13158
    %v13294 = vadd.f32 %v13293, %v13159
    %v13295 = vadd.f32 %v13294, %v13160
    %13296 = vadd.xlane.f32.xlu0 %v13295
    %v13297 = vpop.xlane.xlu0 %13296
    %v13298 = vadd.f32 %v13161, %v13162
    %v13299 = vadd.f32 %v13298, %v13163
    %v13300 = vadd.f32 %v13299, %v13164
    %v13301 = vadd.f32 %v13300, %v13165
    %v13302 = vadd.f32 %v13301, %v13166
    %v13303 = vadd.f32 %v13302, %v13167
    %v13304 = vadd.f32 %v13303, %v13168
    %13305 = vadd.xlane.f32.xlu0 %v13304
    %v13306 = vpop.xlane.xlu0 %13305
    %v13307 = vadd.f32 %v13169, %v13170
    %v13308 = vadd.f32 %v13307, %v13171
    %v13309 = vadd.f32 %v13308, %v13172
    %v13310 = vadd.f32 %v13309, %v13173
    %v13311 = vadd.f32 %v13310, %v13174
    %v13312 = vadd.f32 %v13311, %v13175
    %v13313 = vadd.f32 %v13312, %v13176
    %13314 = vadd.xlane.f32.xlu0 %v13313
    %v13315 = vpop.xlane.xlu0 %13314
    %v13316 = vadd.f32 %v13177, %v13178
    %v13317 = vadd.f32 %v13316, %v13179
    %v13318 = vadd.f32 %v13317, %v13180
    %v13319 = vadd.f32 %v13318, %v13181
    %v13320 = vadd.f32 %v13319, %v13182
    %v13321 = vadd.f32 %v13320, %v13183
    %v13322 = vadd.f32 %v13321, %v13184
    %13323 = vadd.xlane.f32.xlu0 %v13322
    %v13324 = vpop.xlane.xlu0 %13323
    %v13325 = vadd.f32 %v13185, %v13186
    %v13326 = vadd.f32 %v13325, %v13187
    %v13327 = vadd.f32 %v13326, %v13188
    %v13328 = vadd.f32 %v13327, %v13189
    %v13329 = vadd.f32 %v13328, %v13190
    %v13330 = vadd.f32 %v13329, %v13191
    %v13331 = vadd.f32 %v13330, %v13192
    %13332 = vadd.xlane.f32.xlu0 %v13331
    %v13333 = vpop.xlane.xlu0 %13332
    %v13334 = vadd.f32 %v13193, %v13194
    %v13335 = vadd.f32 %v13334, %v13195
    %v13336 = vadd.f32 %v13335, %v13196
    %v13337 = vadd.f32 %v13336, %v13197
    %v13338 = vadd.f32 %v13337, %v13198
    %v13339 = vadd.f32 %v13338, %v13199
    %v13340 = vadd.f32 %v13339, %v13200
    %13341 = vadd.xlane.f32.xlu0 %v13340
    %v13342 = vpop.xlane.xlu0 %13341
    %v13343 = vadd.f32 %v13201, %v13202
    %v13344 = vadd.f32 %v13343, %v13203
    %v13345 = vadd.f32 %v13344, %v13204
    %v13346 = vadd.f32 %v13345, %v13205
    %v13347 = vadd.f32 %v13346, %v13206
    %v13348 = vadd.f32 %v13347, %v13207
    %v13349 = vadd.f32 %v13348, %v13208
    %13350 = vadd.xlane.f32.xlu0 %v13349
    %v13351 = vpop.xlane.xlu0 %13350
    %v13352 = vadd.f32 %v13209, %v13210
    %v13353 = vadd.f32 %v13352, %v13211
    %v13354 = vadd.f32 %v13353, %v13212
    %v13355 = vadd.f32 %v13354, %v13213
    %v13356 = vadd.f32 %v13355, %v13214
    %v13357 = vadd.f32 %v13356, %v13215
    %v13358 = vadd.f32 %v13357, %v13216
    %13359 = vadd.xlane.f32.xlu0 %v13358
    %v13360 = vpop.xlane.xlu0 %13359
    %v13361 = vrsqrt.pop %v13225
    %v13362 = vrsqrt.pop %v13234
    %v13363 = vrsqrt.pop %v13243
    %v13364 = vrsqrt.pop %v13252
    %v13365 = vrsqrt.pop %v13261
    %v13366 = vrsqrt.pop %v13270
    %v13367 = vrsqrt.pop %v13279
    %v13368 = vrsqrt.pop %v13288
    %v13369 = vrsqrt.pop %v13297
    %v13370 = vrsqrt.pop %v13306
    %v13371 = vrsqrt.pop %v13315
    %v13372 = vrsqrt.pop %v13324
    %v13373 = vrsqrt.pop %v13333
    %v13374 = vrsqrt.pop %v13342
    %v13375 = vrsqrt.pop %v13351
    %v13376 = vrsqrt.pop %v13360
    %v13377 = vmul.f32 %v12928, %v13361
    %v13378 = vmul.f32 %v12929, %v13361
    %v13379 = vmul.f32 %v12930, %v13361
    %v13380 = vmul.f32 %v12931, %v13361
    %v13381 = vmul.f32 %v12932, %v13361
    %v13382 = vmul.f32 %v12933, %v13361
    %v13383 = vmul.f32 %v12934, %v13361
    %v13384 = vmul.f32 %v12935, %v13361
    %v13385 = vmul.f32 %v12936, %v13362
    %v13386 = vmul.f32 %v12937, %v13362
    %v13387 = vmul.f32 %v12938, %v13362
    %v13388 = vmul.f32 %v12939, %v13362
    %v13389 = vmul.f32 %v12940, %v13362
    %v13390 = vmul.f32 %v12941, %v13362
    %v13391 = vmul.f32 %v12942, %v13362
    %v13392 = vmul.f32 %v12943, %v13362
    %v13393 = vmul.f32 %v12944, %v13363
    %v13394 = vmul.f32 %v12945, %v13363
    %v13395 = vmul.f32 %v12946, %v13363
    %v13396 = vmul.f32 %v12947, %v13363
    %v13397 = vmul.f32 %v12948, %v13363
    %v13398 = vmul.f32 %v12949, %v13363
    %v13399 = vmul.f32 %v12950, %v13363
    %v13400 = vmul.f32 %v12951, %v13363
    %v13401 = vmul.f32 %v12952, %v13364
    %v13402 = vmul.f32 %v12953, %v13364
    %v13403 = vmul.f32 %v12954, %v13364
    %v13404 = vmul.f32 %v12955, %v13364
    %v13405 = vmul.f32 %v12956, %v13364
    %v13406 = vmul.f32 %v12957, %v13364
    %v13407 = vmul.f32 %v12958, %v13364
    %v13408 = vmul.f32 %v12959, %v13364
    %v13409 = vmul.f32 %v12960, %v13365
    %v13410 = vmul.f32 %v12961, %v13365
    %v13411 = vmul.f32 %v12962, %v13365
    %v13412 = vmul.f32 %v12963, %v13365
    %v13413 = vmul.f32 %v12964, %v13365
    %v13414 = vmul.f32 %v12965, %v13365
    %v13415 = vmul.f32 %v12966, %v13365
    %v13416 = vmul.f32 %v12967, %v13365
    %v13417 = vmul.f32 %v12968, %v13366
    %v13418 = vmul.f32 %v12969, %v13366
    %v13419 = vmul.f32 %v12970, %v13366
    %v13420 = vmul.f32 %v12971, %v13366
    %v13421 = vmul.f32 %v12972, %v13366
    %v13422 = vmul.f32 %v12973, %v13366
    %v13423 = vmul.f32 %v12974, %v13366
    %v13424 = vmul.f32 %v12975, %v13366
    %v13425 = vmul.f32 %v12976, %v13367
    %v13426 = vmul.f32 %v12977, %v13367
    %v13427 = vmul.f32 %v12978, %v13367
    %v13428 = vmul.f32 %v12979, %v13367
    %v13429 = vmul.f32 %v12980, %v13367
    %v13430 = vmul.f32 %v12981, %v13367
    %v13431 = vmul.f32 %v12982, %v13367
    %v13432 = vmul.f32 %v12983, %v13367
    %v13433 = vmul.f32 %v12984, %v13368
    %v13434 = vmul.f32 %v12985, %v13368
    %v13435 = vmul.f32 %v12986, %v13368
    %v13436 = vmul.f32 %v12987, %v13368
    %v13437 = vmul.f32 %v12988, %v13368
    %v13438 = vmul.f32 %v12989, %v13368
    %v13439 = vmul.f32 %v12990, %v13368
    %v13440 = vmul.f32 %v12991, %v13368
    %v13441 = vmul.f32 %v12992, %v13369
    %v13442 = vmul.f32 %v12993, %v13369
    %v13443 = vmul.f32 %v12994, %v13369
    %v13444 = vmul.f32 %v12995, %v13369
    %v13445 = vmul.f32 %v12996, %v13369
    %v13446 = vmul.f32 %v12997, %v13369
    %v13447 = vmul.f32 %v12998, %v13369
    %v13448 = vmul.f32 %v12999, %v13369
    %v13449 = vmul.f32 %v13000, %v13370
    %v13450 = vmul.f32 %v13001, %v13370
    %v13451 = vmul.f32 %v13002, %v13370
    %v13452 = vmul.f32 %v13003, %v13370
    %v13453 = vmul.f32 %v13004, %v13370
    %v13454 = vmul.f32 %v13005, %v13370
    %v13455 = vmul.f32 %v13006, %v13370
    %v13456 = vmul.f32 %v13007, %v13370
    %v13457 = vmul.f32 %v13008, %v13371
    %v13458 = vmul.f32 %v13009, %v13371
    %v13459 = vmul.f32 %v13010, %v13371
    %v13460 = vmul.f32 %v13011, %v13371
    %v13461 = vmul.f32 %v13012, %v13371
    %v13462 = vmul.f32 %v13013, %v13371
    %v13463 = vmul.f32 %v13014, %v13371
    %v13464 = vmul.f32 %v13015, %v13371
    %v13465 = vmul.f32 %v13016, %v13372
    %v13466 = vmul.f32 %v13017, %v13372
    %v13467 = vmul.f32 %v13018, %v13372
    %v13468 = vmul.f32 %v13019, %v13372
    %v13469 = vmul.f32 %v13020, %v13372
    %v13470 = vmul.f32 %v13021, %v13372
    %v13471 = vmul.f32 %v13022, %v13372
    %v13472 = vmul.f32 %v13023, %v13372
    %v13473 = vmul.f32 %v13024, %v13373
    %v13474 = vmul.f32 %v13025, %v13373
    %v13475 = vmul.f32 %v13026, %v13373
    %v13476 = vmul.f32 %v13027, %v13373
    %v13477 = vmul.f32 %v13028, %v13373
    %v13478 = vmul.f32 %v13029, %v13373
    %v13479 = vmul.f32 %v13030, %v13373
    %v13480 = vmul.f32 %v13031, %v13373
    %v13481 = vmul.f32 %v13032, %v13374
    %v13482 = vmul.f32 %v13033, %v13374
    %v13483 = vmul.f32 %v13034, %v13374
    %v13484 = vmul.f32 %v13035, %v13374
    %v13485 = vmul.f32 %v13036, %v13374
    %v13486 = vmul.f32 %v13037, %v13374
    %v13487 = vmul.f32 %v13038, %v13374
    %v13488 = vmul.f32 %v13039, %v13374
    %v13489 = vmul.f32 %v13040, %v13375
    %v13490 = vmul.f32 %v13041, %v13375
    %v13491 = vmul.f32 %v13042, %v13375
    %v13492 = vmul.f32 %v13043, %v13375
    %v13493 = vmul.f32 %v13044, %v13375
    %v13494 = vmul.f32 %v13045, %v13375
    %v13495 = vmul.f32 %v13046, %v13375
    %v13496 = vmul.f32 %v13047, %v13375
    %v13497 = vmul.f32 %v13048, %v13376
    %v13498 = vmul.f32 %v13049, %v13376
    %v13499 = vmul.f32 %v13050, %v13376
    %v13500 = vmul.f32 %v13051, %v13376
    %v13501 = vmul.f32 %v13052, %v13376
    %v13502 = vmul.f32 %v13053, %v13376
    %v13503 = vmul.f32 %v13054, %v13376
    %v13504 = vmul.f32 %v13055, %v13376
    %v13505 = vpack.c.bf16 %v13081, %v13081
    %v13506 = vpack.c.bf16 %v13082, %v13082
    %v13507 = vpack.c.bf16 %v13083, %v13083
    %v13508 = vpack.c.bf16 %v13084, %v13084
    %v13509 = vpack.c.bf16 %v13085, %v13085
    %v13510 = vpack.c.bf16 %v13086, %v13086
    %v13511 = vpack.c.bf16 %v13087, %v13087
    %v13512 = vpack.c.bf16 %v13088, %v13088
    %v13513 = vpack.c.bf16 %v13385, %v13377
    %v13514 = vpack.c.bf16 %v13386, %v13378
    %v13515 = vpack.c.bf16 %v13387, %v13379
    %v13516 = vpack.c.bf16 %v13388, %v13380
    %v13517 = vpack.c.bf16 %v13389, %v13381
    %v13518 = vpack.c.bf16 %v13390, %v13382
    %v13519 = vpack.c.bf16 %v13391, %v13383
    %v13520 = vpack.c.bf16 %v13392, %v13384
    %v13521 = vpack.c.bf16 %v13401, %v13393
    %v13522 = vpack.c.bf16 %v13402, %v13394
    %v13523 = vpack.c.bf16 %v13403, %v13395
    %v13524 = vpack.c.bf16 %v13404, %v13396
    %v13525 = vpack.c.bf16 %v13405, %v13397
    %v13526 = vpack.c.bf16 %v13406, %v13398
    %v13527 = vpack.c.bf16 %v13407, %v13399
    %v13528 = vpack.c.bf16 %v13408, %v13400
    %v13529 = vpack.c.bf16 %v13417, %v13409
    %v13530 = vpack.c.bf16 %v13418, %v13410
    %v13531 = vpack.c.bf16 %v13419, %v13411
    %v13532 = vpack.c.bf16 %v13420, %v13412
    %v13533 = vpack.c.bf16 %v13421, %v13413
    %v13534 = vpack.c.bf16 %v13422, %v13414
    %v13535 = vpack.c.bf16 %v13423, %v13415
    %v13536 = vpack.c.bf16 %v13424, %v13416
    %v13537 = vpack.c.bf16 %v13433, %v13425
    %v13538 = vpack.c.bf16 %v13434, %v13426
    %v13539 = vpack.c.bf16 %v13435, %v13427
    %v13540 = vpack.c.bf16 %v13436, %v13428
    %v13541 = vpack.c.bf16 %v13437, %v13429
    %v13542 = vpack.c.bf16 %v13438, %v13430
    %v13543 = vpack.c.bf16 %v13439, %v13431
    %v13544 = vpack.c.bf16 %v13440, %v13432
    %v13545 = vpack.c.bf16 %v13449, %v13441
    %v13546 = vpack.c.bf16 %v13450, %v13442
    %v13547 = vpack.c.bf16 %v13451, %v13443
    %v13548 = vpack.c.bf16 %v13452, %v13444
    %v13549 = vpack.c.bf16 %v13453, %v13445
    %v13550 = vpack.c.bf16 %v13454, %v13446
    %v13551 = vpack.c.bf16 %v13455, %v13447
    %v13552 = vpack.c.bf16 %v13456, %v13448
    %v13553 = vpack.c.bf16 %v13465, %v13457
    %v13554 = vpack.c.bf16 %v13466, %v13458
    %v13555 = vpack.c.bf16 %v13467, %v13459
    %v13556 = vpack.c.bf16 %v13468, %v13460
    %v13557 = vpack.c.bf16 %v13469, %v13461
    %v13558 = vpack.c.bf16 %v13470, %v13462
    %v13559 = vpack.c.bf16 %v13471, %v13463
    %v13560 = vpack.c.bf16 %v13472, %v13464
    %v13561 = vpack.c.bf16 %v13481, %v13473
    %v13562 = vpack.c.bf16 %v13482, %v13474
    %v13563 = vpack.c.bf16 %v13483, %v13475
    %v13564 = vpack.c.bf16 %v13484, %v13476
    %v13565 = vpack.c.bf16 %v13485, %v13477
    %v13566 = vpack.c.bf16 %v13486, %v13478
    %v13567 = vpack.c.bf16 %v13487, %v13479
    %v13568 = vpack.c.bf16 %v13488, %v13480
    %v13569 = vpack.c.bf16 %v13497, %v13489
    %v13570 = vpack.c.bf16 %v13498, %v13490
    %v13571 = vpack.c.bf16 %v13499, %v13491
    %v13572 = vpack.c.bf16 %v13500, %v13492
    %v13573 = vpack.c.bf16 %v13501, %v13493
    %v13574 = vpack.c.bf16 %v13502, %v13494
    %v13575 = vpack.c.bf16 %v13503, %v13495
    %v13576 = vpack.c.bf16 %v13504, %v13496
    %13577 = vmatprep.subr.bf16.mxu0 %v13570
    %13578 = vmatpush1.bf16.xpose.msra.mxu0 %v13569
    %13579 = vmatprep.subr.bf16.mxu0 %v13562
    %13580 = vmatpush1.bf16.xpose.msra.mxu0 %v13561
    %13581 = vmatprep.subr.bf16.mxu0 %v13554
    %13582 = vmatpush1.bf16.xpose.msra.mxu0 %v13553
    %13583 = vmatprep.subr.bf16.mxu0 %v13546
    %13584 = vmatpush1.bf16.xpose.msra.mxu0 %v13545
    %13585 = vmatprep.subr.bf16.mxu0 %v13538
    %13586 = vmatpush1.bf16.xpose.msra.mxu0 %v13537
    %13587 = vmatprep.subr.bf16.mxu0 %v13530
    %13588 = vmatpush1.bf16.xpose.msra.mxu0 %v13529
    %13589 = vmatprep.subr.bf16.mxu0 %v13522
    %13590 = vmatpush1.bf16.xpose.msra.mxu0 %v13521
    %13591 = vmatprep.subr.bf16.mxu0 %v13514
    %13592 = vmatpush1.bf16.xpose.msra.mxu0 %v13513
    %13593 = vmatprep.subr.bf16.mxu0 0
    %13594 = vmatpush2.bf16.xpose.msra.mxu0 0
    %13595 = vmatprep.subr.bf16.mxu0 0
    %13596 = vmatpush2.bf16.xpose.msra.mxu0 0
    %13597 = vmatprep.subr.bf16.mxu0 0
    %13598 = vmatpush2.bf16.xpose.msra.mxu0 0
    %13599 = vmatprep.subr.bf16.mxu0 0
    %13600 = vmatpush2.bf16.xpose.msra.mxu0 0
    %13601 = vmatprep.subr.bf16.mxu0 0
    %13602 = vmatpush2.bf16.xpose.msra.mxu0 0
    %13603 = vmatprep.subr.bf16.mxu0 0
    %13604 = vmatpush2.bf16.xpose.msra.mxu0 0
    %13605 = vmatprep.subr.bf16.mxu0 0
    %13606 = vmatpush2.bf16.xpose.msra.mxu0 0
    %13607 = vmatprep.subr.bf16.mxu0 0
    %13608 = vmatpush2.bf16.xpose.msra.mxu0 0
    %13609 = vmatprep.mubr.bf16.mxu0 %v13506
    %13610 = vmatmul.mubr.bf16.gmra.mxu0 %v13505
    %v13611 = vpop.f32.mrf.mxu0
    %v13612 = vadd.f32 0.0, %v13611
    %v13613 = vpop.f32.mrf.mxu0
    %v13614 = vpop.f32.mrf.mxu0
    %v13615 = vpop.f32.mrf.mxu0
    %13616 = vdwg.mxu0
    %13617 = vmatprep.subr.bf16.mxu0 %v13572
    %13618 = vmatpush1.bf16.xpose.msra.mxu0 %v13571
    %13619 = vmatprep.subr.bf16.mxu0 %v13564
    %13620 = vmatpush1.bf16.xpose.msra.mxu0 %v13563
    %13621 = vmatprep.subr.bf16.mxu0 %v13556
    %13622 = vmatpush1.bf16.xpose.msra.mxu0 %v13555
    %13623 = vmatprep.subr.bf16.mxu0 %v13548
    %13624 = vmatpush1.bf16.xpose.msra.mxu0 %v13547
    %13625 = vmatprep.subr.bf16.mxu0 %v13540
    %13626 = vmatpush1.bf16.xpose.msra.mxu0 %v13539
    %13627 = vmatprep.subr.bf16.mxu0 %v13532
    %13628 = vmatpush1.bf16.xpose.msra.mxu0 %v13531
    %13629 = vmatprep.subr.bf16.mxu0 %v13524
    %13630 = vmatpush1.bf16.xpose.msra.mxu0 %v13523
    %13631 = vmatprep.subr.bf16.mxu0 %v13516
    %13632 = vmatpush1.bf16.xpose.msra.mxu0 %v13515
    %13633 = vmatprep.subr.bf16.mxu0 0
    %13634 = vmatpush2.bf16.xpose.msra.mxu0 0
    %13635 = vmatprep.subr.bf16.mxu0 0
    %13636 = vmatpush2.bf16.xpose.msra.mxu0 0
    %13637 = vmatprep.subr.bf16.mxu0 0
    %13638 = vmatpush2.bf16.xpose.msra.mxu0 0
    %13639 = vmatprep.subr.bf16.mxu0 0
    %13640 = vmatpush2.bf16.xpose.msra.mxu0 0
    %13641 = vmatprep.subr.bf16.mxu0 0
    %13642 = vmatpush2.bf16.xpose.msra.mxu0 0
    %13643 = vmatprep.subr.bf16.mxu0 0
    %13644 = vmatpush2.bf16.xpose.msra.mxu0 0
    %13645 = vmatprep.subr.bf16.mxu0 0
    %13646 = vmatpush2.bf16.xpose.msra.mxu0 0
    %13647 = vmatprep.subr.bf16.mxu0 0
    %13648 = vmatpush2.bf16.xpose.msra.mxu0 0
    %13649 = vmatprep.mubr.bf16.mxu0 %v13508
    %13650 = vmatmul.mubr.bf16.gmra.mxu0 %v13507
    %v13651 = vpop.f32.mrf.mxu0
    %v13652 = vadd.f32 %v13612, %v13651
    %v13653 = vpop.f32.mrf.mxu0
    %v13654 = vpop.f32.mrf.mxu0
    %v13655 = vpop.f32.mrf.mxu0
    %13656 = vdwg.mxu0
    %13657 = vmatprep.subr.bf16.mxu0 %v13574
    %13658 = vmatpush1.bf16.xpose.msra.mxu0 %v13573
    %13659 = vmatprep.subr.bf16.mxu0 %v13566
    %13660 = vmatpush1.bf16.xpose.msra.mxu0 %v13565
    %13661 = vmatprep.subr.bf16.mxu0 %v13558
    %13662 = vmatpush1.bf16.xpose.msra.mxu0 %v13557
    %13663 = vmatprep.subr.bf16.mxu0 %v13550
    %13664 = vmatpush1.bf16.xpose.msra.mxu0 %v13549
    %13665 = vmatprep.subr.bf16.mxu0 %v13542
    %13666 = vmatpush1.bf16.xpose.msra.mxu0 %v13541
    %13667 = vmatprep.subr.bf16.mxu0 %v13534
    %13668 = vmatpush1.bf16.xpose.msra.mxu0 %v13533
    %13669 = vmatprep.subr.bf16.mxu0 %v13526
    %13670 = vmatpush1.bf16.xpose.msra.mxu0 %v13525
    %13671 = vmatprep.subr.bf16.mxu0 %v13518
    %13672 = vmatpush1.bf16.xpose.msra.mxu0 %v13517
    %13673 = vmatprep.subr.bf16.mxu0 0
    %13674 = vmatpush2.bf16.xpose.msra.mxu0 0
    %13675 = vmatprep.subr.bf16.mxu0 0
    %13676 = vmatpush2.bf16.xpose.msra.mxu0 0
    %13677 = vmatprep.subr.bf16.mxu0 0
    %13678 = vmatpush2.bf16.xpose.msra.mxu0 0
    %13679 = vmatprep.subr.bf16.mxu0 0
    %13680 = vmatpush2.bf16.xpose.msra.mxu0 0
    %13681 = vmatprep.subr.bf16.mxu0 0
    %13682 = vmatpush2.bf16.xpose.msra.mxu0 0
    %13683 = vmatprep.subr.bf16.mxu0 0
    %13684 = vmatpush2.bf16.xpose.msra.mxu0 0
    %13685 = vmatprep.subr.bf16.mxu0 0
    %13686 = vmatpush2.bf16.xpose.msra.mxu0 0
    %13687 = vmatprep.subr.bf16.mxu0 0
    %13688 = vmatpush2.bf16.xpose.msra.mxu0 0
    %13689 = vmatprep.mubr.bf16.mxu0 %v13510
    %13690 = vmatmul.mubr.bf16.gmra.mxu0 %v13509
    %v13691 = vpop.f32.mrf.mxu0
    %v13692 = vadd.f32 %v13652, %v13691
    %v13693 = vpop.f32.mrf.mxu0
    %v13694 = vpop.f32.mrf.mxu0
    %v13695 = vpop.f32.mrf.mxu0
    %13696 = vdwg.mxu0
    %13697 = vmatprep.subr.bf16.mxu0 %v13576
    %13698 = vmatpush1.bf16.xpose.msra.mxu0 %v13575
    %13699 = vmatprep.subr.bf16.mxu0 %v13568
    %13700 = vmatpush1.bf16.xpose.msra.mxu0 %v13567
    %13701 = vmatprep.subr.bf16.mxu0 %v13560
    %13702 = vmatpush1.bf16.xpose.msra.mxu0 %v13559
    %13703 = vmatprep.subr.bf16.mxu0 %v13552
    %13704 = vmatpush1.bf16.xpose.msra.mxu0 %v13551
    %13705 = vmatprep.subr.bf16.mxu0 %v13544
    %13706 = vmatpush1.bf16.xpose.msra.mxu0 %v13543
    %13707 = vmatprep.subr.bf16.mxu0 %v13536
    %13708 = vmatpush1.bf16.xpose.msra.mxu0 %v13535
    %13709 = vmatprep.subr.bf16.mxu0 %v13528
    %13710 = vmatpush1.bf16.xpose.msra.mxu0 %v13527
    %13711 = vmatprep.subr.bf16.mxu0 %v13520
    %13712 = vmatpush1.bf16.xpose.msra.mxu0 %v13519
    %13713 = vmatprep.subr.bf16.mxu0 0
    %13714 = vmatpush2.bf16.xpose.msra.mxu0 0
    %13715 = vmatprep.subr.bf16.mxu0 0
    %13716 = vmatpush2.bf16.xpose.msra.mxu0 0
    %13717 = vmatprep.subr.bf16.mxu0 0
    %13718 = vmatpush2.bf16.xpose.msra.mxu0 0
    %13719 = vmatprep.subr.bf16.mxu0 0
    %13720 = vmatpush2.bf16.xpose.msra.mxu0 0
    %13721 = vmatprep.subr.bf16.mxu0 0
    %13722 = vmatpush2.bf16.xpose.msra.mxu0 0
    %13723 = vmatprep.subr.bf16.mxu0 0
    %13724 = vmatpush2.bf16.xpose.msra.mxu0 0
    %13725 = vmatprep.subr.bf16.mxu0 0
    %13726 = vmatpush2.bf16.xpose.msra.mxu0 0
    %13727 = vmatprep.subr.bf16.mxu0 0
    %13728 = vmatpush2.bf16.xpose.msra.mxu0 0
    %13729 = vmatprep.mubr.bf16.mxu0 %v13512
    %13730 = vmatmul.mubr.bf16.gmra.mxu0 %v13511
    %v13731 = vpop.f32.mrf.mxu0
    %v13732 = vadd.f32 %v13692, %v13731
    %v13733 = vpop.f32.mrf.mxu0
    %v13734 = vpop.f32.mrf.mxu0
    %v13735 = vpop.f32.mrf.mxu0
    %13736 = vdwg.mxu0
    %13737 = vst [vmem:[#allocation17] sm:$0xff] %v13732
    // Predicated region
    $region70: #{tpu_custom_call.1} parent=1 // pred_check
      _
    $region71: #{tpu_custom_call.1} parent=1 // pred_check_branch
      %13739 = sbr.rel (0) target = $region73
    $region72: #{tpu_custom_call.1} parent=1 // pred_region
      %s13741 = ssub.s32 128, 128
      %13742 = vsyncadd [#allocation5], %s13741
      %s13744 = sshll.u32 [#allocation17], 4
      %s13745 = int_to_ptr.vmem [resolvable:$true] %s13744
      %13747 = dma.vmem_to_hbm [thread:$0]  %s13745, 128, %s9, [#allocation5]
    $region73: #{tpu_custom_call.1} parent=1 // pred_fallthru
      _
    // Predicated region
    $region74: #{tpu_custom_call.1} parent=1 // pred_check
      _
    $region75: #{tpu_custom_call.1} parent=1 // pred_check_branch
      %13749 = sbr.rel (0) target = $region77
    $region76: #{tpu_custom_call.1} parent=1 // pred_region
      %13750 = dma.done [#allocation5], 128
    $region77: #{tpu_custom_call.1} parent=1 // pred_fallthru
      _
    %13751 = vsyncpa [#allocation4], 1
    %13752 = vsyncpa [#allocation7], 1
    %13753 = vsyncpa [#allocation10], 1
    %13754 = vsyncpa [#allocation13], 1
    %13755 = vsyncpa [#allocation16], 1
    %13756 = vsyncpa [#allocation5], 1

</llo_original>
